<compile_context>
chip_gen: v6e
topology: v6e:2x2x1
jax: 0.10.0
libtpu: 0.0.40
codegen_flags: <defaults>
</compile_context>

<pallas_src>
import functools

import jax
import jax.numpy as jnp
from jax.experimental import pallas as pl
from jax.experimental.pallas import tpu as pltpu


# --------------------------- VMEM budgeting helpers ---------------------------


def _rup(x, m):
    return -(-int(x) // int(m)) * int(m)


def _vmem_bytes(shape, itemsize):
    """VMEM bytes of one tile incl. (sublane, lane) padding of the last 2 dims."""
    shape = tuple(int(d) for d in shape)
    if len(shape) < 2:
        shape = (1,) * (2 - len(shape)) + shape
    sub_tile = {4: 8, 2: 16, 1: 32}.get(itemsize, 8)
    outer = 1
    for d in shape[:-2]:
        outer *= d
    return outer * _rup(shape[-2], sub_tile) * _rup(shape[-1], 128) * itemsize


@functools.lru_cache(maxsize=None)
def _vmem_capacity_bytes():
    """Generation-aware VMEM capacity (v5e/v6e: 128 MiB, v7x: 64 MiB per TC)."""
    try:
        return int(pltpu.get_tpu_info().vmem_capacity_bytes)
    except Exception:  # conservative, v7x-safe fallback
        return 64 * 1024 * 1024


def _conv_footprint_bytes(th, h, w, c_ins, c_out):
    """Worst-case per-grid-step VMEM footprint of conv3x3_kernel."""
    hp, wp = h + 2, w + 2
    total = 0
    for c in c_ins:
        total += 2 * _vmem_bytes((hp, wp, c), 2)       # resident bf16 input (x2 buffers)
        total += _vmem_bytes((th + 2, wp, c), 4)       # f32 window copy
        total += _vmem_bytes((th * w, 9 * c), 4)       # f32 im2col patches
        total += _vmem_bytes((th * w, 9 * c), 2)       # bf16 patches fed to MXU
        total += _vmem_bytes((9 * c, c_out), 2)        # weights
    total += _vmem_bytes((th * w, c_out), 4)           # f32 accumulator
    total += 2 * _vmem_bytes((th, w, c_out), 4)        # output tile (x2 buffers)
    return total


def _pick_tile_h(h, w, c_ins, c_out, budget_bytes):
    """Largest row-tile height dividing H whose footprint fits the budget
    (bigger tiles amortize the 2-row halo and per-step overhead; prefer H)."""
    divisors = [d for d in range(1, h + 1) if h % d == 0]
    for th in sorted(divisors, reverse=True):
        if _conv_footprint_bytes(th, h, w, c_ins, c_out) <= budget_bytes:
            return th
    # TODO(synk): for images too large for a resident input block, switch to
    # windowed (overlapping) input blocks or manual DMA; correctness is kept.
    return divisors[0]


# ----------------------------- Pallas conv kernels ----------------------------


def conv3x3_kernel(*refs, n_inputs, relu):
    """Fused 3x3 same-conv (+bias, optional ReLU) over one (1, th, W) row tile.

    refs = x_refs[0:n]   : (1, H+2, W+2, Cin_k) bf16 full padded images
                           (resident across the row-tile grid axis)
           w_refs[n:2n]  : (9*Cin_k, Cout)      bf16 im2col weights
           b_ref         : (1, Cout)            f32 bias
           o_ref         : (1, th, W, Cout)     output row tile
    A conv over the channel-concatenation of the inputs is a sum of one im2col
    matmul per input, so the decoder skip-concat never materializes in HBM.
    """
    x_refs = refs[:n_inputs]
    w_refs = refs[n_inputs:2 * n_inputs]
    b_ref = refs[2 * n_inputs]
    o_ref = refs[2 * n_inputs + 1]

    _, th, w_out, c_out = o_ref.shape
    t = pl.program_id(1)
    start = t * th
    if th % 8 == 0:
        start = pl.multiple_of(start, 8)

    acc = None
    for x_ref, w_ref in zip(x_refs, w_refs):
        c_in = x_ref.shape[-1]
        # Halo'd row window sliced from the VMEM-resident padded image.
        x = x_ref[0, pl.ds(start, th + 2)].astype(jnp.float32)  # (th+2, W+2, C)
        # im2col: 9 shifted windows -> one (th*W, 9*Cin) x (9*Cin, Cout) matmul.
        # TODO(synk): a pltpu.roll-based patch builder would cut the lane-axis
        # concat copies further; kept as the proven concat+reshape recipe.
        cols = [x[ky:ky + th, kx:kx + w_out, :]
                for ky in range(3) for kx in range(3)]
        patches = jnp.concatenate(cols, axis=-1).reshape(th * w_out, 9 * c_in)
        part = jnp.dot(patches.astype(jnp.bfloat16), w_ref[...],
                       preferred_element_type=jnp.float32)
        acc = part if acc is None else acc + part

    acc = acc + b_ref[...]                               # f32 VPU epilogue
    if relu:
        acc = jnp.maximum(acc, 0.0)
    o_ref[...] = acc.reshape(1, th, w_out, c_out).astype(o_ref.dtype)


def head_kernel(x_ref, w_ref, b_ref, o_ref):
    """3x3 conv to a single output channel, emitted lane-dense as (1, H, W).

    Computed as 9 shifted VPU multiplies + one XLU lane reduction over Cin
    instead of a fully lane-masked (..., W, 1) MXU store.
    """
    _, h, w = o_ref.shape
    x = x_ref[0].astype(jnp.float32)                     # (H+2, W+2, Cin)
    acc3 = None
    k = 0
    for ky in range(3):
        for kx in range(3):
            contrib = x[ky:ky + h, kx:kx + w, :] * w_ref[k:k + 1, :]
            acc3 = contrib if acc3 is None else acc3 + contrib
            k += 1
    acc = jnp.sum(acc3, axis=-1) + b_ref[...]            # (H, W) f32
    o_ref[...] = acc.reshape(1, h, w)


# ------------------------------ conv wrappers ---------------------------------


def conv3x3(padded_inputs, weights, bias, *, relu, out_dtype=jnp.bfloat16):
    """3x3 conv, stride 1, padding 1 (inputs arrive pre-padded), fused ReLU.

    `padded_inputs`/`weights` are parallel lists: the conv is taken over the
    channel concatenation of the inputs with weights pre-split along Cin.
    """
    n, hp, wp, _ = padded_inputs[0].shape
    h, w = hp - 2, wp - 2
    c_ins = [x.shape[-1] for x in padded_inputs]
    c_out = weights[0].shape[-1]

    cap = _vmem_capacity_bytes()
    tile_h = _pick_tile_h(h, w, c_ins, c_out, budget_bytes=(cap * 2) // 5)
    n_tiles = h // tile_h

    w_flat = [wt.reshape(9 * c, c_out).astype(jnp.bfloat16)
              for wt, c in zip(weights, c_ins)]
    b_row = bias.reshape(1, c_out).astype(jnp.float32)

    in_specs = (
        # Full padded image, block index constant along the row-tile axis ->
        # DMA'd once per batch element, resident in VMEM across the tiles.
        [pl.BlockSpec((1, hp, wp, c), lambda b, t: (b, 0, 0, 0)) for c in c_ins]
        + [pl.BlockSpec((9 * c, c_out), lambda b, t: (0, 0)) for c in c_ins]
        + [pl.BlockSpec((1, c_out), lambda b, t: (0, 0))]
    )
    out_specs = pl.BlockSpec((1, tile_h, w, c_out), lambda b, t: (b, t, 0, 0))

    return pl.pallas_call(
        functools.partial(conv3x3_kernel, n_inputs=len(padded_inputs), relu=relu),
        out_shape=jax.ShapeDtypeStruct((n, h, w, c_out), out_dtype),
        grid=(n, n_tiles),
        in_specs=in_specs,
        out_specs=out_specs,
        compiler_params=pltpu.CompilerParams(
            dimension_semantics=("parallel", "parallel"),
            vmem_limit_bytes=(cap * 3) // 4,
        ),
    )(*padded_inputs, *w_flat, b_row)


def conv3x3_head(xp, weight, bias):
    """Segmentation head: 3x3 conv to 1 class, lane-dense (N, H, W) output."""
    n, hp, wp, c_in = xp.shape
    h, w = hp - 2, wp - 2
    w9 = weight.reshape(9, c_in).astype(jnp.float32)
    b11 = bias.reshape(1, 1).astype(jnp.float32)
    cap = _vmem_capacity_bytes()

    return pl.pallas_call(
        head_kernel,
        out_shape=jax.ShapeDtypeStruct((n, h, w), jnp.float32),
        grid=(n,),
        in_specs=[pl.BlockSpec((1, hp, wp, c_in), lambda b: (b, 0, 0, 0)),
                  pl.BlockSpec((9, c_in), lambda b: (0, 0)),
                  pl.BlockSpec((1, 1), lambda b: (0, 0))],
        out_specs=pl.BlockSpec((1, h, w), lambda b: (b, 0, 0)),
        compiler_params=pltpu.CompilerParams(
            dimension_semantics=("parallel",),
            vmem_limit_bytes=(cap * 3) // 4,
        ),
    )(xp, w9, b11)


# ------------------------------ XLA glue ops -----------------------------------


def maxpool2x2(x):
    # TODO(synk): in-kernel fusion needs stride-2 sublane downsampling that
    # Mosaic does not reliably lower; kept as a (now bf16) XLA op.
    n, h, w, c = x.shape
    return jnp.max(x.reshape(n, h // 2, 2, w // 2, 2, c), axis=(2, 4))


def upsample2x(x):
    # TODO(synk): nearest-2x could be folded into the decoder conv's indexing;
    # kept as an XLA op at coarse resolution (bf16, fused with the halo pad).
    return jnp.repeat(jnp.repeat(x, 2, axis=1), 2, axis=2)


def _pad_halo(x):
    """1-pixel zero halo on H/W, stored bf16 (halves HBM traffic); XLA fuses
    the cast / producer elementwise into this single pad copy."""
    return jnp.pad(x.astype(jnp.bfloat16), ((0, 0), (1, 1), (1, 1), (0, 0)))


# ------------------------------ model setup ------------------------------------

IN_CHANNELS = 3
OUT_CLASSES = 1
C1, C2, C3 = 8, 16, 32  # small encoder/decoder widths for this synthetic model

# ImageNet preprocessing params (smp.encoders.get_preprocessing_params('resnet101'))
IMAGENET_MEAN = jnp.array([0.485, 0.456, 0.406], jnp.float32).reshape(1, 1, 1, 3)
IMAGENET_STD = jnp.array([0.229, 0.224, 0.225], jnp.float32).reshape(1, 1, 1, 3)


def init_params(key):
    def conv_init(k, cin, cout):
        w = jax.random.normal(k, (3, 3, cin, cout), jnp.float32)
        w = w * jnp.sqrt(2.0 / (9 * cin))   # He init, deterministic
        return w, jnp.zeros((cout,), jnp.float32)

    keys = jax.random.split(key, 6)
    enc1_w, enc1_b = conv_init(keys[0], IN_CHANNELS, C1)
    enc2_w, enc2_b = conv_init(keys[1], C1, C2)
    enc3_w, enc3_b = conv_init(keys[2], C2, C3)
    dec2_w, dec2_b = conv_init(keys[3], C3 + C2, C2)
    dec1_w, dec1_b = conv_init(keys[4], C2 + C1, C1)
    head_w, head_b = conv_init(keys[5], C1, OUT_CLASSES)

    inv_std = (1.0 / IMAGENET_STD).reshape(3)
    return {
        # normalize fold: "(x - mean)/std then conv" == "subtract mean (before
        # zero padding, so the fold is exact at the borders) and scale the
        # first conv's weights by 1/std".
        "mean": IMAGENET_MEAN,
        "enc1_w": enc1_w * inv_std[None, None, :, None], "enc1_b": enc1_b,
        "enc2_w": enc2_w, "enc2_b": enc2_b,
        "enc3_w": enc3_w, "enc3_b": enc3_b,
        # decoder weights pre-split along Cin so the skip-concat never hits HBM
        "dec2_w_up": dec2_w[:, :, :C3, :], "dec2_w_skip": dec2_w[:, :, C3:, :],
        "dec2_b": dec2_b,
        "dec1_w_up": dec1_w[:, :, :C2, :], "dec1_w_skip": dec1_w[:, :, C2:, :],
        "dec1_b": dec1_b,
        "head_w": head_w, "head_b": head_b,
    }


def deep_unet_forward(image_nchw, params):
    """image_nchw: (N, 3, H, W) float32 -> mask logits (N, 1, H, W) float32."""
    x = jnp.transpose(image_nchw, (0, 2, 3, 1)).astype(jnp.float32)  # NHWC
    _, h, w, _ = x.shape
    assert h % 4 == 0 and w % 4 == 0, "H and W must be divisible by 4"

    x = x - params["mean"]  # mean-subtract BEFORE padding (keeps the fold exact)

    # Encoder (activations stored bf16 in HBM; f32 accumulate in-kernel)
    e1 = conv3x3([_pad_halo(x)], [params["enc1_w"]], params["enc1_b"], relu=True)     # H
    e2 = conv3x3([_pad_halo(maxpool2x2(e1))], [params["enc2_w"]], params["enc2_b"],
                 relu=True)                                                            # H/2
    e3 = conv3x3([_pad_halo(maxpool2x2(e2))], [params["enc3_w"]], params["enc3_b"],
                 relu=True)                                                            # H/4

    # Decoder: nearest 2x upsample + fused skip concat + conv, as in SMP Unet
    d2 = conv3x3([_pad_halo(upsample2x(e3)), _pad_halo(e2)],
                 [params["dec2_w_up"], params["dec2_w_skip"]],
                 params["dec2_b"], relu=True)                                          # H/2
    d1 = conv3x3([_pad_halo(upsample2x(d2)), _pad_halo(e1)],
                 [params["dec1_w_up"], params["dec1_w_skip"]],
                 params["dec1_b"], relu=True)                                          # H

    # Segmentation head: 3x3 conv to 1 logit, lane-dense (N, H, W) output
    logits = conv3x3_head(_pad_halo(d1), params["head_w"], params["head_b"])

    return logits[:, None, :, :]  # (N, 1, H, W)


# --------------------------- pure-JAX reference --------------------------------


def _reference_forward(image_nchw, params):
    """XLA reference with the same bf16 storage/weight rounding as the kernel
    pipeline, so the comparison isolates the kernel math (only MXU summation
    order differs)."""
    q = lambda a: a.astype(jnp.bfloat16).astype(jnp.float32)
    x = jnp.transpose(image_nchw, (0, 2, 3, 1)).astype(jnp.float32) - params["mean"]

    def conv(y, wt, b, relu, quantize_w=True):
        wt = q(wt) if quantize_w else wt
        out = jax.lax.conv_general_dilated(
            y, wt, window_strides=(1, 1), padding="SAME",
            dimension_numbers=("NHWC", "HWIO", "NHWC")) + b
        return jnp.maximum(out, 0.0) if relu else out

    e1 = q(conv(q(x), params["enc1_w"], params["enc1_b"], True))
    e2 = q(conv(maxpool2x2(e1), params["enc2_w"], params["enc2_b"], True))
    e3 = q(conv(maxpool2x2(e2), params["enc3_w"], params["enc3_b"], True))
    d2 = q(conv(jnp.concatenate([upsample2x(e3), e2], axis=-1),
                jnp.concatenate([params["dec2_w_up"], params["dec2_w_skip"]], axis=2),
                params["dec2_b"], True))
    d1 = q(conv(jnp.concatenate([upsample2x(d2), e1], axis=-1),
                jnp.concatenate([params["dec1_w_up"], params["dec1_w_skip"]], axis=2),
                params["dec1_b"], True))
    logits = conv(d1, params["head_w"], params["head_b"], False, quantize_w=False)
    return jnp.transpose(logits, (0, 3, 1, 2))


if __name__ == "__main__":
    key = jax.random.PRNGKey(0)
    k_param, k_img = jax.random.split(key)

    params = init_params(k_param)
    image = jax.random.uniform(k_img, (2, 3, 16, 16), jnp.float32)  # NCHW like PyTorch

    fwd = jax.jit(deep_unet_forward)
    mask = fwd(image, params)
    jax.block_until_ready(mask)

    assert mask.shape == (2, 1, 16, 16), mask.shape
    assert mask.dtype == jnp.float32

    ref = jax.jit(_reference_forward)(image, params)
    max_err = float(jnp.max(jnp.abs(mask - ref)))
    assert jnp.allclose(mask, ref, atol=2e-2, rtol=2e-2), max_err

    print("KERNEL_OK")
</pallas_src>

<mosaic_0001>
module attributes {stable_mosaic.version = 11 : i64} {
  func.func @conv3x3_kernel(%arg0: i32, %arg1: i32, %arg2: memref<1x18x18x3xbf16, #tpu.memory_space<vmem>>, %arg3: memref<27x8xbf16, #tpu.memory_space<vmem>>, %arg4: memref<1x8xf32, #tpu.memory_space<vmem>>, %arg5: memref<1x16x16x8xbf16, #tpu.memory_space<vmem>>) attributes {dimension_semantics = [#tpu.dimension_semantics<parallel>, #tpu.dimension_semantics<parallel>], iteration_bounds = array<i64: 2, 1>, scalar_prefetch = 0 : i64, scratch_operands = 0 : i64, tpu.core_type = #tpu.core_type<tc>, window_params = [{transform_indices = @transform_0, window_bounds = array<i64: 1, 18, 18, 3>}, {pipeline_mode = #tpu.pipeline_mode<synchronous>, transform_indices = @transform_1, window_bounds = array<i64: 27, 8>}, {pipeline_mode = #tpu.pipeline_mode<synchronous>, transform_indices = @transform_2, window_bounds = array<i64: 1, 8>}, {transform_indices = @transform_3, window_bounds = array<i64: 1, 16, 16, 8>}]} {
    %c16_i32 = arith.constant 16 : i32
    %0 = arith.muli %arg1, %c16_i32 : i32
    %1 = tpu.assume_multiple %0, 8 : i32
    %c0 = arith.constant 0 : index
    %2 = arith.index_cast %1 : i32 to index
    %c0_0 = arith.constant 0 : index
    %c0_1 = arith.constant 0 : index
    %3 = vector.load %arg2[%c0, %2, %c0_0, %c0_1] : memref<1x18x18x3xbf16, #tpu.memory_space<vmem>>, vector<1x18x18x3xbf16>
    %4 = vector.shape_cast %3 : vector<1x18x18x3xbf16> to vector<18x18x3xbf16>
    %5 = arith.extf %4 : vector<18x18x3xbf16> to vector<18x18x3xf32>
    %6 = vector.extract_strided_slice %5 {offsets = [0, 0, 0], sizes = [16, 16, 3], strides = [1, 1, 1]} : vector<18x18x3xf32> to vector<16x16x3xf32>
    %7 = vector.extract_strided_slice %5 {offsets = [0, 1, 0], sizes = [16, 16, 3], strides = [1, 1, 1]} : vector<18x18x3xf32> to vector<16x16x3xf32>
    %8 = vector.extract_strided_slice %5 {offsets = [0, 2, 0], sizes = [16, 16, 3], strides = [1, 1, 1]} : vector<18x18x3xf32> to vector<16x16x3xf32>
    %9 = vector.extract_strided_slice %5 {offsets = [1, 0, 0], sizes = [16, 16, 3], strides = [1, 1, 1]} : vector<18x18x3xf32> to vector<16x16x3xf32>
    %10 = vector.extract_strided_slice %5 {offsets = [1, 1, 0], sizes = [16, 16, 3], strides = [1, 1, 1]} : vector<18x18x3xf32> to vector<16x16x3xf32>
    %11 = vector.extract_strided_slice %5 {offsets = [1, 2, 0], sizes = [16, 16, 3], strides = [1, 1, 1]} : vector<18x18x3xf32> to vector<16x16x3xf32>
    %12 = vector.extract_strided_slice %5 {offsets = [2, 0, 0], sizes = [16, 16, 3], strides = [1, 1, 1]} : vector<18x18x3xf32> to vector<16x16x3xf32>
    %13 = vector.extract_strided_slice %5 {offsets = [2, 1, 0], sizes = [16, 16, 3], strides = [1, 1, 1]} : vector<18x18x3xf32> to vector<16x16x3xf32>
    %14 = vector.extract_strided_slice %5 {offsets = [2, 2, 0], sizes = [16, 16, 3], strides = [1, 1, 1]} : vector<18x18x3xf32> to vector<16x16x3xf32>
    %15 = tpu.concatenate %6, %7, %8, %9, %10, %11, %12, %13, %14 in 2 : vector<16x16x3xf32>, vector<16x16x3xf32>, vector<16x16x3xf32>, vector<16x16x3xf32>, vector<16x16x3xf32>, vector<16x16x3xf32>, vector<16x16x3xf32>, vector<16x16x3xf32>, vector<16x16x3xf32> -> vector<16x16x27xf32>
    %16 = vector.shape_cast %15 : vector<16x16x27xf32> to vector<256x27xf32>
    %17 = arith.truncf %16 : vector<256x27xf32> to vector<256x27xbf16>
    %c0_2 = arith.constant 0 : index
    %c0_3 = arith.constant 0 : index
    %18 = vector.load %arg3[%c0_2, %c0_3] : memref<27x8xbf16, #tpu.memory_space<vmem>>, vector<27x8xbf16>
    %cst = arith.constant dense<0.000000e+00> : vector<256x8xf32>
    %19 = tpu.matmul %17, %18, %cst {dimension_numbers = #tpu.dot_dimension_numbers<[1], [0], [0], [1], [0, 0, 1, 1], [], []>} : vector<256x27xbf16>, vector<27x8xbf16>, vector<256x8xf32> -> vector<256x8xf32>
    %c0_4 = arith.constant 0 : index
    %c0_5 = arith.constant 0 : index
    %20 = vector.load %arg4[%c0_4, %c0_5] : memref<1x8xf32, #tpu.memory_space<vmem>>, vector<1x8xf32>
    %21 = vector.broadcast %20 : vector<1x8xf32> to vector<256x8xf32>
    %22 = arith.addf %19, %21 : vector<256x8xf32>
    %cst_6 = arith.constant 0.000000e+00 : f32
    %23 = vector.broadcast %cst_6 : f32 to vector<256x8xf32>
    %24 = arith.maximumf %22, %23 : vector<256x8xf32>
    %25 = vector.shape_cast %24 : vector<256x8xf32> to vector<1x16x16x8xf32>
    %26 = arith.truncf %25 : vector<1x16x16x8xf32> to vector<1x16x16x8xbf16>
    %c0_7 = arith.constant 0 : index
    %c0_8 = arith.constant 0 : index
    %c0_9 = arith.constant 0 : index
    %c0_10 = arith.constant 0 : index
    %27 = vector.load %arg5[%c0_7, %c0_8, %c0_9, %c0_10] : memref<1x16x16x8xbf16, #tpu.memory_space<vmem>>, vector<1x16x16x8xbf16>
    tpu.vector_store %arg5[%c0_7, %c0_8, %c0_9, %c0_10], %26 {strides = array<i32>} : memref<1x16x16x8xbf16, #tpu.memory_space<vmem>>, vector<1x16x16x8xbf16>,
    return
  }
  func.func @transform_0(%arg0: i32, %arg1: i32) -> (i32, i32, i32, i32) {
    %c0_i32 = arith.constant 0 : i32
    %c0_i32_0 = arith.constant 0 : i32
    %c0_i32_1 = arith.constant 0 : i32
    %c0_i32_2 = arith.constant 0 : i32
    return %arg0, %c0_i32, %c0_i32_0, %c0_i32_1 : i32, i32, i32, i32
  }
  func.func @transform_1(%arg0: i32, %arg1: i32) -> (i32, i32) {
    %c0_i32 = arith.constant 0 : i32
    %c0_i32_0 = arith.constant 0 : i32
    %c0_i32_1 = arith.constant 0 : i32
    return %c0_i32, %c0_i32_0 : i32, i32
  }
  func.func @transform_2(%arg0: i32, %arg1: i32) -> (i32, i32) {
    %c0_i32 = arith.constant 0 : i32
    %c0_i32_0 = arith.constant 0 : i32
    %c0_i32_1 = arith.constant 0 : i32
    return %c0_i32, %c0_i32_0 : i32, i32
  }
  func.func @transform_3(%arg0: i32, %arg1: i32) -> (i32, i32, i32, i32) {
    %c0_i32 = arith.constant 0 : i32
    %c0_i32_0 = arith.constant 0 : i32
    %c0_i32_1 = arith.constant 0 : i32
    return %arg0, %arg1, %c0_i32, %c0_i32_0 : i32, i32, i32, i32
  }
}

module attributes {stable_mosaic.version = 11 : i64} {
  func.func @conv3x3_kernel(%arg0: i32, %arg1: i32, %arg2: memref<1x10x10x8xbf16, #tpu.memory_space<vmem>>, %arg3: memref<72x16xbf16, #tpu.memory_space<vmem>>, %arg4: memref<1x16xf32, #tpu.memory_space<vmem>>, %arg5: memref<1x8x8x16xbf16, #tpu.memory_space<vmem>>) attributes {dimension_semantics = [#tpu.dimension_semantics<parallel>, #tpu.dimension_semantics<parallel>], iteration_bounds = array<i64: 2, 1>, scalar_prefetch = 0 : i64, scratch_operands = 0 : i64, tpu.core_type = #tpu.core_type<tc>, window_params = [{transform_indices = @transform_0, window_bounds = array<i64: 1, 10, 10, 8>}, {pipeline_mode = #tpu.pipeline_mode<synchronous>, transform_indices = @transform_1, window_bounds = array<i64: 72, 16>}, {pipeline_mode = #tpu.pipeline_mode<synchronous>, transform_indices = @transform_2, window_bounds = array<i64: 1, 16>}, {transform_indices = @transform_3, window_bounds = array<i64: 1, 8, 8, 16>}]} {
    %c8_i32 = arith.constant 8 : i32
    %0 = arith.muli %arg1, %c8_i32 : i32
    %1 = tpu.assume_multiple %0, 8 : i32
    %c0 = arith.constant 0 : index
    %2 = arith.index_cast %1 : i32 to index
    %c0_0 = arith.constant 0 : index
    %c0_1 = arith.constant 0 : index
    %3 = vector.load %arg2[%c0, %2, %c0_0, %c0_1] : memref<1x10x10x8xbf16, #tpu.memory_space<vmem>>, vector<1x10x10x8xbf16>
    %4 = vector.shape_cast %3 : vector<1x10x10x8xbf16> to vector<10x10x8xbf16>
    %5 = arith.extf %4 : vector<10x10x8xbf16> to vector<10x10x8xf32>
    %6 = vector.extract_strided_slice %5 {offsets = [0, 0, 0], sizes = [8, 8, 8], strides = [1, 1, 1]} : vector<10x10x8xf32> to vector<8x8x8xf32>
    %7 = vector.extract_strided_slice %5 {offsets = [0, 1, 0], sizes = [8, 8, 8], strides = [1, 1, 1]} : vector<10x10x8xf32> to vector<8x8x8xf32>
    %8 = vector.extract_strided_slice %5 {offsets = [0, 2, 0], sizes = [8, 8, 8], strides = [1, 1, 1]} : vector<10x10x8xf32> to vector<8x8x8xf32>
    %9 = vector.extract_strided_slice %5 {offsets = [1, 0, 0], sizes = [8, 8, 8], strides = [1, 1, 1]} : vector<10x10x8xf32> to vector<8x8x8xf32>
    %10 = vector.extract_strided_slice %5 {offsets = [1, 1, 0], sizes = [8, 8, 8], strides = [1, 1, 1]} : vector<10x10x8xf32> to vector<8x8x8xf32>
    %11 = vector.extract_strided_slice %5 {offsets = [1, 2, 0], sizes = [8, 8, 8], strides = [1, 1, 1]} : vector<10x10x8xf32> to vector<8x8x8xf32>
    %12 = vector.extract_strided_slice %5 {offsets = [2, 0, 0], sizes = [8, 8, 8], strides = [1, 1, 1]} : vector<10x10x8xf32> to vector<8x8x8xf32>
    %13 = vector.extract_strided_slice %5 {offsets = [2, 1, 0], sizes = [8, 8, 8], strides = [1, 1, 1]} : vector<10x10x8xf32> to vector<8x8x8xf32>
    %14 = vector.extract_strided_slice %5 {offsets = [2, 2, 0], sizes = [8, 8, 8], strides = [1, 1, 1]} : vector<10x10x8xf32> to vector<8x8x8xf32>
    %15 = tpu.concatenate %6, %7, %8, %9, %10, %11, %12, %13, %14 in 2 : vector<8x8x8xf32>, vector<8x8x8xf32>, vector<8x8x8xf32>, vector<8x8x8xf32>, vector<8x8x8xf32>, vector<8x8x8xf32>, vector<8x8x8xf32>, vector<8x8x8xf32>, vector<8x8x8xf32> -> vector<8x8x72xf32>
    %16 = vector.shape_cast %15 : vector<8x8x72xf32> to vector<64x72xf32>
    %17 = arith.truncf %16 : vector<64x72xf32> to vector<64x72xbf16>
    %c0_2 = arith.constant 0 : index
    %c0_3 = arith.constant 0 : index
    %18 = vector.load %arg3[%c0_2, %c0_3] : memref<72x16xbf16, #tpu.memory_space<vmem>>, vector<72x16xbf16>
    %cst = arith.constant dense<0.000000e+00> : vector<64x16xf32>
    %19 = tpu.matmul %17, %18, %cst {dimension_numbers = #tpu.dot_dimension_numbers<[1], [0], [0], [1], [0, 0, 1, 1], [], []>} : vector<64x72xbf16>, vector<72x16xbf16>, vector<64x16xf32> -> vector<64x16xf32>
    %c0_4 = arith.constant 0 : index
    %c0_5 = arith.constant 0 : index
    %20 = vector.load %arg4[%c0_4, %c0_5] : memref<1x16xf32, #tpu.memory_space<vmem>>, vector<1x16xf32>
    %21 = vector.broadcast %20 : vector<1x16xf32> to vector<64x16xf32>
    %22 = arith.addf %19, %21 : vector<64x16xf32>
    %cst_6 = arith.constant 0.000000e+00 : f32
    %23 = vector.broadcast %cst_6 : f32 to vector<64x16xf32>
    %24 = arith.maximumf %22, %23 : vector<64x16xf32>
    %25 = vector.shape_cast %24 : vector<64x16xf32> to vector<1x8x8x16xf32>
    %26 = arith.truncf %25 : vector<1x8x8x16xf32> to vector<1x8x8x16xbf16>
    %c0_7 = arith.constant 0 : index
    %c0_8 = arith.constant 0 : index
    %c0_9 = arith.constant 0 : index
    %c0_10 = arith.constant 0 : index
    %27 = vector.load %arg5[%c0_7, %c0_8, %c0_9, %c0_10] : memref<1x8x8x16xbf16, #tpu.memory_space<vmem>>, vector<1x8x8x16xbf16>
    tpu.vector_store %arg5[%c0_7, %c0_8, %c0_9, %c0_10], %26 {strides = array<i32>} : memref<1x8x8x16xbf16, #tpu.memory_space<vmem>>, vector<1x8x8x16xbf16>,
    return
  }
  func.func @transform_0(%arg0: i32, %arg1: i32) -> (i32, i32, i32, i32) {
    %c0_i32 = arith.constant 0 : i32
    %c0_i32_0 = arith.constant 0 : i32
    %c0_i32_1 = arith.constant 0 : i32
    %c0_i32_2 = arith.constant 0 : i32
    return %arg0, %c0_i32, %c0_i32_0, %c0_i32_1 : i32, i32, i32, i32
  }
  func.func @transform_1(%arg0: i32, %arg1: i32) -> (i32, i32) {
    %c0_i32 = arith.constant 0 : i32
    %c0_i32_0 = arith.constant 0 : i32
    %c0_i32_1 = arith.constant 0 : i32
    return %c0_i32, %c0_i32_0 : i32, i32
  }
  func.func @transform_2(%arg0: i32, %arg1: i32) -> (i32, i32) {
    %c0_i32 = arith.constant 0 : i32
    %c0_i32_0 = arith.constant 0 : i32
    %c0_i32_1 = arith.constant 0 : i32
    return %c0_i32, %c0_i32_0 : i32, i32
  }
  func.func @transform_3(%arg0: i32, %arg1: i32) -> (i32, i32, i32, i32) {
    %c0_i32 = arith.constant 0 : i32
    %c0_i32_0 = arith.constant 0 : i32
    %c0_i32_1 = arith.constant 0 : i32
    return %arg0, %arg1, %c0_i32, %c0_i32_0 : i32, i32, i32, i32
  }
}

module attributes {stable_mosaic.version = 11 : i64} {
  func.func @conv3x3_kernel(%arg0: i32, %arg1: i32, %arg2: memref<1x6x6x16xbf16, #tpu.memory_space<vmem>>, %arg3: memref<144x32xbf16, #tpu.memory_space<vmem>>, %arg4: memref<1x32xf32, #tpu.memory_space<vmem>>, %arg5: memref<1x4x4x32xbf16, #tpu.memory_space<vmem>>) attributes {dimension_semantics = [#tpu.dimension_semantics<parallel>, #tpu.dimension_semantics<parallel>], iteration_bounds = array<i64: 2, 1>, scalar_prefetch = 0 : i64, scratch_operands = 0 : i64, tpu.core_type = #tpu.core_type<tc>, window_params = [{transform_indices = @transform_0, window_bounds = array<i64: 1, 6, 6, 16>}, {pipeline_mode = #tpu.pipeline_mode<synchronous>, transform_indices = @transform_1, window_bounds = array<i64: 144, 32>}, {pipeline_mode = #tpu.pipeline_mode<synchronous>, transform_indices = @transform_2, window_bounds = array<i64: 1, 32>}, {transform_indices = @transform_3, window_bounds = array<i64: 1, 4, 4, 32>}]} {
    %c4_i32 = arith.constant 4 : i32
    %0 = arith.muli %arg1, %c4_i32 : i32
    %c0 = arith.constant 0 : index
    %1 = arith.index_cast %0 : i32 to index
    %c0_0 = arith.constant 0 : index
    %c0_1 = arith.constant 0 : index
    %2 = vector.load %arg2[%c0, %1, %c0_0, %c0_1] : memref<1x6x6x16xbf16, #tpu.memory_space<vmem>>, vector<1x6x6x16xbf16>
    %3 = vector.shape_cast %2 : vector<1x6x6x16xbf16> to vector<6x6x16xbf16>
    %4 = arith.extf %3 : vector<6x6x16xbf16> to vector<6x6x16xf32>
    %5 = vector.extract_strided_slice %4 {offsets = [0, 0, 0], sizes = [4, 4, 16], strides = [1, 1, 1]} : vector<6x6x16xf32> to vector<4x4x16xf32>
    %6 = vector.extract_strided_slice %4 {offsets = [0, 1, 0], sizes = [4, 4, 16], strides = [1, 1, 1]} : vector<6x6x16xf32> to vector<4x4x16xf32>
    %7 = vector.extract_strided_slice %4 {offsets = [0, 2, 0], sizes = [4, 4, 16], strides = [1, 1, 1]} : vector<6x6x16xf32> to vector<4x4x16xf32>
    %8 = vector.extract_strided_slice %4 {offsets = [1, 0, 0], sizes = [4, 4, 16], strides = [1, 1, 1]} : vector<6x6x16xf32> to vector<4x4x16xf32>
    %9 = vector.extract_strided_slice %4 {offsets = [1, 1, 0], sizes = [4, 4, 16], strides = [1, 1, 1]} : vector<6x6x16xf32> to vector<4x4x16xf32>
    %10 = vector.extract_strided_slice %4 {offsets = [1, 2, 0], sizes = [4, 4, 16], strides = [1, 1, 1]} : vector<6x6x16xf32> to vector<4x4x16xf32>
    %11 = vector.extract_strided_slice %4 {offsets = [2, 0, 0], sizes = [4, 4, 16], strides = [1, 1, 1]} : vector<6x6x16xf32> to vector<4x4x16xf32>
    %12 = vector.extract_strided_slice %4 {offsets = [2, 1, 0], sizes = [4, 4, 16], strides = [1, 1, 1]} : vector<6x6x16xf32> to vector<4x4x16xf32>
    %13 = vector.extract_strided_slice %4 {offsets = [2, 2, 0], sizes = [4, 4, 16], strides = [1, 1, 1]} : vector<6x6x16xf32> to vector<4x4x16xf32>
    %14 = tpu.concatenate %5, %6, %7, %8, %9, %10, %11, %12, %13 in 2 : vector<4x4x16xf32>, vector<4x4x16xf32>, vector<4x4x16xf32>, vector<4x4x16xf32>, vector<4x4x16xf32>, vector<4x4x16xf32>, vector<4x4x16xf32>, vector<4x4x16xf32>, vector<4x4x16xf32> -> vector<4x4x144xf32>
    %15 = vector.shape_cast %14 : vector<4x4x144xf32> to vector<16x144xf32>
    %16 = arith.truncf %15 : vector<16x144xf32> to vector<16x144xbf16>
    %c0_2 = arith.constant 0 : index
    %c0_3 = arith.constant 0 : index
    %17 = vector.load %arg3[%c0_2, %c0_3] : memref<144x32xbf16, #tpu.memory_space<vmem>>, vector<144x32xbf16>
    %cst = arith.constant dense<0.000000e+00> : vector<16x32xf32>
    %18 = tpu.matmul %16, %17, %cst {dimension_numbers = #tpu.dot_dimension_numbers<[1], [0], [0], [1], [0, 0, 1, 1], [], []>} : vector<16x144xbf16>, vector<144x32xbf16>, vector<16x32xf32> -> vector<16x32xf32>
    %c0_4 = arith.constant 0 : index
    %c0_5 = arith.constant 0 : index
    %19 = vector.load %arg4[%c0_4, %c0_5] : memref<1x32xf32, #tpu.memory_space<vmem>>, vector<1x32xf32>
    %20 = vector.broadcast %19 : vector<1x32xf32> to vector<16x32xf32>
    %21 = arith.addf %18, %20 : vector<16x32xf32>
    %cst_6 = arith.constant 0.000000e+00 : f32
    %22 = vector.broadcast %cst_6 : f32 to vector<16x32xf32>
    %23 = arith.maximumf %21, %22 : vector<16x32xf32>
    %24 = vector.shape_cast %23 : vector<16x32xf32> to vector<1x4x4x32xf32>
    %25 = arith.truncf %24 : vector<1x4x4x32xf32> to vector<1x4x4x32xbf16>
    %c0_7 = arith.constant 0 : index
    %c0_8 = arith.constant 0 : index
    %c0_9 = arith.constant 0 : index
    %c0_10 = arith.constant 0 : index
    %26 = vector.load %arg5[%c0_7, %c0_8, %c0_9, %c0_10] : memref<1x4x4x32xbf16, #tpu.memory_space<vmem>>, vector<1x4x4x32xbf16>
    tpu.vector_store %arg5[%c0_7, %c0_8, %c0_9, %c0_10], %25 {strides = array<i32>} : memref<1x4x4x32xbf16, #tpu.memory_space<vmem>>, vector<1x4x4x32xbf16>,
    return
  }
  func.func @transform_0(%arg0: i32, %arg1: i32) -> (i32, i32, i32, i32) {
    %c0_i32 = arith.constant 0 : i32
    %c0_i32_0 = arith.constant 0 : i32
    %c0_i32_1 = arith.constant 0 : i32
    %c0_i32_2 = arith.constant 0 : i32
    return %arg0, %c0_i32, %c0_i32_0, %c0_i32_1 : i32, i32, i32, i32
  }
  func.func @transform_1(%arg0: i32, %arg1: i32) -> (i32, i32) {
    %c0_i32 = arith.constant 0 : i32
    %c0_i32_0 = arith.constant 0 : i32
    %c0_i32_1 = arith.constant 0 : i32
    return %c0_i32, %c0_i32_0 : i32, i32
  }
  func.func @transform_2(%arg0: i32, %arg1: i32) -> (i32, i32) {
    %c0_i32 = arith.constant 0 : i32
    %c0_i32_0 = arith.constant 0 : i32
    %c0_i32_1 = arith.constant 0 : i32
    return %c0_i32, %c0_i32_0 : i32, i32
  }
  func.func @transform_3(%arg0: i32, %arg1: i32) -> (i32, i32, i32, i32) {
    %c0_i32 = arith.constant 0 : i32
    %c0_i32_0 = arith.constant 0 : i32
    %c0_i32_1 = arith.constant 0 : i32
    return %arg0, %arg1, %c0_i32, %c0_i32_0 : i32, i32, i32, i32
  }
}

module attributes {stable_mosaic.version = 11 : i64} {
  func.func @conv3x3_kernel(%arg0: i32, %arg1: i32, %arg2: memref<1x10x10x32xbf16, #tpu.memory_space<vmem>>, %arg3: memref<1x10x10x16xbf16, #tpu.memory_space<vmem>>, %arg4: memref<288x16xbf16, #tpu.memory_space<vmem>>, %arg5: memref<144x16xbf16, #tpu.memory_space<vmem>>, %arg6: memref<1x16xf32, #tpu.memory_space<vmem>>, %arg7: memref<1x8x8x16xbf16, #tpu.memory_space<vmem>>) attributes {dimension_semantics = [#tpu.dimension_semantics<parallel>, #tpu.dimension_semantics<parallel>], iteration_bounds = array<i64: 2, 1>, scalar_prefetch = 0 : i64, scratch_operands = 0 : i64, tpu.core_type = #tpu.core_type<tc>, window_params = [{transform_indices = @transform_0, window_bounds = array<i64: 1, 10, 10, 32>}, {transform_indices = @transform_1, window_bounds = array<i64: 1, 10, 10, 16>}, {pipeline_mode = #tpu.pipeline_mode<synchronous>, transform_indices = @transform_2, window_bounds = array<i64: 288, 16>}, {pipeline_mode = #tpu.pipeline_mode<synchronous>, transform_indices = @transform_3, window_bounds = array<i64: 144, 16>}, {pipeline_mode = #tpu.pipeline_mode<synchronous>, transform_indices = @transform_4, window_bounds = array<i64: 1, 16>}, {transform_indices = @transform_5, window_bounds = array<i64: 1, 8, 8, 16>}]} {
    %c8_i32 = arith.constant 8 : i32
    %0 = arith.muli %arg1, %c8_i32 : i32
    %1 = tpu.assume_multiple %0, 8 : i32
    %c0 = arith.constant 0 : index
    %2 = arith.index_cast %1 : i32 to index
    %c0_0 = arith.constant 0 : index
    %c0_1 = arith.constant 0 : index
    %3 = vector.load %arg2[%c0, %2, %c0_0, %c0_1] : memref<1x10x10x32xbf16, #tpu.memory_space<vmem>>, vector<1x10x10x32xbf16>
    %4 = vector.shape_cast %3 : vector<1x10x10x32xbf16> to vector<10x10x32xbf16>
    %5 = arith.extf %4 : vector<10x10x32xbf16> to vector<10x10x32xf32>
    %6 = vector.extract_strided_slice %5 {offsets = [0, 0, 0], sizes = [8, 8, 32], strides = [1, 1, 1]} : vector<10x10x32xf32> to vector<8x8x32xf32>
    %7 = vector.extract_strided_slice %5 {offsets = [0, 1, 0], sizes = [8, 8, 32], strides = [1, 1, 1]} : vector<10x10x32xf32> to vector<8x8x32xf32>
    %8 = vector.extract_strided_slice %5 {offsets = [0, 2, 0], sizes = [8, 8, 32], strides = [1, 1, 1]} : vector<10x10x32xf32> to vector<8x8x32xf32>
    %9 = vector.extract_strided_slice %5 {offsets = [1, 0, 0], sizes = [8, 8, 32], strides = [1, 1, 1]} : vector<10x10x32xf32> to vector<8x8x32xf32>
    %10 = vector.extract_strided_slice %5 {offsets = [1, 1, 0], sizes = [8, 8, 32], strides = [1, 1, 1]} : vector<10x10x32xf32> to vector<8x8x32xf32>
    %11 = vector.extract_strided_slice %5 {offsets = [1, 2, 0], sizes = [8, 8, 32], strides = [1, 1, 1]} : vector<10x10x32xf32> to vector<8x8x32xf32>
    %12 = vector.extract_strided_slice %5 {offsets = [2, 0, 0], sizes = [8, 8, 32], strides = [1, 1, 1]} : vector<10x10x32xf32> to vector<8x8x32xf32>
    %13 = vector.extract_strided_slice %5 {offsets = [2, 1, 0], sizes = [8, 8, 32], strides = [1, 1, 1]} : vector<10x10x32xf32> to vector<8x8x32xf32>
    %14 = vector.extract_strided_slice %5 {offsets = [2, 2, 0], sizes = [8, 8, 32], strides = [1, 1, 1]} : vector<10x10x32xf32> to vector<8x8x32xf32>
    %15 = tpu.concatenate %6, %7, %8, %9, %10, %11, %12, %13, %14 in 2 : vector<8x8x32xf32>, vector<8x8x32xf32>, vector<8x8x32xf32>, vector<8x8x32xf32>, vector<8x8x32xf32>, vector<8x8x32xf32>, vector<8x8x32xf32>, vector<8x8x32xf32>, vector<8x8x32xf32> -> vector<8x8x288xf32>
    %16 = vector.shape_cast %15 : vector<8x8x288xf32> to vector<64x288xf32>
    %17 = arith.truncf %16 : vector<64x288xf32> to vector<64x288xbf16>
    %c0_2 = arith.constant 0 : index
    %c0_3 = arith.constant 0 : index
    %18 = vector.load %arg4[%c0_2, %c0_3] : memref<288x16xbf16, #tpu.memory_space<vmem>>, vector<288x16xbf16>
    %cst = arith.constant dense<0.000000e+00> : vector<64x16xf32>
    %19 = tpu.matmul %17, %18, %cst {dimension_numbers = #tpu.dot_dimension_numbers<[1], [0], [0], [1], [0, 0, 1, 1], [], []>} : vector<64x288xbf16>, vector<288x16xbf16>, vector<64x16xf32> -> vector<64x16xf32>
    %c0_4 = arith.constant 0 : index
    %20 = arith.index_cast %1 : i32 to index
    %c0_5 = arith.constant 0 : index
    %c0_6 = arith.constant 0 : index
    %21 = vector.load %arg3[%c0_4, %20, %c0_5, %c0_6] : memref<1x10x10x16xbf16, #tpu.memory_space<vmem>>, vector<1x10x10x16xbf16>
    %22 = vector.shape_cast %21 : vector<1x10x10x16xbf16> to vector<10x10x16xbf16>
    %23 = arith.extf %22 : vector<10x10x16xbf16> to vector<10x10x16xf32>
    %24 = vector.extract_strided_slice %23 {offsets = [0, 0, 0], sizes = [8, 8, 16], strides = [1, 1, 1]} : vector<10x10x16xf32> to vector<8x8x16xf32>
    %25 = vector.extract_strided_slice %23 {offsets = [0, 1, 0], sizes = [8, 8, 16], strides = [1, 1, 1]} : vector<10x10x16xf32> to vector<8x8x16xf32>
    %26 = vector.extract_strided_slice %23 {offsets = [0, 2, 0], sizes = [8, 8, 16], strides = [1, 1, 1]} : vector<10x10x16xf32> to vector<8x8x16xf32>
    %27 = vector.extract_strided_slice %23 {offsets = [1, 0, 0], sizes = [8, 8, 16], strides = [1, 1, 1]} : vector<10x10x16xf32> to vector<8x8x16xf32>
    %28 = vector.extract_strided_slice %23 {offsets = [1, 1, 0], sizes = [8, 8, 16], strides = [1, 1, 1]} : vector<10x10x16xf32> to vector<8x8x16xf32>
    %29 = vector.extract_strided_slice %23 {offsets = [1, 2, 0], sizes = [8, 8, 16], strides = [1, 1, 1]} : vector<10x10x16xf32> to vector<8x8x16xf32>
    %30 = vector.extract_strided_slice %23 {offsets = [2, 0, 0], sizes = [8, 8, 16], strides = [1, 1, 1]} : vector<10x10x16xf32> to vector<8x8x16xf32>
    %31 = vector.extract_strided_slice %23 {offsets = [2, 1, 0], sizes = [8, 8, 16], strides = [1, 1, 1]} : vector<10x10x16xf32> to vector<8x8x16xf32>
    %32 = vector.extract_strided_slice %23 {offsets = [2, 2, 0], sizes = [8, 8, 16], strides = [1, 1, 1]} : vector<10x10x16xf32> to vector<8x8x16xf32>
    %33 = tpu.concatenate %24, %25, %26, %27, %28, %29, %30, %31, %32 in 2 : vector<8x8x16xf32>, vector<8x8x16xf32>, vector<8x8x16xf32>, vector<8x8x16xf32>, vector<8x8x16xf32>, vector<8x8x16xf32>, vector<8x8x16xf32>, vector<8x8x16xf32>, vector<8x8x16xf32> -> vector<8x8x144xf32>
    %34 = vector.shape_cast %33 : vector<8x8x144xf32> to vector<64x144xf32>
    %35 = arith.truncf %34 : vector<64x144xf32> to vector<64x144xbf16>
    %c0_7 = arith.constant 0 : index
    %c0_8 = arith.constant 0 : index
    %36 = vector.load %arg5[%c0_7, %c0_8] : memref<144x16xbf16, #tpu.memory_space<vmem>>, vector<144x16xbf16>
    %cst_9 = arith.constant dense<0.000000e+00> : vector<64x16xf32>
    %37 = tpu.matmul %35, %36, %cst_9 {dimension_numbers = #tpu.dot_dimension_numbers<[1], [0], [0], [1], [0, 0, 1, 1], [], []>} : vector<64x144xbf16>, vector<144x16xbf16>, vector<64x16xf32> -> vector<64x16xf32>
    %38 = arith.addf %19, %37 : vector<64x16xf32>
    %c0_10 = arith.constant 0 : index
    %c0_11 = arith.constant 0 : index
    %39 = vector.load %arg6[%c0_10, %c0_11] : memref<1x16xf32, #tpu.memory_space<vmem>>, vector<1x16xf32>
    %40 = vector.broadcast %39 : vector<1x16xf32> to vector<64x16xf32>
    %41 = arith.addf %38, %40 : vector<64x16xf32>
    %cst_12 = arith.constant 0.000000e+00 : f32
    %42 = vector.broadcast %cst_12 : f32 to vector<64x16xf32>
    %43 = arith.maximumf %41, %42 : vector<64x16xf32>
    %44 = vector.shape_cast %43 : vector<64x16xf32> to vector<1x8x8x16xf32>
    %45 = arith.truncf %44 : vector<1x8x8x16xf32> to vector<1x8x8x16xbf16>
    %c0_13 = arith.constant 0 : index
    %c0_14 = arith.constant 0 : index
    %c0_15 = arith.constant 0 : index
    %c0_16 = arith.constant 0 : index
    %46 = vector.load %arg7[%c0_13, %c0_14, %c0_15, %c0_16] : memref<1x8x8x16xbf16, #tpu.memory_space<vmem>>, vector<1x8x8x16xbf16>
    tpu.vector_store %arg7[%c0_13, %c0_14, %c0_15, %c0_16], %45 {strides = array<i32>} : memref<1x8x8x16xbf16, #tpu.memory_space<vmem>>, vector<1x8x8x16xbf16>,
    return
  }
  func.func @transform_0(%arg0: i32, %arg1: i32) -> (i32, i32, i32, i32) {
    %c0_i32 = arith.constant 0 : i32
    %c0_i32_0 = arith.constant 0 : i32
    %c0_i32_1 = arith.constant 0 : i32
    %c0_i32_2 = arith.constant 0 : i32
    return %arg0, %c0_i32, %c0_i32_0, %c0_i32_1 : i32, i32, i32, i32
  }
  func.func @transform_1(%arg0: i32, %arg1: i32) -> (i32, i32, i32, i32) {
    %c0_i32 = arith.constant 0 : i32
    %c0_i32_0 = arith.constant 0 : i32
    %c0_i32_1 = arith.constant 0 : i32
    %c0_i32_2 = arith.constant 0 : i32
    return %arg0, %c0_i32, %c0_i32_0, %c0_i32_1 : i32, i32, i32, i32
  }
  func.func @transform_2(%arg0: i32, %arg1: i32) -> (i32, i32) {
    %c0_i32 = arith.constant 0 : i32
    %c0_i32_0 = arith.constant 0 : i32
    %c0_i32_1 = arith.constant 0 : i32
    return %c0_i32, %c0_i32_0 : i32, i32
  }
  func.func @transform_3(%arg0: i32, %arg1: i32) -> (i32, i32) {
    %c0_i32 = arith.constant 0 : i32
    %c0_i32_0 = arith.constant 0 : i32
    %c0_i32_1 = arith.constant 0 : i32
    return %c0_i32, %c0_i32_0 : i32, i32
  }
  func.func @transform_4(%arg0: i32, %arg1: i32) -> (i32, i32) {
    %c0_i32 = arith.constant 0 : i32
    %c0_i32_0 = arith.constant 0 : i32
    %c0_i32_1 = arith.constant 0 : i32
    return %c0_i32, %c0_i32_0 : i32, i32
  }
  func.func @transform_5(%arg0: i32, %arg1: i32) -> (i32, i32, i32, i32) {
    %c0_i32 = arith.constant 0 : i32
    %c0_i32_0 = arith.constant 0 : i32
    %c0_i32_1 = arith.constant 0 : i32
    return %arg0, %arg1, %c0_i32, %c0_i32_0 : i32, i32, i32, i32
  }
}

module attributes {stable_mosaic.version = 11 : i64} {
  func.func @conv3x3_kernel(%arg0: i32, %arg1: i32, %arg2: memref<1x18x18x16xbf16, #tpu.memory_space<vmem>>, %arg3: memref<1x18x18x8xbf16, #tpu.memory_space<vmem>>, %arg4: memref<144x8xbf16, #tpu.memory_space<vmem>>, %arg5: memref<72x8xbf16, #tpu.memory_space<vmem>>, %arg6: memref<1x8xf32, #tpu.memory_space<vmem>>, %arg7: memref<1x16x16x8xbf16, #tpu.memory_space<vmem>>) attributes {dimension_semantics = [#tpu.dimension_semantics<parallel>, #tpu.dimension_semantics<parallel>], iteration_bounds = array<i64: 2, 1>, scalar_prefetch = 0 : i64, scratch_operands = 0 : i64, tpu.core_type = #tpu.core_type<tc>, window_params = [{transform_indices = @transform_0, window_bounds = array<i64: 1, 18, 18, 16>}, {transform_indices = @transform_1, window_bounds = array<i64: 1, 18, 18, 8>}, {pipeline_mode = #tpu.pipeline_mode<synchronous>, transform_indices = @transform_2, window_bounds = array<i64: 144, 8>}, {pipeline_mode = #tpu.pipeline_mode<synchronous>, transform_indices = @transform_3, window_bounds = array<i64: 72, 8>}, {pipeline_mode = #tpu.pipeline_mode<synchronous>, transform_indices = @transform_4, window_bounds = array<i64: 1, 8>}, {transform_indices = @transform_5, window_bounds = array<i64: 1, 16, 16, 8>}]} {
    %c16_i32 = arith.constant 16 : i32
    %0 = arith.muli %arg1, %c16_i32 : i32
    %1 = tpu.assume_multiple %0, 8 : i32
    %c0 = arith.constant 0 : index
    %2 = arith.index_cast %1 : i32 to index
    %c0_0 = arith.constant 0 : index
    %c0_1 = arith.constant 0 : index
    %3 = vector.load %arg2[%c0, %2, %c0_0, %c0_1] : memref<1x18x18x16xbf16, #tpu.memory_space<vmem>>, vector<1x18x18x16xbf16>
    %4 = vector.shape_cast %3 : vector<1x18x18x16xbf16> to vector<18x18x16xbf16>
    %5 = arith.extf %4 : vector<18x18x16xbf16> to vector<18x18x16xf32>
    %6 = vector.extract_strided_slice %5 {offsets = [0, 0, 0], sizes = [16, 16, 16], strides = [1, 1, 1]} : vector<18x18x16xf32> to vector<16x16x16xf32>
    %7 = vector.extract_strided_slice %5 {offsets = [0, 1, 0], sizes = [16, 16, 16], strides = [1, 1, 1]} : vector<18x18x16xf32> to vector<16x16x16xf32>
    %8 = vector.extract_strided_slice %5 {offsets = [0, 2, 0], sizes = [16, 16, 16], strides = [1, 1, 1]} : vector<18x18x16xf32> to vector<16x16x16xf32>
    %9 = vector.extract_strided_slice %5 {offsets = [1, 0, 0], sizes = [16, 16, 16], strides = [1, 1, 1]} : vector<18x18x16xf32> to vector<16x16x16xf32>
    %10 = vector.extract_strided_slice %5 {offsets = [1, 1, 0], sizes = [16, 16, 16], strides = [1, 1, 1]} : vector<18x18x16xf32> to vector<16x16x16xf32>
    %11 = vector.extract_strided_slice %5 {offsets = [1, 2, 0], sizes = [16, 16, 16], strides = [1, 1, 1]} : vector<18x18x16xf32> to vector<16x16x16xf32>
    %12 = vector.extract_strided_slice %5 {offsets = [2, 0, 0], sizes = [16, 16, 16], strides = [1, 1, 1]} : vector<18x18x16xf32> to vector<16x16x16xf32>
    %13 = vector.extract_strided_slice %5 {offsets = [2, 1, 0], sizes = [16, 16, 16], strides = [1, 1, 1]} : vector<18x18x16xf32> to vector<16x16x16xf32>
    %14 = vector.extract_strided_slice %5 {offsets = [2, 2, 0], sizes = [16, 16, 16], strides = [1, 1, 1]} : vector<18x18x16xf32> to vector<16x16x16xf32>
    %15 = tpu.concatenate %6, %7, %8, %9, %10, %11, %12, %13, %14 in 2 : vector<16x16x16xf32>, vector<16x16x16xf32>, vector<16x16x16xf32>, vector<16x16x16xf32>, vector<16x16x16xf32>, vector<16x16x16xf32>, vector<16x16x16xf32>, vector<16x16x16xf32>, vector<16x16x16xf32> -> vector<16x16x144xf32>
    %16 = vector.shape_cast %15 : vector<16x16x144xf32> to vector<256x144xf32>
    %17 = arith.truncf %16 : vector<256x144xf32> to vector<256x144xbf16>
    %c0_2 = arith.constant 0 : index
    %c0_3 = arith.constant 0 : index
    %18 = vector.load %arg4[%c0_2, %c0_3] : memref<144x8xbf16, #tpu.memory_space<vmem>>, vector<144x8xbf16>
    %cst = arith.constant dense<0.000000e+00> : vector<256x8xf32>
    %19 = tpu.matmul %17, %18, %cst {dimension_numbers = #tpu.dot_dimension_numbers<[1], [0], [0], [1], [0, 0, 1, 1], [], []>} : vector<256x144xbf16>, vector<144x8xbf16>, vector<256x8xf32> -> vector<256x8xf32>
    %c0_4 = arith.constant 0 : index
    %20 = arith.index_cast %1 : i32 to index
    %c0_5 = arith.constant 0 : index
    %c0_6 = arith.constant 0 : index
    %21 = vector.load %arg3[%c0_4, %20, %c0_5, %c0_6] : memref<1x18x18x8xbf16, #tpu.memory_space<vmem>>, vector<1x18x18x8xbf16>
    %22 = vector.shape_cast %21 : vector<1x18x18x8xbf16> to vector<18x18x8xbf16>
    %23 = arith.extf %22 : vector<18x18x8xbf16> to vector<18x18x8xf32>
    %24 = vector.extract_strided_slice %23 {offsets = [0, 0, 0], sizes = [16, 16, 8], strides = [1, 1, 1]} : vector<18x18x8xf32> to vector<16x16x8xf32>
    %25 = vector.extract_strided_slice %23 {offsets = [0, 1, 0], sizes = [16, 16, 8], strides = [1, 1, 1]} : vector<18x18x8xf32> to vector<16x16x8xf32>
    %26 = vector.extract_strided_slice %23 {offsets = [0, 2, 0], sizes = [16, 16, 8], strides = [1, 1, 1]} : vector<18x18x8xf32> to vector<16x16x8xf32>
    %27 = vector.extract_strided_slice %23 {offsets = [1, 0, 0], sizes = [16, 16, 8], strides = [1, 1, 1]} : vector<18x18x8xf32> to vector<16x16x8xf32>
    %28 = vector.extract_strided_slice %23 {offsets = [1, 1, 0], sizes = [16, 16, 8], strides = [1, 1, 1]} : vector<18x18x8xf32> to vector<16x16x8xf32>
    %29 = vector.extract_strided_slice %23 {offsets = [1, 2, 0], sizes = [16, 16, 8], strides = [1, 1, 1]} : vector<18x18x8xf32> to vector<16x16x8xf32>
    %30 = vector.extract_strided_slice %23 {offsets = [2, 0, 0], sizes = [16, 16, 8], strides = [1, 1, 1]} : vector<18x18x8xf32> to vector<16x16x8xf32>
    %31 = vector.extract_strided_slice %23 {offsets = [2, 1, 0], sizes = [16, 16, 8], strides = [1, 1, 1]} : vector<18x18x8xf32> to vector<16x16x8xf32>
    %32 = vector.extract_strided_slice %23 {offsets = [2, 2, 0], sizes = [16, 16, 8], strides = [1, 1, 1]} : vector<18x18x8xf32> to vector<16x16x8xf32>
    %33 = tpu.concatenate %24, %25, %26, %27, %28, %29, %30, %31, %32 in 2 : vector<16x16x8xf32>, vector<16x16x8xf32>, vector<16x16x8xf32>, vector<16x16x8xf32>, vector<16x16x8xf32>, vector<16x16x8xf32>, vector<16x16x8xf32>, vector<16x16x8xf32>, vector<16x16x8xf32> -> vector<16x16x72xf32>
    %34 = vector.shape_cast %33 : vector<16x16x72xf32> to vector<256x72xf32>
    %35 = arith.truncf %34 : vector<256x72xf32> to vector<256x72xbf16>
    %c0_7 = arith.constant 0 : index
    %c0_8 = arith.constant 0 : index
    %36 = vector.load %arg5[%c0_7, %c0_8] : memref<72x8xbf16, #tpu.memory_space<vmem>>, vector<72x8xbf16>
    %cst_9 = arith.constant dense<0.000000e+00> : vector<256x8xf32>
    %37 = tpu.matmul %35, %36, %cst_9 {dimension_numbers = #tpu.dot_dimension_numbers<[1], [0], [0], [1], [0, 0, 1, 1], [], []>} : vector<256x72xbf16>, vector<72x8xbf16>, vector<256x8xf32> -> vector<256x8xf32>
    %38 = arith.addf %19, %37 : vector<256x8xf32>
    %c0_10 = arith.constant 0 : index
    %c0_11 = arith.constant 0 : index
    %39 = vector.load %arg6[%c0_10, %c0_11] : memref<1x8xf32, #tpu.memory_space<vmem>>, vector<1x8xf32>
    %40 = vector.broadcast %39 : vector<1x8xf32> to vector<256x8xf32>
    %41 = arith.addf %38, %40 : vector<256x8xf32>
    %cst_12 = arith.constant 0.000000e+00 : f32
    %42 = vector.broadcast %cst_12 : f32 to vector<256x8xf32>
    %43 = arith.maximumf %41, %42 : vector<256x8xf32>
    %44 = vector.shape_cast %43 : vector<256x8xf32> to vector<1x16x16x8xf32>
    %45 = arith.truncf %44 : vector<1x16x16x8xf32> to vector<1x16x16x8xbf16>
    %c0_13 = arith.constant 0 : index
    %c0_14 = arith.constant 0 : index
    %c0_15 = arith.constant 0 : index
    %c0_16 = arith.constant 0 : index
    %46 = vector.load %arg7[%c0_13, %c0_14, %c0_15, %c0_16] : memref<1x16x16x8xbf16, #tpu.memory_space<vmem>>, vector<1x16x16x8xbf16>
    tpu.vector_store %arg7[%c0_13, %c0_14, %c0_15, %c0_16], %45 {strides = array<i32>} : memref<1x16x16x8xbf16, #tpu.memory_space<vmem>>, vector<1x16x16x8xbf16>,
    return
  }
  func.func @transform_0(%arg0: i32, %arg1: i32) -> (i32, i32, i32, i32) {
    %c0_i32 = arith.constant 0 : i32
    %c0_i32_0 = arith.constant 0 : i32
    %c0_i32_1 = arith.constant 0 : i32
    %c0_i32_2 = arith.constant 0 : i32
    return %arg0, %c0_i32, %c0_i32_0, %c0_i32_1 : i32, i32, i32, i32
  }
  func.func @transform_1(%arg0: i32, %arg1: i32) -> (i32, i32, i32, i32) {
    %c0_i32 = arith.constant 0 : i32
    %c0_i32_0 = arith.constant 0 : i32
    %c0_i32_1 = arith.constant 0 : i32
    %c0_i32_2 = arith.constant 0 : i32
    return %arg0, %c0_i32, %c0_i32_0, %c0_i32_1 : i32, i32, i32, i32
  }
  func.func @transform_2(%arg0: i32, %arg1: i32) -> (i32, i32) {
    %c0_i32 = arith.constant 0 : i32
    %c0_i32_0 = arith.constant 0 : i32
    %c0_i32_1 = arith.constant 0 : i32
    return %c0_i32, %c0_i32_0 : i32, i32
  }
  func.func @transform_3(%arg0: i32, %arg1: i32) -> (i32, i32) {
    %c0_i32 = arith.constant 0 : i32
    %c0_i32_0 = arith.constant 0 : i32
    %c0_i32_1 = arith.constant 0 : i32
    return %c0_i32, %c0_i32_0 : i32, i32
  }
  func.func @transform_4(%arg0: i32, %arg1: i32) -> (i32, i32) {
    %c0_i32 = arith.constant 0 : i32
    %c0_i32_0 = arith.constant 0 : i32
    %c0_i32_1 = arith.constant 0 : i32
    return %c0_i32, %c0_i32_0 : i32, i32
  }
  func.func @transform_5(%arg0: i32, %arg1: i32) -> (i32, i32, i32, i32) {
    %c0_i32 = arith.constant 0 : i32
    %c0_i32_0 = arith.constant 0 : i32
    %c0_i32_1 = arith.constant 0 : i32
    return %arg0, %arg1, %c0_i32, %c0_i32_0 : i32, i32, i32, i32
  }
}

module attributes {stable_mosaic.version = 11 : i64} {
  func.func @head_kernel(%arg0: i32, %arg1: memref<1x18x18x8xbf16, #tpu.memory_space<vmem>>, %arg2: memref<9x8xf32, #tpu.memory_space<vmem>>, %arg3: memref<1x1xf32, #tpu.memory_space<vmem>>, %arg4: memref<1x16x16xf32, #tpu.memory_space<vmem>>) attributes {dimension_semantics = [#tpu.dimension_semantics<parallel>], iteration_bounds = array<i64: 2>, scalar_prefetch = 0 : i64, scratch_operands = 0 : i64, tpu.core_type = #tpu.core_type<tc>, window_params = [{transform_indices = @transform_0, window_bounds = array<i64: 1, 18, 18, 8>}, {pipeline_mode = #tpu.pipeline_mode<synchronous>, transform_indices = @transform_1, window_bounds = array<i64: 9, 8>}, {pipeline_mode = #tpu.pipeline_mode<synchronous>, transform_indices = @transform_2, window_bounds = array<i64: 1, 1>}, {transform_indices = @transform_3, window_bounds = array<i64: 1, 16, 16>}]} {
    %c0 = arith.constant 0 : index
    %c0_0 = arith.constant 0 : index
    %c0_1 = arith.constant 0 : index
    %c0_2 = arith.constant 0 : index
    %0 = vector.load %arg1[%c0, %c0_0, %c0_1, %c0_2] : memref<1x18x18x8xbf16, #tpu.memory_space<vmem>>, vector<1x18x18x8xbf16>
    %1 = vector.shape_cast %0 : vector<1x18x18x8xbf16> to vector<18x18x8xbf16>
    %2 = arith.extf %1 : vector<18x18x8xbf16> to vector<18x18x8xf32>
    %3 = vector.extract_strided_slice %2 {offsets = [0, 0, 0], sizes = [16, 16, 8], strides = [1, 1, 1]} : vector<18x18x8xf32> to vector<16x16x8xf32>
    %c0_3 = arith.constant 0 : index
    %c0_4 = arith.constant 0 : index
    %4 = vector.load %arg2[%c0_3, %c0_4] : memref<9x8xf32, #tpu.memory_space<vmem>>, vector<1x8xf32>
    %5 = vector.shape_cast %4 : vector<1x8xf32> to vector<1x1x8xf32>
    %6 = vector.broadcast %5 : vector<1x1x8xf32> to vector<16x16x8xf32>
    %7 = arith.mulf %3, %6 : vector<16x16x8xf32>
    %8 = vector.extract_strided_slice %2 {offsets = [0, 1, 0], sizes = [16, 16, 8], strides = [1, 1, 1]} : vector<18x18x8xf32> to vector<16x16x8xf32>
    %c1 = arith.constant 1 : index
    %c0_5 = arith.constant 0 : index
    %9 = vector.load %arg2[%c1, %c0_5] : memref<9x8xf32, #tpu.memory_space<vmem>>, vector<1x8xf32>
    %10 = vector.shape_cast %9 : vector<1x8xf32> to vector<1x1x8xf32>
    %11 = vector.broadcast %10 : vector<1x1x8xf32> to vector<16x16x8xf32>
    %12 = arith.mulf %8, %11 : vector<16x16x8xf32>
    %13 = arith.addf %7, %12 : vector<16x16x8xf32>
    %14 = vector.extract_strided_slice %2 {offsets = [0, 2, 0], sizes = [16, 16, 8], strides = [1, 1, 1]} : vector<18x18x8xf32> to vector<16x16x8xf32>
    %c2 = arith.constant 2 : index
    %c0_6 = arith.constant 0 : index
    %15 = vector.load %arg2[%c2, %c0_6] : memref<9x8xf32, #tpu.memory_space<vmem>>, vector<1x8xf32>
    %16 = vector.shape_cast %15 : vector<1x8xf32> to vector<1x1x8xf32>
    %17 = vector.broadcast %16 : vector<1x1x8xf32> to vector<16x16x8xf32>
    %18 = arith.mulf %14, %17 : vector<16x16x8xf32>
    %19 = arith.addf %13, %18 : vector<16x16x8xf32>
    %20 = vector.extract_strided_slice %2 {offsets = [1, 0, 0], sizes = [16, 16, 8], strides = [1, 1, 1]} : vector<18x18x8xf32> to vector<16x16x8xf32>
    %c3 = arith.constant 3 : index
    %c0_7 = arith.constant 0 : index
    %21 = vector.load %arg2[%c3, %c0_7] : memref<9x8xf32, #tpu.memory_space<vmem>>, vector<1x8xf32>
    %22 = vector.shape_cast %21 : vector<1x8xf32> to vector<1x1x8xf32>
    %23 = vector.broadcast %22 : vector<1x1x8xf32> to vector<16x16x8xf32>
    %24 = arith.mulf %20, %23 : vector<16x16x8xf32>
    %25 = arith.addf %19, %24 : vector<16x16x8xf32>
    %26 = vector.extract_strided_slice %2 {offsets = [1, 1, 0], sizes = [16, 16, 8], strides = [1, 1, 1]} : vector<18x18x8xf32> to vector<16x16x8xf32>
    %c4 = arith.constant 4 : index
    %c0_8 = arith.constant 0 : index
    %27 = vector.load %arg2[%c4, %c0_8] : memref<9x8xf32, #tpu.memory_space<vmem>>, vector<1x8xf32>
    %28 = vector.shape_cast %27 : vector<1x8xf32> to vector<1x1x8xf32>
    %29 = vector.broadcast %28 : vector<1x1x8xf32> to vector<16x16x8xf32>
    %30 = arith.mulf %26, %29 : vector<16x16x8xf32>
    %31 = arith.addf %25, %30 : vector<16x16x8xf32>
    %32 = vector.extract_strided_slice %2 {offsets = [1, 2, 0], sizes = [16, 16, 8], strides = [1, 1, 1]} : vector<18x18x8xf32> to vector<16x16x8xf32>
    %c5 = arith.constant 5 : index
    %c0_9 = arith.constant 0 : index
    %33 = vector.load %arg2[%c5, %c0_9] : memref<9x8xf32, #tpu.memory_space<vmem>>, vector<1x8xf32>
    %34 = vector.shape_cast %33 : vector<1x8xf32> to vector<1x1x8xf32>
    %35 = vector.broadcast %34 : vector<1x1x8xf32> to vector<16x16x8xf32>
    %36 = arith.mulf %32, %35 : vector<16x16x8xf32>
    %37 = arith.addf %31, %36 : vector<16x16x8xf32>
    %38 = vector.extract_strided_slice %2 {offsets = [2, 0, 0], sizes = [16, 16, 8], strides = [1, 1, 1]} : vector<18x18x8xf32> to vector<16x16x8xf32>
    %c6 = arith.constant 6 : index
    %c0_10 = arith.constant 0 : index
    %39 = vector.load %arg2[%c6, %c0_10] : memref<9x8xf32, #tpu.memory_space<vmem>>, vector<1x8xf32>
    %40 = vector.shape_cast %39 : vector<1x8xf32> to vector<1x1x8xf32>
    %41 = vector.broadcast %40 : vector<1x1x8xf32> to vector<16x16x8xf32>
    %42 = arith.mulf %38, %41 : vector<16x16x8xf32>
    %43 = arith.addf %37, %42 : vector<16x16x8xf32>
    %44 = vector.extract_strided_slice %2 {offsets = [2, 1, 0], sizes = [16, 16, 8], strides = [1, 1, 1]} : vector<18x18x8xf32> to vector<16x16x8xf32>
    %c7 = arith.constant 7 : index
    %c0_11 = arith.constant 0 : index
    %45 = vector.load %arg2[%c7, %c0_11] : memref<9x8xf32, #tpu.memory_space<vmem>>, vector<1x8xf32>
    %46 = vector.shape_cast %45 : vector<1x8xf32> to vector<1x1x8xf32>
    %47 = vector.broadcast %46 : vector<1x1x8xf32> to vector<16x16x8xf32>
    %48 = arith.mulf %44, %47 : vector<16x16x8xf32>
    %49 = arith.addf %43, %48 : vector<16x16x8xf32>
    %50 = vector.extract_strided_slice %2 {offsets = [2, 2, 0], sizes = [16, 16, 8], strides = [1, 1, 1]} : vector<18x18x8xf32> to vector<16x16x8xf32>
    %c8 = arith.constant 8 : index
    %c0_12 = arith.constant 0 : index
    %51 = vector.load %arg2[%c8, %c0_12] : memref<9x8xf32, #tpu.memory_space<vmem>>, vector<1x8xf32>
    %52 = vector.shape_cast %51 : vector<1x8xf32> to vector<1x1x8xf32>
    %53 = vector.broadcast %52 : vector<1x1x8xf32> to vector<16x16x8xf32>
    %54 = arith.mulf %50, %53 : vector<16x16x8xf32>
    %55 = arith.addf %49, %54 : vector<16x16x8xf32>
    %cst = arith.constant dense<0.000000e+00> : vector<16x16xf32>
    %56 = vector.multi_reduction <add>, %55, %cst [2] : vector<16x16x8xf32> to vector<16x16xf32>
    %c0_13 = arith.constant 0 : index
    %c0_14 = arith.constant 0 : index
    %57 = vector.load %arg3[%c0_13, %c0_14] : memref<1x1xf32, #tpu.memory_space<vmem>>, vector<1x1xf32>
    %58 = vector.broadcast %57 : vector<1x1xf32> to vector<16x16xf32>
    %59 = arith.addf %56, %58 : vector<16x16xf32>
    %60 = vector.shape_cast %59 : vector<16x16xf32> to vector<1x16x16xf32>
    %c0_15 = arith.constant 0 : index
    %c0_16 = arith.constant 0 : index
    %c0_17 = arith.constant 0 : index
    %61 = vector.load %arg4[%c0_15, %c0_16, %c0_17] : memref<1x16x16xf32, #tpu.memory_space<vmem>>, vector<1x16x16xf32>
    tpu.vector_store %arg4[%c0_15, %c0_16, %c0_17], %60 {strides = array<i32>} : memref<1x16x16xf32, #tpu.memory_space<vmem>>, vector<1x16x16xf32>,
    return
  }
  func.func @transform_0(%arg0: i32) -> (i32, i32, i32, i32) {
    %c0_i32 = arith.constant 0 : i32
    %c0_i32_0 = arith.constant 0 : i32
    %c0_i32_1 = arith.constant 0 : i32
    %c0_i32_2 = arith.constant 0 : i32
    return %arg0, %c0_i32, %c0_i32_0, %c0_i32_1 : i32, i32, i32, i32
  }
  func.func @transform_1(%arg0: i32) -> (i32, i32) {
    %c0_i32 = arith.constant 0 : i32
    %c0_i32_0 = arith.constant 0 : i32
    %c0_i32_1 = arith.constant 0 : i32
    return %c0_i32, %c0_i32_0 : i32, i32
  }
  func.func @transform_2(%arg0: i32) -> (i32, i32) {
    %c0_i32 = arith.constant 0 : i32
    %c0_i32_0 = arith.constant 0 : i32
    %c0_i32_1 = arith.constant 0 : i32
    return %c0_i32, %c0_i32_0 : i32, i32
  }
  func.func @transform_3(%arg0: i32) -> (i32, i32, i32) {
    %c0_i32 = arith.constant 0 : i32
    %c0_i32_0 = arith.constant 0 : i32
    %c0_i32_1 = arith.constant 0 : i32
    return %arg0, %c0_i32, %c0_i32_0 : i32, i32, i32
  }
}

</mosaic_0001>

<llo_original>
// kernel: deep_unet_forward.7
$region0: #{deep_unet_forward.7}
  #allocation0 [shape = 'u32[]', space=smem, size = 0x4, offset = 0x4, fixed_abs, tag = 'smem constant byte address 0x4 - core index']
  #allocation1 [shape = 'u32[144,128]{1,0:T(1,128)}', space=vmem, size = 0x12000, scoped, tag = 'internal scratch']
  %s0 = inlined_call_operand.vmem [shape: bf16[2,10,10,8], index: 0, kind: input, shape index: {}]
  %s1 = inlined_call_operand.vmem [shape: bf16[72,16], index: 1, kind: input, shape index: {}]
  %s2 = inlined_call_operand.vmem [shape: f32[1,16], index: 2, kind: input, shape index: {}]
  %s3 = inlined_call_operand.vmem [shape: bf16[2,8,8,16], index: 3, kind: output, shape index: {}]
  %s4 = sld [smem:[#allocation0]]
  $region45: #{deep_unet_forward.7} parent=0
    _
  %s6 = ssub.s32 1, %s4
  %s7 = scalar_select 0, %s6, %s4
  loop: start=0, step=1, limit=4
  $region2: #{deep_unet_forward.7} parent=0 // loop_pre_header
    _
  $region3: #{deep_unet_forward.7} parent=0 // loop_header
    %s9 = sphi 0, %s13
    %p10 = scmp.ge.s32.totalorder %s9, 4
    %s16 = sphi 0, %s28
    %s17 = sphi 0, %s24
    %s18 = sphi 0, %s16
    %s19 = sphi 0, %s17
    %s20 = sphi 0, %s18
    %s21 = sphi 0, %s19
    %s31 = sphi 0, %s33
    %s34 = sphi 0, %s31
    %s35 = sphi 0, %s34
    %s51 = sphi 0, %s35
    %s55 = sphi 0, %s55
    %s57 = sphi 0, %s55
    %s58 = sphi 0, %s57
    %s72 = sphi 0, %s58
    %s76 = sphi 0, %s76
    %s78 = sphi 0, %s76
    %s79 = sphi 0, %s78
    %s93 = sphi 0, %s79
    %s101 = sphi 0, %s103
    %s104 = sphi 0, %s101
    %s105 = sphi 0, %s104
    %s121 = sphi 0, %s105
  $region4: #{deep_unet_forward.7} parent=0 // loop_header_branch
    %12 = sbr.rel (%p10) target = $region8
  $region5: #{deep_unet_forward.7} parent=0 // loop_body
    %s14 = ssub.s32 %s9, 1
    %s15 = ssub.s32 %s9, 2
    %s22 = sadd.s32 1, %s17
    %p23 = scmp.ge.s32.totalorder %s22, 1
    %s24 = scalar_select %p23, 0, %s22
    %s25 = sadd.s32 1, %s16
    %s26 = scalar_select %p23, %s25, %s16
    %p27 = scmp.ge.s32.totalorder %s26, 2
    %s28 = scalar_select %p27, 0, %s26
    %s29 = ssub.s32 %s16, %s28
    %p30 = scmp.eq.s32.totalorder %s29, 0
    %s32 = sadd.s32 %s31, 1
    %s33 = scalar_select %p30, %s31, %s32
    %p36 = pneg %p30
    %p37 = scmp.eq.s32.totalorder %s9, 1
    %p38 = por %p36, %p37
    %p39 = scmp.ne.s32.totalorder %s31, %s34
    %p40 = scmp.eq.s32.totalorder %s9, 0
    %p41 = por %p39, %p40
    %p42 = scmp.ne.s32.totalorder %s31, %s34
    %p43 = scmp.eq.s32.totalorder %s14, 1
    %p44 = por %p42, %p43
    %p45 = scmp.ne.s32.totalorder %s34, %s35
    %p46 = scmp.eq.s32.totalorder %s14, 0
    %p47 = por %p45, %p46
    %p48 = scmp.ne.s32.totalorder %s34, %s35
    %p49 = scmp.eq.s32.totalorder %s15, 1
    %p50 = por %p48, %p49
    %p52 = scmp.ne.s32.totalorder %s35, %s51
    %p53 = scmp.eq.s32.totalorder %s15, 0
    %p54 = por %p52, %p53
    %s56 = sadd.s32 %s55, 1
    %p59 = scmp.eq.s32.totalorder %s9, 1
    %p60 = scmp.ne.s32.totalorder %s55, %s57
    %p61 = scmp.eq.s32.totalorder %s9, 0
    %p62 = por %p60, %p61
    %p63 = scmp.ne.s32.totalorder %s55, %s57
    %p64 = scmp.eq.s32.totalorder %s14, 1
    %p65 = por %p63, %p64
    %p66 = scmp.ne.s32.totalorder %s57, %s58
    %p67 = scmp.eq.s32.totalorder %s14, 0
    %p68 = por %p66, %p67
    %p69 = scmp.ne.s32.totalorder %s57, %s58
    %p70 = scmp.eq.s32.totalorder %s15, 1
    %p71 = por %p69, %p70
    %p73 = scmp.ne.s32.totalorder %s58, %s72
    %p74 = scmp.eq.s32.totalorder %s15, 0
    %p75 = por %p73, %p74
    %s77 = sadd.s32 %s76, 1
    %p80 = scmp.eq.s32.totalorder %s9, 1
    %p81 = scmp.ne.s32.totalorder %s76, %s78
    %p82 = scmp.eq.s32.totalorder %s9, 0
    %p83 = por %p81, %p82
    %p84 = scmp.ne.s32.totalorder %s76, %s78
    %p85 = scmp.eq.s32.totalorder %s14, 1
    %p86 = por %p84, %p85
    %p87 = scmp.ne.s32.totalorder %s78, %s79
    %p88 = scmp.eq.s32.totalorder %s14, 0
    %p89 = por %p87, %p88
    %p90 = scmp.ne.s32.totalorder %s78, %s79
    %p91 = scmp.eq.s32.totalorder %s15, 1
    %p92 = por %p90, %p91
    %p94 = scmp.ne.s32.totalorder %s79, %s93
    %p95 = scmp.eq.s32.totalorder %s15, 0
    %p96 = por %p94, %p95
    %s97 = ssub.s32 %s16, %s28
    %s98 = ssub.s32 %s17, %s24
    %s99 = sor.u32 %s97, %s98
    %p100 = scmp.eq.s32.totalorder %s99, 0
    %s102 = sadd.s32 %s101, 1
    %s103 = scalar_select %p100, %s101, %s102
    %p106 = pneg %p100
    %p107 = scmp.eq.s32.totalorder %s9, 1
    %p108 = por %p106, %p107
    %p109 = scmp.ne.s32.totalorder %s101, %s104
    %p110 = scmp.eq.s32.totalorder %s9, 0
    %p111 = por %p109, %p110
    %p112 = scmp.ne.s32.totalorder %s101, %s104
    %p113 = scmp.eq.s32.totalorder %s14, 1
    %p114 = por %p112, %p113
    %p115 = scmp.ne.s32.totalorder %s104, %s105
    %p116 = scmp.eq.s32.totalorder %s14, 0
    %p117 = por %p115, %p116
    %p118 = scmp.ne.s32.totalorder %s104, %s105
    %p119 = scmp.eq.s32.totalorder %s15, 1
    %p120 = por %p118, %p119
    %p122 = scmp.ne.s32.totalorder %s105, %s121
    %p123 = scmp.eq.s32.totalorder %s15, 0
    %p124 = por %p122, %p123
    %p125 = scmp.le.s32.totalorder 1, %s9
    %p126 = scmp.lt.s32.totalorder %s9, 3
    %p127 = pnand %p125, %p126
    %p128 = pneg %p127
    // Predicated region
    $region9: #{deep_unet_forward.7} parent=5 // pred_check
      _
    $region10: #{deep_unet_forward.7} parent=5 // pred_check_branch
      %130 = sbr.rel (%p127) target = $region12
    $region11: #{deep_unet_forward.7} parent=5 // pred_region
      %s131 = ssub.s32 %s9, 1
      // Predicated region
      $region13: #{deep_unet_forward.7} parent=11 // pred_check
        %p132 = pneg %p68
      $region14: #{deep_unet_forward.7} parent=11 // pred_check_branch
        %134 = sbr.rel (%p132) target = $region16
      $region15: #{deep_unet_forward.7} parent=11 // pred_region
        _
      $region16: #{deep_unet_forward.7} parent=11 // pred_fallthru
        _
      // Predicated region
      $region17: #{deep_unet_forward.7} parent=11 // pred_check
        %p135 = pneg %p89
      $region18: #{deep_unet_forward.7} parent=11 // pred_check_branch
        %137 = sbr.rel (%p135) target = $region20
      $region19: #{deep_unet_forward.7} parent=11 // pred_region
        _
      $region20: #{deep_unet_forward.7} parent=11 // pred_fallthru
        _
    $region12: #{deep_unet_forward.7} parent=5 // pred_fallthru
      _
    %p138 = scmp.lt.s32.totalorder %s9, 2
    // Predicated region
    $region21: #{deep_unet_forward.7} parent=5 // pred_check
      %p139 = pneg %p138
    $region22: #{deep_unet_forward.7} parent=5 // pred_check_branch
      %141 = sbr.rel (%p139) target = $region24
    $region23: #{deep_unet_forward.7} parent=5 // pred_region
      // Predicated region
      $region25: #{deep_unet_forward.7} parent=23 // pred_check
        %p142 = pneg %p41
      $region26: #{deep_unet_forward.7} parent=23 // pred_check_branch
        %144 = sbr.rel (%p142) target = $region28
      $region27: #{deep_unet_forward.7} parent=23 // pred_region
        %p145 = scmp.lt.s32.totalorder %s16, 1
        %s146 = scalar_select %p145, %s16, 1
        %s147 = smul.addr %s146, 20
        %s148 = smul.addr %s147, 4
        %s149 = scalar_lea.vmem %s0, %s148
      $region28: #{deep_unet_forward.7} parent=23 // pred_fallthru
        _
    $region24: #{deep_unet_forward.7} parent=5 // pred_fallthru
      _
    %p150 = scmp.le.s32.totalorder 1, %s9
    %p151 = scmp.lt.s32.totalorder %s9, 3
    %p152 = pnand %p150, %p151
    %p153 = pneg %p152
    // Predicated region
    $region29: #{deep_unet_forward.7} parent=5 // pred_check
      _
    $region30: #{deep_unet_forward.7} parent=5 // pred_check_branch
      %155 = sbr.rel (%p152) target = $region32
    $region31: #{deep_unet_forward.7} parent=5 // pred_region
      %s156 = ssub.s32 %s9, 1
      %p157 = scmp.lt.s32.totalorder %s18, 1
      %s158 = scalar_select %p157, %s18, 1
      %s159 = smul.addr %s158, 20
      %s160 = smul.addr %s159, 4
      %s161 = scalar_lea.vmem %s0, %s160
      %p162 = pneg %p47
      %p163 = pneg %p44
      %p164 = pneg %p68
      %p165 = pneg %p65
      %p166 = pneg %p89
      %p167 = pneg %p86
      %p168 = pneg %p117
      %p169 = pneg %p114
      %s170 = smul.u32 8, %s19
      %p171 = scmp.lt.s32.totalorder %s18, 1
      %s172 = scalar_select %p171, %s18, 1
      %p173 = scmp.lt.s32.totalorder %s170, 7
      %s174 = scalar_select %p173, %s170, 7
      %s175 = smul.addr %s172, 8
      %s176 = sadd.s32 %s174, %s175
      %s177 = smul.addr %s176, 4
      %s178 = scalar_lea.vmem %s3, %s177
      %p179 = scmp.lt.s32.totalorder %s18, 1
      %s180 = scalar_select %p179, %s18, 1
      %s181 = smul.addr %s180, 20
      %s182 = smul.addr %s181, 4
      %s183 = scalar_lea.vmem %s0, %s182
      %s184 = smul.u32 8, %s19
      %p185 = scmp.lt.s32.totalorder %s18, 1
      %s186 = scalar_select %p185, %s18, 1
      %p187 = scmp.lt.s32.totalorder %s184, 7
      %s188 = scalar_select %p187, %s184, 7
      %s189 = smul.addr %s186, 8
      %s190 = sadd.s32 %s188, %s189
      %s191 = smul.addr %s190, 4
      %s192 = scalar_lea.vmem %s3, %s191
      %s193 = smul.u32 8, %s19
      %s195 = smul.u32 %s19, 8
      %s196 = smul.u32 %s195, 2
      %s197 = smul.addr %s196, 4
      %s198 = scalar_lea.vmem %s183, %s197
      %v199 = vld [vmem:[%s198] sm:$0xf]
      %v200 = vld [vmem:[%s198 + $0x4] sm:$0x1]
      %v201 = vld [vmem:[%s198 + $0x8] sm:$0xf]
      %v202 = vld [vmem:[%s198 + $0xc] sm:$0x1]
      %v203 = vld [vmem:[%s198 + $0x10] sm:$0xf]
      %v204 = vld [vmem:[%s198 + $0x14] sm:$0x1]
      %v205 = vld [vmem:[%s198 + $0x18] sm:$0xf]
      %v206 = vld [vmem:[%s198 + $0x1c] sm:$0x1]
      %v207 = vld [vmem:[%s198 + $0x20] sm:$0xf]
      %v208 = vld [vmem:[%s198 + $0x24] sm:$0x1]
      %v209 = vld [vmem:[%s198 + $0x28] sm:$0xf]
      %v210 = vld [vmem:[%s198 + $0x2c] sm:$0x1]
      %v211 = vld [vmem:[%s198 + $0x30] sm:$0xf]
      %v212 = vld [vmem:[%s198 + $0x34] sm:$0x1]
      %v213 = vld [vmem:[%s198 + $0x38] sm:$0xf]
      %v214 = vld [vmem:[%s198 + $0x3c] sm:$0x1]
      %v215 = vld [vmem:[%s198 + $0x40] sm:$0xf]
      %v216 = vld [vmem:[%s198 + $0x44] sm:$0x1]
      %v217 = vld [vmem:[%s198 + $0x48] sm:$0xf]
      %v218 = vld [vmem:[%s198 + $0x4c] sm:$0x1]
      %v219 = vunpack.c.l.bf16 %v199
      %v220 = vunpack.c.l.bf16 %v200
      %v221 = vunpack.c.l.bf16 %v201
      %v222 = vunpack.c.l.bf16 %v202
      %v223 = vunpack.c.l.bf16 %v203
      %v224 = vunpack.c.l.bf16 %v204
      %v225 = vunpack.c.l.bf16 %v205
      %v226 = vunpack.c.l.bf16 %v206
      %v227 = vunpack.c.l.bf16 %v207
      %v228 = vunpack.c.l.bf16 %v208
      %v229 = vunpack.c.l.bf16 %v209
      %v230 = vunpack.c.l.bf16 %v210
      %v231 = vunpack.c.l.bf16 %v211
      %v232 = vunpack.c.l.bf16 %v212
      %v233 = vunpack.c.l.bf16 %v213
      %v234 = vunpack.c.l.bf16 %v214
      %v235 = vunpack.c.l.bf16 %v215
      %v236 = vunpack.c.l.bf16 %v216
      %v237 = vunpack.c.l.bf16 %v217
      %v238 = vunpack.c.l.bf16 %v218
      %vm255 = vcmask 1046528
      %v256 = vrot.slane %v219, 1
      %v257 = vrot.slane %v220, 1
      %v258 = vsel %vm255, %v256, %v257
      %v259 = vrot.slane %v221, 1
      %v260 = vrot.slane %v222, 1
      %v261 = vsel %vm255, %v259, %v260
      %v262 = vrot.slane %v223, 1
      %v263 = vrot.slane %v224, 1
      %v264 = vsel %vm255, %v262, %v263
      %v265 = vrot.slane %v225, 1
      %v266 = vrot.slane %v226, 1
      %v267 = vsel %vm255, %v265, %v266
      %v268 = vrot.slane %v227, 1
      %v269 = vrot.slane %v228, 1
      %v270 = vsel %vm255, %v268, %v269
      %v271 = vrot.slane %v229, 1
      %v272 = vrot.slane %v230, 1
      %v273 = vsel %vm255, %v271, %v272
      %v274 = vrot.slane %v231, 1
      %v275 = vrot.slane %v232, 1
      %v276 = vsel %vm255, %v274, %v275
      %v277 = vrot.slane %v233, 1
      %v278 = vrot.slane %v234, 1
      %v279 = vsel %vm255, %v277, %v278
      %280 = vrot.lane.b32.xlu0 %v258, 8
      %v281 = vpop.permute.xlu0 %280
      %282 = vrot.lane.b32.xlu0 %v261, 8
      %v283 = vpop.permute.xlu0 %282
      %284 = vrot.lane.b32.xlu0 %v264, 8
      %v285 = vpop.permute.xlu0 %284
      %286 = vrot.lane.b32.xlu0 %v267, 8
      %v287 = vpop.permute.xlu0 %286
      %288 = vrot.lane.b32.xlu0 %v270, 8
      %v289 = vpop.permute.xlu0 %288
      %290 = vrot.lane.b32.xlu0 %v273, 8
      %v291 = vpop.permute.xlu0 %290
      %292 = vrot.lane.b32.xlu0 %v276, 8
      %v293 = vpop.permute.xlu0 %292
      %294 = vrot.lane.b32.xlu0 %v279, 8
      %v295 = vpop.permute.xlu0 %294
      %vm304 = vcmask 1045504
      %v305 = vrot.slane %v219, 2
      %v306 = vrot.slane %v220, 2
      %v307 = vsel %vm304, %v305, %v306
      %v308 = vrot.slane %v221, 2
      %v309 = vrot.slane %v222, 2
      %v310 = vsel %vm304, %v308, %v309
      %v311 = vrot.slane %v223, 2
      %v312 = vrot.slane %v224, 2
      %v313 = vsel %vm304, %v311, %v312
      %v314 = vrot.slane %v225, 2
      %v315 = vrot.slane %v226, 2
      %v316 = vsel %vm304, %v314, %v315
      %v317 = vrot.slane %v227, 2
      %v318 = vrot.slane %v228, 2
      %v319 = vsel %vm304, %v317, %v318
      %v320 = vrot.slane %v229, 2
      %v321 = vrot.slane %v230, 2
      %v322 = vsel %vm304, %v320, %v321
      %v323 = vrot.slane %v231, 2
      %v324 = vrot.slane %v232, 2
      %v325 = vsel %vm304, %v323, %v324
      %v326 = vrot.slane %v233, 2
      %v327 = vrot.slane %v234, 2
      %v328 = vsel %vm304, %v326, %v327
      %329 = vrot.lane.b32.xlu0 %v307, 16
      %v330 = vpop.permute.xlu0 %329
      %331 = vrot.lane.b32.xlu0 %v310, 16
      %v332 = vpop.permute.xlu0 %331
      %333 = vrot.lane.b32.xlu0 %v313, 16
      %v334 = vpop.permute.xlu0 %333
      %335 = vrot.lane.b32.xlu0 %v316, 16
      %v336 = vpop.permute.xlu0 %335
      %337 = vrot.lane.b32.xlu0 %v319, 16
      %v338 = vpop.permute.xlu0 %337
      %339 = vrot.lane.b32.xlu0 %v322, 16
      %v340 = vpop.permute.xlu0 %339
      %341 = vrot.lane.b32.xlu0 %v325, 16
      %v342 = vpop.permute.xlu0 %341
      %343 = vrot.lane.b32.xlu0 %v328, 16
      %v344 = vpop.permute.xlu0 %343
      %354 = vrot.lane.b32.xlu0 %v221, 24
      %v355 = vpop.permute.xlu0 %354
      %356 = vrot.lane.b32.xlu0 %v223, 24
      %v357 = vpop.permute.xlu0 %356
      %358 = vrot.lane.b32.xlu0 %v225, 24
      %v359 = vpop.permute.xlu0 %358
      %360 = vrot.lane.b32.xlu0 %v227, 24
      %v361 = vpop.permute.xlu0 %360
      %362 = vrot.lane.b32.xlu0 %v229, 24
      %v363 = vpop.permute.xlu0 %362
      %364 = vrot.lane.b32.xlu0 %v231, 24
      %v365 = vpop.permute.xlu0 %364
      %366 = vrot.lane.b32.xlu0 %v233, 24
      %v367 = vpop.permute.xlu0 %366
      %368 = vrot.lane.b32.xlu0 %v235, 24
      %v369 = vpop.permute.xlu0 %368
      %v379 = vrot.slane %v235, 1
      %v380 = vrot.slane %v236, 1
      %v381 = vsel %vm255, %v379, %v380
      %382 = vrot.lane.b32.xlu0 %v261, 32
      %v383 = vpop.permute.xlu0 %382
      %384 = vrot.lane.b32.xlu0 %v264, 32
      %v385 = vpop.permute.xlu0 %384
      %386 = vrot.lane.b32.xlu0 %v267, 32
      %v387 = vpop.permute.xlu0 %386
      %388 = vrot.lane.b32.xlu0 %v270, 32
      %v389 = vpop.permute.xlu0 %388
      %390 = vrot.lane.b32.xlu0 %v273, 32
      %v391 = vpop.permute.xlu0 %390
      %392 = vrot.lane.b32.xlu0 %v276, 32
      %v393 = vpop.permute.xlu0 %392
      %394 = vrot.lane.b32.xlu0 %v279, 32
      %v395 = vpop.permute.xlu0 %394
      %396 = vrot.lane.b32.xlu0 %v381, 32
      %v397 = vpop.permute.xlu0 %396
      %v406 = vrot.slane %v235, 2
      %v407 = vrot.slane %v236, 2
      %v408 = vsel %vm304, %v406, %v407
      %409 = vrot.lane.b32.xlu0 %v310, 40
      %v410 = vpop.permute.xlu0 %409
      %411 = vrot.lane.b32.xlu0 %v313, 40
      %v412 = vpop.permute.xlu0 %411
      %413 = vrot.lane.b32.xlu0 %v316, 40
      %v414 = vpop.permute.xlu0 %413
      %415 = vrot.lane.b32.xlu0 %v319, 40
      %v416 = vpop.permute.xlu0 %415
      %417 = vrot.lane.b32.xlu0 %v322, 40
      %v418 = vpop.permute.xlu0 %417
      %419 = vrot.lane.b32.xlu0 %v325, 40
      %v420 = vpop.permute.xlu0 %419
      %421 = vrot.lane.b32.xlu0 %v328, 40
      %v422 = vpop.permute.xlu0 %421
      %423 = vrot.lane.b32.xlu0 %v408, 40
      %v424 = vpop.permute.xlu0 %423
      %434 = vrot.lane.b32.xlu0 %v223, 48
      %v435 = vpop.permute.xlu0 %434
      %436 = vrot.lane.b32.xlu0 %v225, 48
      %v437 = vpop.permute.xlu0 %436
      %438 = vrot.lane.b32.xlu0 %v227, 48
      %v439 = vpop.permute.xlu0 %438
      %440 = vrot.lane.b32.xlu0 %v229, 48
      %v441 = vpop.permute.xlu0 %440
      %442 = vrot.lane.b32.xlu0 %v231, 48
      %v443 = vpop.permute.xlu0 %442
      %444 = vrot.lane.b32.xlu0 %v233, 48
      %v445 = vpop.permute.xlu0 %444
      %446 = vrot.lane.b32.xlu0 %v235, 48
      %v447 = vpop.permute.xlu0 %446
      %448 = vrot.lane.b32.xlu0 %v237, 48
      %v449 = vpop.permute.xlu0 %448
      %v459 = vrot.slane %v237, 1
      %v460 = vrot.slane %v238, 1
      %v461 = vsel %vm255, %v459, %v460
      %462 = vrot.lane.b32.xlu0 %v264, 56
      %v463 = vpop.permute.xlu0 %462
      %464 = vrot.lane.b32.xlu0 %v267, 56
      %v465 = vpop.permute.xlu0 %464
      %466 = vrot.lane.b32.xlu0 %v270, 56
      %v467 = vpop.permute.xlu0 %466
      %468 = vrot.lane.b32.xlu0 %v273, 56
      %v469 = vpop.permute.xlu0 %468
      %470 = vrot.lane.b32.xlu0 %v276, 56
      %v471 = vpop.permute.xlu0 %470
      %472 = vrot.lane.b32.xlu0 %v279, 56
      %v473 = vpop.permute.xlu0 %472
      %474 = vrot.lane.b32.xlu0 %v381, 56
      %v475 = vpop.permute.xlu0 %474
      %476 = vrot.lane.b32.xlu0 %v461, 56
      %v477 = vpop.permute.xlu0 %476
      %v486 = vrot.slane %v237, 2
      %v487 = vrot.slane %v238, 2
      %v488 = vsel %vm304, %v486, %v487
      %489 = vrot.lane.b32.xlu0 %v313, 64
      %v490 = vpop.permute.xlu0 %489
      %491 = vrot.lane.b32.xlu0 %v316, 64
      %v492 = vpop.permute.xlu0 %491
      %493 = vrot.lane.b32.xlu0 %v319, 64
      %v494 = vpop.permute.xlu0 %493
      %495 = vrot.lane.b32.xlu0 %v322, 64
      %v496 = vpop.permute.xlu0 %495
      %497 = vrot.lane.b32.xlu0 %v325, 64
      %v498 = vpop.permute.xlu0 %497
      %499 = vrot.lane.b32.xlu0 %v328, 64
      %v500 = vpop.permute.xlu0 %499
      %501 = vrot.lane.b32.xlu0 %v408, 64
      %v502 = vpop.permute.xlu0 %501
      %503 = vrot.lane.b32.xlu0 %v488, 64
      %v504 = vpop.permute.xlu0 %503
      %vm513 = vcmask 64512
      %v514 = vsel %vm513, %v219, %v281
      %v515 = vsel %vm513, %v221, %v283
      %v516 = vsel %vm513, %v223, %v285
      %v517 = vsel %vm513, %v225, %v287
      %v518 = vsel %vm513, %v227, %v289
      %v519 = vsel %vm513, %v229, %v291
      %v520 = vsel %vm513, %v231, %v293
      %v521 = vsel %vm513, %v233, %v295
      %vm522 = vcmask 130048
      %v523 = vsel %vm522, %v514, %v330
      %v524 = vsel %vm522, %v515, %v332
      %v525 = vsel %vm522, %v516, %v334
      %v526 = vsel %vm522, %v517, %v336
      %v527 = vsel %vm522, %v518, %v338
      %v528 = vsel %vm522, %v519, %v340
      %v529 = vsel %vm522, %v520, %v342
      %v530 = vsel %vm522, %v521, %v344
      %vm531 = vcmask 195584
      %v532 = vsel %vm531, %v523, %v355
      %v533 = vsel %vm531, %v524, %v357
      %v534 = vsel %vm531, %v525, %v359
      %v535 = vsel %vm531, %v526, %v361
      %v536 = vsel %vm531, %v527, %v363
      %v537 = vsel %vm531, %v528, %v365
      %v538 = vsel %vm531, %v529, %v367
      %v539 = vsel %vm531, %v530, %v369
      %vm540 = vcmask 261120
      %v541 = vsel %vm540, %v532, %v383
      %v542 = vsel %vm540, %v533, %v385
      %v543 = vsel %vm540, %v534, %v387
      %v544 = vsel %vm540, %v535, %v389
      %v545 = vsel %vm540, %v536, %v391
      %v546 = vsel %vm540, %v537, %v393
      %v547 = vsel %vm540, %v538, %v395
      %v548 = vsel %vm540, %v539, %v397
      %vm549 = vcmask 326656
      %v550 = vsel %vm549, %v541, %v410
      %v551 = vsel %vm549, %v542, %v412
      %v552 = vsel %vm549, %v543, %v414
      %v553 = vsel %vm549, %v544, %v416
      %v554 = vsel %vm549, %v545, %v418
      %v555 = vsel %vm549, %v546, %v420
      %v556 = vsel %vm549, %v547, %v422
      %v557 = vsel %vm549, %v548, %v424
      %vm558 = vcmask 392192
      %v559 = vsel %vm558, %v550, %v435
      %v560 = vsel %vm558, %v551, %v437
      %v561 = vsel %vm558, %v552, %v439
      %v562 = vsel %vm558, %v553, %v441
      %v563 = vsel %vm558, %v554, %v443
      %v564 = vsel %vm558, %v555, %v445
      %v565 = vsel %vm558, %v556, %v447
      %v566 = vsel %vm558, %v557, %v449
      %vm567 = vcmask 457728
      %v568 = vsel %vm567, %v559, %v463
      %v569 = vsel %vm567, %v560, %v465
      %v570 = vsel %vm567, %v561, %v467
      %v571 = vsel %vm567, %v562, %v469
      %v572 = vsel %vm567, %v563, %v471
      %v573 = vsel %vm567, %v564, %v473
      %v574 = vsel %vm567, %v565, %v475
      %v575 = vsel %vm567, %v566, %v477
      %vm576 = vcmask 523264
      %v577 = vsel %vm576, %v568, %v490
      %v578 = vsel %vm576, %v569, %v492
      %v579 = vsel %vm576, %v570, %v494
      %v580 = vsel %vm576, %v571, %v496
      %v581 = vsel %vm576, %v572, %v498
      %v582 = vsel %vm576, %v573, %v500
      %v583 = vsel %vm576, %v574, %v502
      %v584 = vsel %vm576, %v575, %v504
      %v585 = vpack.c.bf16 %v578, %v577
      %v586 = vpack.c.bf16 %v580, %v579
      %v587 = vpack.c.bf16 %v582, %v581
      %v588 = vpack.c.bf16 %v584, %v583
      %v589 = vld [vmem:[%s1] sm:$0xf]
      %v590 = vld [vmem:[%s1 + $0x4] sm:$0xf]
      %v591 = vld [vmem:[%s1 + $0x8] sm:$0xf]
      %v592 = vld [vmem:[%s1 + $0xc] sm:$0xf]
      %v593 = vld [vmem:[%s1 + $0x10] sm:$0xf]
      %v594 = vld [vmem:[%s1 + $0x14] sm:$0xf]
      %v595 = vld [vmem:[%s1 + $0x18] sm:$0xf]
      %v596 = vld [vmem:[%s1 + $0x1c] sm:$0xf]
      %v597 = vld [vmem:[%s1 + $0x20] sm:$0xf]
      %v598 = vld [vmem:[%s2] sm:$0x1]
      %v600 = vlaneseq
      %v601 = vshrl.u32 %v600, 7
      %v602 = vsub.s32 0, %v601
      %v603 = vrot.slane %v598, %v602
      %v614 = vunpack.c.l.b16 %v589
      %v615 = vunpack.c.l.b16 %v590
      %v616 = vunpack.c.l.b16 %v591
      %v617 = vunpack.c.l.b16 %v592
      %v618 = vunpack.c.l.b16 %v593
      %v619 = vunpack.c.l.b16 %v594
      %v620 = vunpack.c.l.b16 %v595
      %v621 = vunpack.c.l.b16 %v596
      %v622 = vunpack.c.l.b16 %v597
      %v623 = vpack.c.b16 %v615, %v614
      %v624 = vpack.c.b16 %v617, %v616
      %v625 = vpack.c.b16 %v619, %v618
      %v626 = vpack.c.b16 %v621, %v620
      %v627 = vpack.c.b16 %v622, %v622
      %vm632 = vcmask 588800
      %v634 = vsel %vm632, %v585, 0
      %v637 = vsel %vm632, %v586, 0
      %v640 = vsel %vm632, %v587, 0
      %v643 = vsel %vm632, %v588, 0
      %vm645 = vcmask 1043456
      %v647 = vsel %vm645, %v627, 0
      %649 = vmatprep.subr.bf16.mxu0 0
      %650 = vmatpush1.bf16.msra.mxu0 0
      %651 = vmatprep.subr.bf16.mxu0 0
      %652 = vmatpush1.bf16.msra.mxu0 0
      %653 = vmatprep.subr.bf16.mxu0 0
      %654 = vmatpush1.bf16.msra.mxu0 0
      %655 = vmatprep.subr.bf16.mxu0 0
      %656 = vmatpush1.bf16.msra.mxu0 %v647
      %657 = vmatprep.subr.bf16.mxu0 0
      %658 = vmatpush1.bf16.msra.mxu0 %v626
      %659 = vmatprep.subr.bf16.mxu0 0
      %660 = vmatpush1.bf16.msra.mxu0 %v625
      %661 = vmatprep.subr.bf16.mxu0 0
      %662 = vmatpush1.bf16.msra.mxu0 %v624
      %663 = vmatprep.subr.bf16.mxu0 0
      %664 = vmatpush1.bf16.msra.mxu0 %v623
      %665 = vmatprep.subr.bf16.mxu0 0
      %666 = vmatpush2.bf16.msra.mxu0 0
      %667 = vmatprep.subr.bf16.mxu0 0
      %668 = vmatpush2.bf16.msra.mxu0 0
      %669 = vmatprep.subr.bf16.mxu0 0
      %670 = vmatpush2.bf16.msra.mxu0 0
      %671 = vmatprep.subr.bf16.mxu0 0
      %672 = vmatpush2.bf16.msra.mxu0 0
      %673 = vmatprep.subr.bf16.mxu0 0
      %674 = vmatpush2.bf16.msra.mxu0 0
      %675 = vmatprep.subr.bf16.mxu0 0
      %676 = vmatpush2.bf16.msra.mxu0 0
      %677 = vmatprep.subr.bf16.mxu0 0
      %678 = vmatpush2.bf16.msra.mxu0 0
      %679 = vmatprep.subr.bf16.mxu0 0
      %680 = vmatpush2.bf16.msra.mxu0 0
      %681 = vmatprep.mubr.bf16.mxu0 0
      %682 = vmatmul.mubr.bf16.gmra.mxu0 %v634
      %v683 = vpop.f32.mrf.mxu0
      %v684 = vadd.f32 %v603, %v683
      %v685 = vpop.f32.mrf.mxu0
      %v686 = vpop.f32.mrf.mxu0
      %v687 = vadd.f32 %v603, %v686
      %v688 = vpop.f32.mrf.mxu0
      %689 = vmatprep.mubr.bf16.mxu0 0
      %690 = vmatmul.mubr.bf16.gmra.mxu0 %v637
      %v691 = vpop.f32.mrf.mxu0
      %v692 = vadd.f32 %v603, %v691
      %v693 = vpop.f32.mrf.mxu0
      %v694 = vpop.f32.mrf.mxu0
      %v695 = vadd.f32 %v603, %v694
      %v696 = vpop.f32.mrf.mxu0
      %697 = vmatprep.mubr.bf16.mxu0 0
      %698 = vmatmul.mubr.bf16.gmra.mxu0 %v640
      %v699 = vpop.f32.mrf.mxu0
      %v700 = vadd.f32 %v603, %v699
      %v701 = vpop.f32.mrf.mxu0
      %v702 = vpop.f32.mrf.mxu0
      %v703 = vadd.f32 %v603, %v702
      %v704 = vpop.f32.mrf.mxu0
      %705 = vmatprep.mubr.bf16.mxu0 0
      %706 = vmatmul.mubr.bf16.gmra.mxu0 %v643
      %v707 = vpop.f32.mrf.mxu0
      %v708 = vadd.f32 %v603, %v707
      %v709 = vpop.f32.mrf.mxu0
      %v710 = vpop.f32.mrf.mxu0
      %v711 = vadd.f32 %v603, %v710
      %v712 = vpop.f32.mrf.mxu0
      %713 = vdwg.mxu0
      %v714 = vmax.f32 %v684, 0.0
      %v715 = vmax.f32 %v687, 0.0
      %v716 = vmax.f32 %v692, 0.0
      %v717 = vmax.f32 %v695, 0.0
      %v718 = vmax.f32 %v700, 0.0
      %v719 = vmax.f32 %v703, 0.0
      %v720 = vmax.f32 %v708, 0.0
      %v721 = vmax.f32 %v711, 0.0
      %v722 = vpack.c.bf16 %v714, %v714
      %v723 = vpack.c.bf16 %v715, %v715
      %v724 = vpack.c.bf16 %v716, %v716
      %v725 = vpack.c.bf16 %v717, %v717
      %v726 = vpack.c.bf16 %v718, %v718
      %v727 = vpack.c.bf16 %v719, %v719
      %v728 = vpack.c.bf16 %v720, %v720
      %v729 = vpack.c.bf16 %v721, %v721
      %vm730 = vcmask 125952
      %731 = vst.msk [vmem:[%s192] sm:$0xf] %vm730, %v722
      %732 = vst.msk [vmem:[%s192 + $0x4] sm:$0xf] %vm730, %v723
      %733 = vst.msk [vmem:[%s192 + $0x8] sm:$0xf] %vm730, %v724
      %734 = vst.msk [vmem:[%s192 + $0xc] sm:$0xf] %vm730, %v725
      %735 = vst.msk [vmem:[%s192 + $0x10] sm:$0xf] %vm730, %v726
      %736 = vst.msk [vmem:[%s192 + $0x14] sm:$0xf] %vm730, %v727
      %737 = vst.msk [vmem:[%s192 + $0x18] sm:$0xf] %vm730, %v728
      %738 = vst.msk [vmem:[%s192 + $0x1c] sm:$0xf] %vm730, %v729
      %s739 = smul.u32 8, %s19
      %p740 = scmp.lt.s32.totalorder %s18, 1
      %s741 = scalar_select %p740, %s18, 1
      %p742 = scmp.lt.s32.totalorder %s739, 7
      %s743 = scalar_select %p742, %s739, 7
      %s744 = smul.addr %s741, 8
      %s745 = sadd.s32 %s743, %s744
      %s746 = smul.addr %s745, 4
      %s747 = scalar_lea.vmem %s3, %s746
      // Predicated region
      $region33: #{deep_unet_forward.7} parent=31 // pred_check
        %p748 = pneg %p114
      $region34: #{deep_unet_forward.7} parent=31 // pred_check_branch
        %750 = sbr.rel (%p748) target = $region36
      $region35: #{deep_unet_forward.7} parent=31 // pred_region
        %s751 = smul.u32 8, %s19
      $region36: #{deep_unet_forward.7} parent=31 // pred_fallthru
        _
    $region32: #{deep_unet_forward.7} parent=5 // pred_fallthru
      _
    %p752 = scmp.le.s32.totalorder 2, %s9
    // Predicated region
    $region37: #{deep_unet_forward.7} parent=5 // pred_check
      %p753 = pneg %p752
    $region38: #{deep_unet_forward.7} parent=5 // pred_check_branch
      %755 = sbr.rel (%p753) target = $region40
    $region39: #{deep_unet_forward.7} parent=5 // pred_region
      %s756 = ssub.s32 %s9, 2
      // Predicated region
      $region41: #{deep_unet_forward.7} parent=39 // pred_check
        %p757 = pneg %p120
      $region42: #{deep_unet_forward.7} parent=39 // pred_check_branch
        %759 = sbr.rel (%p757) target = $region44
      $region43: #{deep_unet_forward.7} parent=39 // pred_region
        %s760 = smul.u32 8, %s21
        %p761 = scmp.lt.s32.totalorder %s20, 1
        %s762 = scalar_select %p761, %s20, 1
        %p763 = scmp.lt.s32.totalorder %s760, 7
        %s764 = scalar_select %p763, %s760, 7
        %s765 = smul.addr %s762, 8
        %s766 = sadd.s32 %s764, %s765
        %s767 = smul.addr %s766, 4
        %s768 = scalar_lea.vmem %s3, %s767
      $region44: #{deep_unet_forward.7} parent=39 // pred_fallthru
        _
    $region40: #{deep_unet_forward.7} parent=5 // pred_fallthru
      _
  $region6: #{deep_unet_forward.7} parent=0 // loop_footer
    %s13 = sadd.s32 1, %s9
  $region7: #{deep_unet_forward.7} parent=0 // loop_footer_branch
    %8 = sbr.rel target = $region3
  $region8: #{deep_unet_forward.7} parent=0 // loop_exit
    _

// kernel: deep_unet_forward.6
$region0: #{deep_unet_forward.6}
  #allocation0 [shape = 'u32[]', space=smem, size = 0x4, offset = 0x4, fixed_abs, tag = 'smem constant byte address 0x4 - core index']
  #allocation1 [shape = 'u32[144,128]{1,0:T(1,128)}', space=vmem, size = 0x12000, scoped, tag = 'internal scratch']
  %s0 = inlined_call_operand.vmem [shape: bf16[2,18,18,3], index: 0, kind: input, shape index: {}]
  %s1 = inlined_call_operand.vmem [shape: bf16[27,8], index: 1, kind: input, shape index: {}]
  %s2 = inlined_call_operand.vmem [shape: f32[1,8], index: 2, kind: input, shape index: {}]
  %s3 = inlined_call_operand.vmem [shape: bf16[2,16,16,8], index: 3, kind: output, shape index: {}]
  %s4 = sld [smem:[#allocation0]]
  $region45: #{deep_unet_forward.6} parent=0
    _
  %s6 = ssub.s32 1, %s4
  %s7 = scalar_select 0, %s6, %s4
  loop: start=0, step=1, limit=4
  $region2: #{deep_unet_forward.6} parent=0 // loop_pre_header
    _
  $region3: #{deep_unet_forward.6} parent=0 // loop_header
    %s9 = sphi 0, %s13
    %p10 = scmp.ge.s32.totalorder %s9, 4
    %s16 = sphi 0, %s28
    %s17 = sphi 0, %s24
    %s18 = sphi 0, %s16
    %s19 = sphi 0, %s17
    %s20 = sphi 0, %s18
    %s21 = sphi 0, %s19
    %s31 = sphi 0, %s33
    %s34 = sphi 0, %s31
    %s35 = sphi 0, %s34
    %s51 = sphi 0, %s35
    %s55 = sphi 0, %s55
    %s57 = sphi 0, %s55
    %s58 = sphi 0, %s57
    %s72 = sphi 0, %s58
    %s76 = sphi 0, %s76
    %s78 = sphi 0, %s76
    %s79 = sphi 0, %s78
    %s93 = sphi 0, %s79
    %s101 = sphi 0, %s103
    %s104 = sphi 0, %s101
    %s105 = sphi 0, %s104
    %s121 = sphi 0, %s105
  $region4: #{deep_unet_forward.6} parent=0 // loop_header_branch
    %12 = sbr.rel (%p10) target = $region8
  $region5: #{deep_unet_forward.6} parent=0 // loop_body
    %s14 = ssub.s32 %s9, 1
    %s15 = ssub.s32 %s9, 2
    %s22 = sadd.s32 1, %s17
    %p23 = scmp.ge.s32.totalorder %s22, 1
    %s24 = scalar_select %p23, 0, %s22
    %s25 = sadd.s32 1, %s16
    %s26 = scalar_select %p23, %s25, %s16
    %p27 = scmp.ge.s32.totalorder %s26, 2
    %s28 = scalar_select %p27, 0, %s26
    %s29 = ssub.s32 %s16, %s28
    %p30 = scmp.eq.s32.totalorder %s29, 0
    %s32 = sadd.s32 %s31, 1
    %s33 = scalar_select %p30, %s31, %s32
    %p36 = pneg %p30
    %p37 = scmp.eq.s32.totalorder %s9, 1
    %p38 = por %p36, %p37
    %p39 = scmp.ne.s32.totalorder %s31, %s34
    %p40 = scmp.eq.s32.totalorder %s9, 0
    %p41 = por %p39, %p40
    %p42 = scmp.ne.s32.totalorder %s31, %s34
    %p43 = scmp.eq.s32.totalorder %s14, 1
    %p44 = por %p42, %p43
    %p45 = scmp.ne.s32.totalorder %s34, %s35
    %p46 = scmp.eq.s32.totalorder %s14, 0
    %p47 = por %p45, %p46
    %p48 = scmp.ne.s32.totalorder %s34, %s35
    %p49 = scmp.eq.s32.totalorder %s15, 1
    %p50 = por %p48, %p49
    %p52 = scmp.ne.s32.totalorder %s35, %s51
    %p53 = scmp.eq.s32.totalorder %s15, 0
    %p54 = por %p52, %p53
    %s56 = sadd.s32 %s55, 1
    %p59 = scmp.eq.s32.totalorder %s9, 1
    %p60 = scmp.ne.s32.totalorder %s55, %s57
    %p61 = scmp.eq.s32.totalorder %s9, 0
    %p62 = por %p60, %p61
    %p63 = scmp.ne.s32.totalorder %s55, %s57
    %p64 = scmp.eq.s32.totalorder %s14, 1
    %p65 = por %p63, %p64
    %p66 = scmp.ne.s32.totalorder %s57, %s58
    %p67 = scmp.eq.s32.totalorder %s14, 0
    %p68 = por %p66, %p67
    %p69 = scmp.ne.s32.totalorder %s57, %s58
    %p70 = scmp.eq.s32.totalorder %s15, 1
    %p71 = por %p69, %p70
    %p73 = scmp.ne.s32.totalorder %s58, %s72
    %p74 = scmp.eq.s32.totalorder %s15, 0
    %p75 = por %p73, %p74
    %s77 = sadd.s32 %s76, 1
    %p80 = scmp.eq.s32.totalorder %s9, 1
    %p81 = scmp.ne.s32.totalorder %s76, %s78
    %p82 = scmp.eq.s32.totalorder %s9, 0
    %p83 = por %p81, %p82
    %p84 = scmp.ne.s32.totalorder %s76, %s78
    %p85 = scmp.eq.s32.totalorder %s14, 1
    %p86 = por %p84, %p85
    %p87 = scmp.ne.s32.totalorder %s78, %s79
    %p88 = scmp.eq.s32.totalorder %s14, 0
    %p89 = por %p87, %p88
    %p90 = scmp.ne.s32.totalorder %s78, %s79
    %p91 = scmp.eq.s32.totalorder %s15, 1
    %p92 = por %p90, %p91
    %p94 = scmp.ne.s32.totalorder %s79, %s93
    %p95 = scmp.eq.s32.totalorder %s15, 0
    %p96 = por %p94, %p95
    %s97 = ssub.s32 %s16, %s28
    %s98 = ssub.s32 %s17, %s24
    %s99 = sor.u32 %s97, %s98
    %p100 = scmp.eq.s32.totalorder %s99, 0
    %s102 = sadd.s32 %s101, 1
    %s103 = scalar_select %p100, %s101, %s102
    %p106 = pneg %p100
    %p107 = scmp.eq.s32.totalorder %s9, 1
    %p108 = por %p106, %p107
    %p109 = scmp.ne.s32.totalorder %s101, %s104
    %p110 = scmp.eq.s32.totalorder %s9, 0
    %p111 = por %p109, %p110
    %p112 = scmp.ne.s32.totalorder %s101, %s104
    %p113 = scmp.eq.s32.totalorder %s14, 1
    %p114 = por %p112, %p113
    %p115 = scmp.ne.s32.totalorder %s104, %s105
    %p116 = scmp.eq.s32.totalorder %s14, 0
    %p117 = por %p115, %p116
    %p118 = scmp.ne.s32.totalorder %s104, %s105
    %p119 = scmp.eq.s32.totalorder %s15, 1
    %p120 = por %p118, %p119
    %p122 = scmp.ne.s32.totalorder %s105, %s121
    %p123 = scmp.eq.s32.totalorder %s15, 0
    %p124 = por %p122, %p123
    %p125 = scmp.le.s32.totalorder 1, %s9
    %p126 = scmp.lt.s32.totalorder %s9, 3
    %p127 = pnand %p125, %p126
    %p128 = pneg %p127
    // Predicated region
    $region9: #{deep_unet_forward.6} parent=5 // pred_check
      _
    $region10: #{deep_unet_forward.6} parent=5 // pred_check_branch
      %130 = sbr.rel (%p127) target = $region12
    $region11: #{deep_unet_forward.6} parent=5 // pred_region
      %s131 = ssub.s32 %s9, 1
      // Predicated region
      $region13: #{deep_unet_forward.6} parent=11 // pred_check
        %p132 = pneg %p68
      $region14: #{deep_unet_forward.6} parent=11 // pred_check_branch
        %134 = sbr.rel (%p132) target = $region16
      $region15: #{deep_unet_forward.6} parent=11 // pred_region
        _
      $region16: #{deep_unet_forward.6} parent=11 // pred_fallthru
        _
      // Predicated region
      $region17: #{deep_unet_forward.6} parent=11 // pred_check
        %p135 = pneg %p89
      $region18: #{deep_unet_forward.6} parent=11 // pred_check_branch
        %137 = sbr.rel (%p135) target = $region20
      $region19: #{deep_unet_forward.6} parent=11 // pred_region
        _
      $region20: #{deep_unet_forward.6} parent=11 // pred_fallthru
        _
    $region12: #{deep_unet_forward.6} parent=5 // pred_fallthru
      _
    %p138 = scmp.lt.s32.totalorder %s9, 2
    // Predicated region
    $region21: #{deep_unet_forward.6} parent=5 // pred_check
      %p139 = pneg %p138
    $region22: #{deep_unet_forward.6} parent=5 // pred_check_branch
      %141 = sbr.rel (%p139) target = $region24
    $region23: #{deep_unet_forward.6} parent=5 // pred_region
      // Predicated region
      $region25: #{deep_unet_forward.6} parent=23 // pred_check
        %p142 = pneg %p41
      $region26: #{deep_unet_forward.6} parent=23 // pred_check_branch
        %144 = sbr.rel (%p142) target = $region28
      $region27: #{deep_unet_forward.6} parent=23 // pred_region
        %p145 = scmp.lt.s32.totalorder %s16, 1
        %s146 = scalar_select %p145, %s16, 1
        %s147 = smul.addr %s146, 54
        %s148 = smul.addr %s147, 4
        %s149 = scalar_lea.vmem %s0, %s148
      $region28: #{deep_unet_forward.6} parent=23 // pred_fallthru
        _
    $region24: #{deep_unet_forward.6} parent=5 // pred_fallthru
      _
    %p150 = scmp.le.s32.totalorder 1, %s9
    %p151 = scmp.lt.s32.totalorder %s9, 3
    %p152 = pnand %p150, %p151
    %p153 = pneg %p152
    // Predicated region
    $region29: #{deep_unet_forward.6} parent=5 // pred_check
      _
    $region30: #{deep_unet_forward.6} parent=5 // pred_check_branch
      %155 = sbr.rel (%p152) target = $region32
    $region31: #{deep_unet_forward.6} parent=5 // pred_region
      %s156 = ssub.s32 %s9, 1
      %p157 = scmp.lt.s32.totalorder %s18, 1
      %s158 = scalar_select %p157, %s18, 1
      %s159 = smul.addr %s158, 54
      %s160 = smul.addr %s159, 4
      %s161 = scalar_lea.vmem %s0, %s160
      %p162 = pneg %p47
      %p163 = pneg %p44
      %p164 = pneg %p68
      %p165 = pneg %p65
      %p166 = pneg %p89
      %p167 = pneg %p86
      %p168 = pneg %p117
      %p169 = pneg %p114
      %s170 = smul.u32 16, %s19
      %p171 = scmp.lt.s32.totalorder %s18, 1
      %s172 = scalar_select %p171, %s18, 1
      %p173 = scmp.lt.s32.totalorder %s170, 15
      %s174 = scalar_select %p173, %s170, 15
      %s175 = smul.addr %s174, 2
      %s176 = smul.addr %s172, 32
      %s177 = sadd.s32 %s175, %s176
      %s178 = smul.addr %s177, 4
      %s179 = scalar_lea.vmem %s3, %s178
      %p180 = scmp.lt.s32.totalorder %s18, 1
      %s181 = scalar_select %p180, %s18, 1
      %s182 = smul.addr %s181, 54
      %s183 = smul.addr %s182, 4
      %s184 = scalar_lea.vmem %s0, %s183
      %s185 = smul.u32 16, %s19
      %p186 = scmp.lt.s32.totalorder %s18, 1
      %s187 = scalar_select %p186, %s18, 1
      %p188 = scmp.lt.s32.totalorder %s185, 15
      %s189 = scalar_select %p188, %s185, 15
      %s190 = smul.addr %s189, 2
      %s191 = smul.addr %s187, 32
      %s192 = sadd.s32 %s190, %s191
      %s193 = smul.addr %s192, 4
      %s194 = scalar_lea.vmem %s3, %s193
      %s195 = smul.u32 16, %s19
      %s197 = smul.u32 %s19, 16
      %s198 = smul.u32 %s197, 3
      %s199 = smul.addr %s198, 4
      %s200 = scalar_lea.vmem %s184, %s199
      %v201 = vld [vmem:[%s200] sm:$0xf]
      %v202 = vld [vmem:[%s200 + $0x4] sm:$0xf]
      %v203 = vld [vmem:[%s200 + $0x8] sm:$0x1]
      %v204 = vld [vmem:[%s200 + $0xc] sm:$0xf]
      %v205 = vld [vmem:[%s200 + $0x10] sm:$0xf]
      %v206 = vld [vmem:[%s200 + $0x14] sm:$0x1]
      %v207 = vld [vmem:[%s200 + $0x18] sm:$0xf]
      %v208 = vld [vmem:[%s200 + $0x1c] sm:$0xf]
      %v209 = vld [vmem:[%s200 + $0x20] sm:$0x1]
      %v210 = vld [vmem:[%s200 + $0x24] sm:$0xf]
      %v211 = vld [vmem:[%s200 + $0x28] sm:$0xf]
      %v212 = vld [vmem:[%s200 + $0x2c] sm:$0x1]
      %v213 = vld [vmem:[%s200 + $0x30] sm:$0xf]
      %v214 = vld [vmem:[%s200 + $0x34] sm:$0xf]
      %v215 = vld [vmem:[%s200 + $0x38] sm:$0x1]
      %v216 = vld [vmem:[%s200 + $0x3c] sm:$0xf]
      %v217 = vld [vmem:[%s200 + $0x40] sm:$0xf]
      %v218 = vld [vmem:[%s200 + $0x44] sm:$0x1]
      %v219 = vld [vmem:[%s200 + $0x48] sm:$0xf]
      %v220 = vld [vmem:[%s200 + $0x4c] sm:$0xf]
      %v221 = vld [vmem:[%s200 + $0x50] sm:$0x1]
      %v222 = vld [vmem:[%s200 + $0x54] sm:$0xf]
      %v223 = vld [vmem:[%s200 + $0x58] sm:$0xf]
      %v224 = vld [vmem:[%s200 + $0x5c] sm:$0x1]
      %v225 = vld [vmem:[%s200 + $0x60] sm:$0xf]
      %v226 = vld [vmem:[%s200 + $0x64] sm:$0xf]
      %v227 = vld [vmem:[%s200 + $0x68] sm:$0x1]
      %v228 = vld [vmem:[%s200 + $0x6c] sm:$0xf]
      %v229 = vld [vmem:[%s200 + $0x70] sm:$0xf]
      %v230 = vld [vmem:[%s200 + $0x74] sm:$0x1]
      %v231 = vld [vmem:[%s200 + $0x78] sm:$0xf]
      %v232 = vld [vmem:[%s200 + $0x7c] sm:$0xf]
      %v233 = vld [vmem:[%s200 + $0x80] sm:$0x1]
      %v234 = vld [vmem:[%s200 + $0x84] sm:$0xf]
      %v235 = vld [vmem:[%s200 + $0x88] sm:$0xf]
      %v236 = vld [vmem:[%s200 + $0x8c] sm:$0x1]
      %v237 = vld [vmem:[%s200 + $0x90] sm:$0xf]
      %v238 = vld [vmem:[%s200 + $0x94] sm:$0xf]
      %v239 = vld [vmem:[%s200 + $0x98] sm:$0x1]
      %v240 = vld [vmem:[%s200 + $0x9c] sm:$0xf]
      %v241 = vld [vmem:[%s200 + $0xa0] sm:$0xf]
      %v242 = vld [vmem:[%s200 + $0xa4] sm:$0x1]
      %v243 = vld [vmem:[%s200 + $0xa8] sm:$0xf]
      %v244 = vld [vmem:[%s200 + $0xac] sm:$0xf]
      %v245 = vld [vmem:[%s200 + $0xb0] sm:$0x1]
      %v246 = vld [vmem:[%s200 + $0xb4] sm:$0xf]
      %v247 = vld [vmem:[%s200 + $0xb8] sm:$0xf]
      %v248 = vld [vmem:[%s200 + $0xbc] sm:$0x1]
      %v249 = vld [vmem:[%s200 + $0xc0] sm:$0xf]
      %v250 = vld [vmem:[%s200 + $0xc4] sm:$0xf]
      %v251 = vld [vmem:[%s200 + $0xc8] sm:$0x1]
      %v252 = vld [vmem:[%s200 + $0xcc] sm:$0xf]
      %v253 = vld [vmem:[%s200 + $0xd0] sm:$0xf]
      %v254 = vld [vmem:[%s200 + $0xd4] sm:$0x1]
      %v255 = vunpack.c.l.bf16 %v201
      %v256 = vunpack.c.l.bf16 %v202
      %v257 = vunpack.c.l.bf16 %v203
      %v258 = vunpack.c.l.bf16 %v204
      %v259 = vunpack.c.l.bf16 %v205
      %v260 = vunpack.c.l.bf16 %v206
      %v261 = vunpack.c.l.bf16 %v207
      %v262 = vunpack.c.l.bf16 %v208
      %v263 = vunpack.c.l.bf16 %v209
      %v264 = vunpack.c.l.bf16 %v210
      %v265 = vunpack.c.l.bf16 %v211
      %v266 = vunpack.c.l.bf16 %v212
      %v267 = vunpack.c.l.bf16 %v213
      %v268 = vunpack.c.l.bf16 %v214
      %v269 = vunpack.c.l.bf16 %v215
      %v270 = vunpack.c.l.bf16 %v216
      %v271 = vunpack.c.l.bf16 %v217
      %v272 = vunpack.c.l.bf16 %v218
      %v273 = vunpack.c.l.bf16 %v219
      %v274 = vunpack.c.l.bf16 %v220
      %v275 = vunpack.c.l.bf16 %v221
      %v276 = vunpack.c.l.bf16 %v222
      %v277 = vunpack.c.l.bf16 %v223
      %v278 = vunpack.c.l.bf16 %v224
      %v279 = vunpack.c.l.bf16 %v225
      %v280 = vunpack.c.l.bf16 %v226
      %v281 = vunpack.c.l.bf16 %v227
      %v282 = vunpack.c.l.bf16 %v228
      %v283 = vunpack.c.l.bf16 %v229
      %v284 = vunpack.c.l.bf16 %v230
      %v285 = vunpack.c.l.bf16 %v231
      %v286 = vunpack.c.l.bf16 %v232
      %v287 = vunpack.c.l.bf16 %v233
      %v288 = vunpack.c.l.bf16 %v234
      %v289 = vunpack.c.l.bf16 %v235
      %v290 = vunpack.c.l.bf16 %v236
      %v291 = vunpack.c.l.bf16 %v237
      %v292 = vunpack.c.l.bf16 %v238
      %v293 = vunpack.c.l.bf16 %v239
      %v294 = vunpack.c.l.bf16 %v240
      %v295 = vunpack.c.l.bf16 %v241
      %v296 = vunpack.c.l.bf16 %v242
      %v297 = vunpack.c.l.bf16 %v243
      %v298 = vunpack.c.l.bf16 %v244
      %v299 = vunpack.c.l.bf16 %v245
      %v300 = vunpack.c.l.bf16 %v246
      %v301 = vunpack.c.l.bf16 %v247
      %v302 = vunpack.c.l.bf16 %v248
      %v303 = vunpack.c.l.bf16 %v249
      %v304 = vunpack.c.l.bf16 %v250
      %v305 = vunpack.c.l.bf16 %v251
      %v306 = vunpack.c.l.bf16 %v252
      %v307 = vunpack.c.l.bf16 %v253
      %v308 = vunpack.c.l.bf16 %v254
      %vm357 = vcmask 1046528
      %v358 = vrot.slane %v255, 1
      %v359 = vrot.slane %v256, 1
      %v360 = vsel %vm357, %v358, %v359
      %v361 = vrot.slane %v257, 1
      %v362 = vsel %vm357, %v359, %v361
      %v363 = vrot.slane %v258, 1
      %v364 = vrot.slane %v259, 1
      %v365 = vsel %vm357, %v363, %v364
      %v366 = vrot.slane %v260, 1
      %v367 = vsel %vm357, %v364, %v366
      %v368 = vrot.slane %v261, 1
      %v369 = vrot.slane %v262, 1
      %v370 = vsel %vm357, %v368, %v369
      %v371 = vrot.slane %v263, 1
      %v372 = vsel %vm357, %v369, %v371
      %v373 = vrot.slane %v264, 1
      %v374 = vrot.slane %v265, 1
      %v375 = vsel %vm357, %v373, %v374
      %v376 = vrot.slane %v266, 1
      %v377 = vsel %vm357, %v374, %v376
      %v378 = vrot.slane %v267, 1
      %v379 = vrot.slane %v268, 1
      %v380 = vsel %vm357, %v378, %v379
      %v381 = vrot.slane %v269, 1
      %v382 = vsel %vm357, %v379, %v381
      %v383 = vrot.slane %v270, 1
      %v384 = vrot.slane %v271, 1
      %v385 = vsel %vm357, %v383, %v384
      %v386 = vrot.slane %v272, 1
      %v387 = vsel %vm357, %v384, %v386
      %v388 = vrot.slane %v273, 1
      %v389 = vrot.slane %v274, 1
      %v390 = vsel %vm357, %v388, %v389
      %v391 = vrot.slane %v275, 1
      %v392 = vsel %vm357, %v389, %v391
      %v393 = vrot.slane %v276, 1
      %v394 = vrot.slane %v277, 1
      %v395 = vsel %vm357, %v393, %v394
      %v396 = vrot.slane %v278, 1
      %v397 = vsel %vm357, %v394, %v396
      %v398 = vrot.slane %v279, 1
      %v399 = vrot.slane %v280, 1
      %v400 = vsel %vm357, %v398, %v399
      %v401 = vrot.slane %v281, 1
      %v402 = vsel %vm357, %v399, %v401
      %v403 = vrot.slane %v282, 1
      %v404 = vrot.slane %v283, 1
      %v405 = vsel %vm357, %v403, %v404
      %v406 = vrot.slane %v284, 1
      %v407 = vsel %vm357, %v404, %v406
      %v408 = vrot.slane %v285, 1
      %v409 = vrot.slane %v286, 1
      %v410 = vsel %vm357, %v408, %v409
      %v411 = vrot.slane %v287, 1
      %v412 = vsel %vm357, %v409, %v411
      %v413 = vrot.slane %v288, 1
      %v414 = vrot.slane %v289, 1
      %v415 = vsel %vm357, %v413, %v414
      %v416 = vrot.slane %v290, 1
      %v417 = vsel %vm357, %v414, %v416
      %v418 = vrot.slane %v291, 1
      %v419 = vrot.slane %v292, 1
      %v420 = vsel %vm357, %v418, %v419
      %v421 = vrot.slane %v293, 1
      %v422 = vsel %vm357, %v419, %v421
      %v423 = vrot.slane %v294, 1
      %v424 = vrot.slane %v295, 1
      %v425 = vsel %vm357, %v423, %v424
      %v426 = vrot.slane %v296, 1
      %v427 = vsel %vm357, %v424, %v426
      %v428 = vrot.slane %v297, 1
      %v429 = vrot.slane %v298, 1
      %v430 = vsel %vm357, %v428, %v429
      %v431 = vrot.slane %v299, 1
      %v432 = vsel %vm357, %v429, %v431
      %v433 = vrot.slane %v300, 1
      %v434 = vrot.slane %v301, 1
      %v435 = vsel %vm357, %v433, %v434
      %v436 = vrot.slane %v302, 1
      %v437 = vsel %vm357, %v434, %v436
      %438 = vrot.lane.b32.xlu0 %v360, 3
      %v439 = vpop.permute.xlu0 %438
      %440 = vrot.lane.b32.xlu0 %v362, 3
      %v441 = vpop.permute.xlu0 %440
      %442 = vrot.lane.b32.xlu0 %v365, 3
      %v443 = vpop.permute.xlu0 %442
      %444 = vrot.lane.b32.xlu0 %v367, 3
      %v445 = vpop.permute.xlu0 %444
      %446 = vrot.lane.b32.xlu0 %v370, 3
      %v447 = vpop.permute.xlu0 %446
      %448 = vrot.lane.b32.xlu0 %v372, 3
      %v449 = vpop.permute.xlu0 %448
      %450 = vrot.lane.b32.xlu0 %v375, 3
      %v451 = vpop.permute.xlu0 %450
      %452 = vrot.lane.b32.xlu0 %v377, 3
      %v453 = vpop.permute.xlu0 %452
      %454 = vrot.lane.b32.xlu0 %v380, 3
      %v455 = vpop.permute.xlu0 %454
      %456 = vrot.lane.b32.xlu0 %v382, 3
      %v457 = vpop.permute.xlu0 %456
      %458 = vrot.lane.b32.xlu0 %v385, 3
      %v459 = vpop.permute.xlu0 %458
      %460 = vrot.lane.b32.xlu0 %v387, 3
      %v461 = vpop.permute.xlu0 %460
      %462 = vrot.lane.b32.xlu0 %v390, 3
      %v463 = vpop.permute.xlu0 %462
      %464 = vrot.lane.b32.xlu0 %v392, 3
      %v465 = vpop.permute.xlu0 %464
      %466 = vrot.lane.b32.xlu0 %v395, 3
      %v467 = vpop.permute.xlu0 %466
      %468 = vrot.lane.b32.xlu0 %v397, 3
      %v469 = vpop.permute.xlu0 %468
      %470 = vrot.lane.b32.xlu0 %v400, 3
      %v471 = vpop.permute.xlu0 %470
      %472 = vrot.lane.b32.xlu0 %v402, 3
      %v473 = vpop.permute.xlu0 %472
      %474 = vrot.lane.b32.xlu0 %v405, 3
      %v475 = vpop.permute.xlu0 %474
      %476 = vrot.lane.b32.xlu0 %v407, 3
      %v477 = vpop.permute.xlu0 %476
      %478 = vrot.lane.b32.xlu0 %v410, 3
      %v479 = vpop.permute.xlu0 %478
      %480 = vrot.lane.b32.xlu0 %v412, 3
      %v481 = vpop.permute.xlu0 %480
      %482 = vrot.lane.b32.xlu0 %v415, 3
      %v483 = vpop.permute.xlu0 %482
      %484 = vrot.lane.b32.xlu0 %v417, 3
      %v485 = vpop.permute.xlu0 %484
      %486 = vrot.lane.b32.xlu0 %v420, 3
      %v487 = vpop.permute.xlu0 %486
      %488 = vrot.lane.b32.xlu0 %v422, 3
      %v489 = vpop.permute.xlu0 %488
      %490 = vrot.lane.b32.xlu0 %v425, 3
      %v491 = vpop.permute.xlu0 %490
      %492 = vrot.lane.b32.xlu0 %v427, 3
      %v493 = vpop.permute.xlu0 %492
      %494 = vrot.lane.b32.xlu0 %v430, 3
      %v495 = vpop.permute.xlu0 %494
      %496 = vrot.lane.b32.xlu0 %v432, 3
      %v497 = vpop.permute.xlu0 %496
      %498 = vrot.lane.b32.xlu0 %v435, 3
      %v499 = vpop.permute.xlu0 %498
      %500 = vrot.lane.b32.xlu0 %v437, 3
      %v501 = vpop.permute.xlu0 %500
      %vm534 = vcmask 1045504
      %v535 = vrot.slane %v255, 2
      %v536 = vrot.slane %v256, 2
      %v537 = vsel %vm534, %v535, %v536
      %v538 = vrot.slane %v257, 2
      %v539 = vsel %vm534, %v536, %v538
      %v540 = vrot.slane %v258, 2
      %v541 = vrot.slane %v259, 2
      %v542 = vsel %vm534, %v540, %v541
      %v543 = vrot.slane %v260, 2
      %v544 = vsel %vm534, %v541, %v543
      %v545 = vrot.slane %v261, 2
      %v546 = vrot.slane %v262, 2
      %v547 = vsel %vm534, %v545, %v546
      %v548 = vrot.slane %v263, 2
      %v549 = vsel %vm534, %v546, %v548
      %v550 = vrot.slane %v264, 2
      %v551 = vrot.slane %v265, 2
      %v552 = vsel %vm534, %v550, %v551
      %v553 = vrot.slane %v266, 2
      %v554 = vsel %vm534, %v551, %v553
      %v555 = vrot.slane %v267, 2
      %v556 = vrot.slane %v268, 2
      %v557 = vsel %vm534, %v555, %v556
      %v558 = vrot.slane %v269, 2
      %v559 = vsel %vm534, %v556, %v558
      %v560 = vrot.slane %v270, 2
      %v561 = vrot.slane %v271, 2
      %v562 = vsel %vm534, %v560, %v561
      %v563 = vrot.slane %v272, 2
      %v564 = vsel %vm534, %v561, %v563
      %v565 = vrot.slane %v273, 2
      %v566 = vrot.slane %v274, 2
      %v567 = vsel %vm534, %v565, %v566
      %v568 = vrot.slane %v275, 2
      %v569 = vsel %vm534, %v566, %v568
      %v570 = vrot.slane %v276, 2
      %v571 = vrot.slane %v277, 2
      %v572 = vsel %vm534, %v570, %v571
      %v573 = vrot.slane %v278, 2
      %v574 = vsel %vm534, %v571, %v573
      %v575 = vrot.slane %v279, 2
      %v576 = vrot.slane %v280, 2
      %v577 = vsel %vm534, %v575, %v576
      %v578 = vrot.slane %v281, 2
      %v579 = vsel %vm534, %v576, %v578
      %v580 = vrot.slane %v282, 2
      %v581 = vrot.slane %v283, 2
      %v582 = vsel %vm534, %v580, %v581
      %v583 = vrot.slane %v284, 2
      %v584 = vsel %vm534, %v581, %v583
      %v585 = vrot.slane %v285, 2
      %v586 = vrot.slane %v286, 2
      %v587 = vsel %vm534, %v585, %v586
      %v588 = vrot.slane %v287, 2
      %v589 = vsel %vm534, %v586, %v588
      %v590 = vrot.slane %v288, 2
      %v591 = vrot.slane %v289, 2
      %v592 = vsel %vm534, %v590, %v591
      %v593 = vrot.slane %v290, 2
      %v594 = vsel %vm534, %v591, %v593
      %v595 = vrot.slane %v291, 2
      %v596 = vrot.slane %v292, 2
      %v597 = vsel %vm534, %v595, %v596
      %v598 = vrot.slane %v293, 2
      %v599 = vsel %vm534, %v596, %v598
      %v600 = vrot.slane %v294, 2
      %v601 = vrot.slane %v295, 2
      %v602 = vsel %vm534, %v600, %v601
      %v603 = vrot.slane %v296, 2
      %v604 = vsel %vm534, %v601, %v603
      %v605 = vrot.slane %v297, 2
      %v606 = vrot.slane %v298, 2
      %v607 = vsel %vm534, %v605, %v606
      %v608 = vrot.slane %v299, 2
      %v609 = vsel %vm534, %v606, %v608
      %v610 = vrot.slane %v300, 2
      %v611 = vrot.slane %v301, 2
      %v612 = vsel %vm534, %v610, %v611
      %v613 = vrot.slane %v302, 2
      %v614 = vsel %vm534, %v611, %v613
      %615 = vrot.lane.b32.xlu0 %v537, 6
      %v616 = vpop.permute.xlu0 %615
      %617 = vrot.lane.b32.xlu0 %v539, 6
      %v618 = vpop.permute.xlu0 %617
      %619 = vrot.lane.b32.xlu0 %v542, 6
      %v620 = vpop.permute.xlu0 %619
      %621 = vrot.lane.b32.xlu0 %v544, 6
      %v622 = vpop.permute.xlu0 %621
      %623 = vrot.lane.b32.xlu0 %v547, 6
      %v624 = vpop.permute.xlu0 %623
      %625 = vrot.lane.b32.xlu0 %v549, 6
      %v626 = vpop.permute.xlu0 %625
      %627 = vrot.lane.b32.xlu0 %v552, 6
      %v628 = vpop.permute.xlu0 %627
      %629 = vrot.lane.b32.xlu0 %v554, 6
      %v630 = vpop.permute.xlu0 %629
      %631 = vrot.lane.b32.xlu0 %v557, 6
      %v632 = vpop.permute.xlu0 %631
      %633 = vrot.lane.b32.xlu0 %v559, 6
      %v634 = vpop.permute.xlu0 %633
      %635 = vrot.lane.b32.xlu0 %v562, 6
      %v636 = vpop.permute.xlu0 %635
      %637 = vrot.lane.b32.xlu0 %v564, 6
      %v638 = vpop.permute.xlu0 %637
      %639 = vrot.lane.b32.xlu0 %v567, 6
      %v640 = vpop.permute.xlu0 %639
      %641 = vrot.lane.b32.xlu0 %v569, 6
      %v642 = vpop.permute.xlu0 %641
      %643 = vrot.lane.b32.xlu0 %v572, 6
      %v644 = vpop.permute.xlu0 %643
      %645 = vrot.lane.b32.xlu0 %v574, 6
      %v646 = vpop.permute.xlu0 %645
      %647 = vrot.lane.b32.xlu0 %v577, 6
      %v648 = vpop.permute.xlu0 %647
      %649 = vrot.lane.b32.xlu0 %v579, 6
      %v650 = vpop.permute.xlu0 %649
      %651 = vrot.lane.b32.xlu0 %v582, 6
      %v652 = vpop.permute.xlu0 %651
      %653 = vrot.lane.b32.xlu0 %v584, 6
      %v654 = vpop.permute.xlu0 %653
      %655 = vrot.lane.b32.xlu0 %v587, 6
      %v656 = vpop.permute.xlu0 %655
      %657 = vrot.lane.b32.xlu0 %v589, 6
      %v658 = vpop.permute.xlu0 %657
      %659 = vrot.lane.b32.xlu0 %v592, 6
      %v660 = vpop.permute.xlu0 %659
      %661 = vrot.lane.b32.xlu0 %v594, 6
      %v662 = vpop.permute.xlu0 %661
      %663 = vrot.lane.b32.xlu0 %v597, 6
      %v664 = vpop.permute.xlu0 %663
      %665 = vrot.lane.b32.xlu0 %v599, 6
      %v666 = vpop.permute.xlu0 %665
      %667 = vrot.lane.b32.xlu0 %v602, 6
      %v668 = vpop.permute.xlu0 %667
      %669 = vrot.lane.b32.xlu0 %v604, 6
      %v670 = vpop.permute.xlu0 %669
      %671 = vrot.lane.b32.xlu0 %v607, 6
      %v672 = vpop.permute.xlu0 %671
      %673 = vrot.lane.b32.xlu0 %v609, 6
      %v674 = vpop.permute.xlu0 %673
      %675 = vrot.lane.b32.xlu0 %v612, 6
      %v676 = vpop.permute.xlu0 %675
      %677 = vrot.lane.b32.xlu0 %v614, 6
      %v678 = vpop.permute.xlu0 %677
      %713 = vrot.lane.b32.xlu0 %v258, 9
      %v714 = vpop.permute.xlu0 %713
      %715 = vrot.lane.b32.xlu0 %v259, 9
      %v716 = vpop.permute.xlu0 %715
      %717 = vrot.lane.b32.xlu0 %v261, 9
      %v718 = vpop.permute.xlu0 %717
      %719 = vrot.lane.b32.xlu0 %v262, 9
      %v720 = vpop.permute.xlu0 %719
      %721 = vrot.lane.b32.xlu0 %v264, 9
      %v722 = vpop.permute.xlu0 %721
      %723 = vrot.lane.b32.xlu0 %v265, 9
      %v724 = vpop.permute.xlu0 %723
      %725 = vrot.lane.b32.xlu0 %v267, 9
      %v726 = vpop.permute.xlu0 %725
      %727 = vrot.lane.b32.xlu0 %v268, 9
      %v728 = vpop.permute.xlu0 %727
      %729 = vrot.lane.b32.xlu0 %v270, 9
      %v730 = vpop.permute.xlu0 %729
      %731 = vrot.lane.b32.xlu0 %v271, 9
      %v732 = vpop.permute.xlu0 %731
      %733 = vrot.lane.b32.xlu0 %v273, 9
      %v734 = vpop.permute.xlu0 %733
      %735 = vrot.lane.b32.xlu0 %v274, 9
      %v736 = vpop.permute.xlu0 %735
      %737 = vrot.lane.b32.xlu0 %v276, 9
      %v738 = vpop.permute.xlu0 %737
      %739 = vrot.lane.b32.xlu0 %v277, 9
      %v740 = vpop.permute.xlu0 %739
      %741 = vrot.lane.b32.xlu0 %v279, 9
      %v742 = vpop.permute.xlu0 %741
      %743 = vrot.lane.b32.xlu0 %v280, 9
      %v744 = vpop.permute.xlu0 %743
      %745 = vrot.lane.b32.xlu0 %v282, 9
      %v746 = vpop.permute.xlu0 %745
      %747 = vrot.lane.b32.xlu0 %v283, 9
      %v748 = vpop.permute.xlu0 %747
      %749 = vrot.lane.b32.xlu0 %v285, 9
      %v750 = vpop.permute.xlu0 %749
      %751 = vrot.lane.b32.xlu0 %v286, 9
      %v752 = vpop.permute.xlu0 %751
      %753 = vrot.lane.b32.xlu0 %v288, 9
      %v754 = vpop.permute.xlu0 %753
      %755 = vrot.lane.b32.xlu0 %v289, 9
      %v756 = vpop.permute.xlu0 %755
      %757 = vrot.lane.b32.xlu0 %v291, 9
      %v758 = vpop.permute.xlu0 %757
      %759 = vrot.lane.b32.xlu0 %v292, 9
      %v760 = vpop.permute.xlu0 %759
      %761 = vrot.lane.b32.xlu0 %v294, 9
      %v762 = vpop.permute.xlu0 %761
      %763 = vrot.lane.b32.xlu0 %v295, 9
      %v764 = vpop.permute.xlu0 %763
      %765 = vrot.lane.b32.xlu0 %v297, 9
      %v766 = vpop.permute.xlu0 %765
      %767 = vrot.lane.b32.xlu0 %v298, 9
      %v768 = vpop.permute.xlu0 %767
      %769 = vrot.lane.b32.xlu0 %v300, 9
      %v770 = vpop.permute.xlu0 %769
      %771 = vrot.lane.b32.xlu0 %v301, 9
      %v772 = vpop.permute.xlu0 %771
      %773 = vrot.lane.b32.xlu0 %v303, 9
      %v774 = vpop.permute.xlu0 %773
      %775 = vrot.lane.b32.xlu0 %v304, 9
      %v776 = vpop.permute.xlu0 %775
      %v810 = vrot.slane %v303, 1
      %v811 = vrot.slane %v304, 1
      %v812 = vsel %vm357, %v810, %v811
      %v813 = vrot.slane %v305, 1
      %v814 = vsel %vm357, %v811, %v813
      %815 = vrot.lane.b32.xlu0 %v365, 12
      %v816 = vpop.permute.xlu0 %815
      %817 = vrot.lane.b32.xlu0 %v367, 12
      %v818 = vpop.permute.xlu0 %817
      %819 = vrot.lane.b32.xlu0 %v370, 12
      %v820 = vpop.permute.xlu0 %819
      %821 = vrot.lane.b32.xlu0 %v372, 12
      %v822 = vpop.permute.xlu0 %821
      %823 = vrot.lane.b32.xlu0 %v375, 12
      %v824 = vpop.permute.xlu0 %823
      %825 = vrot.lane.b32.xlu0 %v377, 12
      %v826 = vpop.permute.xlu0 %825
      %827 = vrot.lane.b32.xlu0 %v380, 12
      %v828 = vpop.permute.xlu0 %827
      %829 = vrot.lane.b32.xlu0 %v382, 12
      %v830 = vpop.permute.xlu0 %829
      %831 = vrot.lane.b32.xlu0 %v385, 12
      %v832 = vpop.permute.xlu0 %831
      %833 = vrot.lane.b32.xlu0 %v387, 12
      %v834 = vpop.permute.xlu0 %833
      %835 = vrot.lane.b32.xlu0 %v390, 12
      %v836 = vpop.permute.xlu0 %835
      %837 = vrot.lane.b32.xlu0 %v392, 12
      %v838 = vpop.permute.xlu0 %837
      %839 = vrot.lane.b32.xlu0 %v395, 12
      %v840 = vpop.permute.xlu0 %839
      %841 = vrot.lane.b32.xlu0 %v397, 12
      %v842 = vpop.permute.xlu0 %841
      %843 = vrot.lane.b32.xlu0 %v400, 12
      %v844 = vpop.permute.xlu0 %843
      %845 = vrot.lane.b32.xlu0 %v402, 12
      %v846 = vpop.permute.xlu0 %845
      %847 = vrot.lane.b32.xlu0 %v405, 12
      %v848 = vpop.permute.xlu0 %847
      %849 = vrot.lane.b32.xlu0 %v407, 12
      %v850 = vpop.permute.xlu0 %849
      %851 = vrot.lane.b32.xlu0 %v410, 12
      %v852 = vpop.permute.xlu0 %851
      %853 = vrot.lane.b32.xlu0 %v412, 12
      %v854 = vpop.permute.xlu0 %853
      %855 = vrot.lane.b32.xlu0 %v415, 12
      %v856 = vpop.permute.xlu0 %855
      %857 = vrot.lane.b32.xlu0 %v417, 12
      %v858 = vpop.permute.xlu0 %857
      %859 = vrot.lane.b32.xlu0 %v420, 12
      %v860 = vpop.permute.xlu0 %859
      %861 = vrot.lane.b32.xlu0 %v422, 12
      %v862 = vpop.permute.xlu0 %861
      %863 = vrot.lane.b32.xlu0 %v425, 12
      %v864 = vpop.permute.xlu0 %863
      %865 = vrot.lane.b32.xlu0 %v427, 12
      %v866 = vpop.permute.xlu0 %865
      %867 = vrot.lane.b32.xlu0 %v430, 12
      %v868 = vpop.permute.xlu0 %867
      %869 = vrot.lane.b32.xlu0 %v432, 12
      %v870 = vpop.permute.xlu0 %869
      %871 = vrot.lane.b32.xlu0 %v435, 12
      %v872 = vpop.permute.xlu0 %871
      %873 = vrot.lane.b32.xlu0 %v437, 12
      %v874 = vpop.permute.xlu0 %873
      %875 = vrot.lane.b32.xlu0 %v812, 12
      %v876 = vpop.permute.xlu0 %875
      %877 = vrot.lane.b32.xlu0 %v814, 12
      %v878 = vpop.permute.xlu0 %877
      %v911 = vrot.slane %v303, 2
      %v912 = vrot.slane %v304, 2
      %v913 = vsel %vm534, %v911, %v912
      %v914 = vrot.slane %v305, 2
      %v915 = vsel %vm534, %v912, %v914
      %916 = vrot.lane.b32.xlu0 %v542, 15
      %v917 = vpop.permute.xlu0 %916
      %918 = vrot.lane.b32.xlu0 %v544, 15
      %v919 = vpop.permute.xlu0 %918
      %920 = vrot.lane.b32.xlu0 %v547, 15
      %v921 = vpop.permute.xlu0 %920
      %922 = vrot.lane.b32.xlu0 %v549, 15
      %v923 = vpop.permute.xlu0 %922
      %924 = vrot.lane.b32.xlu0 %v552, 15
      %v925 = vpop.permute.xlu0 %924
      %926 = vrot.lane.b32.xlu0 %v554, 15
      %v927 = vpop.permute.xlu0 %926
      %928 = vrot.lane.b32.xlu0 %v557, 15
      %v929 = vpop.permute.xlu0 %928
      %930 = vrot.lane.b32.xlu0 %v559, 15
      %v931 = vpop.permute.xlu0 %930
      %932 = vrot.lane.b32.xlu0 %v562, 15
      %v933 = vpop.permute.xlu0 %932
      %934 = vrot.lane.b32.xlu0 %v564, 15
      %v935 = vpop.permute.xlu0 %934
      %936 = vrot.lane.b32.xlu0 %v567, 15
      %v937 = vpop.permute.xlu0 %936
      %938 = vrot.lane.b32.xlu0 %v569, 15
      %v939 = vpop.permute.xlu0 %938
      %940 = vrot.lane.b32.xlu0 %v572, 15
      %v941 = vpop.permute.xlu0 %940
      %942 = vrot.lane.b32.xlu0 %v574, 15
      %v943 = vpop.permute.xlu0 %942
      %944 = vrot.lane.b32.xlu0 %v577, 15
      %v945 = vpop.permute.xlu0 %944
      %946 = vrot.lane.b32.xlu0 %v579, 15
      %v947 = vpop.permute.xlu0 %946
      %948 = vrot.lane.b32.xlu0 %v582, 15
      %v949 = vpop.permute.xlu0 %948
      %950 = vrot.lane.b32.xlu0 %v584, 15
      %v951 = vpop.permute.xlu0 %950
      %952 = vrot.lane.b32.xlu0 %v587, 15
      %v953 = vpop.permute.xlu0 %952
      %954 = vrot.lane.b32.xlu0 %v589, 15
      %v955 = vpop.permute.xlu0 %954
      %956 = vrot.lane.b32.xlu0 %v592, 15
      %v957 = vpop.permute.xlu0 %956
      %958 = vrot.lane.b32.xlu0 %v594, 15
      %v959 = vpop.permute.xlu0 %958
      %960 = vrot.lane.b32.xlu0 %v597, 15
      %v961 = vpop.permute.xlu0 %960
      %962 = vrot.lane.b32.xlu0 %v599, 15
      %v963 = vpop.permute.xlu0 %962
      %964 = vrot.lane.b32.xlu0 %v602, 15
      %v965 = vpop.permute.xlu0 %964
      %966 = vrot.lane.b32.xlu0 %v604, 15
      %v967 = vpop.permute.xlu0 %966
      %968 = vrot.lane.b32.xlu0 %v607, 15
      %v969 = vpop.permute.xlu0 %968
      %970 = vrot.lane.b32.xlu0 %v609, 15
      %v971 = vpop.permute.xlu0 %970
      %972 = vrot.lane.b32.xlu0 %v612, 15
      %v973 = vpop.permute.xlu0 %972
      %974 = vrot.lane.b32.xlu0 %v614, 15
      %v975 = vpop.permute.xlu0 %974
      %976 = vrot.lane.b32.xlu0 %v913, 15
      %v977 = vpop.permute.xlu0 %976
      %978 = vrot.lane.b32.xlu0 %v915, 15
      %v979 = vpop.permute.xlu0 %978
      %1014 = vrot.lane.b32.xlu0 %v261, 18
      %v1015 = vpop.permute.xlu0 %1014
      %1016 = vrot.lane.b32.xlu0 %v262, 18
      %v1017 = vpop.permute.xlu0 %1016
      %1018 = vrot.lane.b32.xlu0 %v264, 18
      %v1019 = vpop.permute.xlu0 %1018
      %1020 = vrot.lane.b32.xlu0 %v265, 18
      %v1021 = vpop.permute.xlu0 %1020
      %1022 = vrot.lane.b32.xlu0 %v267, 18
      %v1023 = vpop.permute.xlu0 %1022
      %1024 = vrot.lane.b32.xlu0 %v268, 18
      %v1025 = vpop.permute.xlu0 %1024
      %1026 = vrot.lane.b32.xlu0 %v270, 18
      %v1027 = vpop.permute.xlu0 %1026
      %1028 = vrot.lane.b32.xlu0 %v271, 18
      %v1029 = vpop.permute.xlu0 %1028
      %1030 = vrot.lane.b32.xlu0 %v273, 18
      %v1031 = vpop.permute.xlu0 %1030
      %1032 = vrot.lane.b32.xlu0 %v274, 18
      %v1033 = vpop.permute.xlu0 %1032
      %1034 = vrot.lane.b32.xlu0 %v276, 18
      %v1035 = vpop.permute.xlu0 %1034
      %1036 = vrot.lane.b32.xlu0 %v277, 18
      %v1037 = vpop.permute.xlu0 %1036
      %1038 = vrot.lane.b32.xlu0 %v279, 18
      %v1039 = vpop.permute.xlu0 %1038
      %1040 = vrot.lane.b32.xlu0 %v280, 18
      %v1041 = vpop.permute.xlu0 %1040
      %1042 = vrot.lane.b32.xlu0 %v282, 18
      %v1043 = vpop.permute.xlu0 %1042
      %1044 = vrot.lane.b32.xlu0 %v283, 18
      %v1045 = vpop.permute.xlu0 %1044
      %1046 = vrot.lane.b32.xlu0 %v285, 18
      %v1047 = vpop.permute.xlu0 %1046
      %1048 = vrot.lane.b32.xlu0 %v286, 18
      %v1049 = vpop.permute.xlu0 %1048
      %1050 = vrot.lane.b32.xlu0 %v288, 18
      %v1051 = vpop.permute.xlu0 %1050
      %1052 = vrot.lane.b32.xlu0 %v289, 18
      %v1053 = vpop.permute.xlu0 %1052
      %1054 = vrot.lane.b32.xlu0 %v291, 18
      %v1055 = vpop.permute.xlu0 %1054
      %1056 = vrot.lane.b32.xlu0 %v292, 18
      %v1057 = vpop.permute.xlu0 %1056
      %1058 = vrot.lane.b32.xlu0 %v294, 18
      %v1059 = vpop.permute.xlu0 %1058
      %1060 = vrot.lane.b32.xlu0 %v295, 18
      %v1061 = vpop.permute.xlu0 %1060
      %1062 = vrot.lane.b32.xlu0 %v297, 18
      %v1063 = vpop.permute.xlu0 %1062
      %1064 = vrot.lane.b32.xlu0 %v298, 18
      %v1065 = vpop.permute.xlu0 %1064
      %1066 = vrot.lane.b32.xlu0 %v300, 18
      %v1067 = vpop.permute.xlu0 %1066
      %1068 = vrot.lane.b32.xlu0 %v301, 18
      %v1069 = vpop.permute.xlu0 %1068
      %1070 = vrot.lane.b32.xlu0 %v303, 18
      %v1071 = vpop.permute.xlu0 %1070
      %1072 = vrot.lane.b32.xlu0 %v304, 18
      %v1073 = vpop.permute.xlu0 %1072
      %1074 = vrot.lane.b32.xlu0 %v306, 18
      %v1075 = vpop.permute.xlu0 %1074
      %1076 = vrot.lane.b32.xlu0 %v307, 18
      %v1077 = vpop.permute.xlu0 %1076
      %v1111 = vrot.slane %v306, 1
      %v1112 = vrot.slane %v307, 1
      %v1113 = vsel %vm357, %v1111, %v1112
      %v1114 = vrot.slane %v308, 1
      %v1115 = vsel %vm357, %v1112, %v1114
      %1116 = vrot.lane.b32.xlu0 %v370, 21
      %v1117 = vpop.permute.xlu0 %1116
      %1118 = vrot.lane.b32.xlu0 %v372, 21
      %v1119 = vpop.permute.xlu0 %1118
      %1120 = vrot.lane.b32.xlu0 %v375, 21
      %v1121 = vpop.permute.xlu0 %1120
      %1122 = vrot.lane.b32.xlu0 %v377, 21
      %v1123 = vpop.permute.xlu0 %1122
      %1124 = vrot.lane.b32.xlu0 %v380, 21
      %v1125 = vpop.permute.xlu0 %1124
      %1126 = vrot.lane.b32.xlu0 %v382, 21
      %v1127 = vpop.permute.xlu0 %1126
      %1128 = vrot.lane.b32.xlu0 %v385, 21
      %v1129 = vpop.permute.xlu0 %1128
      %1130 = vrot.lane.b32.xlu0 %v387, 21
      %v1131 = vpop.permute.xlu0 %1130
      %1132 = vrot.lane.b32.xlu0 %v390, 21
      %v1133 = vpop.permute.xlu0 %1132
      %1134 = vrot.lane.b32.xlu0 %v392, 21
      %v1135 = vpop.permute.xlu0 %1134
      %1136 = vrot.lane.b32.xlu0 %v395, 21
      %v1137 = vpop.permute.xlu0 %1136
      %1138 = vrot.lane.b32.xlu0 %v397, 21
      %v1139 = vpop.permute.xlu0 %1138
      %1140 = vrot.lane.b32.xlu0 %v400, 21
      %v1141 = vpop.permute.xlu0 %1140
      %1142 = vrot.lane.b32.xlu0 %v402, 21
      %v1143 = vpop.permute.xlu0 %1142
      %1144 = vrot.lane.b32.xlu0 %v405, 21
      %v1145 = vpop.permute.xlu0 %1144
      %1146 = vrot.lane.b32.xlu0 %v407, 21
      %v1147 = vpop.permute.xlu0 %1146
      %1148 = vrot.lane.b32.xlu0 %v410, 21
      %v1149 = vpop.permute.xlu0 %1148
      %1150 = vrot.lane.b32.xlu0 %v412, 21
      %v1151 = vpop.permute.xlu0 %1150
      %1152 = vrot.lane.b32.xlu0 %v415, 21
      %v1153 = vpop.permute.xlu0 %1152
      %1154 = vrot.lane.b32.xlu0 %v417, 21
      %v1155 = vpop.permute.xlu0 %1154
      %1156 = vrot.lane.b32.xlu0 %v420, 21
      %v1157 = vpop.permute.xlu0 %1156
      %1158 = vrot.lane.b32.xlu0 %v422, 21
      %v1159 = vpop.permute.xlu0 %1158
      %1160 = vrot.lane.b32.xlu0 %v425, 21
      %v1161 = vpop.permute.xlu0 %1160
      %1162 = vrot.lane.b32.xlu0 %v427, 21
      %v1163 = vpop.permute.xlu0 %1162
      %1164 = vrot.lane.b32.xlu0 %v430, 21
      %v1165 = vpop.permute.xlu0 %1164
      %1166 = vrot.lane.b32.xlu0 %v432, 21
      %v1167 = vpop.permute.xlu0 %1166
      %1168 = vrot.lane.b32.xlu0 %v435, 21
      %v1169 = vpop.permute.xlu0 %1168
      %1170 = vrot.lane.b32.xlu0 %v437, 21
      %v1171 = vpop.permute.xlu0 %1170
      %1172 = vrot.lane.b32.xlu0 %v812, 21
      %v1173 = vpop.permute.xlu0 %1172
      %1174 = vrot.lane.b32.xlu0 %v814, 21
      %v1175 = vpop.permute.xlu0 %1174
      %1176 = vrot.lane.b32.xlu0 %v1113, 21
      %v1177 = vpop.permute.xlu0 %1176
      %1178 = vrot.lane.b32.xlu0 %v1115, 21
      %v1179 = vpop.permute.xlu0 %1178
      %v1212 = vrot.slane %v306, 2
      %v1213 = vrot.slane %v307, 2
      %v1214 = vsel %vm534, %v1212, %v1213
      %v1215 = vrot.slane %v308, 2
      %v1216 = vsel %vm534, %v1213, %v1215
      %1217 = vrot.lane.b32.xlu0 %v547, 24
      %v1218 = vpop.permute.xlu0 %1217
      %1219 = vrot.lane.b32.xlu0 %v549, 24
      %v1220 = vpop.permute.xlu0 %1219
      %1221 = vrot.lane.b32.xlu0 %v552, 24
      %v1222 = vpop.permute.xlu0 %1221
      %1223 = vrot.lane.b32.xlu0 %v554, 24
      %v1224 = vpop.permute.xlu0 %1223
      %1225 = vrot.lane.b32.xlu0 %v557, 24
      %v1226 = vpop.permute.xlu0 %1225
      %1227 = vrot.lane.b32.xlu0 %v559, 24
      %v1228 = vpop.permute.xlu0 %1227
      %1229 = vrot.lane.b32.xlu0 %v562, 24
      %v1230 = vpop.permute.xlu0 %1229
      %1231 = vrot.lane.b32.xlu0 %v564, 24
      %v1232 = vpop.permute.xlu0 %1231
      %1233 = vrot.lane.b32.xlu0 %v567, 24
      %v1234 = vpop.permute.xlu0 %1233
      %1235 = vrot.lane.b32.xlu0 %v569, 24
      %v1236 = vpop.permute.xlu0 %1235
      %1237 = vrot.lane.b32.xlu0 %v572, 24
      %v1238 = vpop.permute.xlu0 %1237
      %1239 = vrot.lane.b32.xlu0 %v574, 24
      %v1240 = vpop.permute.xlu0 %1239
      %1241 = vrot.lane.b32.xlu0 %v577, 24
      %v1242 = vpop.permute.xlu0 %1241
      %1243 = vrot.lane.b32.xlu0 %v579, 24
      %v1244 = vpop.permute.xlu0 %1243
      %1245 = vrot.lane.b32.xlu0 %v582, 24
      %v1246 = vpop.permute.xlu0 %1245
      %1247 = vrot.lane.b32.xlu0 %v584, 24
      %v1248 = vpop.permute.xlu0 %1247
      %1249 = vrot.lane.b32.xlu0 %v587, 24
      %v1250 = vpop.permute.xlu0 %1249
      %1251 = vrot.lane.b32.xlu0 %v589, 24
      %v1252 = vpop.permute.xlu0 %1251
      %1253 = vrot.lane.b32.xlu0 %v592, 24
      %v1254 = vpop.permute.xlu0 %1253
      %1255 = vrot.lane.b32.xlu0 %v594, 24
      %v1256 = vpop.permute.xlu0 %1255
      %1257 = vrot.lane.b32.xlu0 %v597, 24
      %v1258 = vpop.permute.xlu0 %1257
      %1259 = vrot.lane.b32.xlu0 %v599, 24
      %v1260 = vpop.permute.xlu0 %1259
      %1261 = vrot.lane.b32.xlu0 %v602, 24
      %v1262 = vpop.permute.xlu0 %1261
      %1263 = vrot.lane.b32.xlu0 %v604, 24
      %v1264 = vpop.permute.xlu0 %1263
      %1265 = vrot.lane.b32.xlu0 %v607, 24
      %v1266 = vpop.permute.xlu0 %1265
      %1267 = vrot.lane.b32.xlu0 %v609, 24
      %v1268 = vpop.permute.xlu0 %1267
      %1269 = vrot.lane.b32.xlu0 %v612, 24
      %v1270 = vpop.permute.xlu0 %1269
      %1271 = vrot.lane.b32.xlu0 %v614, 24
      %v1272 = vpop.permute.xlu0 %1271
      %1273 = vrot.lane.b32.xlu0 %v913, 24
      %v1274 = vpop.permute.xlu0 %1273
      %1275 = vrot.lane.b32.xlu0 %v915, 24
      %v1276 = vpop.permute.xlu0 %1275
      %1277 = vrot.lane.b32.xlu0 %v1214, 24
      %v1278 = vpop.permute.xlu0 %1277
      %1279 = vrot.lane.b32.xlu0 %v1216, 24
      %v1280 = vpop.permute.xlu0 %1279
      %vm1313 = vcmask 23552
      %v1314 = vsel %vm1313, %v255, %v439
      %v1315 = vsel %vm1313, %v256, %v441
      %v1316 = vsel %vm1313, %v258, %v443
      %v1317 = vsel %vm1313, %v259, %v445
      %v1318 = vsel %vm1313, %v261, %v447
      %v1319 = vsel %vm1313, %v262, %v449
      %v1320 = vsel %vm1313, %v264, %v451
      %v1321 = vsel %vm1313, %v265, %v453
      %v1322 = vsel %vm1313, %v267, %v455
      %v1323 = vsel %vm1313, %v268, %v457
      %v1324 = vsel %vm1313, %v270, %v459
      %v1325 = vsel %vm1313, %v271, %v461
      %v1326 = vsel %vm1313, %v273, %v463
      %v1327 = vsel %vm1313, %v274, %v465
      %v1328 = vsel %vm1313, %v276, %v467
      %v1329 = vsel %vm1313, %v277, %v469
      %v1330 = vsel %vm1313, %v279, %v471
      %v1331 = vsel %vm1313, %v280, %v473
      %v1332 = vsel %vm1313, %v282, %v475
      %v1333 = vsel %vm1313, %v283, %v477
      %v1334 = vsel %vm1313, %v285, %v479
      %v1335 = vsel %vm1313, %v286, %v481
      %v1336 = vsel %vm1313, %v288, %v483
      %v1337 = vsel %vm1313, %v289, %v485
      %v1338 = vsel %vm1313, %v291, %v487
      %v1339 = vsel %vm1313, %v292, %v489
      %v1340 = vsel %vm1313, %v294, %v491
      %v1341 = vsel %vm1313, %v295, %v493
      %v1342 = vsel %vm1313, %v297, %v495
      %v1343 = vsel %vm1313, %v298, %v497
      %v1344 = vsel %vm1313, %v300, %v499
      %v1345 = vsel %vm1313, %v301, %v501
      %vm1346 = vcmask 48128
      %v1347 = vsel %vm1346, %v1314, %v616
      %v1348 = vsel %vm1346, %v1315, %v618
      %v1349 = vsel %vm1346, %v1316, %v620
      %v1350 = vsel %vm1346, %v1317, %v622
      %v1351 = vsel %vm1346, %v1318, %v624
      %v1352 = vsel %vm1346, %v1319, %v626
      %v1353 = vsel %vm1346, %v1320, %v628
      %v1354 = vsel %vm1346, %v1321, %v630
      %v1355 = vsel %vm1346, %v1322, %v632
      %v1356 = vsel %vm1346, %v1323, %v634
      %v1357 = vsel %vm1346, %v1324, %v636
      %v1358 = vsel %vm1346, %v1325, %v638
      %v1359 = vsel %vm1346, %v1326, %v640
      %v1360 = vsel %vm1346, %v1327, %v642
      %v1361 = vsel %vm1346, %v1328, %v644
      %v1362 = vsel %vm1346, %v1329, %v646
      %v1363 = vsel %vm1346, %v1330, %v648
      %v1364 = vsel %vm1346, %v1331, %v650
      %v1365 = vsel %vm1346, %v1332, %v652
      %v1366 = vsel %vm1346, %v1333, %v654
      %v1367 = vsel %vm1346, %v1334, %v656
      %v1368 = vsel %vm1346, %v1335, %v658
      %v1369 = vsel %vm1346, %v1336, %v660
      %v1370 = vsel %vm1346, %v1337, %v662
      %v1371 = vsel %vm1346, %v1338, %v664
      %v1372 = vsel %vm1346, %v1339, %v666
      %v1373 = vsel %vm1346, %v1340, %v668
      %v1374 = vsel %vm1346, %v1341, %v670
      %v1375 = vsel %vm1346, %v1342, %v672
      %v1376 = vsel %vm1346, %v1343, %v674
      %v1377 = vsel %vm1346, %v1344, %v676
      %v1378 = vsel %vm1346, %v1345, %v678
      %vm1379 = vcmask 72704
      %v1380 = vsel %vm1379, %v1347, %v714
      %v1381 = vsel %vm1379, %v1348, %v716
      %v1382 = vsel %vm1379, %v1349, %v718
      %v1383 = vsel %vm1379, %v1350, %v720
      %v1384 = vsel %vm1379, %v1351, %v722
      %v1385 = vsel %vm1379, %v1352, %v724
      %v1386 = vsel %vm1379, %v1353, %v726
      %v1387 = vsel %vm1379, %v1354, %v728
      %v1388 = vsel %vm1379, %v1355, %v730
      %v1389 = vsel %vm1379, %v1356, %v732
      %v1390 = vsel %vm1379, %v1357, %v734
      %v1391 = vsel %vm1379, %v1358, %v736
      %v1392 = vsel %vm1379, %v1359, %v738
      %v1393 = vsel %vm1379, %v1360, %v740
      %v1394 = vsel %vm1379, %v1361, %v742
      %v1395 = vsel %vm1379, %v1362, %v744
      %v1396 = vsel %vm1379, %v1363, %v746
      %v1397 = vsel %vm1379, %v1364, %v748
      %v1398 = vsel %vm1379, %v1365, %v750
      %v1399 = vsel %vm1379, %v1366, %v752
      %v1400 = vsel %vm1379, %v1367, %v754
      %v1401 = vsel %vm1379, %v1368, %v756
      %v1402 = vsel %vm1379, %v1369, %v758
      %v1403 = vsel %vm1379, %v1370, %v760
      %v1404 = vsel %vm1379, %v1371, %v762
      %v1405 = vsel %vm1379, %v1372, %v764
      %v1406 = vsel %vm1379, %v1373, %v766
      %v1407 = vsel %vm1379, %v1374, %v768
      %v1408 = vsel %vm1379, %v1375, %v770
      %v1409 = vsel %vm1379, %v1376, %v772
      %v1410 = vsel %vm1379, %v1377, %v774
      %v1411 = vsel %vm1379, %v1378, %v776
      %vm1412 = vcmask 97280
      %v1413 = vsel %vm1412, %v1380, %v816
      %v1414 = vsel %vm1412, %v1381, %v818
      %v1415 = vsel %vm1412, %v1382, %v820
      %v1416 = vsel %vm1412, %v1383, %v822
      %v1417 = vsel %vm1412, %v1384, %v824
      %v1418 = vsel %vm1412, %v1385, %v826
      %v1419 = vsel %vm1412, %v1386, %v828
      %v1420 = vsel %vm1412, %v1387, %v830
      %v1421 = vsel %vm1412, %v1388, %v832
      %v1422 = vsel %vm1412, %v1389, %v834
      %v1423 = vsel %vm1412, %v1390, %v836
      %v1424 = vsel %vm1412, %v1391, %v838
      %v1425 = vsel %vm1412, %v1392, %v840
      %v1426 = vsel %vm1412, %v1393, %v842
      %v1427 = vsel %vm1412, %v1394, %v844
      %v1428 = vsel %vm1412, %v1395, %v846
      %v1429 = vsel %vm1412, %v1396, %v848
      %v1430 = vsel %vm1412, %v1397, %v850
      %v1431 = vsel %vm1412, %v1398, %v852
      %v1432 = vsel %vm1412, %v1399, %v854
      %v1433 = vsel %vm1412, %v1400, %v856
      %v1434 = vsel %vm1412, %v1401, %v858
      %v1435 = vsel %vm1412, %v1402, %v860
      %v1436 = vsel %vm1412, %v1403, %v862
      %v1437 = vsel %vm1412, %v1404, %v864
      %v1438 = vsel %vm1412, %v1405, %v866
      %v1439 = vsel %vm1412, %v1406, %v868
      %v1440 = vsel %vm1412, %v1407, %v870
      %v1441 = vsel %vm1412, %v1408, %v872
      %v1442 = vsel %vm1412, %v1409, %v874
      %v1443 = vsel %vm1412, %v1410, %v876
      %v1444 = vsel %vm1412, %v1411, %v878
      %vm1445 = vcmask 121856
      %v1446 = vsel %vm1445, %v1413, %v917
      %v1447 = vsel %vm1445, %v1414, %v919
      %v1448 = vsel %vm1445, %v1415, %v921
      %v1449 = vsel %vm1445, %v1416, %v923
      %v1450 = vsel %vm1445, %v1417, %v925
      %v1451 = vsel %vm1445, %v1418, %v927
      %v1452 = vsel %vm1445, %v1419, %v929
      %v1453 = vsel %vm1445, %v1420, %v931
      %v1454 = vsel %vm1445, %v1421, %v933
      %v1455 = vsel %vm1445, %v1422, %v935
      %v1456 = vsel %vm1445, %v1423, %v937
      %v1457 = vsel %vm1445, %v1424, %v939
      %v1458 = vsel %vm1445, %v1425, %v941
      %v1459 = vsel %vm1445, %v1426, %v943
      %v1460 = vsel %vm1445, %v1427, %v945
      %v1461 = vsel %vm1445, %v1428, %v947
      %v1462 = vsel %vm1445, %v1429, %v949
      %v1463 = vsel %vm1445, %v1430, %v951
      %v1464 = vsel %vm1445, %v1431, %v953
      %v1465 = vsel %vm1445, %v1432, %v955
      %v1466 = vsel %vm1445, %v1433, %v957
      %v1467 = vsel %vm1445, %v1434, %v959
      %v1468 = vsel %vm1445, %v1435, %v961
      %v1469 = vsel %vm1445, %v1436, %v963
      %v1470 = vsel %vm1445, %v1437, %v965
      %v1471 = vsel %vm1445, %v1438, %v967
      %v1472 = vsel %vm1445, %v1439, %v969
      %v1473 = vsel %vm1445, %v1440, %v971
      %v1474 = vsel %vm1445, %v1441, %v973
      %v1475 = vsel %vm1445, %v1442, %v975
      %v1476 = vsel %vm1445, %v1443, %v977
      %v1477 = vsel %vm1445, %v1444, %v979
      %vm1478 = vcmask 146432
      %v1479 = vsel %vm1478, %v1446, %v1015
      %v1480 = vsel %vm1478, %v1447, %v1017
      %v1481 = vsel %vm1478, %v1448, %v1019
      %v1482 = vsel %vm1478, %v1449, %v1021
      %v1483 = vsel %vm1478, %v1450, %v1023
      %v1484 = vsel %vm1478, %v1451, %v1025
      %v1485 = vsel %vm1478, %v1452, %v1027
      %v1486 = vsel %vm1478, %v1453, %v1029
      %v1487 = vsel %vm1478, %v1454, %v1031
      %v1488 = vsel %vm1478, %v1455, %v1033
      %v1489 = vsel %vm1478, %v1456, %v1035
      %v1490 = vsel %vm1478, %v1457, %v1037
      %v1491 = vsel %vm1478, %v1458, %v1039
      %v1492 = vsel %vm1478, %v1459, %v1041
      %v1493 = vsel %vm1478, %v1460, %v1043
      %v1494 = vsel %vm1478, %v1461, %v1045
      %v1495 = vsel %vm1478, %v1462, %v1047
      %v1496 = vsel %vm1478, %v1463, %v1049
      %v1497 = vsel %vm1478, %v1464, %v1051
      %v1498 = vsel %vm1478, %v1465, %v1053
      %v1499 = vsel %vm1478, %v1466, %v1055
      %v1500 = vsel %vm1478, %v1467, %v1057
      %v1501 = vsel %vm1478, %v1468, %v1059
      %v1502 = vsel %vm1478, %v1469, %v1061
      %v1503 = vsel %vm1478, %v1470, %v1063
      %v1504 = vsel %vm1478, %v1471, %v1065
      %v1505 = vsel %vm1478, %v1472, %v1067
      %v1506 = vsel %vm1478, %v1473, %v1069
      %v1507 = vsel %vm1478, %v1474, %v1071
      %v1508 = vsel %vm1478, %v1475, %v1073
      %v1509 = vsel %vm1478, %v1476, %v1075
      %v1510 = vsel %vm1478, %v1477, %v1077
      %vm1511 = vcmask 171008
      %v1512 = vsel %vm1511, %v1479, %v1117
      %v1513 = vsel %vm1511, %v1480, %v1119
      %v1514 = vsel %vm1511, %v1481, %v1121
      %v1515 = vsel %vm1511, %v1482, %v1123
      %v1516 = vsel %vm1511, %v1483, %v1125
      %v1517 = vsel %vm1511, %v1484, %v1127
      %v1518 = vsel %vm1511, %v1485, %v1129
      %v1519 = vsel %vm1511, %v1486, %v1131
      %v1520 = vsel %vm1511, %v1487, %v1133
      %v1521 = vsel %vm1511, %v1488, %v1135
      %v1522 = vsel %vm1511, %v1489, %v1137
      %v1523 = vsel %vm1511, %v1490, %v1139
      %v1524 = vsel %vm1511, %v1491, %v1141
      %v1525 = vsel %vm1511, %v1492, %v1143
      %v1526 = vsel %vm1511, %v1493, %v1145
      %v1527 = vsel %vm1511, %v1494, %v1147
      %v1528 = vsel %vm1511, %v1495, %v1149
      %v1529 = vsel %vm1511, %v1496, %v1151
      %v1530 = vsel %vm1511, %v1497, %v1153
      %v1531 = vsel %vm1511, %v1498, %v1155
      %v1532 = vsel %vm1511, %v1499, %v1157
      %v1533 = vsel %vm1511, %v1500, %v1159
      %v1534 = vsel %vm1511, %v1501, %v1161
      %v1535 = vsel %vm1511, %v1502, %v1163
      %v1536 = vsel %vm1511, %v1503, %v1165
      %v1537 = vsel %vm1511, %v1504, %v1167
      %v1538 = vsel %vm1511, %v1505, %v1169
      %v1539 = vsel %vm1511, %v1506, %v1171
      %v1540 = vsel %vm1511, %v1507, %v1173
      %v1541 = vsel %vm1511, %v1508, %v1175
      %v1542 = vsel %vm1511, %v1509, %v1177
      %v1543 = vsel %vm1511, %v1510, %v1179
      %vm1544 = vcmask 195584
      %v1545 = vsel %vm1544, %v1512, %v1218
      %v1546 = vsel %vm1544, %v1513, %v1220
      %v1547 = vsel %vm1544, %v1514, %v1222
      %v1548 = vsel %vm1544, %v1515, %v1224
      %v1549 = vsel %vm1544, %v1516, %v1226
      %v1550 = vsel %vm1544, %v1517, %v1228
      %v1551 = vsel %vm1544, %v1518, %v1230
      %v1552 = vsel %vm1544, %v1519, %v1232
      %v1553 = vsel %vm1544, %v1520, %v1234
      %v1554 = vsel %vm1544, %v1521, %v1236
      %v1555 = vsel %vm1544, %v1522, %v1238
      %v1556 = vsel %vm1544, %v1523, %v1240
      %v1557 = vsel %vm1544, %v1524, %v1242
      %v1558 = vsel %vm1544, %v1525, %v1244
      %v1559 = vsel %vm1544, %v1526, %v1246
      %v1560 = vsel %vm1544, %v1527, %v1248
      %v1561 = vsel %vm1544, %v1528, %v1250
      %v1562 = vsel %vm1544, %v1529, %v1252
      %v1563 = vsel %vm1544, %v1530, %v1254
      %v1564 = vsel %vm1544, %v1531, %v1256
      %v1565 = vsel %vm1544, %v1532, %v1258
      %v1566 = vsel %vm1544, %v1533, %v1260
      %v1567 = vsel %vm1544, %v1534, %v1262
      %v1568 = vsel %vm1544, %v1535, %v1264
      %v1569 = vsel %vm1544, %v1536, %v1266
      %v1570 = vsel %vm1544, %v1537, %v1268
      %v1571 = vsel %vm1544, %v1538, %v1270
      %v1572 = vsel %vm1544, %v1539, %v1272
      %v1573 = vsel %vm1544, %v1540, %v1274
      %v1574 = vsel %vm1544, %v1541, %v1276
      %v1575 = vsel %vm1544, %v1542, %v1278
      %v1576 = vsel %vm1544, %v1543, %v1280
      %v1577 = vpack.c.bf16 %v1546, %v1545
      %v1578 = vpack.c.bf16 %v1548, %v1547
      %v1579 = vpack.c.bf16 %v1550, %v1549
      %v1580 = vpack.c.bf16 %v1552, %v1551
      %v1581 = vpack.c.bf16 %v1554, %v1553
      %v1582 = vpack.c.bf16 %v1556, %v1555
      %v1583 = vpack.c.bf16 %v1558, %v1557
      %v1584 = vpack.c.bf16 %v1560, %v1559
      %v1585 = vpack.c.bf16 %v1562, %v1561
      %v1586 = vpack.c.bf16 %v1564, %v1563
      %v1587 = vpack.c.bf16 %v1566, %v1565
      %v1588 = vpack.c.bf16 %v1568, %v1567
      %v1589 = vpack.c.bf16 %v1570, %v1569
      %v1590 = vpack.c.bf16 %v1572, %v1571
      %v1591 = vpack.c.bf16 %v1574, %v1573
      %v1592 = vpack.c.bf16 %v1576, %v1575
      %v1593 = vld [vmem:[%s1] sm:$0xf]
      %v1594 = vld [vmem:[%s1 + $0x4] sm:$0xf]
      %v1595 = vld [vmem:[%s1 + $0x8] sm:$0xf]
      %v1596 = vld [vmem:[%s1 + $0xc] sm:$0x3]
      %v1597 = vld [vmem:[%s2] sm:$0x1]
      %v1599 = vlaneseq
      %v1600 = vshrl.u32 %v1599, 7
      %v1601 = vsub.s32 0, %v1600
      %v1602 = vrot.slane %v1597, %v1601
      %v1608 = vunpack.c.l.b16 %v1593
      %v1609 = vunpack.c.l.b16 %v1594
      %v1610 = vunpack.c.l.b16 %v1595
      %v1611 = vunpack.c.l.b16 %v1596
      %v1612 = vpack.c.b16 %v1609, %v1608
      %v1613 = vpack.c.b16 %v1611, %v1610
      %vm1615 = vcmask 220160
      %v1617 = vsel %vm1615, %v1577, 0
      %v1620 = vsel %vm1615, %v1578, 0
      %v1623 = vsel %vm1615, %v1579, 0
      %v1626 = vsel %vm1615, %v1580, 0
      %v1629 = vsel %vm1615, %v1581, 0
      %v1632 = vsel %vm1615, %v1582, 0
      %v1635 = vsel %vm1615, %v1583, 0
      %v1638 = vsel %vm1615, %v1584, 0
      %v1641 = vsel %vm1615, %v1585, 0
      %v1644 = vsel %vm1615, %v1586, 0
      %v1647 = vsel %vm1615, %v1587, 0
      %v1650 = vsel %vm1615, %v1588, 0
      %v1653 = vsel %vm1615, %v1589, 0
      %v1656 = vsel %vm1615, %v1590, 0
      %v1659 = vsel %vm1615, %v1591, 0
      %v1662 = vsel %vm1615, %v1592, 0
      %vm1664 = vcmask 1044480
      %v1665 = vsel %vm1664, 4294967295, 65535
      %v1666 = vsel %vm534, %v1665, 0
      %v1668 = vand.u32 %v1613, %v1666
      %1670 = vmatprep.subr.bf16.mxu0 0
      %1671 = vmatpush1.bf16.msra.mxu0 0
      %1672 = vmatprep.subr.bf16.mxu0 0
      %1673 = vmatpush1.bf16.msra.mxu0 0
      %1674 = vmatprep.subr.bf16.mxu0 0
      %1675 = vmatpush1.bf16.msra.mxu0 0
      %1676 = vmatprep.subr.bf16.mxu0 0
      %1677 = vmatpush1.bf16.msra.mxu0 0
      %1678 = vmatprep.subr.bf16.mxu0 0
      %1679 = vmatpush1.bf16.msra.mxu0 0
      %1680 = vmatprep.subr.bf16.mxu0 0
      %1681 = vmatpush1.bf16.msra.mxu0 0
      %1682 = vmatprep.subr.bf16.mxu0 0
      %1683 = vmatpush1.bf16.msra.mxu0 %v1668
      %1684 = vmatprep.subr.bf16.mxu0 0
      %1685 = vmatpush1.bf16.msra.mxu0 %v1612
      %1686 = vmatprep.subr.bf16.mxu0 0
      %1687 = vmatpush2.bf16.msra.mxu0 0
      %1688 = vmatprep.subr.bf16.mxu0 0
      %1689 = vmatpush2.bf16.msra.mxu0 0
      %1690 = vmatprep.subr.bf16.mxu0 0
      %1691 = vmatpush2.bf16.msra.mxu0 0
      %1692 = vmatprep.subr.bf16.mxu0 0
      %1693 = vmatpush2.bf16.msra.mxu0 0
      %1694 = vmatprep.subr.bf16.mxu0 0
      %1695 = vmatpush2.bf16.msra.mxu0 0
      %1696 = vmatprep.subr.bf16.mxu0 0
      %1697 = vmatpush2.bf16.msra.mxu0 0
      %1698 = vmatprep.subr.bf16.mxu0 0
      %1699 = vmatpush2.bf16.msra.mxu0 0
      %1700 = vmatprep.subr.bf16.mxu0 0
      %1701 = vmatpush2.bf16.msra.mxu0 0
      %1702 = vmatprep.mubr.bf16.mxu0 0
      %1703 = vmatmul.mubr.bf16.gmra.mxu0 %v1617
      %v1704 = vpop.f32.mrf.mxu0
      %v1705 = vadd.f32 %v1602, %v1704
      %v1706 = vpop.f32.mrf.mxu0
      %v1707 = vpop.f32.mrf.mxu0
      %v1708 = vadd.f32 %v1602, %v1707
      %v1709 = vpop.f32.mrf.mxu0
      %1710 = vmatprep.mubr.bf16.mxu0 0
      %1711 = vmatmul.mubr.bf16.gmra.mxu0 %v1620
      %v1712 = vpop.f32.mrf.mxu0
      %v1713 = vadd.f32 %v1602, %v1712
      %v1714 = vpop.f32.mrf.mxu0
      %v1715 = vpop.f32.mrf.mxu0
      %v1716 = vadd.f32 %v1602, %v1715
      %v1717 = vpop.f32.mrf.mxu0
      %1718 = vmatprep.mubr.bf16.mxu0 0
      %1719 = vmatmul.mubr.bf16.gmra.mxu0 %v1623
      %v1720 = vpop.f32.mrf.mxu0
      %v1721 = vadd.f32 %v1602, %v1720
      %v1722 = vpop.f32.mrf.mxu0
      %v1723 = vpop.f32.mrf.mxu0
      %v1724 = vadd.f32 %v1602, %v1723
      %v1725 = vpop.f32.mrf.mxu0
      %1726 = vmatprep.mubr.bf16.mxu0 0
      %1727 = vmatmul.mubr.bf16.gmra.mxu0 %v1626
      %v1728 = vpop.f32.mrf.mxu0
      %v1729 = vadd.f32 %v1602, %v1728
      %v1730 = vpop.f32.mrf.mxu0
      %v1731 = vpop.f32.mrf.mxu0
      %v1732 = vadd.f32 %v1602, %v1731
      %v1733 = vpop.f32.mrf.mxu0
      %1734 = vmatprep.mubr.bf16.mxu0 0
      %1735 = vmatmul.mubr.bf16.gmra.mxu0 %v1629
      %v1736 = vpop.f32.mrf.mxu0
      %v1737 = vadd.f32 %v1602, %v1736
      %v1738 = vpop.f32.mrf.mxu0
      %v1739 = vpop.f32.mrf.mxu0
      %v1740 = vadd.f32 %v1602, %v1739
      %v1741 = vpop.f32.mrf.mxu0
      %1742 = vmatprep.mubr.bf16.mxu0 0
      %1743 = vmatmul.mubr.bf16.gmra.mxu0 %v1632
      %v1744 = vpop.f32.mrf.mxu0
      %v1745 = vadd.f32 %v1602, %v1744
      %v1746 = vpop.f32.mrf.mxu0
      %v1747 = vpop.f32.mrf.mxu0
      %v1748 = vadd.f32 %v1602, %v1747
      %v1749 = vpop.f32.mrf.mxu0
      %1750 = vmatprep.mubr.bf16.mxu0 0
      %1751 = vmatmul.mubr.bf16.gmra.mxu0 %v1635
      %v1752 = vpop.f32.mrf.mxu0
      %v1753 = vadd.f32 %v1602, %v1752
      %v1754 = vpop.f32.mrf.mxu0
      %v1755 = vpop.f32.mrf.mxu0
      %v1756 = vadd.f32 %v1602, %v1755
      %v1757 = vpop.f32.mrf.mxu0
      %1758 = vmatprep.mubr.bf16.mxu0 0
      %1759 = vmatmul.mubr.bf16.gmra.mxu0 %v1638
      %v1760 = vpop.f32.mrf.mxu0
      %v1761 = vadd.f32 %v1602, %v1760
      %v1762 = vpop.f32.mrf.mxu0
      %v1763 = vpop.f32.mrf.mxu0
      %v1764 = vadd.f32 %v1602, %v1763
      %v1765 = vpop.f32.mrf.mxu0
      %1766 = vmatprep.mubr.bf16.mxu0 0
      %1767 = vmatmul.mubr.bf16.gmra.mxu0 %v1641
      %v1768 = vpop.f32.mrf.mxu0
      %v1769 = vadd.f32 %v1602, %v1768
      %v1770 = vpop.f32.mrf.mxu0
      %v1771 = vpop.f32.mrf.mxu0
      %v1772 = vadd.f32 %v1602, %v1771
      %v1773 = vpop.f32.mrf.mxu0
      %1774 = vmatprep.mubr.bf16.mxu0 0
      %1775 = vmatmul.mubr.bf16.gmra.mxu0 %v1644
      %v1776 = vpop.f32.mrf.mxu0
      %v1777 = vadd.f32 %v1602, %v1776
      %v1778 = vpop.f32.mrf.mxu0
      %v1779 = vpop.f32.mrf.mxu0
      %v1780 = vadd.f32 %v1602, %v1779
      %v1781 = vpop.f32.mrf.mxu0
      %1782 = vmatprep.mubr.bf16.mxu0 0
      %1783 = vmatmul.mubr.bf16.gmra.mxu0 %v1647
      %v1784 = vpop.f32.mrf.mxu0
      %v1785 = vadd.f32 %v1602, %v1784
      %v1786 = vpop.f32.mrf.mxu0
      %v1787 = vpop.f32.mrf.mxu0
      %v1788 = vadd.f32 %v1602, %v1787
      %v1789 = vpop.f32.mrf.mxu0
      %1790 = vmatprep.mubr.bf16.mxu0 0
      %1791 = vmatmul.mubr.bf16.gmra.mxu0 %v1650
      %v1792 = vpop.f32.mrf.mxu0
      %v1793 = vadd.f32 %v1602, %v1792
      %v1794 = vpop.f32.mrf.mxu0
      %v1795 = vpop.f32.mrf.mxu0
      %v1796 = vadd.f32 %v1602, %v1795
      %v1797 = vpop.f32.mrf.mxu0
      %1798 = vmatprep.mubr.bf16.mxu0 0
      %1799 = vmatmul.mubr.bf16.gmra.mxu0 %v1653
      %v1800 = vpop.f32.mrf.mxu0
      %v1801 = vadd.f32 %v1602, %v1800
      %v1802 = vpop.f32.mrf.mxu0
      %v1803 = vpop.f32.mrf.mxu0
      %v1804 = vadd.f32 %v1602, %v1803
      %v1805 = vpop.f32.mrf.mxu0
      %1806 = vmatprep.mubr.bf16.mxu0 0
      %1807 = vmatmul.mubr.bf16.gmra.mxu0 %v1656
      %v1808 = vpop.f32.mrf.mxu0
      %v1809 = vadd.f32 %v1602, %v1808
      %v1810 = vpop.f32.mrf.mxu0
      %v1811 = vpop.f32.mrf.mxu0
      %v1812 = vadd.f32 %v1602, %v1811
      %v1813 = vpop.f32.mrf.mxu0
      %1814 = vmatprep.mubr.bf16.mxu0 0
      %1815 = vmatmul.mubr.bf16.gmra.mxu0 %v1659
      %v1816 = vpop.f32.mrf.mxu0
      %v1817 = vadd.f32 %v1602, %v1816
      %v1818 = vpop.f32.mrf.mxu0
      %v1819 = vpop.f32.mrf.mxu0
      %v1820 = vadd.f32 %v1602, %v1819
      %v1821 = vpop.f32.mrf.mxu0
      %1822 = vmatprep.mubr.bf16.mxu0 0
      %1823 = vmatmul.mubr.bf16.gmra.mxu0 %v1662
      %v1824 = vpop.f32.mrf.mxu0
      %v1825 = vadd.f32 %v1602, %v1824
      %v1826 = vpop.f32.mrf.mxu0
      %v1827 = vpop.f32.mrf.mxu0
      %v1828 = vadd.f32 %v1602, %v1827
      %v1829 = vpop.f32.mrf.mxu0
      %1830 = vdwg.mxu0
      %v1831 = vmax.f32 %v1705, 0.0
      %v1832 = vmax.f32 %v1708, 0.0
      %v1833 = vmax.f32 %v1713, 0.0
      %v1834 = vmax.f32 %v1716, 0.0
      %v1835 = vmax.f32 %v1721, 0.0
      %v1836 = vmax.f32 %v1724, 0.0
      %v1837 = vmax.f32 %v1729, 0.0
      %v1838 = vmax.f32 %v1732, 0.0
      %v1839 = vmax.f32 %v1737, 0.0
      %v1840 = vmax.f32 %v1740, 0.0
      %v1841 = vmax.f32 %v1745, 0.0
      %v1842 = vmax.f32 %v1748, 0.0
      %v1843 = vmax.f32 %v1753, 0.0
      %v1844 = vmax.f32 %v1756, 0.0
      %v1845 = vmax.f32 %v1761, 0.0
      %v1846 = vmax.f32 %v1764, 0.0
      %v1847 = vmax.f32 %v1769, 0.0
      %v1848 = vmax.f32 %v1772, 0.0
      %v1849 = vmax.f32 %v1777, 0.0
      %v1850 = vmax.f32 %v1780, 0.0
      %v1851 = vmax.f32 %v1785, 0.0
      %v1852 = vmax.f32 %v1788, 0.0
      %v1853 = vmax.f32 %v1793, 0.0
      %v1854 = vmax.f32 %v1796, 0.0
      %v1855 = vmax.f32 %v1801, 0.0
      %v1856 = vmax.f32 %v1804, 0.0
      %v1857 = vmax.f32 %v1809, 0.0
      %v1858 = vmax.f32 %v1812, 0.0
      %v1859 = vmax.f32 %v1817, 0.0
      %v1860 = vmax.f32 %v1820, 0.0
      %v1861 = vmax.f32 %v1825, 0.0
      %v1862 = vmax.f32 %v1828, 0.0
      %v1863 = vpack.c.bf16 %v1832, %v1831
      %v1864 = vpack.c.bf16 %v1834, %v1833
      %v1865 = vpack.c.bf16 %v1836, %v1835
      %v1866 = vpack.c.bf16 %v1838, %v1837
      %v1867 = vpack.c.bf16 %v1840, %v1839
      %v1868 = vpack.c.bf16 %v1842, %v1841
      %v1869 = vpack.c.bf16 %v1844, %v1843
      %v1870 = vpack.c.bf16 %v1846, %v1845
      %v1871 = vpack.c.bf16 %v1848, %v1847
      %v1872 = vpack.c.bf16 %v1850, %v1849
      %v1873 = vpack.c.bf16 %v1852, %v1851
      %v1874 = vpack.c.bf16 %v1854, %v1853
      %v1875 = vpack.c.bf16 %v1856, %v1855
      %v1876 = vpack.c.bf16 %v1858, %v1857
      %v1877 = vpack.c.bf16 %v1860, %v1859
      %v1878 = vpack.c.bf16 %v1862, %v1861
      %v1895 = vunpack.c.l.b16 %v1863
      %v1896 = vunpack.c.h.b16 %v1863
      %v1897 = vunpack.c.l.b16 %v1864
      %v1898 = vunpack.c.h.b16 %v1864
      %v1899 = vunpack.c.l.b16 %v1865
      %v1900 = vunpack.c.h.b16 %v1865
      %v1901 = vunpack.c.l.b16 %v1866
      %v1902 = vunpack.c.h.b16 %v1866
      %v1903 = vunpack.c.l.b16 %v1867
      %v1904 = vunpack.c.h.b16 %v1867
      %v1905 = vunpack.c.l.b16 %v1868
      %v1906 = vunpack.c.h.b16 %v1868
      %v1907 = vunpack.c.l.b16 %v1869
      %v1908 = vunpack.c.h.b16 %v1869
      %v1909 = vunpack.c.l.b16 %v1870
      %v1910 = vunpack.c.h.b16 %v1870
      %v1911 = vunpack.c.l.b16 %v1871
      %v1912 = vunpack.c.h.b16 %v1871
      %v1913 = vunpack.c.l.b16 %v1872
      %v1914 = vunpack.c.h.b16 %v1872
      %v1915 = vunpack.c.l.b16 %v1873
      %v1916 = vunpack.c.h.b16 %v1873
      %v1917 = vunpack.c.l.b16 %v1874
      %v1918 = vunpack.c.h.b16 %v1874
      %v1919 = vunpack.c.l.b16 %v1875
      %v1920 = vunpack.c.h.b16 %v1875
      %v1921 = vunpack.c.l.b16 %v1876
      %v1922 = vunpack.c.h.b16 %v1876
      %v1923 = vunpack.c.l.b16 %v1877
      %v1924 = vunpack.c.h.b16 %v1877
      %v1925 = vunpack.c.l.b16 %v1878
      %v1926 = vunpack.c.h.b16 %v1878
      %v1927 = vpack.c.b16 %v1895, %v1895
      %v1928 = vpack.c.b16 %v1896, %v1896
      %v1929 = vpack.c.b16 %v1897, %v1897
      %v1930 = vpack.c.b16 %v1898, %v1898
      %v1931 = vpack.c.b16 %v1899, %v1899
      %v1932 = vpack.c.b16 %v1900, %v1900
      %v1933 = vpack.c.b16 %v1901, %v1901
      %v1934 = vpack.c.b16 %v1902, %v1902
      %v1935 = vpack.c.b16 %v1903, %v1903
      %v1936 = vpack.c.b16 %v1904, %v1904
      %v1937 = vpack.c.b16 %v1905, %v1905
      %v1938 = vpack.c.b16 %v1906, %v1906
      %v1939 = vpack.c.b16 %v1907, %v1907
      %v1940 = vpack.c.b16 %v1908, %v1908
      %v1941 = vpack.c.b16 %v1909, %v1909
      %v1942 = vpack.c.b16 %v1910, %v1910
      %v1943 = vpack.c.b16 %v1911, %v1911
      %v1944 = vpack.c.b16 %v1912, %v1912
      %v1945 = vpack.c.b16 %v1913, %v1913
      %v1946 = vpack.c.b16 %v1914, %v1914
      %v1947 = vpack.c.b16 %v1915, %v1915
      %v1948 = vpack.c.b16 %v1916, %v1916
      %v1949 = vpack.c.b16 %v1917, %v1917
      %v1950 = vpack.c.b16 %v1918, %v1918
      %v1951 = vpack.c.b16 %v1919, %v1919
      %v1952 = vpack.c.b16 %v1920, %v1920
      %v1953 = vpack.c.b16 %v1921, %v1921
      %v1954 = vpack.c.b16 %v1922, %v1922
      %v1955 = vpack.c.b16 %v1923, %v1923
      %v1956 = vpack.c.b16 %v1924, %v1924
      %v1957 = vpack.c.b16 %v1925, %v1925
      %v1958 = vpack.c.b16 %v1926, %v1926
      %vm1991 = vcmask 60416
      %1992 = vst.msk [vmem:[%s194] sm:$0xf] %vm1991, %v1927
      %1993 = vst.msk [vmem:[%s194 + $0x4] sm:$0xf] %vm1991, %v1928
      %1994 = vst.msk [vmem:[%s194 + $0x8] sm:$0xf] %vm1991, %v1929
      %1995 = vst.msk [vmem:[%s194 + $0xc] sm:$0xf] %vm1991, %v1930
      %1996 = vst.msk [vmem:[%s194 + $0x10] sm:$0xf] %vm1991, %v1931
      %1997 = vst.msk [vmem:[%s194 + $0x14] sm:$0xf] %vm1991, %v1932
      %1998 = vst.msk [vmem:[%s194 + $0x18] sm:$0xf] %vm1991, %v1933
      %1999 = vst.msk [vmem:[%s194 + $0x1c] sm:$0xf] %vm1991, %v1934
      %2000 = vst.msk [vmem:[%s194 + $0x20] sm:$0xf] %vm1991, %v1935
      %2001 = vst.msk [vmem:[%s194 + $0x24] sm:$0xf] %vm1991, %v1936
      %2002 = vst.msk [vmem:[%s194 + $0x28] sm:$0xf] %vm1991, %v1937
      %2003 = vst.msk [vmem:[%s194 + $0x2c] sm:$0xf] %vm1991, %v1938
      %2004 = vst.msk [vmem:[%s194 + $0x30] sm:$0xf] %vm1991, %v1939
      %2005 = vst.msk [vmem:[%s194 + $0x34] sm:$0xf] %vm1991, %v1940
      %2006 = vst.msk [vmem:[%s194 + $0x38] sm:$0xf] %vm1991, %v1941
      %2007 = vst.msk [vmem:[%s194 + $0x3c] sm:$0xf] %vm1991, %v1942
      %2008 = vst.msk [vmem:[%s194 + $0x40] sm:$0xf] %vm1991, %v1943
      %2009 = vst.msk [vmem:[%s194 + $0x44] sm:$0xf] %vm1991, %v1944
      %2010 = vst.msk [vmem:[%s194 + $0x48] sm:$0xf] %vm1991, %v1945
      %2011 = vst.msk [vmem:[%s194 + $0x4c] sm:$0xf] %vm1991, %v1946
      %2012 = vst.msk [vmem:[%s194 + $0x50] sm:$0xf] %vm1991, %v1947
      %2013 = vst.msk [vmem:[%s194 + $0x54] sm:$0xf] %vm1991, %v1948
      %2014 = vst.msk [vmem:[%s194 + $0x58] sm:$0xf] %vm1991, %v1949
      %2015 = vst.msk [vmem:[%s194 + $0x5c] sm:$0xf] %vm1991, %v1950
      %2016 = vst.msk [vmem:[%s194 + $0x60] sm:$0xf] %vm1991, %v1951
      %2017 = vst.msk [vmem:[%s194 + $0x64] sm:$0xf] %vm1991, %v1952
      %2018 = vst.msk [vmem:[%s194 + $0x68] sm:$0xf] %vm1991, %v1953
      %2019 = vst.msk [vmem:[%s194 + $0x6c] sm:$0xf] %vm1991, %v1954
      %2020 = vst.msk [vmem:[%s194 + $0x70] sm:$0xf] %vm1991, %v1955
      %2021 = vst.msk [vmem:[%s194 + $0x74] sm:$0xf] %vm1991, %v1956
      %2022 = vst.msk [vmem:[%s194 + $0x78] sm:$0xf] %vm1991, %v1957
      %2023 = vst.msk [vmem:[%s194 + $0x7c] sm:$0xf] %vm1991, %v1958
      %s2024 = smul.u32 16, %s19
      %p2025 = scmp.lt.s32.totalorder %s18, 1
      %s2026 = scalar_select %p2025, %s18, 1
      %p2027 = scmp.lt.s32.totalorder %s2024, 15
      %s2028 = scalar_select %p2027, %s2024, 15
      %s2029 = smul.addr %s2028, 2
      %s2030 = smul.addr %s2026, 32
      %s2031 = sadd.s32 %s2029, %s2030
      %s2032 = smul.addr %s2031, 4
      %s2033 = scalar_lea.vmem %s3, %s2032
      // Predicated region
      $region33: #{deep_unet_forward.6} parent=31 // pred_check
        %p2034 = pneg %p114
      $region34: #{deep_unet_forward.6} parent=31 // pred_check_branch
        %2036 = sbr.rel (%p2034) target = $region36
      $region35: #{deep_unet_forward.6} parent=31 // pred_region
        %s2037 = smul.u32 16, %s19
      $region36: #{deep_unet_forward.6} parent=31 // pred_fallthru
        _
    $region32: #{deep_unet_forward.6} parent=5 // pred_fallthru
      _
    %p2038 = scmp.le.s32.totalorder 2, %s9
    // Predicated region
    $region37: #{deep_unet_forward.6} parent=5 // pred_check
      %p2039 = pneg %p2038
    $region38: #{deep_unet_forward.6} parent=5 // pred_check_branch
      %2041 = sbr.rel (%p2039) target = $region40
    $region39: #{deep_unet_forward.6} parent=5 // pred_region
      %s2042 = ssub.s32 %s9, 2
      // Predicated region
      $region41: #{deep_unet_forward.6} parent=39 // pred_check
        %p2043 = pneg %p120
      $region42: #{deep_unet_forward.6} parent=39 // pred_check_branch
        %2045 = sbr.rel (%p2043) target = $region44
      $region43: #{deep_unet_forward.6} parent=39 // pred_region
        %s2046 = smul.u32 16, %s21
        %p2047 = scmp.lt.s32.totalorder %s20, 1
        %s2048 = scalar_select %p2047, %s20, 1
        %p2049 = scmp.lt.s32.totalorder %s2046, 15
        %s2050 = scalar_select %p2049, %s2046, 15
        %s2051 = smul.addr %s2050, 2
        %s2052 = smul.addr %s2048, 32
        %s2053 = sadd.s32 %s2051, %s2052
        %s2054 = smul.addr %s2053, 4
        %s2055 = scalar_lea.vmem %s3, %s2054
      $region44: #{deep_unet_forward.6} parent=39 // pred_fallthru
        _
    $region40: #{deep_unet_forward.6} parent=5 // pred_fallthru
      _
  $region6: #{deep_unet_forward.6} parent=0 // loop_footer
    %s13 = sadd.s32 1, %s9
  $region7: #{deep_unet_forward.6} parent=0 // loop_footer_branch
    %8 = sbr.rel target = $region3
  $region8: #{deep_unet_forward.6} parent=0 // loop_exit
    _

// kernel: deep_unet_forward.8
$region0: #{deep_unet_forward.8}
  #allocation0 [shape = 'u32[]', space=smem, size = 0x4, offset = 0x4, fixed_abs, tag = 'smem constant byte address 0x4 - core index']
  #allocation1 [shape = 'u32[144,128]{1,0:T(1,128)}', space=vmem, size = 0x12000, scoped, tag = 'internal scratch']
  %s0 = inlined_call_operand.vmem [shape: bf16[2,6,6,16], index: 0, kind: input, shape index: {}]
  %s1 = inlined_call_operand.vmem [shape: bf16[144,32], index: 1, kind: input, shape index: {}]
  %s2 = inlined_call_operand.vmem [shape: f32[1,32], index: 2, kind: input, shape index: {}]
  %s3 = inlined_call_operand.vmem [shape: bf16[2,4,4,32], index: 3, kind: output, shape index: {}]
  %s4 = sld [smem:[#allocation0]]
  $region45: #{deep_unet_forward.8} parent=0
    _
  %s6 = ssub.s32 1, %s4
  %s7 = scalar_select 0, %s6, %s4
  loop: start=0, step=1, limit=4
  $region2: #{deep_unet_forward.8} parent=0 // loop_pre_header
    _
  $region3: #{deep_unet_forward.8} parent=0 // loop_header
    %s9 = sphi 0, %s13
    %p10 = scmp.ge.s32.totalorder %s9, 4
    %s16 = sphi 0, %s28
    %s17 = sphi 0, %s24
    %s18 = sphi 0, %s16
    %s19 = sphi 0, %s17
    %s20 = sphi 0, %s18
    %s21 = sphi 0, %s19
    %s31 = sphi 0, %s33
    %s34 = sphi 0, %s31
    %s35 = sphi 0, %s34
    %s51 = sphi 0, %s35
    %s55 = sphi 0, %s55
    %s57 = sphi 0, %s55
    %s58 = sphi 0, %s57
    %s72 = sphi 0, %s58
    %s76 = sphi 0, %s76
    %s78 = sphi 0, %s76
    %s79 = sphi 0, %s78
    %s93 = sphi 0, %s79
    %s101 = sphi 0, %s103
    %s104 = sphi 0, %s101
    %s105 = sphi 0, %s104
    %s121 = sphi 0, %s105
  $region4: #{deep_unet_forward.8} parent=0 // loop_header_branch
    %12 = sbr.rel (%p10) target = $region8
  $region5: #{deep_unet_forward.8} parent=0 // loop_body
    %s14 = ssub.s32 %s9, 1
    %s15 = ssub.s32 %s9, 2
    %s22 = sadd.s32 1, %s17
    %p23 = scmp.ge.s32.totalorder %s22, 1
    %s24 = scalar_select %p23, 0, %s22
    %s25 = sadd.s32 1, %s16
    %s26 = scalar_select %p23, %s25, %s16
    %p27 = scmp.ge.s32.totalorder %s26, 2
    %s28 = scalar_select %p27, 0, %s26
    %s29 = ssub.s32 %s16, %s28
    %p30 = scmp.eq.s32.totalorder %s29, 0
    %s32 = sadd.s32 %s31, 1
    %s33 = scalar_select %p30, %s31, %s32
    %p36 = pneg %p30
    %p37 = scmp.eq.s32.totalorder %s9, 1
    %p38 = por %p36, %p37
    %p39 = scmp.ne.s32.totalorder %s31, %s34
    %p40 = scmp.eq.s32.totalorder %s9, 0
    %p41 = por %p39, %p40
    %p42 = scmp.ne.s32.totalorder %s31, %s34
    %p43 = scmp.eq.s32.totalorder %s14, 1
    %p44 = por %p42, %p43
    %p45 = scmp.ne.s32.totalorder %s34, %s35
    %p46 = scmp.eq.s32.totalorder %s14, 0
    %p47 = por %p45, %p46
    %p48 = scmp.ne.s32.totalorder %s34, %s35
    %p49 = scmp.eq.s32.totalorder %s15, 1
    %p50 = por %p48, %p49
    %p52 = scmp.ne.s32.totalorder %s35, %s51
    %p53 = scmp.eq.s32.totalorder %s15, 0
    %p54 = por %p52, %p53
    %s56 = sadd.s32 %s55, 1
    %p59 = scmp.eq.s32.totalorder %s9, 1
    %p60 = scmp.ne.s32.totalorder %s55, %s57
    %p61 = scmp.eq.s32.totalorder %s9, 0
    %p62 = por %p60, %p61
    %p63 = scmp.ne.s32.totalorder %s55, %s57
    %p64 = scmp.eq.s32.totalorder %s14, 1
    %p65 = por %p63, %p64
    %p66 = scmp.ne.s32.totalorder %s57, %s58
    %p67 = scmp.eq.s32.totalorder %s14, 0
    %p68 = por %p66, %p67
    %p69 = scmp.ne.s32.totalorder %s57, %s58
    %p70 = scmp.eq.s32.totalorder %s15, 1
    %p71 = por %p69, %p70
    %p73 = scmp.ne.s32.totalorder %s58, %s72
    %p74 = scmp.eq.s32.totalorder %s15, 0
    %p75 = por %p73, %p74
    %s77 = sadd.s32 %s76, 1
    %p80 = scmp.eq.s32.totalorder %s9, 1
    %p81 = scmp.ne.s32.totalorder %s76, %s78
    %p82 = scmp.eq.s32.totalorder %s9, 0
    %p83 = por %p81, %p82
    %p84 = scmp.ne.s32.totalorder %s76, %s78
    %p85 = scmp.eq.s32.totalorder %s14, 1
    %p86 = por %p84, %p85
    %p87 = scmp.ne.s32.totalorder %s78, %s79
    %p88 = scmp.eq.s32.totalorder %s14, 0
    %p89 = por %p87, %p88
    %p90 = scmp.ne.s32.totalorder %s78, %s79
    %p91 = scmp.eq.s32.totalorder %s15, 1
    %p92 = por %p90, %p91
    %p94 = scmp.ne.s32.totalorder %s79, %s93
    %p95 = scmp.eq.s32.totalorder %s15, 0
    %p96 = por %p94, %p95
    %s97 = ssub.s32 %s16, %s28
    %s98 = ssub.s32 %s17, %s24
    %s99 = sor.u32 %s97, %s98
    %p100 = scmp.eq.s32.totalorder %s99, 0
    %s102 = sadd.s32 %s101, 1
    %s103 = scalar_select %p100, %s101, %s102
    %p106 = pneg %p100
    %p107 = scmp.eq.s32.totalorder %s9, 1
    %p108 = por %p106, %p107
    %p109 = scmp.ne.s32.totalorder %s101, %s104
    %p110 = scmp.eq.s32.totalorder %s9, 0
    %p111 = por %p109, %p110
    %p112 = scmp.ne.s32.totalorder %s101, %s104
    %p113 = scmp.eq.s32.totalorder %s14, 1
    %p114 = por %p112, %p113
    %p115 = scmp.ne.s32.totalorder %s104, %s105
    %p116 = scmp.eq.s32.totalorder %s14, 0
    %p117 = por %p115, %p116
    %p118 = scmp.ne.s32.totalorder %s104, %s105
    %p119 = scmp.eq.s32.totalorder %s15, 1
    %p120 = por %p118, %p119
    %p122 = scmp.ne.s32.totalorder %s105, %s121
    %p123 = scmp.eq.s32.totalorder %s15, 0
    %p124 = por %p122, %p123
    %p125 = scmp.le.s32.totalorder 1, %s9
    %p126 = scmp.lt.s32.totalorder %s9, 3
    %p127 = pnand %p125, %p126
    %p128 = pneg %p127
    // Predicated region
    $region9: #{deep_unet_forward.8} parent=5 // pred_check
      _
    $region10: #{deep_unet_forward.8} parent=5 // pred_check_branch
      %130 = sbr.rel (%p127) target = $region12
    $region11: #{deep_unet_forward.8} parent=5 // pred_region
      %s131 = ssub.s32 %s9, 1
      // Predicated region
      $region13: #{deep_unet_forward.8} parent=11 // pred_check
        %p132 = pneg %p68
      $region14: #{deep_unet_forward.8} parent=11 // pred_check_branch
        %134 = sbr.rel (%p132) target = $region16
      $region15: #{deep_unet_forward.8} parent=11 // pred_region
        _
      $region16: #{deep_unet_forward.8} parent=11 // pred_fallthru
        _
      // Predicated region
      $region17: #{deep_unet_forward.8} parent=11 // pred_check
        %p135 = pneg %p89
      $region18: #{deep_unet_forward.8} parent=11 // pred_check_branch
        %137 = sbr.rel (%p135) target = $region20
      $region19: #{deep_unet_forward.8} parent=11 // pred_region
        _
      $region20: #{deep_unet_forward.8} parent=11 // pred_fallthru
        _
    $region12: #{deep_unet_forward.8} parent=5 // pred_fallthru
      _
    %p138 = scmp.lt.s32.totalorder %s9, 2
    // Predicated region
    $region21: #{deep_unet_forward.8} parent=5 // pred_check
      %p139 = pneg %p138
    $region22: #{deep_unet_forward.8} parent=5 // pred_check_branch
      %141 = sbr.rel (%p139) target = $region24
    $region23: #{deep_unet_forward.8} parent=5 // pred_region
      // Predicated region
      $region25: #{deep_unet_forward.8} parent=23 // pred_check
        %p142 = pneg %p41
      $region26: #{deep_unet_forward.8} parent=23 // pred_check_branch
        %144 = sbr.rel (%p142) target = $region28
      $region27: #{deep_unet_forward.8} parent=23 // pred_region
        %p145 = scmp.lt.s32.totalorder %s16, 1
        %s146 = scalar_select %p145, %s16, 1
        %s147 = smul.addr %s146, 6
        %s148 = smul.addr %s147, 4
        %s149 = scalar_lea.vmem %s0, %s148
      $region28: #{deep_unet_forward.8} parent=23 // pred_fallthru
        _
    $region24: #{deep_unet_forward.8} parent=5 // pred_fallthru
      _
    %p150 = scmp.le.s32.totalorder 1, %s9
    %p151 = scmp.lt.s32.totalorder %s9, 3
    %p152 = pnand %p150, %p151
    %p153 = pneg %p152
    // Predicated region
    $region29: #{deep_unet_forward.8} parent=5 // pred_check
      _
    $region30: #{deep_unet_forward.8} parent=5 // pred_check_branch
      %155 = sbr.rel (%p152) target = $region32
    $region31: #{deep_unet_forward.8} parent=5 // pred_region
      %s156 = ssub.s32 %s9, 1
      %p157 = scmp.lt.s32.totalorder %s18, 1
      %s158 = scalar_select %p157, %s18, 1
      %s159 = smul.addr %s158, 6
      %s160 = smul.addr %s159, 4
      %s161 = scalar_lea.vmem %s0, %s160
      %p162 = pneg %p47
      %p163 = pneg %p44
      %p164 = pneg %p68
      %p165 = pneg %p65
      %p166 = pneg %p89
      %p167 = pneg %p86
      %p168 = pneg %p117
      %p169 = pneg %p114
      %s170 = smul.u32 4, %s19
      %p171 = scmp.lt.s32.totalorder %s18, 1
      %s172 = scalar_select %p171, %s18, 1
      %p173 = scmp.lt.s32.totalorder %s170, 3
      %s174 = scalar_select %p173, %s170, 3
      %s175 = smul.addr %s172, 4
      %s176 = sadd.s32 %s174, %s175
      %s177 = smul.addr %s176, 2
      %s178 = scalar_lea.vmem %s3, %s177
      %p179 = scmp.lt.s32.totalorder %s18, 1
      %s180 = scalar_select %p179, %s18, 1
      %s181 = smul.addr %s180, 6
      %s182 = smul.addr %s181, 4
      %s183 = scalar_lea.vmem %s0, %s182
      %s184 = smul.u32 4, %s19
      %p185 = scmp.lt.s32.totalorder %s18, 1
      %s186 = scalar_select %p185, %s18, 1
      %p187 = scmp.lt.s32.totalorder %s184, 3
      %s188 = scalar_select %p187, %s184, 3
      %s189 = smul.addr %s186, 4
      %s190 = sadd.s32 %s188, %s189
      %s191 = smul.addr %s190, 2
      %s192 = scalar_lea.vmem %s3, %s191
      %s193 = smul.u32 4, %s19
      %s195 = smul.u32 %s19, 4
      %s196 = smul.addr %s195, 4
      %s197 = scalar_lea.vmem %s183, %s196
      %v198 = vld [vmem:[%s197] sm:$0x7]
      %v199 = vld [vmem:[%s197 + $0x4] sm:$0x7]
      %v200 = vld [vmem:[%s197 + $0x8] sm:$0x7]
      %v201 = vld [vmem:[%s197 + $0xc] sm:$0x7]
      %v202 = vld [vmem:[%s197 + $0x10] sm:$0x7]
      %v203 = vld [vmem:[%s197 + $0x14] sm:$0x7]
      %v204 = vunpack.c.l.bf16 %v198
      %v205 = vunpack.c.l.bf16 %v199
      %v206 = vunpack.c.l.bf16 %v200
      %v207 = vunpack.c.l.bf16 %v201
      %v208 = vunpack.c.l.bf16 %v202
      %v209 = vunpack.c.l.bf16 %v203
      %v214 = vrot.slane %v204, 1
      %v215 = vrot.slane %v205, 1
      %v216 = vrot.slane %v206, 1
      %v217 = vrot.slane %v207, 1
      %218 = vrot.lane.b32.xlu0 %v214, 16
      %v219 = vpop.permute.xlu0 %218
      %220 = vrot.lane.b32.xlu0 %v215, 16
      %v221 = vpop.permute.xlu0 %220
      %222 = vrot.lane.b32.xlu0 %v216, 16
      %v223 = vpop.permute.xlu0 %222
      %224 = vrot.lane.b32.xlu0 %v217, 16
      %v225 = vpop.permute.xlu0 %224
      %v230 = vrot.slane %v204, 2
      %v231 = vrot.slane %v205, 2
      %v232 = vrot.slane %v206, 2
      %v233 = vrot.slane %v207, 2
      %234 = vrot.lane.b32.xlu0 %v230, 32
      %v235 = vpop.permute.xlu0 %234
      %236 = vrot.lane.b32.xlu0 %v231, 32
      %v237 = vpop.permute.xlu0 %236
      %238 = vrot.lane.b32.xlu0 %v232, 32
      %v239 = vpop.permute.xlu0 %238
      %240 = vrot.lane.b32.xlu0 %v233, 32
      %v241 = vpop.permute.xlu0 %240
      %247 = vrot.lane.b32.xlu0 %v205, 48
      %v248 = vpop.permute.xlu0 %247
      %249 = vrot.lane.b32.xlu0 %v206, 48
      %v250 = vpop.permute.xlu0 %249
      %251 = vrot.lane.b32.xlu0 %v207, 48
      %v252 = vpop.permute.xlu0 %251
      %253 = vrot.lane.b32.xlu0 %v208, 48
      %v254 = vpop.permute.xlu0 %253
      %v259 = vrot.slane %v208, 1
      %260 = vrot.lane.b32.xlu0 %v215, 64
      %v261 = vpop.permute.xlu0 %260
      %262 = vrot.lane.b32.xlu0 %v216, 64
      %v263 = vpop.permute.xlu0 %262
      %264 = vrot.lane.b32.xlu0 %v217, 64
      %v265 = vpop.permute.xlu0 %264
      %266 = vrot.lane.b32.xlu0 %v259, 64
      %v267 = vpop.permute.xlu0 %266
      %v272 = vrot.slane %v208, 2
      %273 = vrot.lane.b32.xlu0 %v231, 80
      %v274 = vpop.permute.xlu0 %273
      %275 = vrot.lane.b32.xlu0 %v232, 80
      %v276 = vpop.permute.xlu0 %275
      %277 = vrot.lane.b32.xlu0 %v233, 80
      %v278 = vpop.permute.xlu0 %277
      %279 = vrot.lane.b32.xlu0 %v272, 80
      %v280 = vpop.permute.xlu0 %279
      %286 = vrot.lane.b32.xlu0 %v206, 96
      %v287 = vpop.permute.xlu0 %286
      %288 = vrot.lane.b32.xlu0 %v207, 96
      %v289 = vpop.permute.xlu0 %288
      %290 = vrot.lane.b32.xlu0 %v208, 96
      %v291 = vpop.permute.xlu0 %290
      %292 = vrot.lane.b32.xlu0 %v209, 96
      %v293 = vpop.permute.xlu0 %292
      %v298 = vrot.slane %v209, 1
      %299 = vrot.lane.b32.xlu0 %v216, 112
      %v300 = vpop.permute.xlu0 %299
      %301 = vrot.lane.b32.xlu0 %v217, 112
      %v302 = vpop.permute.xlu0 %301
      %303 = vrot.lane.b32.xlu0 %v259, 112
      %v304 = vpop.permute.xlu0 %303
      %305 = vrot.lane.b32.xlu0 %v298, 112
      %v306 = vpop.permute.xlu0 %305
      %v311 = vrot.slane %v209, 2
      %vm312 = vcmask 130048
      %v313 = vsel %vm312, %v204, %v219
      %v314 = vsel %vm312, %v205, %v221
      %v315 = vsel %vm312, %v206, %v223
      %v316 = vsel %vm312, %v207, %v225
      %vm317 = vcmask 261120
      %v318 = vsel %vm317, %v313, %v235
      %v319 = vsel %vm317, %v314, %v237
      %v320 = vsel %vm317, %v315, %v239
      %v321 = vsel %vm317, %v316, %v241
      %vm322 = vcmask 392192
      %v323 = vsel %vm322, %v318, %v248
      %v324 = vsel %vm322, %v319, %v250
      %v325 = vsel %vm322, %v320, %v252
      %v326 = vsel %vm322, %v321, %v254
      %vm327 = vcmask 523264
      %v328 = vsel %vm327, %v323, %v261
      %v329 = vsel %vm327, %v324, %v263
      %v330 = vsel %vm327, %v325, %v265
      %v331 = vsel %vm327, %v326, %v267
      %vm332 = vcmask 654336
      %v333 = vsel %vm332, %v328, %v274
      %v334 = vsel %vm332, %v329, %v276
      %v335 = vsel %vm332, %v330, %v278
      %v336 = vsel %vm332, %v331, %v280
      %vm337 = vcmask 785408
      %v338 = vsel %vm337, %v333, %v287
      %v339 = vsel %vm337, %v334, %v289
      %v340 = vsel %vm337, %v335, %v291
      %v341 = vsel %vm337, %v336, %v293
      %vm342 = vcmask 916480
      %v343 = vsel %vm342, %v338, %v300
      %v344 = vsel %vm342, %v339, %v302
      %v345 = vsel %vm342, %v340, %v304
      %v346 = vsel %vm342, %v341, %v306
      %v351 = vcombine.low %v343, %v232
      %v352 = vcombine.low %v344, %v233
      %v353 = vcombine.low %v345, %v272
      %v354 = vcombine.low %v346, %v311
      %v355 = vcombine.low %v351, %v352
      %v356 = vcombine.high %v351, %v352
      %v357 = vcombine.low %v353, %v354
      %v358 = vcombine.high %v353, %v354
      %v363 = vpack.c.bf16 %v357, %v355
      %v364 = vpack.c.bf16 %v358, %v356
      %v365 = vld [vmem:[%s1] sm:$0xf]
      %v366 = vld [vmem:[%s1 + $0x4] sm:$0xf]
      %v367 = vld [vmem:[%s1 + $0x8] sm:$0xf]
      %v368 = vld [vmem:[%s1 + $0xc] sm:$0xf]
      %v369 = vld [vmem:[%s1 + $0x10] sm:$0xf]
      %v370 = vld [vmem:[%s1 + $0x14] sm:$0xf]
      %v371 = vld [vmem:[%s1 + $0x18] sm:$0xf]
      %v372 = vld [vmem:[%s1 + $0x1c] sm:$0xf]
      %v373 = vld [vmem:[%s1 + $0x20] sm:$0xf]
      %v374 = vld [vmem:[%s1 + $0x24] sm:$0xf]
      %v375 = vld [vmem:[%s1 + $0x28] sm:$0xf]
      %v376 = vld [vmem:[%s1 + $0x2c] sm:$0xf]
      %v377 = vld [vmem:[%s1 + $0x30] sm:$0xf]
      %v378 = vld [vmem:[%s1 + $0x34] sm:$0xf]
      %v379 = vld [vmem:[%s1 + $0x38] sm:$0xf]
      %v380 = vld [vmem:[%s1 + $0x3c] sm:$0xf]
      %v381 = vld [vmem:[%s1 + $0x40] sm:$0xf]
      %v382 = vld [vmem:[%s1 + $0x44] sm:$0xf]
      %v383 = vld [vmem:[%s2] sm:$0x1]
      %v385 = vlaneseq
      %v386 = vshrl.u32 %v385, 7
      %v387 = vsub.s32 0, %v386
      %v388 = vrot.slane %v383, %v387
      %v408 = vunpack.c.l.b16 %v365
      %v409 = vunpack.c.l.b16 %v366
      %v410 = vunpack.c.l.b16 %v367
      %v411 = vunpack.c.l.b16 %v368
      %v412 = vunpack.c.l.b16 %v369
      %v413 = vunpack.c.l.b16 %v370
      %v414 = vunpack.c.l.b16 %v371
      %v415 = vunpack.c.l.b16 %v372
      %v416 = vunpack.c.l.b16 %v373
      %v417 = vunpack.c.l.b16 %v374
      %v418 = vunpack.c.l.b16 %v375
      %v419 = vunpack.c.l.b16 %v376
      %v420 = vunpack.c.l.b16 %v377
      %v421 = vunpack.c.l.b16 %v378
      %v422 = vunpack.c.l.b16 %v379
      %v423 = vunpack.c.l.b16 %v380
      %v424 = vunpack.c.l.b16 %v381
      %v425 = vunpack.c.l.b16 %v382
      %v426 = vpack.c.b16 %v409, %v408
      %v427 = vpack.c.b16 %v411, %v410
      %v428 = vpack.c.b16 %v413, %v412
      %v429 = vpack.c.b16 %v415, %v414
      %v430 = vpack.c.b16 %v417, %v416
      %v431 = vpack.c.b16 %v419, %v418
      %v432 = vpack.c.b16 %v421, %v420
      %v433 = vpack.c.b16 %v423, %v422
      %v434 = vpack.c.b16 %v425, %v424
      %v445 = vsel %vm312, %v364, 0
      %447 = vmatprep.subr.bf16.mxu0 0
      %448 = vmatpush1.bf16.msra.mxu0 %v433
      %449 = vmatprep.subr.bf16.mxu0 0
      %450 = vmatpush1.bf16.msra.mxu0 %v432
      %451 = vmatprep.subr.bf16.mxu0 0
      %452 = vmatpush1.bf16.msra.mxu0 %v431
      %453 = vmatprep.subr.bf16.mxu0 0
      %454 = vmatpush1.bf16.msra.mxu0 %v430
      %455 = vmatprep.subr.bf16.mxu0 0
      %456 = vmatpush1.bf16.msra.mxu0 %v429
      %457 = vmatprep.subr.bf16.mxu0 0
      %458 = vmatpush1.bf16.msra.mxu0 %v428
      %459 = vmatprep.subr.bf16.mxu0 0
      %460 = vmatpush1.bf16.msra.mxu0 %v427
      %461 = vmatprep.subr.bf16.mxu0 0
      %462 = vmatpush1.bf16.msra.mxu0 %v426
      %463 = vmatprep.subr.bf16.mxu0 0
      %464 = vmatpush2.bf16.msra.mxu0 0
      %465 = vmatprep.subr.bf16.mxu0 0
      %466 = vmatpush2.bf16.msra.mxu0 0
      %467 = vmatprep.subr.bf16.mxu0 0
      %468 = vmatpush2.bf16.msra.mxu0 0
      %469 = vmatprep.subr.bf16.mxu0 0
      %470 = vmatpush2.bf16.msra.mxu0 0
      %471 = vmatprep.subr.bf16.mxu0 0
      %472 = vmatpush2.bf16.msra.mxu0 0
      %473 = vmatprep.subr.bf16.mxu0 0
      %474 = vmatpush2.bf16.msra.mxu0 0
      %475 = vmatprep.subr.bf16.mxu0 0
      %476 = vmatpush2.bf16.msra.mxu0 0
      %477 = vmatprep.subr.bf16.mxu0 0
      %478 = vmatpush2.bf16.msra.mxu0 %v434
      %479 = vmatprep.mubr.bf16.mxu0 %v445
      %480 = vmatmul.mubr.bf16.gmra.mxu0 %v363
      %v481 = vpop.f32.mrf.mxu0
      %v482 = vadd.f32 %v388, %v481
      %v483 = vpop.f32.mrf.mxu0
      %v484 = vpop.f32.mrf.mxu0
      %v485 = vadd.f32 %v388, %v484
      %v486 = vpop.f32.mrf.mxu0
      %487 = vdwg.mxu0
      %v488 = vmax.f32 %v482, 0.0
      %v489 = vmax.f32 %v485, 0.0
      %v492 = vcombine.high %v488, %v488
      %v493 = vcombine.high %v489, %v489
      %v496 = vpack.c.bf16 %v488, %v488
      %v497 = vpack.c.bf16 %v492, %v492
      %v498 = vpack.c.bf16 %v489, %v489
      %v499 = vpack.c.bf16 %v493, %v493
      %vm500 = vcmask 254976
      %501 = vst.msk [vmem:[%s192] sm:$0x3] %vm500, %v496
      %502 = vst.msk [vmem:[%s192 + $0x2] sm:$0x3] %vm500, %v497
      %503 = vst.msk [vmem:[%s192 + $0x4] sm:$0x3] %vm500, %v498
      %504 = vst.msk [vmem:[%s192 + $0x6] sm:$0x3] %vm500, %v499
      %s505 = smul.u32 4, %s19
      %p506 = scmp.lt.s32.totalorder %s18, 1
      %s507 = scalar_select %p506, %s18, 1
      %p508 = scmp.lt.s32.totalorder %s505, 3
      %s509 = scalar_select %p508, %s505, 3
      %s510 = smul.addr %s507, 4
      %s511 = sadd.s32 %s509, %s510
      %s512 = smul.addr %s511, 2
      %s513 = scalar_lea.vmem %s3, %s512
      // Predicated region
      $region33: #{deep_unet_forward.8} parent=31 // pred_check
        %p514 = pneg %p114
      $region34: #{deep_unet_forward.8} parent=31 // pred_check_branch
        %516 = sbr.rel (%p514) target = $region36
      $region35: #{deep_unet_forward.8} parent=31 // pred_region
        %s517 = smul.u32 4, %s19
      $region36: #{deep_unet_forward.8} parent=31 // pred_fallthru
        _
    $region32: #{deep_unet_forward.8} parent=5 // pred_fallthru
      _
    %p518 = scmp.le.s32.totalorder 2, %s9
    // Predicated region
    $region37: #{deep_unet_forward.8} parent=5 // pred_check
      %p519 = pneg %p518
    $region38: #{deep_unet_forward.8} parent=5 // pred_check_branch
      %521 = sbr.rel (%p519) target = $region40
    $region39: #{deep_unet_forward.8} parent=5 // pred_region
      %s522 = ssub.s32 %s9, 2
      // Predicated region
      $region41: #{deep_unet_forward.8} parent=39 // pred_check
        %p523 = pneg %p120
      $region42: #{deep_unet_forward.8} parent=39 // pred_check_branch
        %525 = sbr.rel (%p523) target = $region44
      $region43: #{deep_unet_forward.8} parent=39 // pred_region
        %s526 = smul.u32 4, %s21
        %p527 = scmp.lt.s32.totalorder %s20, 1
        %s528 = scalar_select %p527, %s20, 1
        %p529 = scmp.lt.s32.totalorder %s526, 3
        %s530 = scalar_select %p529, %s526, 3
        %s531 = smul.addr %s528, 4
        %s532 = sadd.s32 %s530, %s531
        %s533 = smul.addr %s532, 2
        %s534 = scalar_lea.vmem %s3, %s533
      $region44: #{deep_unet_forward.8} parent=39 // pred_fallthru
        _
    $region40: #{deep_unet_forward.8} parent=5 // pred_fallthru
      _
  $region6: #{deep_unet_forward.8} parent=0 // loop_footer
    %s13 = sadd.s32 1, %s9
  $region7: #{deep_unet_forward.8} parent=0 // loop_footer_branch
    %8 = sbr.rel target = $region3
  $region8: #{deep_unet_forward.8} parent=0 // loop_exit
    _

// kernel: deep_unet_forward.9
$region0: #{deep_unet_forward.9}
  #allocation0 [shape = 'u32[]', space=smem, size = 0x4, offset = 0x4, fixed_abs, tag = 'smem constant byte address 0x4 - core index']
  #allocation1 [shape = 'u32[144,128]{1,0:T(1,128)}', space=vmem, size = 0x12000, scoped, tag = 'internal scratch']
  %s0 = inlined_call_operand.vmem [shape: bf16[2,10,10,32], index: 0, kind: input, shape index: {}]
  %s1 = inlined_call_operand.vmem [shape: bf16[2,10,10,16], index: 1, kind: input, shape index: {}]
  %s2 = inlined_call_operand.vmem [shape: bf16[288,16], index: 2, kind: input, shape index: {}]
  %s3 = inlined_call_operand.vmem [shape: bf16[144,16], index: 3, kind: input, shape index: {}]
  %s4 = inlined_call_operand.vmem [shape: f32[1,16], index: 4, kind: input, shape index: {}]
  %s5 = inlined_call_operand.vmem [shape: bf16[2,8,8,16], index: 5, kind: output, shape index: {}]
  %s6 = sld [smem:[#allocation0]]
  $region53: #{deep_unet_forward.9} parent=0
    _
  %s8 = ssub.s32 1, %s6
  %s9 = scalar_select 0, %s8, %s6
  loop: start=0, step=1, limit=4
  $region2: #{deep_unet_forward.9} parent=0 // loop_pre_header
    _
  $region3: #{deep_unet_forward.9} parent=0 // loop_header
    %s11 = sphi 0, %s15
    %p12 = scmp.ge.s32.totalorder %s11, 4
    %s18 = sphi 0, %s30
    %s19 = sphi 0, %s26
    %s20 = sphi 0, %s18
    %s21 = sphi 0, %s19
    %s22 = sphi 0, %s20
    %s23 = sphi 0, %s21
    %s33 = sphi 0, %s35
    %s36 = sphi 0, %s33
    %s37 = sphi 0, %s36
    %s53 = sphi 0, %s37
    %s59 = sphi 0, %s61
    %s62 = sphi 0, %s59
    %s63 = sphi 0, %s62
    %s79 = sphi 0, %s63
    %s83 = sphi 0, %s83
    %s85 = sphi 0, %s83
    %s86 = sphi 0, %s85
    %s100 = sphi 0, %s86
    %s104 = sphi 0, %s104
    %s106 = sphi 0, %s104
    %s107 = sphi 0, %s106
    %s121 = sphi 0, %s107
    %s125 = sphi 0, %s125
    %s127 = sphi 0, %s125
    %s128 = sphi 0, %s127
    %s142 = sphi 0, %s128
    %s150 = sphi 0, %s152
    %s153 = sphi 0, %s150
    %s154 = sphi 0, %s153
    %s170 = sphi 0, %s154
  $region4: #{deep_unet_forward.9} parent=0 // loop_header_branch
    %14 = sbr.rel (%p12) target = $region8
  $region5: #{deep_unet_forward.9} parent=0 // loop_body
    %s16 = ssub.s32 %s11, 1
    %s17 = ssub.s32 %s11, 2
    %s24 = sadd.s32 1, %s19
    %p25 = scmp.ge.s32.totalorder %s24, 1
    %s26 = scalar_select %p25, 0, %s24
    %s27 = sadd.s32 1, %s18
    %s28 = scalar_select %p25, %s27, %s18
    %p29 = scmp.ge.s32.totalorder %s28, 2
    %s30 = scalar_select %p29, 0, %s28
    %s31 = ssub.s32 %s18, %s30
    %p32 = scmp.eq.s32.totalorder %s31, 0
    %s34 = sadd.s32 %s33, 1
    %s35 = scalar_select %p32, %s33, %s34
    %p38 = pneg %p32
    %p39 = scmp.eq.s32.totalorder %s11, 1
    %p40 = por %p38, %p39
    %p41 = scmp.ne.s32.totalorder %s33, %s36
    %p42 = scmp.eq.s32.totalorder %s11, 0
    %p43 = por %p41, %p42
    %p44 = scmp.ne.s32.totalorder %s33, %s36
    %p45 = scmp.eq.s32.totalorder %s16, 1
    %p46 = por %p44, %p45
    %p47 = scmp.ne.s32.totalorder %s36, %s37
    %p48 = scmp.eq.s32.totalorder %s16, 0
    %p49 = por %p47, %p48
    %p50 = scmp.ne.s32.totalorder %s36, %s37
    %p51 = scmp.eq.s32.totalorder %s17, 1
    %p52 = por %p50, %p51
    %p54 = scmp.ne.s32.totalorder %s37, %s53
    %p55 = scmp.eq.s32.totalorder %s17, 0
    %p56 = por %p54, %p55
    %s57 = ssub.s32 %s18, %s30
    %p58 = scmp.eq.s32.totalorder %s57, 0
    %s60 = sadd.s32 %s59, 1
    %s61 = scalar_select %p58, %s59, %s60
    %p64 = pneg %p58
    %p65 = scmp.eq.s32.totalorder %s11, 1
    %p66 = por %p64, %p65
    %p67 = scmp.ne.s32.totalorder %s59, %s62
    %p68 = scmp.eq.s32.totalorder %s11, 0
    %p69 = por %p67, %p68
    %p70 = scmp.ne.s32.totalorder %s59, %s62
    %p71 = scmp.eq.s32.totalorder %s16, 1
    %p72 = por %p70, %p71
    %p73 = scmp.ne.s32.totalorder %s62, %s63
    %p74 = scmp.eq.s32.totalorder %s16, 0
    %p75 = por %p73, %p74
    %p76 = scmp.ne.s32.totalorder %s62, %s63
    %p77 = scmp.eq.s32.totalorder %s17, 1
    %p78 = por %p76, %p77
    %p80 = scmp.ne.s32.totalorder %s63, %s79
    %p81 = scmp.eq.s32.totalorder %s17, 0
    %p82 = por %p80, %p81
    %s84 = sadd.s32 %s83, 1
    %p87 = scmp.eq.s32.totalorder %s11, 1
    %p88 = scmp.ne.s32.totalorder %s83, %s85
    %p89 = scmp.eq.s32.totalorder %s11, 0
    %p90 = por %p88, %p89
    %p91 = scmp.ne.s32.totalorder %s83, %s85
    %p92 = scmp.eq.s32.totalorder %s16, 1
    %p93 = por %p91, %p92
    %p94 = scmp.ne.s32.totalorder %s85, %s86
    %p95 = scmp.eq.s32.totalorder %s16, 0
    %p96 = por %p94, %p95
    %p97 = scmp.ne.s32.totalorder %s85, %s86
    %p98 = scmp.eq.s32.totalorder %s17, 1
    %p99 = por %p97, %p98
    %p101 = scmp.ne.s32.totalorder %s86, %s100
    %p102 = scmp.eq.s32.totalorder %s17, 0
    %p103 = por %p101, %p102
    %s105 = sadd.s32 %s104, 1
    %p108 = scmp.eq.s32.totalorder %s11, 1
    %p109 = scmp.ne.s32.totalorder %s104, %s106
    %p110 = scmp.eq.s32.totalorder %s11, 0
    %p111 = por %p109, %p110
    %p112 = scmp.ne.s32.totalorder %s104, %s106
    %p113 = scmp.eq.s32.totalorder %s16, 1
    %p114 = por %p112, %p113
    %p115 = scmp.ne.s32.totalorder %s106, %s107
    %p116 = scmp.eq.s32.totalorder %s16, 0
    %p117 = por %p115, %p116
    %p118 = scmp.ne.s32.totalorder %s106, %s107
    %p119 = scmp.eq.s32.totalorder %s17, 1
    %p120 = por %p118, %p119
    %p122 = scmp.ne.s32.totalorder %s107, %s121
    %p123 = scmp.eq.s32.totalorder %s17, 0
    %p124 = por %p122, %p123
    %s126 = sadd.s32 %s125, 1
    %p129 = scmp.eq.s32.totalorder %s11, 1
    %p130 = scmp.ne.s32.totalorder %s125, %s127
    %p131 = scmp.eq.s32.totalorder %s11, 0
    %p132 = por %p130, %p131
    %p133 = scmp.ne.s32.totalorder %s125, %s127
    %p134 = scmp.eq.s32.totalorder %s16, 1
    %p135 = por %p133, %p134
    %p136 = scmp.ne.s32.totalorder %s127, %s128
    %p137 = scmp.eq.s32.totalorder %s16, 0
    %p138 = por %p136, %p137
    %p139 = scmp.ne.s32.totalorder %s127, %s128
    %p140 = scmp.eq.s32.totalorder %s17, 1
    %p141 = por %p139, %p140
    %p143 = scmp.ne.s32.totalorder %s128, %s142
    %p144 = scmp.eq.s32.totalorder %s17, 0
    %p145 = por %p143, %p144
    %s146 = ssub.s32 %s18, %s30
    %s147 = ssub.s32 %s19, %s26
    %s148 = sor.u32 %s146, %s147
    %p149 = scmp.eq.s32.totalorder %s148, 0
    %s151 = sadd.s32 %s150, 1
    %s152 = scalar_select %p149, %s150, %s151
    %p155 = pneg %p149
    %p156 = scmp.eq.s32.totalorder %s11, 1
    %p157 = por %p155, %p156
    %p158 = scmp.ne.s32.totalorder %s150, %s153
    %p159 = scmp.eq.s32.totalorder %s11, 0
    %p160 = por %p158, %p159
    %p161 = scmp.ne.s32.totalorder %s150, %s153
    %p162 = scmp.eq.s32.totalorder %s16, 1
    %p163 = por %p161, %p162
    %p164 = scmp.ne.s32.totalorder %s153, %s154
    %p165 = scmp.eq.s32.totalorder %s16, 0
    %p166 = por %p164, %p165
    %p167 = scmp.ne.s32.totalorder %s153, %s154
    %p168 = scmp.eq.s32.totalorder %s17, 1
    %p169 = por %p167, %p168
    %p171 = scmp.ne.s32.totalorder %s154, %s170
    %p172 = scmp.eq.s32.totalorder %s17, 0
    %p173 = por %p171, %p172
    %p174 = scmp.le.s32.totalorder 1, %s11
    %p175 = scmp.lt.s32.totalorder %s11, 3
    %p176 = pnand %p174, %p175
    %p177 = pneg %p176
    // Predicated region
    $region9: #{deep_unet_forward.9} parent=5 // pred_check
      _
    $region10: #{deep_unet_forward.9} parent=5 // pred_check_branch
      %179 = sbr.rel (%p176) target = $region12
    $region11: #{deep_unet_forward.9} parent=5 // pred_region
      %s180 = ssub.s32 %s11, 1
      // Predicated region
      $region13: #{deep_unet_forward.9} parent=11 // pred_check
        %p181 = pneg %p96
      $region14: #{deep_unet_forward.9} parent=11 // pred_check_branch
        %183 = sbr.rel (%p181) target = $region16
      $region15: #{deep_unet_forward.9} parent=11 // pred_region
        _
      $region16: #{deep_unet_forward.9} parent=11 // pred_fallthru
        _
      // Predicated region
      $region17: #{deep_unet_forward.9} parent=11 // pred_check
        %p184 = pneg %p117
      $region18: #{deep_unet_forward.9} parent=11 // pred_check_branch
        %186 = sbr.rel (%p184) target = $region20
      $region19: #{deep_unet_forward.9} parent=11 // pred_region
        _
      $region20: #{deep_unet_forward.9} parent=11 // pred_fallthru
        _
      // Predicated region
      $region21: #{deep_unet_forward.9} parent=11 // pred_check
        %p187 = pneg %p138
      $region22: #{deep_unet_forward.9} parent=11 // pred_check_branch
        %189 = sbr.rel (%p187) target = $region24
      $region23: #{deep_unet_forward.9} parent=11 // pred_region
        _
      $region24: #{deep_unet_forward.9} parent=11 // pred_fallthru
        _
    $region12: #{deep_unet_forward.9} parent=5 // pred_fallthru
      _
    %p190 = scmp.lt.s32.totalorder %s11, 2
    // Predicated region
    $region25: #{deep_unet_forward.9} parent=5 // pred_check
      %p191 = pneg %p190
    $region26: #{deep_unet_forward.9} parent=5 // pred_check_branch
      %193 = sbr.rel (%p191) target = $region28
    $region27: #{deep_unet_forward.9} parent=5 // pred_region
      // Predicated region
      $region29: #{deep_unet_forward.9} parent=27 // pred_check
        %p194 = pneg %p43
      $region30: #{deep_unet_forward.9} parent=27 // pred_check_branch
        %196 = sbr.rel (%p194) target = $region32
      $region31: #{deep_unet_forward.9} parent=27 // pred_region
        %p197 = scmp.lt.s32.totalorder %s18, 1
        %s198 = scalar_select %p197, %s18, 1
        %s199 = smul.addr %s198, 20
        %s200 = smul.addr %s199, 4
        %s201 = scalar_lea.vmem %s0, %s200
      $region32: #{deep_unet_forward.9} parent=27 // pred_fallthru
        _
      // Predicated region
      $region33: #{deep_unet_forward.9} parent=27 // pred_check
        %p202 = pneg %p69
      $region34: #{deep_unet_forward.9} parent=27 // pred_check_branch
        %204 = sbr.rel (%p202) target = $region36
      $region35: #{deep_unet_forward.9} parent=27 // pred_region
        %p205 = scmp.lt.s32.totalorder %s18, 1
        %s206 = scalar_select %p205, %s18, 1
        %s207 = smul.addr %s206, 20
        %s208 = smul.addr %s207, 4
        %s209 = scalar_lea.vmem %s1, %s208
      $region36: #{deep_unet_forward.9} parent=27 // pred_fallthru
        _
    $region28: #{deep_unet_forward.9} parent=5 // pred_fallthru
      _
    %p210 = scmp.le.s32.totalorder 1, %s11
    %p211 = scmp.lt.s32.totalorder %s11, 3
    %p212 = pnand %p210, %p211
    %p213 = pneg %p212
    // Predicated region
    $region37: #{deep_unet_forward.9} parent=5 // pred_check
      _
    $region38: #{deep_unet_forward.9} parent=5 // pred_check_branch
      %215 = sbr.rel (%p212) target = $region40
    $region39: #{deep_unet_forward.9} parent=5 // pred_region
      %s216 = ssub.s32 %s11, 1
      %p217 = scmp.lt.s32.totalorder %s20, 1
      %s218 = scalar_select %p217, %s20, 1
      %s219 = smul.addr %s218, 20
      %s220 = smul.addr %s219, 4
      %s221 = scalar_lea.vmem %s0, %s220
      %p222 = pneg %p49
      %p223 = pneg %p46
      %p224 = scmp.lt.s32.totalorder %s20, 1
      %s225 = scalar_select %p224, %s20, 1
      %s226 = smul.addr %s225, 20
      %s227 = smul.addr %s226, 4
      %s228 = scalar_lea.vmem %s1, %s227
      %p229 = pneg %p75
      %p230 = pneg %p72
      %p231 = pneg %p96
      %p232 = pneg %p93
      %p233 = pneg %p117
      %p234 = pneg %p114
      %p235 = pneg %p138
      %p236 = pneg %p135
      %p237 = pneg %p166
      %p238 = pneg %p163
      %s239 = smul.u32 8, %s21
      %p240 = scmp.lt.s32.totalorder %s20, 1
      %s241 = scalar_select %p240, %s20, 1
      %p242 = scmp.lt.s32.totalorder %s239, 7
      %s243 = scalar_select %p242, %s239, 7
      %s244 = smul.addr %s241, 8
      %s245 = sadd.s32 %s243, %s244
      %s246 = smul.addr %s245, 4
      %s247 = scalar_lea.vmem %s5, %s246
      %p248 = scmp.lt.s32.totalorder %s20, 1
      %s249 = scalar_select %p248, %s20, 1
      %s250 = smul.addr %s249, 20
      %s251 = smul.addr %s250, 4
      %s252 = scalar_lea.vmem %s0, %s251
      %p253 = scmp.lt.s32.totalorder %s20, 1
      %s254 = scalar_select %p253, %s20, 1
      %s255 = smul.addr %s254, 20
      %s256 = smul.addr %s255, 4
      %s257 = scalar_lea.vmem %s1, %s256
      %s258 = smul.u32 8, %s21
      %p259 = scmp.lt.s32.totalorder %s20, 1
      %s260 = scalar_select %p259, %s20, 1
      %p261 = scmp.lt.s32.totalorder %s258, 7
      %s262 = scalar_select %p261, %s258, 7
      %s263 = smul.addr %s260, 8
      %s264 = sadd.s32 %s262, %s263
      %s265 = smul.addr %s264, 4
      %s266 = scalar_lea.vmem %s5, %s265
      %s267 = smul.u32 8, %s21
      %s269 = smul.u32 %s21, 8
      %s270 = smul.u32 %s269, 2
      %s271 = smul.addr %s270, 4
      %s272 = scalar_lea.vmem %s252, %s271
      %v273 = vld [vmem:[%s272] sm:$0xf]
      %v274 = vld [vmem:[%s272 + $0x4] sm:$0x1]
      %v275 = vld [vmem:[%s272 + $0x8] sm:$0xf]
      %v276 = vld [vmem:[%s272 + $0xc] sm:$0x1]
      %v277 = vld [vmem:[%s272 + $0x10] sm:$0xf]
      %v278 = vld [vmem:[%s272 + $0x14] sm:$0x1]
      %v279 = vld [vmem:[%s272 + $0x18] sm:$0xf]
      %v280 = vld [vmem:[%s272 + $0x1c] sm:$0x1]
      %v281 = vld [vmem:[%s272 + $0x20] sm:$0xf]
      %v282 = vld [vmem:[%s272 + $0x24] sm:$0x1]
      %v283 = vld [vmem:[%s272 + $0x28] sm:$0xf]
      %v284 = vld [vmem:[%s272 + $0x2c] sm:$0x1]
      %v285 = vld [vmem:[%s272 + $0x30] sm:$0xf]
      %v286 = vld [vmem:[%s272 + $0x34] sm:$0x1]
      %v287 = vld [vmem:[%s272 + $0x38] sm:$0xf]
      %v288 = vld [vmem:[%s272 + $0x3c] sm:$0x1]
      %v289 = vld [vmem:[%s272 + $0x40] sm:$0xf]
      %v290 = vld [vmem:[%s272 + $0x44] sm:$0x1]
      %v291 = vld [vmem:[%s272 + $0x48] sm:$0xf]
      %v292 = vld [vmem:[%s272 + $0x4c] sm:$0x1]
      %v293 = vunpack.c.l.bf16 %v273
      %v294 = vunpack.c.l.bf16 %v274
      %v295 = vunpack.c.l.bf16 %v275
      %v296 = vunpack.c.l.bf16 %v276
      %v297 = vunpack.c.l.bf16 %v277
      %v298 = vunpack.c.l.bf16 %v278
      %v299 = vunpack.c.l.bf16 %v279
      %v300 = vunpack.c.l.bf16 %v280
      %v301 = vunpack.c.l.bf16 %v281
      %v302 = vunpack.c.l.bf16 %v282
      %v303 = vunpack.c.l.bf16 %v283
      %v304 = vunpack.c.l.bf16 %v284
      %v305 = vunpack.c.l.bf16 %v285
      %v306 = vunpack.c.l.bf16 %v286
      %v307 = vunpack.c.l.bf16 %v287
      %v308 = vunpack.c.l.bf16 %v288
      %v309 = vunpack.c.l.bf16 %v289
      %v310 = vunpack.c.l.bf16 %v290
      %v311 = vunpack.c.l.bf16 %v291
      %v312 = vunpack.c.l.bf16 %v292
      %vm329 = vcmask 1046528
      %v330 = vrot.slane %v293, 1
      %v331 = vrot.slane %v294, 1
      %v332 = vsel %vm329, %v330, %v331
      %v333 = vrot.slane %v295, 1
      %v334 = vrot.slane %v296, 1
      %v335 = vsel %vm329, %v333, %v334
      %v336 = vrot.slane %v297, 1
      %v337 = vrot.slane %v298, 1
      %v338 = vsel %vm329, %v336, %v337
      %v339 = vrot.slane %v299, 1
      %v340 = vrot.slane %v300, 1
      %v341 = vsel %vm329, %v339, %v340
      %v342 = vrot.slane %v301, 1
      %v343 = vrot.slane %v302, 1
      %v344 = vsel %vm329, %v342, %v343
      %v345 = vrot.slane %v303, 1
      %v346 = vrot.slane %v304, 1
      %v347 = vsel %vm329, %v345, %v346
      %v348 = vrot.slane %v305, 1
      %v349 = vrot.slane %v306, 1
      %v350 = vsel %vm329, %v348, %v349
      %v351 = vrot.slane %v307, 1
      %v352 = vrot.slane %v308, 1
      %v353 = vsel %vm329, %v351, %v352
      %354 = vrot.lane.b32.xlu0 %v332, 32
      %v355 = vpop.permute.xlu0 %354
      %356 = vrot.lane.b32.xlu0 %v335, 32
      %v357 = vpop.permute.xlu0 %356
      %358 = vrot.lane.b32.xlu0 %v338, 32
      %v359 = vpop.permute.xlu0 %358
      %360 = vrot.lane.b32.xlu0 %v341, 32
      %v361 = vpop.permute.xlu0 %360
      %362 = vrot.lane.b32.xlu0 %v344, 32
      %v363 = vpop.permute.xlu0 %362
      %364 = vrot.lane.b32.xlu0 %v347, 32
      %v365 = vpop.permute.xlu0 %364
      %366 = vrot.lane.b32.xlu0 %v350, 32
      %v367 = vpop.permute.xlu0 %366
      %368 = vrot.lane.b32.xlu0 %v353, 32
      %v369 = vpop.permute.xlu0 %368
      %vm378 = vcmask 1045504
      %v379 = vrot.slane %v293, 2
      %v380 = vrot.slane %v294, 2
      %v381 = vsel %vm378, %v379, %v380
      %v382 = vrot.slane %v295, 2
      %v383 = vrot.slane %v296, 2
      %v384 = vsel %vm378, %v382, %v383
      %v385 = vrot.slane %v297, 2
      %v386 = vrot.slane %v298, 2
      %v387 = vsel %vm378, %v385, %v386
      %v388 = vrot.slane %v299, 2
      %v389 = vrot.slane %v300, 2
      %v390 = vsel %vm378, %v388, %v389
      %v391 = vrot.slane %v301, 2
      %v392 = vrot.slane %v302, 2
      %v393 = vsel %vm378, %v391, %v392
      %v394 = vrot.slane %v303, 2
      %v395 = vrot.slane %v304, 2
      %v396 = vsel %vm378, %v394, %v395
      %v397 = vrot.slane %v305, 2
      %v398 = vrot.slane %v306, 2
      %v399 = vsel %vm378, %v397, %v398
      %v400 = vrot.slane %v307, 2
      %v401 = vrot.slane %v308, 2
      %v402 = vsel %vm378, %v400, %v401
      %403 = vrot.lane.b32.xlu0 %v381, 64
      %v404 = vpop.permute.xlu0 %403
      %405 = vrot.lane.b32.xlu0 %v384, 64
      %v406 = vpop.permute.xlu0 %405
      %407 = vrot.lane.b32.xlu0 %v387, 64
      %v408 = vpop.permute.xlu0 %407
      %409 = vrot.lane.b32.xlu0 %v390, 64
      %v410 = vpop.permute.xlu0 %409
      %411 = vrot.lane.b32.xlu0 %v393, 64
      %v412 = vpop.permute.xlu0 %411
      %413 = vrot.lane.b32.xlu0 %v396, 64
      %v414 = vpop.permute.xlu0 %413
      %415 = vrot.lane.b32.xlu0 %v399, 64
      %v416 = vpop.permute.xlu0 %415
      %417 = vrot.lane.b32.xlu0 %v402, 64
      %v418 = vpop.permute.xlu0 %417
      %428 = vrot.lane.b32.xlu0 %v295, 96
      %v429 = vpop.permute.xlu0 %428
      %430 = vrot.lane.b32.xlu0 %v297, 96
      %v431 = vpop.permute.xlu0 %430
      %432 = vrot.lane.b32.xlu0 %v299, 96
      %v433 = vpop.permute.xlu0 %432
      %434 = vrot.lane.b32.xlu0 %v301, 96
      %v435 = vpop.permute.xlu0 %434
      %436 = vrot.lane.b32.xlu0 %v303, 96
      %v437 = vpop.permute.xlu0 %436
      %438 = vrot.lane.b32.xlu0 %v305, 96
      %v439 = vpop.permute.xlu0 %438
      %440 = vrot.lane.b32.xlu0 %v307, 96
      %v441 = vpop.permute.xlu0 %440
      %442 = vrot.lane.b32.xlu0 %v309, 96
      %v443 = vpop.permute.xlu0 %442
      %v453 = vrot.slane %v309, 1
      %v454 = vrot.slane %v310, 1
      %v455 = vsel %vm329, %v453, %v454
      %v464 = vrot.slane %v309, 2
      %v465 = vrot.slane %v310, 2
      %v466 = vsel %vm378, %v464, %v465
      %467 = vrot.lane.b32.xlu0 %v384, 32
      %v468 = vpop.permute.xlu0 %467
      %469 = vrot.lane.b32.xlu0 %v387, 32
      %v470 = vpop.permute.xlu0 %469
      %471 = vrot.lane.b32.xlu0 %v390, 32
      %v472 = vpop.permute.xlu0 %471
      %473 = vrot.lane.b32.xlu0 %v393, 32
      %v474 = vpop.permute.xlu0 %473
      %475 = vrot.lane.b32.xlu0 %v396, 32
      %v476 = vpop.permute.xlu0 %475
      %477 = vrot.lane.b32.xlu0 %v399, 32
      %v478 = vpop.permute.xlu0 %477
      %479 = vrot.lane.b32.xlu0 %v402, 32
      %v480 = vpop.permute.xlu0 %479
      %481 = vrot.lane.b32.xlu0 %v466, 32
      %v482 = vpop.permute.xlu0 %481
      %492 = vrot.lane.b32.xlu0 %v297, 64
      %v493 = vpop.permute.xlu0 %492
      %494 = vrot.lane.b32.xlu0 %v299, 64
      %v495 = vpop.permute.xlu0 %494
      %496 = vrot.lane.b32.xlu0 %v301, 64
      %v497 = vpop.permute.xlu0 %496
      %498 = vrot.lane.b32.xlu0 %v303, 64
      %v499 = vpop.permute.xlu0 %498
      %500 = vrot.lane.b32.xlu0 %v305, 64
      %v501 = vpop.permute.xlu0 %500
      %502 = vrot.lane.b32.xlu0 %v307, 64
      %v503 = vpop.permute.xlu0 %502
      %504 = vrot.lane.b32.xlu0 %v309, 64
      %v505 = vpop.permute.xlu0 %504
      %506 = vrot.lane.b32.xlu0 %v311, 64
      %v507 = vpop.permute.xlu0 %506
      %v517 = vrot.slane %v311, 1
      %v518 = vrot.slane %v312, 1
      %v519 = vsel %vm329, %v517, %v518
      %520 = vrot.lane.b32.xlu0 %v338, 96
      %v521 = vpop.permute.xlu0 %520
      %522 = vrot.lane.b32.xlu0 %v341, 96
      %v523 = vpop.permute.xlu0 %522
      %524 = vrot.lane.b32.xlu0 %v344, 96
      %v525 = vpop.permute.xlu0 %524
      %526 = vrot.lane.b32.xlu0 %v347, 96
      %v527 = vpop.permute.xlu0 %526
      %528 = vrot.lane.b32.xlu0 %v350, 96
      %v529 = vpop.permute.xlu0 %528
      %530 = vrot.lane.b32.xlu0 %v353, 96
      %v531 = vpop.permute.xlu0 %530
      %532 = vrot.lane.b32.xlu0 %v455, 96
      %v533 = vpop.permute.xlu0 %532
      %534 = vrot.lane.b32.xlu0 %v519, 96
      %v535 = vpop.permute.xlu0 %534
      %v544 = vrot.slane %v311, 2
      %v545 = vrot.slane %v312, 2
      %v546 = vsel %vm378, %v544, %v545
      %vm555 = vcmask 261120
      %v556 = vsel %vm555, %v293, %v355
      %v557 = vsel %vm555, %v295, %v357
      %v558 = vsel %vm555, %v297, %v359
      %v559 = vsel %vm555, %v299, %v361
      %v560 = vsel %vm555, %v301, %v363
      %v561 = vsel %vm555, %v303, %v365
      %v562 = vsel %vm555, %v305, %v367
      %v563 = vsel %vm555, %v307, %v369
      %vm564 = vcmask 523264
      %v565 = vsel %vm564, %v556, %v404
      %v566 = vsel %vm564, %v557, %v406
      %v567 = vsel %vm564, %v558, %v408
      %v568 = vsel %vm564, %v559, %v410
      %v569 = vsel %vm564, %v560, %v412
      %v570 = vsel %vm564, %v561, %v414
      %v571 = vsel %vm564, %v562, %v416
      %v572 = vsel %vm564, %v563, %v418
      %vm573 = vcmask 785408
      %v574 = vsel %vm573, %v565, %v429
      %v575 = vsel %vm573, %v566, %v431
      %v576 = vsel %vm573, %v567, %v433
      %v577 = vsel %vm573, %v568, %v435
      %v578 = vsel %vm573, %v569, %v437
      %v579 = vsel %vm573, %v570, %v439
      %v580 = vsel %vm573, %v571, %v441
      %v581 = vsel %vm573, %v572, %v443
      %v582 = vsel %vm555, %v335, %v468
      %v583 = vsel %vm555, %v338, %v470
      %v584 = vsel %vm555, %v341, %v472
      %v585 = vsel %vm555, %v344, %v474
      %v586 = vsel %vm555, %v347, %v476
      %v587 = vsel %vm555, %v350, %v478
      %v588 = vsel %vm555, %v353, %v480
      %v589 = vsel %vm555, %v455, %v482
      %v590 = vsel %vm564, %v582, %v493
      %v591 = vsel %vm564, %v583, %v495
      %v592 = vsel %vm564, %v584, %v497
      %v593 = vsel %vm564, %v585, %v499
      %v594 = vsel %vm564, %v586, %v501
      %v595 = vsel %vm564, %v587, %v503
      %v596 = vsel %vm564, %v588, %v505
      %v597 = vsel %vm564, %v589, %v507
      %v598 = vsel %vm573, %v590, %v521
      %v599 = vsel %vm573, %v591, %v523
      %v600 = vsel %vm573, %v592, %v525
      %v601 = vsel %vm573, %v593, %v527
      %v602 = vsel %vm573, %v594, %v529
      %v603 = vsel %vm573, %v595, %v531
      %v604 = vsel %vm573, %v596, %v533
      %v605 = vsel %vm573, %v597, %v535
      %v606 = vpack.c.bf16 %v575, %v574
      %v607 = vpack.c.bf16 %v599, %v598
      %v608 = vpack.c.bf16 %v390, %v387
      %v609 = vpack.c.bf16 %v577, %v576
      %v610 = vpack.c.bf16 %v601, %v600
      %v611 = vpack.c.bf16 %v396, %v393
      %v612 = vpack.c.bf16 %v579, %v578
      %v613 = vpack.c.bf16 %v603, %v602
      %v614 = vpack.c.bf16 %v402, %v399
      %v615 = vpack.c.bf16 %v581, %v580
      %v616 = vpack.c.bf16 %v605, %v604
      %v617 = vpack.c.bf16 %v546, %v466
      %v618 = vld [vmem:[%s2] sm:$0xf]
      %v619 = vld [vmem:[%s2 + $0x4] sm:$0xf]
      %v620 = vld [vmem:[%s2 + $0x8] sm:$0xf]
      %v621 = vld [vmem:[%s2 + $0xc] sm:$0xf]
      %v622 = vld [vmem:[%s2 + $0x10] sm:$0xf]
      %v623 = vld [vmem:[%s2 + $0x14] sm:$0xf]
      %v624 = vld [vmem:[%s2 + $0x18] sm:$0xf]
      %v625 = vld [vmem:[%s2 + $0x1c] sm:$0xf]
      %v626 = vld [vmem:[%s2 + $0x20] sm:$0xf]
      %v627 = vld [vmem:[%s2 + $0x24] sm:$0xf]
      %v628 = vld [vmem:[%s2 + $0x28] sm:$0xf]
      %v629 = vld [vmem:[%s2 + $0x2c] sm:$0xf]
      %v630 = vld [vmem:[%s2 + $0x30] sm:$0xf]
      %v631 = vld [vmem:[%s2 + $0x34] sm:$0xf]
      %v632 = vld [vmem:[%s2 + $0x38] sm:$0xf]
      %v633 = vld [vmem:[%s2 + $0x3c] sm:$0xf]
      %v634 = vld [vmem:[%s2 + $0x40] sm:$0xf]
      %v635 = vld [vmem:[%s2 + $0x44] sm:$0xf]
      %v636 = vld [vmem:[%s2 + $0x48] sm:$0xf]
      %v637 = vld [vmem:[%s2 + $0x4c] sm:$0xf]
      %v638 = vld [vmem:[%s2 + $0x50] sm:$0xf]
      %v639 = vld [vmem:[%s2 + $0x54] sm:$0xf]
      %v640 = vld [vmem:[%s2 + $0x58] sm:$0xf]
      %v641 = vld [vmem:[%s2 + $0x5c] sm:$0xf]
      %v642 = vld [vmem:[%s2 + $0x60] sm:$0xf]
      %v643 = vld [vmem:[%s2 + $0x64] sm:$0xf]
      %v644 = vld [vmem:[%s2 + $0x68] sm:$0xf]
      %v645 = vld [vmem:[%s2 + $0x6c] sm:$0xf]
      %v646 = vld [vmem:[%s2 + $0x70] sm:$0xf]
      %v647 = vld [vmem:[%s2 + $0x74] sm:$0xf]
      %v648 = vld [vmem:[%s2 + $0x78] sm:$0xf]
      %v649 = vld [vmem:[%s2 + $0x7c] sm:$0xf]
      %v650 = vld [vmem:[%s2 + $0x80] sm:$0xf]
      %v651 = vld [vmem:[%s2 + $0x84] sm:$0xf]
      %v652 = vld [vmem:[%s2 + $0x88] sm:$0xf]
      %v653 = vld [vmem:[%s2 + $0x8c] sm:$0xf]
      %s654 = smul.addr %s270, 4
      %s655 = scalar_lea.vmem %s257, %s654
      %v656 = vld [vmem:[%s655] sm:$0xf]
      %v657 = vld [vmem:[%s655 + $0x4] sm:$0x1]
      %v658 = vld [vmem:[%s655 + $0x8] sm:$0xf]
      %v659 = vld [vmem:[%s655 + $0xc] sm:$0x1]
      %v660 = vld [vmem:[%s655 + $0x10] sm:$0xf]
      %v661 = vld [vmem:[%s655 + $0x14] sm:$0x1]
      %v662 = vld [vmem:[%s655 + $0x18] sm:$0xf]
      %v663 = vld [vmem:[%s655 + $0x1c] sm:$0x1]
      %v664 = vld [vmem:[%s655 + $0x20] sm:$0xf]
      %v665 = vld [vmem:[%s655 + $0x24] sm:$0x1]
      %v666 = vld [vmem:[%s655 + $0x28] sm:$0xf]
      %v667 = vld [vmem:[%s655 + $0x2c] sm:$0x1]
      %v668 = vld [vmem:[%s655 + $0x30] sm:$0xf]
      %v669 = vld [vmem:[%s655 + $0x34] sm:$0x1]
      %v670 = vld [vmem:[%s655 + $0x38] sm:$0xf]
      %v671 = vld [vmem:[%s655 + $0x3c] sm:$0x1]
      %v672 = vld [vmem:[%s655 + $0x40] sm:$0xf]
      %v673 = vld [vmem:[%s655 + $0x44] sm:$0x1]
      %v674 = vld [vmem:[%s655 + $0x48] sm:$0xf]
      %v675 = vld [vmem:[%s655 + $0x4c] sm:$0x1]
      %v676 = vunpack.c.l.bf16 %v656
      %v677 = vunpack.c.l.bf16 %v657
      %v678 = vunpack.c.l.bf16 %v658
      %v679 = vunpack.c.l.bf16 %v659
      %v680 = vunpack.c.l.bf16 %v660
      %v681 = vunpack.c.l.bf16 %v661
      %v682 = vunpack.c.l.bf16 %v662
      %v683 = vunpack.c.l.bf16 %v663
      %v684 = vunpack.c.l.bf16 %v664
      %v685 = vunpack.c.l.bf16 %v665
      %v686 = vunpack.c.l.bf16 %v666
      %v687 = vunpack.c.l.bf16 %v667
      %v688 = vunpack.c.l.bf16 %v668
      %v689 = vunpack.c.l.bf16 %v669
      %v690 = vunpack.c.l.bf16 %v670
      %v691 = vunpack.c.l.bf16 %v671
      %v692 = vunpack.c.l.bf16 %v672
      %v693 = vunpack.c.l.bf16 %v673
      %v694 = vunpack.c.l.bf16 %v674
      %v695 = vunpack.c.l.bf16 %v675
      %v712 = vrot.slane %v676, 1
      %v713 = vrot.slane %v677, 1
      %v714 = vsel %vm329, %v712, %v713
      %v715 = vrot.slane %v678, 1
      %v716 = vrot.slane %v679, 1
      %v717 = vsel %vm329, %v715, %v716
      %v718 = vrot.slane %v680, 1
      %v719 = vrot.slane %v681, 1
      %v720 = vsel %vm329, %v718, %v719
      %v721 = vrot.slane %v682, 1
      %v722 = vrot.slane %v683, 1
      %v723 = vsel %vm329, %v721, %v722
      %v724 = vrot.slane %v684, 1
      %v725 = vrot.slane %v685, 1
      %v726 = vsel %vm329, %v724, %v725
      %v727 = vrot.slane %v686, 1
      %v728 = vrot.slane %v687, 1
      %v729 = vsel %vm329, %v727, %v728
      %v730 = vrot.slane %v688, 1
      %v731 = vrot.slane %v689, 1
      %v732 = vsel %vm329, %v730, %v731
      %v733 = vrot.slane %v690, 1
      %v734 = vrot.slane %v691, 1
      %v735 = vsel %vm329, %v733, %v734
      %736 = vrot.lane.b32.xlu0 %v714, 16
      %v737 = vpop.permute.xlu0 %736
      %738 = vrot.lane.b32.xlu0 %v717, 16
      %v739 = vpop.permute.xlu0 %738
      %740 = vrot.lane.b32.xlu0 %v720, 16
      %v741 = vpop.permute.xlu0 %740
      %742 = vrot.lane.b32.xlu0 %v723, 16
      %v743 = vpop.permute.xlu0 %742
      %744 = vrot.lane.b32.xlu0 %v726, 16
      %v745 = vpop.permute.xlu0 %744
      %746 = vrot.lane.b32.xlu0 %v729, 16
      %v747 = vpop.permute.xlu0 %746
      %748 = vrot.lane.b32.xlu0 %v732, 16
      %v749 = vpop.permute.xlu0 %748
      %750 = vrot.lane.b32.xlu0 %v735, 16
      %v751 = vpop.permute.xlu0 %750
      %v760 = vrot.slane %v676, 2
      %v761 = vrot.slane %v677, 2
      %v762 = vsel %vm378, %v760, %v761
      %v763 = vrot.slane %v678, 2
      %v764 = vrot.slane %v679, 2
      %v765 = vsel %vm378, %v763, %v764
      %v766 = vrot.slane %v680, 2
      %v767 = vrot.slane %v681, 2
      %v768 = vsel %vm378, %v766, %v767
      %v769 = vrot.slane %v682, 2
      %v770 = vrot.slane %v683, 2
      %v771 = vsel %vm378, %v769, %v770
      %v772 = vrot.slane %v684, 2
      %v773 = vrot.slane %v685, 2
      %v774 = vsel %vm378, %v772, %v773
      %v775 = vrot.slane %v686, 2
      %v776 = vrot.slane %v687, 2
      %v777 = vsel %vm378, %v775, %v776
      %v778 = vrot.slane %v688, 2
      %v779 = vrot.slane %v689, 2
      %v780 = vsel %vm378, %v778, %v779
      %v781 = vrot.slane %v690, 2
      %v782 = vrot.slane %v691, 2
      %v783 = vsel %vm378, %v781, %v782
      %784 = vrot.lane.b32.xlu0 %v762, 32
      %v785 = vpop.permute.xlu0 %784
      %786 = vrot.lane.b32.xlu0 %v765, 32
      %v787 = vpop.permute.xlu0 %786
      %788 = vrot.lane.b32.xlu0 %v768, 32
      %v789 = vpop.permute.xlu0 %788
      %790 = vrot.lane.b32.xlu0 %v771, 32
      %v791 = vpop.permute.xlu0 %790
      %792 = vrot.lane.b32.xlu0 %v774, 32
      %v793 = vpop.permute.xlu0 %792
      %794 = vrot.lane.b32.xlu0 %v777, 32
      %v795 = vpop.permute.xlu0 %794
      %796 = vrot.lane.b32.xlu0 %v780, 32
      %v797 = vpop.permute.xlu0 %796
      %798 = vrot.lane.b32.xlu0 %v783, 32
      %v799 = vpop.permute.xlu0 %798
      %809 = vrot.lane.b32.xlu0 %v678, 48
      %v810 = vpop.permute.xlu0 %809
      %811 = vrot.lane.b32.xlu0 %v680, 48
      %v812 = vpop.permute.xlu0 %811
      %813 = vrot.lane.b32.xlu0 %v682, 48
      %v814 = vpop.permute.xlu0 %813
      %815 = vrot.lane.b32.xlu0 %v684, 48
      %v816 = vpop.permute.xlu0 %815
      %817 = vrot.lane.b32.xlu0 %v686, 48
      %v818 = vpop.permute.xlu0 %817
      %819 = vrot.lane.b32.xlu0 %v688, 48
      %v820 = vpop.permute.xlu0 %819
      %821 = vrot.lane.b32.xlu0 %v690, 48
      %v822 = vpop.permute.xlu0 %821
      %823 = vrot.lane.b32.xlu0 %v692, 48
      %v824 = vpop.permute.xlu0 %823
      %v834 = vrot.slane %v692, 1
      %v835 = vrot.slane %v693, 1
      %v836 = vsel %vm329, %v834, %v835
      %837 = vrot.lane.b32.xlu0 %v717, 64
      %v838 = vpop.permute.xlu0 %837
      %839 = vrot.lane.b32.xlu0 %v720, 64
      %v840 = vpop.permute.xlu0 %839
      %841 = vrot.lane.b32.xlu0 %v723, 64
      %v842 = vpop.permute.xlu0 %841
      %843 = vrot.lane.b32.xlu0 %v726, 64
      %v844 = vpop.permute.xlu0 %843
      %845 = vrot.lane.b32.xlu0 %v729, 64
      %v846 = vpop.permute.xlu0 %845
      %847 = vrot.lane.b32.xlu0 %v732, 64
      %v848 = vpop.permute.xlu0 %847
      %849 = vrot.lane.b32.xlu0 %v735, 64
      %v850 = vpop.permute.xlu0 %849
      %851 = vrot.lane.b32.xlu0 %v836, 64
      %v852 = vpop.permute.xlu0 %851
      %v861 = vrot.slane %v692, 2
      %v862 = vrot.slane %v693, 2
      %v863 = vsel %vm378, %v861, %v862
      %864 = vrot.lane.b32.xlu0 %v765, 80
      %v865 = vpop.permute.xlu0 %864
      %866 = vrot.lane.b32.xlu0 %v768, 80
      %v867 = vpop.permute.xlu0 %866
      %868 = vrot.lane.b32.xlu0 %v771, 80
      %v869 = vpop.permute.xlu0 %868
      %870 = vrot.lane.b32.xlu0 %v774, 80
      %v871 = vpop.permute.xlu0 %870
      %872 = vrot.lane.b32.xlu0 %v777, 80
      %v873 = vpop.permute.xlu0 %872
      %874 = vrot.lane.b32.xlu0 %v780, 80
      %v875 = vpop.permute.xlu0 %874
      %876 = vrot.lane.b32.xlu0 %v783, 80
      %v877 = vpop.permute.xlu0 %876
      %878 = vrot.lane.b32.xlu0 %v863, 80
      %v879 = vpop.permute.xlu0 %878
      %889 = vrot.lane.b32.xlu0 %v680, 96
      %v890 = vpop.permute.xlu0 %889
      %891 = vrot.lane.b32.xlu0 %v682, 96
      %v892 = vpop.permute.xlu0 %891
      %893 = vrot.lane.b32.xlu0 %v684, 96
      %v894 = vpop.permute.xlu0 %893
      %895 = vrot.lane.b32.xlu0 %v686, 96
      %v896 = vpop.permute.xlu0 %895
      %897 = vrot.lane.b32.xlu0 %v688, 96
      %v898 = vpop.permute.xlu0 %897
      %899 = vrot.lane.b32.xlu0 %v690, 96
      %v900 = vpop.permute.xlu0 %899
      %901 = vrot.lane.b32.xlu0 %v692, 96
      %v902 = vpop.permute.xlu0 %901
      %903 = vrot.lane.b32.xlu0 %v694, 96
      %v904 = vpop.permute.xlu0 %903
      %v914 = vrot.slane %v694, 1
      %v915 = vrot.slane %v695, 1
      %v916 = vsel %vm329, %v914, %v915
      %917 = vrot.lane.b32.xlu0 %v720, 112
      %v918 = vpop.permute.xlu0 %917
      %919 = vrot.lane.b32.xlu0 %v723, 112
      %v920 = vpop.permute.xlu0 %919
      %921 = vrot.lane.b32.xlu0 %v726, 112
      %v922 = vpop.permute.xlu0 %921
      %923 = vrot.lane.b32.xlu0 %v729, 112
      %v924 = vpop.permute.xlu0 %923
      %925 = vrot.lane.b32.xlu0 %v732, 112
      %v926 = vpop.permute.xlu0 %925
      %927 = vrot.lane.b32.xlu0 %v735, 112
      %v928 = vpop.permute.xlu0 %927
      %929 = vrot.lane.b32.xlu0 %v836, 112
      %v930 = vpop.permute.xlu0 %929
      %931 = vrot.lane.b32.xlu0 %v916, 112
      %v932 = vpop.permute.xlu0 %931
      %v941 = vrot.slane %v694, 2
      %v942 = vrot.slane %v695, 2
      %v943 = vsel %vm378, %v941, %v942
      %vm952 = vcmask 130048
      %v953 = vsel %vm952, %v676, %v737
      %v954 = vsel %vm952, %v678, %v739
      %v955 = vsel %vm952, %v680, %v741
      %v956 = vsel %vm952, %v682, %v743
      %v957 = vsel %vm952, %v684, %v745
      %v958 = vsel %vm952, %v686, %v747
      %v959 = vsel %vm952, %v688, %v749
      %v960 = vsel %vm952, %v690, %v751
      %v961 = vsel %vm555, %v953, %v785
      %v962 = vsel %vm555, %v954, %v787
      %v963 = vsel %vm555, %v955, %v789
      %v964 = vsel %vm555, %v956, %v791
      %v965 = vsel %vm555, %v957, %v793
      %v966 = vsel %vm555, %v958, %v795
      %v967 = vsel %vm555, %v959, %v797
      %v968 = vsel %vm555, %v960, %v799
      %vm969 = vcmask 392192
      %v970 = vsel %vm969, %v961, %v810
      %v971 = vsel %vm969, %v962, %v812
      %v972 = vsel %vm969, %v963, %v814
      %v973 = vsel %vm969, %v964, %v816
      %v974 = vsel %vm969, %v965, %v818
      %v975 = vsel %vm969, %v966, %v820
      %v976 = vsel %vm969, %v967, %v822
      %v977 = vsel %vm969, %v968, %v824
      %v978 = vsel %vm564, %v970, %v838
      %v979 = vsel %vm564, %v971, %v840
      %v980 = vsel %vm564, %v972, %v842
      %v981 = vsel %vm564, %v973, %v844
      %v982 = vsel %vm564, %v974, %v846
      %v983 = vsel %vm564, %v975, %v848
      %v984 = vsel %vm564, %v976, %v850
      %v985 = vsel %vm564, %v977, %v852
      %vm986 = vcmask 654336
      %v987 = vsel %vm986, %v978, %v865
      %v988 = vsel %vm986, %v979, %v867
      %v989 = vsel %vm986, %v980, %v869
      %v990 = vsel %vm986, %v981, %v871
      %v991 = vsel %vm986, %v982, %v873
      %v992 = vsel %vm986, %v983, %v875
      %v993 = vsel %vm986, %v984, %v877
      %v994 = vsel %vm986, %v985, %v879
      %v995 = vsel %vm573, %v987, %v890
      %v996 = vsel %vm573, %v988, %v892
      %v997 = vsel %vm573, %v989, %v894
      %v998 = vsel %vm573, %v990, %v896
      %v999 = vsel %vm573, %v991, %v898
      %v1000 = vsel %vm573, %v992, %v900
      %v1001 = vsel %vm573, %v993, %v902
      %v1002 = vsel %vm573, %v994, %v904
      %vm1003 = vcmask 916480
      %v1004 = vsel %vm1003, %v995, %v918
      %v1005 = vsel %vm1003, %v996, %v920
      %v1006 = vsel %vm1003, %v997, %v922
      %v1007 = vsel %vm1003, %v998, %v924
      %v1008 = vsel %vm1003, %v999, %v926
      %v1009 = vsel %vm1003, %v1000, %v928
      %v1010 = vsel %vm1003, %v1001, %v930
      %v1011 = vsel %vm1003, %v1002, %v932
      %v1012 = vpack.c.bf16 %v1005, %v1004
      %v1013 = vpack.c.bf16 %v771, %v768
      %v1014 = vpack.c.bf16 %v1007, %v1006
      %v1015 = vpack.c.bf16 %v777, %v774
      %v1016 = vpack.c.bf16 %v1009, %v1008
      %v1017 = vpack.c.bf16 %v783, %v780
      %v1018 = vpack.c.bf16 %v1011, %v1010
      %v1019 = vpack.c.bf16 %v943, %v863
      %v1020 = vld [vmem:[%s3] sm:$0xf]
      %v1021 = vld [vmem:[%s3 + $0x4] sm:$0xf]
      %v1022 = vld [vmem:[%s3 + $0x8] sm:$0xf]
      %v1023 = vld [vmem:[%s3 + $0xc] sm:$0xf]
      %v1024 = vld [vmem:[%s3 + $0x10] sm:$0xf]
      %v1025 = vld [vmem:[%s3 + $0x14] sm:$0xf]
      %v1026 = vld [vmem:[%s3 + $0x18] sm:$0xf]
      %v1027 = vld [vmem:[%s3 + $0x1c] sm:$0xf]
      %v1028 = vld [vmem:[%s3 + $0x20] sm:$0xf]
      %v1029 = vld [vmem:[%s3 + $0x24] sm:$0xf]
      %v1030 = vld [vmem:[%s3 + $0x28] sm:$0xf]
      %v1031 = vld [vmem:[%s3 + $0x2c] sm:$0xf]
      %v1032 = vld [vmem:[%s3 + $0x30] sm:$0xf]
      %v1033 = vld [vmem:[%s3 + $0x34] sm:$0xf]
      %v1034 = vld [vmem:[%s3 + $0x38] sm:$0xf]
      %v1035 = vld [vmem:[%s3 + $0x3c] sm:$0xf]
      %v1036 = vld [vmem:[%s3 + $0x40] sm:$0xf]
      %v1037 = vld [vmem:[%s3 + $0x44] sm:$0xf]
      %v1056 = vunpack.c.l.b16 %v1020
      %v1057 = vunpack.c.l.b16 %v1021
      %v1058 = vunpack.c.l.b16 %v1022
      %v1059 = vunpack.c.l.b16 %v1023
      %v1060 = vunpack.c.l.b16 %v1024
      %v1061 = vunpack.c.l.b16 %v1025
      %v1062 = vunpack.c.l.b16 %v1026
      %v1063 = vunpack.c.l.b16 %v1027
      %v1064 = vunpack.c.l.b16 %v1028
      %v1065 = vunpack.c.l.b16 %v1029
      %v1066 = vunpack.c.l.b16 %v1030
      %v1067 = vunpack.c.l.b16 %v1031
      %v1068 = vunpack.c.l.b16 %v1032
      %v1069 = vunpack.c.l.b16 %v1033
      %v1070 = vunpack.c.l.b16 %v1034
      %v1071 = vunpack.c.l.b16 %v1035
      %v1072 = vunpack.c.l.b16 %v1036
      %v1073 = vunpack.c.l.b16 %v1037
      %v1074 = vpack.c.b16 %v1057, %v1056
      %v1075 = vpack.c.b16 %v1059, %v1058
      %v1076 = vpack.c.b16 %v1061, %v1060
      %v1077 = vpack.c.b16 %v1063, %v1062
      %v1078 = vpack.c.b16 %v1065, %v1064
      %v1079 = vpack.c.b16 %v1067, %v1066
      %v1080 = vpack.c.b16 %v1069, %v1068
      %v1081 = vpack.c.b16 %v1071, %v1070
      %v1082 = vpack.c.b16 %v1073, %v1072
      %v1093 = vsel %vm952, %v1013, 0
      %v1096 = vsel %vm952, %v1015, 0
      %v1099 = vsel %vm952, %v1017, 0
      %v1102 = vsel %vm952, %v1019, 0
      %1104 = vmatprep.subr.bf16.mxu0 0
      %1105 = vmatpush1.bf16.msra.mxu0 %v1081
      %1106 = vmatprep.subr.bf16.mxu0 0
      %1107 = vmatpush1.bf16.msra.mxu0 %v1080
      %1108 = vmatprep.subr.bf16.mxu0 0
      %1109 = vmatpush1.bf16.msra.mxu0 %v1079
      %1110 = vmatprep.subr.bf16.mxu0 0
      %1111 = vmatpush1.bf16.msra.mxu0 %v1078
      %1112 = vmatprep.subr.bf16.mxu0 0
      %1113 = vmatpush1.bf16.msra.mxu0 %v1077
      %1114 = vmatprep.subr.bf16.mxu0 0
      %1115 = vmatpush1.bf16.msra.mxu0 %v1076
      %1116 = vmatprep.subr.bf16.mxu0 0
      %1117 = vmatpush1.bf16.msra.mxu0 %v1075
      %1118 = vmatprep.subr.bf16.mxu0 0
      %1119 = vmatpush1.bf16.msra.mxu0 %v1074
      %1120 = vmatprep.subr.bf16.mxu0 0
      %1121 = vmatpush2.bf16.msra.mxu0 0
      %1122 = vmatprep.subr.bf16.mxu0 0
      %1123 = vmatpush2.bf16.msra.mxu0 0
      %1124 = vmatprep.subr.bf16.mxu0 0
      %1125 = vmatpush2.bf16.msra.mxu0 0
      %1126 = vmatprep.subr.bf16.mxu0 0
      %1127 = vmatpush2.bf16.msra.mxu0 0
      %1128 = vmatprep.subr.bf16.mxu0 0
      %1129 = vmatpush2.bf16.msra.mxu0 0
      %1130 = vmatprep.subr.bf16.mxu0 0
      %1131 = vmatpush2.bf16.msra.mxu0 0
      %1132 = vmatprep.subr.bf16.mxu0 0
      %1133 = vmatpush2.bf16.msra.mxu0 0
      %1134 = vmatprep.subr.bf16.mxu0 0
      %1135 = vmatpush2.bf16.msra.mxu0 %v1082
      %1136 = vmatprep.mubr.bf16.mxu0 %v1093
      %1137 = vmatmul.mubr.bf16.gmra.mxu0 %v1012
      %v1138 = vpop.f32.mrf.mxu0
      %v1139 = vadd.f32 0.0, %v1138
      %v1140 = vpop.f32.mrf.mxu0
      %v1141 = vpop.f32.mrf.mxu0
      %v1142 = vadd.f32 0.0, %v1141
      %v1143 = vpop.f32.mrf.mxu0
      %1144 = vmatprep.mubr.bf16.mxu0 %v1096
      %1145 = vmatmul.mubr.bf16.gmra.mxu0 %v1014
      %v1146 = vpop.f32.mrf.mxu0
      %v1147 = vadd.f32 0.0, %v1146
      %v1148 = vpop.f32.mrf.mxu0
      %v1149 = vpop.f32.mrf.mxu0
      %v1150 = vadd.f32 0.0, %v1149
      %v1151 = vpop.f32.mrf.mxu0
      %1152 = vmatprep.mubr.bf16.mxu0 %v1099
      %1153 = vmatmul.mubr.bf16.gmra.mxu0 %v1016
      %v1154 = vpop.f32.mrf.mxu0
      %v1155 = vadd.f32 0.0, %v1154
      %v1156 = vpop.f32.mrf.mxu0
      %v1157 = vpop.f32.mrf.mxu0
      %v1158 = vadd.f32 0.0, %v1157
      %v1159 = vpop.f32.mrf.mxu0
      %1160 = vmatprep.mubr.bf16.mxu0 %v1102
      %1161 = vmatmul.mubr.bf16.gmra.mxu0 %v1018
      %v1162 = vpop.f32.mrf.mxu0
      %v1163 = vadd.f32 0.0, %v1162
      %v1164 = vpop.f32.mrf.mxu0
      %v1165 = vpop.f32.mrf.mxu0
      %v1166 = vadd.f32 0.0, %v1165
      %v1167 = vpop.f32.mrf.mxu0
      %1168 = vdwg.mxu0
      %v1205 = vunpack.c.l.b16 %v618
      %v1206 = vunpack.c.l.b16 %v619
      %v1207 = vunpack.c.l.b16 %v620
      %v1208 = vunpack.c.l.b16 %v621
      %v1209 = vunpack.c.l.b16 %v622
      %v1210 = vunpack.c.l.b16 %v623
      %v1211 = vunpack.c.l.b16 %v624
      %v1212 = vunpack.c.l.b16 %v625
      %v1213 = vunpack.c.l.b16 %v626
      %v1214 = vunpack.c.l.b16 %v627
      %v1215 = vunpack.c.l.b16 %v628
      %v1216 = vunpack.c.l.b16 %v629
      %v1217 = vunpack.c.l.b16 %v630
      %v1218 = vunpack.c.l.b16 %v631
      %v1219 = vunpack.c.l.b16 %v632
      %v1220 = vunpack.c.l.b16 %v633
      %v1221 = vunpack.c.l.b16 %v634
      %v1222 = vunpack.c.l.b16 %v635
      %v1223 = vunpack.c.l.b16 %v636
      %v1224 = vunpack.c.l.b16 %v637
      %v1225 = vunpack.c.l.b16 %v638
      %v1226 = vunpack.c.l.b16 %v639
      %v1227 = vunpack.c.l.b16 %v640
      %v1228 = vunpack.c.l.b16 %v641
      %v1229 = vunpack.c.l.b16 %v642
      %v1230 = vunpack.c.l.b16 %v643
      %v1231 = vunpack.c.l.b16 %v644
      %v1232 = vunpack.c.l.b16 %v645
      %v1233 = vunpack.c.l.b16 %v646
      %v1234 = vunpack.c.l.b16 %v647
      %v1235 = vunpack.c.l.b16 %v648
      %v1236 = vunpack.c.l.b16 %v649
      %v1237 = vunpack.c.l.b16 %v650
      %v1238 = vunpack.c.l.b16 %v651
      %v1239 = vunpack.c.l.b16 %v652
      %v1240 = vunpack.c.l.b16 %v653
      %v1241 = vpack.c.b16 %v1206, %v1205
      %v1242 = vpack.c.b16 %v1208, %v1207
      %v1243 = vpack.c.b16 %v1210, %v1209
      %v1244 = vpack.c.b16 %v1212, %v1211
      %v1245 = vpack.c.b16 %v1214, %v1213
      %v1246 = vpack.c.b16 %v1216, %v1215
      %v1247 = vpack.c.b16 %v1218, %v1217
      %v1248 = vpack.c.b16 %v1220, %v1219
      %v1249 = vpack.c.b16 %v1222, %v1221
      %v1250 = vpack.c.b16 %v1224, %v1223
      %v1251 = vpack.c.b16 %v1226, %v1225
      %v1252 = vpack.c.b16 %v1228, %v1227
      %v1253 = vpack.c.b16 %v1230, %v1229
      %v1254 = vpack.c.b16 %v1232, %v1231
      %v1255 = vpack.c.b16 %v1234, %v1233
      %v1256 = vpack.c.b16 %v1236, %v1235
      %v1257 = vpack.c.b16 %v1238, %v1237
      %v1258 = vpack.c.b16 %v1240, %v1239
      %v1278 = vsel %vm555, %v608, 0
      %v1281 = vsel %vm555, %v611, 0
      %v1284 = vsel %vm555, %v614, 0
      %v1287 = vsel %vm555, %v617, 0
      %1289 = vmatprep.subr.bf16.mxu0 0
      %1290 = vmatpush1.bf16.msra.mxu0 %v1248
      %1291 = vmatprep.subr.bf16.mxu0 0
      %1292 = vmatpush1.bf16.msra.mxu0 %v1247
      %1293 = vmatprep.subr.bf16.mxu0 0
      %1294 = vmatpush1.bf16.msra.mxu0 %v1246
      %1295 = vmatprep.subr.bf16.mxu0 0
      %1296 = vmatpush1.bf16.msra.mxu0 %v1245
      %1297 = vmatprep.subr.bf16.mxu0 0
      %1298 = vmatpush1.bf16.msra.mxu0 %v1244
      %1299 = vmatprep.subr.bf16.mxu0 0
      %1300 = vmatpush1.bf16.msra.mxu0 %v1243
      %1301 = vmatprep.subr.bf16.mxu0 0
      %1302 = vmatpush1.bf16.msra.mxu0 %v1242
      %1303 = vmatprep.subr.bf16.mxu0 0
      %1304 = vmatpush1.bf16.msra.mxu0 %v1241
      %1305 = vmatprep.subr.bf16.mxu0 0
      %1306 = vmatpush2.bf16.msra.mxu0 %v1256
      %1307 = vmatprep.subr.bf16.mxu0 0
      %1308 = vmatpush2.bf16.msra.mxu0 %v1255
      %1309 = vmatprep.subr.bf16.mxu0 0
      %1310 = vmatpush2.bf16.msra.mxu0 %v1254
      %1311 = vmatprep.subr.bf16.mxu0 0
      %1312 = vmatpush2.bf16.msra.mxu0 %v1253
      %1313 = vmatprep.subr.bf16.mxu0 0
      %1314 = vmatpush2.bf16.msra.mxu0 %v1252
      %1315 = vmatprep.subr.bf16.mxu0 0
      %1316 = vmatpush2.bf16.msra.mxu0 %v1251
      %1317 = vmatprep.subr.bf16.mxu0 0
      %1318 = vmatpush2.bf16.msra.mxu0 %v1250
      %1319 = vmatprep.subr.bf16.mxu0 0
      %1320 = vmatpush2.bf16.msra.mxu0 %v1249
      %1321 = vmatprep.mubr.bf16.mxu0 %v607
      %1322 = vmatmul.mubr.bf16.gmra.mxu0 %v606
      %v1323 = vpop.f32.mrf.mxu0
      %v1324 = vadd.f32 %v1139, %v1323
      %v1325 = vpop.f32.mrf.mxu0
      %v1326 = vpop.f32.mrf.mxu0
      %v1327 = vadd.f32 %v1142, %v1326
      %v1328 = vpop.f32.mrf.mxu0
      %1329 = vmatprep.mubr.bf16.mxu0 %v610
      %1330 = vmatmul.mubr.bf16.gmra.mxu0 %v609
      %v1331 = vpop.f32.mrf.mxu0
      %v1332 = vadd.f32 %v1147, %v1331
      %v1333 = vpop.f32.mrf.mxu0
      %v1334 = vpop.f32.mrf.mxu0
      %v1335 = vadd.f32 %v1150, %v1334
      %v1336 = vpop.f32.mrf.mxu0
      %1337 = vmatprep.mubr.bf16.mxu0 %v613
      %1338 = vmatmul.mubr.bf16.gmra.mxu0 %v612
      %v1339 = vpop.f32.mrf.mxu0
      %v1340 = vadd.f32 %v1155, %v1339
      %v1341 = vpop.f32.mrf.mxu0
      %v1342 = vpop.f32.mrf.mxu0
      %v1343 = vadd.f32 %v1158, %v1342
      %v1344 = vpop.f32.mrf.mxu0
      %1345 = vmatprep.mubr.bf16.mxu0 %v616
      %1346 = vmatmul.mubr.bf16.gmra.mxu0 %v615
      %v1347 = vpop.f32.mrf.mxu0
      %v1348 = vadd.f32 %v1163, %v1347
      %v1349 = vpop.f32.mrf.mxu0
      %v1350 = vpop.f32.mrf.mxu0
      %v1351 = vadd.f32 %v1166, %v1350
      %v1352 = vpop.f32.mrf.mxu0
      %1353 = vdwg.mxu0
      %1354 = vmatprep.subr.bf16.mxu0 0
      %1355 = vmatpush1.bf16.msra.mxu0 0
      %1356 = vmatprep.subr.bf16.mxu0 0
      %1357 = vmatpush1.bf16.msra.mxu0 0
      %1358 = vmatprep.subr.bf16.mxu0 0
      %1359 = vmatpush1.bf16.msra.mxu0 0
      %1360 = vmatprep.subr.bf16.mxu0 0
      %1361 = vmatpush1.bf16.msra.mxu0 0
      %1362 = vmatprep.subr.bf16.mxu0 0
      %1363 = vmatpush1.bf16.msra.mxu0 0
      %1364 = vmatprep.subr.bf16.mxu0 0
      %1365 = vmatpush1.bf16.msra.mxu0 0
      %1366 = vmatprep.subr.bf16.mxu0 0
      %1367 = vmatpush1.bf16.msra.mxu0 %v1258
      %1368 = vmatprep.subr.bf16.mxu0 0
      %1369 = vmatpush1.bf16.msra.mxu0 %v1257
      %1370 = vmatprep.subr.bf16.mxu0 0
      %1371 = vmatpush2.bf16.msra.mxu0 0
      %1372 = vmatprep.subr.bf16.mxu0 0
      %1373 = vmatpush2.bf16.msra.mxu0 0
      %1374 = vmatprep.subr.bf16.mxu0 0
      %1375 = vmatpush2.bf16.msra.mxu0 0
      %1376 = vmatprep.subr.bf16.mxu0 0
      %1377 = vmatpush2.bf16.msra.mxu0 0
      %1378 = vmatprep.subr.bf16.mxu0 0
      %1379 = vmatpush2.bf16.msra.mxu0 0
      %1380 = vmatprep.subr.bf16.mxu0 0
      %1381 = vmatpush2.bf16.msra.mxu0 0
      %1382 = vmatprep.subr.bf16.mxu0 0
      %1383 = vmatpush2.bf16.msra.mxu0 0
      %1384 = vmatprep.subr.bf16.mxu0 0
      %1385 = vmatpush2.bf16.msra.mxu0 0
      %1386 = vmatprep.mubr.bf16.mxu0 0
      %1387 = vmatmul.mubr.bf16.gmra.mxu0 %v1278
      %v1388 = vpop.f32.mrf.mxu0
      %v1389 = vadd.f32 %v1324, %v1388
      %v1390 = vpop.f32.mrf.mxu0
      %v1391 = vpop.f32.mrf.mxu0
      %v1392 = vadd.f32 %v1327, %v1391
      %v1393 = vpop.f32.mrf.mxu0
      %1394 = vmatprep.mubr.bf16.mxu0 0
      %1395 = vmatmul.mubr.bf16.gmra.mxu0 %v1281
      %v1396 = vpop.f32.mrf.mxu0
      %v1397 = vadd.f32 %v1332, %v1396
      %v1398 = vpop.f32.mrf.mxu0
      %v1399 = vpop.f32.mrf.mxu0
      %v1400 = vadd.f32 %v1335, %v1399
      %v1401 = vpop.f32.mrf.mxu0
      %1402 = vmatprep.mubr.bf16.mxu0 0
      %1403 = vmatmul.mubr.bf16.gmra.mxu0 %v1284
      %v1404 = vpop.f32.mrf.mxu0
      %v1405 = vadd.f32 %v1340, %v1404
      %v1406 = vpop.f32.mrf.mxu0
      %v1407 = vpop.f32.mrf.mxu0
      %v1408 = vadd.f32 %v1343, %v1407
      %v1409 = vpop.f32.mrf.mxu0
      %1410 = vmatprep.mubr.bf16.mxu0 0
      %1411 = vmatmul.mubr.bf16.gmra.mxu0 %v1287
      %v1412 = vpop.f32.mrf.mxu0
      %v1413 = vadd.f32 %v1348, %v1412
      %v1414 = vpop.f32.mrf.mxu0
      %v1415 = vpop.f32.mrf.mxu0
      %v1416 = vadd.f32 %v1351, %v1415
      %v1417 = vpop.f32.mrf.mxu0
      %1418 = vdwg.mxu0
      %v1419 = vld [vmem:[%s4] sm:$0x1]
      %v1421 = vlaneseq
      %v1422 = vshrl.u32 %v1421, 7
      %v1423 = vsub.s32 0, %v1422
      %v1424 = vrot.slane %v1419, %v1423
      %v1426 = vadd.f32 %v1389, %v1424
      %v1427 = vadd.f32 %v1392, %v1424
      %v1428 = vadd.f32 %v1397, %v1424
      %v1429 = vadd.f32 %v1400, %v1424
      %v1430 = vadd.f32 %v1405, %v1424
      %v1431 = vadd.f32 %v1408, %v1424
      %v1432 = vadd.f32 %v1413, %v1424
      %v1433 = vadd.f32 %v1416, %v1424
      %v1434 = vmax.f32 %v1426, 0.0
      %v1435 = vmax.f32 %v1427, 0.0
      %v1436 = vmax.f32 %v1428, 0.0
      %v1437 = vmax.f32 %v1429, 0.0
      %v1438 = vmax.f32 %v1430, 0.0
      %v1439 = vmax.f32 %v1431, 0.0
      %v1440 = vmax.f32 %v1432, 0.0
      %v1441 = vmax.f32 %v1433, 0.0
      %v1442 = vpack.c.bf16 %v1434, %v1434
      %v1443 = vpack.c.bf16 %v1435, %v1435
      %v1444 = vpack.c.bf16 %v1436, %v1436
      %v1445 = vpack.c.bf16 %v1437, %v1437
      %v1446 = vpack.c.bf16 %v1438, %v1438
      %v1447 = vpack.c.bf16 %v1439, %v1439
      %v1448 = vpack.c.bf16 %v1440, %v1440
      %v1449 = vpack.c.bf16 %v1441, %v1441
      %vm1450 = vcmask 125952
      %1451 = vst.msk [vmem:[%s266] sm:$0xf] %vm1450, %v1442
      %1452 = vst.msk [vmem:[%s266 + $0x4] sm:$0xf] %vm1450, %v1443
      %1453 = vst.msk [vmem:[%s266 + $0x8] sm:$0xf] %vm1450, %v1444
      %1454 = vst.msk [vmem:[%s266 + $0xc] sm:$0xf] %vm1450, %v1445
      %1455 = vst.msk [vmem:[%s266 + $0x10] sm:$0xf] %vm1450, %v1446
      %1456 = vst.msk [vmem:[%s266 + $0x14] sm:$0xf] %vm1450, %v1447
      %1457 = vst.msk [vmem:[%s266 + $0x18] sm:$0xf] %vm1450, %v1448
      %1458 = vst.msk [vmem:[%s266 + $0x1c] sm:$0xf] %vm1450, %v1449
      %s1459 = smul.u32 8, %s21
      %p1460 = scmp.lt.s32.totalorder %s20, 1
      %s1461 = scalar_select %p1460, %s20, 1
      %p1462 = scmp.lt.s32.totalorder %s1459, 7
      %s1463 = scalar_select %p1462, %s1459, 7
      %s1464 = smul.addr %s1461, 8
      %s1465 = sadd.s32 %s1463, %s1464
      %s1466 = smul.addr %s1465, 4
      %s1467 = scalar_lea.vmem %s5, %s1466
      // Predicated region
      $region41: #{deep_unet_forward.9} parent=39 // pred_check
        %p1468 = pneg %p163
      $region42: #{deep_unet_forward.9} parent=39 // pred_check_branch
        %1470 = sbr.rel (%p1468) target = $region44
      $region43: #{deep_unet_forward.9} parent=39 // pred_region
        %s1471 = smul.u32 8, %s21
      $region44: #{deep_unet_forward.9} parent=39 // pred_fallthru
        _
    $region40: #{deep_unet_forward.9} parent=5 // pred_fallthru
      _
    %p1472 = scmp.le.s32.totalorder 2, %s11
    // Predicated region
    $region45: #{deep_unet_forward.9} parent=5 // pred_check
      %p1473 = pneg %p1472
    $region46: #{deep_unet_forward.9} parent=5 // pred_check_branch
      %1475 = sbr.rel (%p1473) target = $region48
    $region47: #{deep_unet_forward.9} parent=5 // pred_region
      %s1476 = ssub.s32 %s11, 2
      // Predicated region
      $region49: #{deep_unet_forward.9} parent=47 // pred_check
        %p1477 = pneg %p169
      $region50: #{deep_unet_forward.9} parent=47 // pred_check_branch
        %1479 = sbr.rel (%p1477) target = $region52
      $region51: #{deep_unet_forward.9} parent=47 // pred_region
        %s1480 = smul.u32 8, %s23
        %p1481 = scmp.lt.s32.totalorder %s22, 1
        %s1482 = scalar_select %p1481, %s22, 1
        %p1483 = scmp.lt.s32.totalorder %s1480, 7
        %s1484 = scalar_select %p1483, %s1480, 7
        %s1485 = smul.addr %s1482, 8
        %s1486 = sadd.s32 %s1484, %s1485
        %s1487 = smul.addr %s1486, 4
        %s1488 = scalar_lea.vmem %s5, %s1487
      $region52: #{deep_unet_forward.9} parent=47 // pred_fallthru
        _
    $region48: #{deep_unet_forward.9} parent=5 // pred_fallthru
      _
  $region6: #{deep_unet_forward.9} parent=0 // loop_footer
    %s15 = sadd.s32 1, %s11
  $region7: #{deep_unet_forward.9} parent=0 // loop_footer_branch
    %10 = sbr.rel target = $region3
  $region8: #{deep_unet_forward.9} parent=0 // loop_exit
    _

// kernel: deep_unet_forward.11
$region0: #{deep_unet_forward.11}
  #allocation0 [shape = 'u32[]', space=smem, size = 0x4, offset = 0x4, fixed_abs, tag = 'smem constant byte address 0x4 - core index']
  #allocation1 [shape = 'u32[144,128]{1,0:T(1,128)}', space=vmem, size = 0x12000, scoped, tag = 'internal scratch']
  #allocation2 [shape = 'f32[1,1]{1,0:T(1,128)S(1)}', space=vmem, size = 0x200, scoped, tag = 'scoped memory for deep_unet_forward.11']
  %s0 = inlined_call_operand.vmem [shape: bf16[2,18,18,8], index: 0, kind: input, shape index: {}]
  %s1 = inlined_call_operand.vmem [shape: f32[9,8], index: 1, kind: input, shape index: {}]
  %s2 = inlined_call_operand.<no memory space> [shape: f32[1,1], index: 2, kind: input, shape index: {}]
  %s3 = inlined_call_operand.hbm [shape: f32[2,16,16], index: 3, kind: output, shape index: {}]
  %s4 = sld [smem:[#allocation0]]
  $region45: #{deep_unet_forward.11} parent=0
    _
  %s6 = ssub.s32 1, %s4
  %s7 = scalar_select 0, %s6, %s4
  %v8 = vstv %s2
  %9 = vst [vmem:[#allocation2] sm:$0x1] %v8
  $region1: #{deep_unet_forward.11} parent=0
    #allocation3 [shape = 'u8[16384]{0}', space=vmem, size = 0x4000, scoped, tag = 'output window, operand 0']
    #allocation4 [shape = 's32[2]{0}', space=sflag, size = 0x8, scoped, tag = 'scoped memory for deep_unet_forward.11']
    %10 = vsyncpa [#allocation4], 0
    %s11 = scalar_lea.sflag [#allocation4], 1
    %12 = vsyncpa %s11, 0
    loop: start=0, step=1, limit=4
    $region2: #{deep_unet_forward.11} parent=1 // loop_pre_header
      _
    $region3: #{deep_unet_forward.11} parent=1 // loop_header
      %s14 = sphi 0, %s18
      %p15 = scmp.ge.s32.totalorder %s14, 4
      %s24 = sphi 0, %s26
      %s27 = sphi 0, %s24
      %s28 = sphi 0, %s27
      %s44 = sphi 0, %s28
      %s48 = sphi 0, %s48
      %s50 = sphi 0, %s48
      %s51 = sphi 0, %s50
      %s65 = sphi 0, %s51
      %s69 = sphi 0, %s69
      %s71 = sphi 0, %s69
      %s72 = sphi 0, %s71
      %s86 = sphi 0, %s72
      %s92 = sphi 0, %s94
      %s95 = sphi 0, %s92
      %s96 = sphi 0, %s95
      %s112 = sphi 0, %s96
    $region4: #{deep_unet_forward.11} parent=1 // loop_header_branch
      %17 = sbr.rel (%p15) target = $region8
    $region5: #{deep_unet_forward.11} parent=1 // loop_body
      %s19 = ssub.s32 %s14, 1
      %s20 = ssub.s32 %s14, 2
      %s21 = sadd.s32 %s14, 1
      %s22 = ssub.s32 %s14, %s21
      %p23 = scmp.eq.s32.totalorder %s22, 0
      %s25 = sadd.s32 %s24, 1
      %s26 = scalar_select %p23, %s24, %s25
      %p29 = pneg %p23
      %p30 = scmp.eq.s32.totalorder %s14, 1
      %p31 = por %p29, %p30
      %p32 = scmp.ne.s32.totalorder %s24, %s27
      %p33 = scmp.eq.s32.totalorder %s14, 0
      %p34 = por %p32, %p33
      %p35 = scmp.ne.s32.totalorder %s24, %s27
      %p36 = scmp.eq.s32.totalorder %s19, 1
      %p37 = por %p35, %p36
      %p38 = scmp.ne.s32.totalorder %s27, %s28
      %p39 = scmp.eq.s32.totalorder %s19, 0
      %p40 = por %p38, %p39
      %p41 = scmp.ne.s32.totalorder %s27, %s28
      %p42 = scmp.eq.s32.totalorder %s20, 1
      %p43 = por %p41, %p42
      %p45 = scmp.ne.s32.totalorder %s28, %s44
      %p46 = scmp.eq.s32.totalorder %s20, 0
      %p47 = por %p45, %p46
      %s49 = sadd.s32 %s48, 1
      %p52 = scmp.eq.s32.totalorder %s14, 1
      %p53 = scmp.ne.s32.totalorder %s48, %s50
      %p54 = scmp.eq.s32.totalorder %s14, 0
      %p55 = por %p53, %p54
      %p56 = scmp.ne.s32.totalorder %s48, %s50
      %p57 = scmp.eq.s32.totalorder %s19, 1
      %p58 = por %p56, %p57
      %p59 = scmp.ne.s32.totalorder %s50, %s51
      %p60 = scmp.eq.s32.totalorder %s19, 0
      %p61 = por %p59, %p60
      %p62 = scmp.ne.s32.totalorder %s50, %s51
      %p63 = scmp.eq.s32.totalorder %s20, 1
      %p64 = por %p62, %p63
      %p66 = scmp.ne.s32.totalorder %s51, %s65
      %p67 = scmp.eq.s32.totalorder %s20, 0
      %p68 = por %p66, %p67
      %s70 = sadd.s32 %s69, 1
      %p73 = scmp.eq.s32.totalorder %s14, 1
      %p74 = scmp.ne.s32.totalorder %s69, %s71
      %p75 = scmp.eq.s32.totalorder %s14, 0
      %p76 = por %p74, %p75
      %p77 = scmp.ne.s32.totalorder %s69, %s71
      %p78 = scmp.eq.s32.totalorder %s19, 1
      %p79 = por %p77, %p78
      %p80 = scmp.ne.s32.totalorder %s71, %s72
      %p81 = scmp.eq.s32.totalorder %s19, 0
      %p82 = por %p80, %p81
      %p83 = scmp.ne.s32.totalorder %s71, %s72
      %p84 = scmp.eq.s32.totalorder %s20, 1
      %p85 = por %p83, %p84
      %p87 = scmp.ne.s32.totalorder %s72, %s86
      %p88 = scmp.eq.s32.totalorder %s20, 0
      %p89 = por %p87, %p88
      %s90 = ssub.s32 %s14, %s21
      %p91 = scmp.eq.s32.totalorder %s90, 0
      %s93 = sadd.s32 %s92, 1
      %s94 = scalar_select %p91, %s92, %s93
      %p97 = pneg %p91
      %p98 = scmp.eq.s32.totalorder %s14, 1
      %p99 = por %p97, %p98
      %p100 = scmp.ne.s32.totalorder %s92, %s95
      %p101 = scmp.eq.s32.totalorder %s14, 0
      %p102 = por %p100, %p101
      %p103 = scmp.ne.s32.totalorder %s92, %s95
      %p104 = scmp.eq.s32.totalorder %s19, 1
      %p105 = por %p103, %p104
      %p106 = scmp.ne.s32.totalorder %s95, %s96
      %p107 = scmp.eq.s32.totalorder %s19, 0
      %p108 = por %p106, %p107
      %p109 = scmp.ne.s32.totalorder %s95, %s96
      %p110 = scmp.eq.s32.totalorder %s20, 1
      %p111 = por %p109, %p110
      %p113 = scmp.ne.s32.totalorder %s96, %s112
      %p114 = scmp.eq.s32.totalorder %s20, 0
      %p115 = por %p113, %p114
      %p116 = scmp.le.s32.totalorder 1, %s14
      %p117 = scmp.lt.s32.totalorder %s14, 3
      %p118 = pnand %p116, %p117
      %p119 = pneg %p118
      // Predicated region
      $region9: #{deep_unet_forward.11} parent=5 // pred_check
        _
      $region10: #{deep_unet_forward.11} parent=5 // pred_check_branch
        %121 = sbr.rel (%p118) target = $region12
      $region11: #{deep_unet_forward.11} parent=5 // pred_region
        %s122 = ssub.s32 %s14, 1
        // Predicated region
        $region13: #{deep_unet_forward.11} parent=11 // pred_check
          %p123 = pneg %p61
        $region14: #{deep_unet_forward.11} parent=11 // pred_check_branch
          %125 = sbr.rel (%p123) target = $region16
        $region15: #{deep_unet_forward.11} parent=11 // pred_region
          _
        $region16: #{deep_unet_forward.11} parent=11 // pred_fallthru
          _
        // Predicated region
        $region17: #{deep_unet_forward.11} parent=11 // pred_check
          %p126 = pneg %p82
        $region18: #{deep_unet_forward.11} parent=11 // pred_check_branch
          %128 = sbr.rel (%p126) target = $region20
        $region19: #{deep_unet_forward.11} parent=11 // pred_region
          _
        $region20: #{deep_unet_forward.11} parent=11 // pred_fallthru
          _
      $region12: #{deep_unet_forward.11} parent=5 // pred_fallthru
        _
      %p129 = scmp.lt.s32.totalorder %s14, 2
      // Predicated region
      $region21: #{deep_unet_forward.11} parent=5 // pred_check
        %p130 = pneg %p129
      $region22: #{deep_unet_forward.11} parent=5 // pred_check_branch
        %132 = sbr.rel (%p130) target = $region24
      $region23: #{deep_unet_forward.11} parent=5 // pred_region
        // Predicated region
        $region25: #{deep_unet_forward.11} parent=23 // pred_check
          %p133 = pneg %p34
        $region26: #{deep_unet_forward.11} parent=23 // pred_check_branch
          %135 = sbr.rel (%p133) target = $region28
        $region27: #{deep_unet_forward.11} parent=23 // pred_region
          %p136 = scmp.lt.s32.totalorder %s14, 1
          %s137 = scalar_select %p136, %s14, 1
          %s138 = smul.addr %s137, 54
          %s139 = smul.addr %s138, 4
          %s140 = scalar_lea.vmem %s0, %s139
        $region28: #{deep_unet_forward.11} parent=23 // pred_fallthru
          _
      $region24: #{deep_unet_forward.11} parent=5 // pred_fallthru
        _
      %p141 = scmp.le.s32.totalorder 1, %s14
      %p142 = scmp.lt.s32.totalorder %s14, 3
      %p143 = pnand %p141, %p142
      %p144 = pneg %p143
      // Predicated region
      $region29: #{deep_unet_forward.11} parent=5 // pred_check
        _
      $region30: #{deep_unet_forward.11} parent=5 // pred_check_branch
        %146 = sbr.rel (%p143) target = $region32
      $region31: #{deep_unet_forward.11} parent=5 // pred_region
        %s147 = ssub.s32 %s14, 1
        %p148 = scmp.lt.s32.totalorder %s19, 1
        %s149 = scalar_select %p148, %s19, 1
        %s150 = smul.addr %s149, 54
        %s151 = smul.addr %s150, 4
        %s152 = scalar_lea.vmem %s0, %s151
        %p153 = pneg %p40
        %p154 = pneg %p37
        %p155 = pneg %p61
        %p156 = pneg %p58
        %p157 = pneg %p82
        %p158 = pneg %p79
        %p159 = pneg %p108
        %p160 = pneg %p105
        %s161 = sand.u32 %s95, 1
        %s162 = scalar_lea.sflag [#allocation4], %s161
        %s163 = sand.u32 %s95, 1
        %s164 = smul.addr %s163, 16
        %s165 = scalar_lea.vmem [#allocation3], %s164
        %p166 = scmp.lt.s32.totalorder %s19, 1
        %s167 = scalar_select %p166, %s19, 1
        %s168 = smul.addr %s167, 54
        %s169 = smul.addr %s168, 4
        %s170 = scalar_lea.vmem %s0, %s169
        %v171 = vld [vmem:[%s170] sm:$0xf]
        %v172 = vld [vmem:[%s170 + $0x4] sm:$0xf]
        %v173 = vld [vmem:[%s170 + $0x8] sm:$0x1]
        %v174 = vld [vmem:[%s170 + $0xc] sm:$0xf]
        %v175 = vld [vmem:[%s170 + $0x10] sm:$0xf]
        %v176 = vld [vmem:[%s170 + $0x14] sm:$0x1]
        %v177 = vld [vmem:[%s170 + $0x18] sm:$0xf]
        %v178 = vld [vmem:[%s170 + $0x1c] sm:$0xf]
        %v179 = vld [vmem:[%s170 + $0x20] sm:$0x1]
        %v180 = vld [vmem:[%s170 + $0x24] sm:$0xf]
        %v181 = vld [vmem:[%s170 + $0x28] sm:$0xf]
        %v182 = vld [vmem:[%s170 + $0x2c] sm:$0x1]
        %v183 = vld [vmem:[%s170 + $0x30] sm:$0xf]
        %v184 = vld [vmem:[%s170 + $0x34] sm:$0xf]
        %v185 = vld [vmem:[%s170 + $0x38] sm:$0x1]
        %v186 = vld [vmem:[%s170 + $0x3c] sm:$0xf]
        %v187 = vld [vmem:[%s170 + $0x40] sm:$0xf]
        %v188 = vld [vmem:[%s170 + $0x44] sm:$0x1]
        %v189 = vld [vmem:[%s170 + $0x48] sm:$0xf]
        %v190 = vld [vmem:[%s170 + $0x4c] sm:$0xf]
        %v191 = vld [vmem:[%s170 + $0x50] sm:$0x1]
        %v192 = vld [vmem:[%s170 + $0x54] sm:$0xf]
        %v193 = vld [vmem:[%s170 + $0x58] sm:$0xf]
        %v194 = vld [vmem:[%s170 + $0x5c] sm:$0x1]
        %v195 = vld [vmem:[%s170 + $0x60] sm:$0xf]
        %v196 = vld [vmem:[%s170 + $0x64] sm:$0xf]
        %v197 = vld [vmem:[%s170 + $0x68] sm:$0x1]
        %v198 = vld [vmem:[%s170 + $0x6c] sm:$0xf]
        %v199 = vld [vmem:[%s170 + $0x70] sm:$0xf]
        %v200 = vld [vmem:[%s170 + $0x74] sm:$0x1]
        %v201 = vld [vmem:[%s170 + $0x78] sm:$0xf]
        %v202 = vld [vmem:[%s170 + $0x7c] sm:$0xf]
        %v203 = vld [vmem:[%s170 + $0x80] sm:$0x1]
        %v204 = vld [vmem:[%s170 + $0x84] sm:$0xf]
        %v205 = vld [vmem:[%s170 + $0x88] sm:$0xf]
        %v206 = vld [vmem:[%s170 + $0x8c] sm:$0x1]
        %v207 = vld [vmem:[%s170 + $0x90] sm:$0xf]
        %v208 = vld [vmem:[%s170 + $0x94] sm:$0xf]
        %v209 = vld [vmem:[%s170 + $0x98] sm:$0x1]
        %v210 = vld [vmem:[%s170 + $0x9c] sm:$0xf]
        %v211 = vld [vmem:[%s170 + $0xa0] sm:$0xf]
        %v212 = vld [vmem:[%s170 + $0xa4] sm:$0x1]
        %v213 = vld [vmem:[%s170 + $0xa8] sm:$0xf]
        %v214 = vld [vmem:[%s170 + $0xac] sm:$0xf]
        %v215 = vld [vmem:[%s170 + $0xb0] sm:$0x1]
        %v216 = vld [vmem:[%s170 + $0xb4] sm:$0xf]
        %v217 = vld [vmem:[%s170 + $0xb8] sm:$0xf]
        %v218 = vld [vmem:[%s170 + $0xbc] sm:$0x1]
        %v219 = vld [vmem:[%s170 + $0xc0] sm:$0xf]
        %v220 = vld [vmem:[%s170 + $0xc4] sm:$0xf]
        %v221 = vld [vmem:[%s170 + $0xc8] sm:$0x1]
        %v222 = vld [vmem:[%s170 + $0xcc] sm:$0xf]
        %v223 = vld [vmem:[%s170 + $0xd0] sm:$0xf]
        %v224 = vld [vmem:[%s170 + $0xd4] sm:$0x1]
        %v225 = vunpack.c.l.bf16 %v171
        %v226 = vunpack.c.l.bf16 %v172
        %v227 = vunpack.c.l.bf16 %v173
        %v228 = vunpack.c.l.bf16 %v174
        %v229 = vunpack.c.l.bf16 %v175
        %v230 = vunpack.c.l.bf16 %v176
        %v231 = vunpack.c.l.bf16 %v177
        %v232 = vunpack.c.l.bf16 %v178
        %v233 = vunpack.c.l.bf16 %v179
        %v234 = vunpack.c.l.bf16 %v180
        %v235 = vunpack.c.l.bf16 %v181
        %v236 = vunpack.c.l.bf16 %v182
        %v237 = vunpack.c.l.bf16 %v183
        %v238 = vunpack.c.l.bf16 %v184
        %v239 = vunpack.c.l.bf16 %v185
        %v240 = vunpack.c.l.bf16 %v186
        %v241 = vunpack.c.l.bf16 %v187
        %v242 = vunpack.c.l.bf16 %v188
        %v243 = vunpack.c.l.bf16 %v189
        %v244 = vunpack.c.l.bf16 %v190
        %v245 = vunpack.c.l.bf16 %v191
        %v246 = vunpack.c.l.bf16 %v192
        %v247 = vunpack.c.l.bf16 %v193
        %v248 = vunpack.c.l.bf16 %v194
        %v249 = vunpack.c.l.bf16 %v195
        %v250 = vunpack.c.l.bf16 %v196
        %v251 = vunpack.c.l.bf16 %v197
        %v252 = vunpack.c.l.bf16 %v198
        %v253 = vunpack.c.l.bf16 %v199
        %v254 = vunpack.c.l.bf16 %v200
        %v255 = vunpack.c.l.bf16 %v201
        %v256 = vunpack.c.l.bf16 %v202
        %v257 = vunpack.c.l.bf16 %v203
        %v258 = vunpack.c.l.bf16 %v204
        %v259 = vunpack.c.l.bf16 %v205
        %v260 = vunpack.c.l.bf16 %v206
        %v261 = vunpack.c.l.bf16 %v207
        %v262 = vunpack.c.l.bf16 %v208
        %v263 = vunpack.c.l.bf16 %v209
        %v264 = vunpack.c.l.bf16 %v210
        %v265 = vunpack.c.l.bf16 %v211
        %v266 = vunpack.c.l.bf16 %v212
        %v267 = vunpack.c.l.bf16 %v213
        %v268 = vunpack.c.l.bf16 %v214
        %v269 = vunpack.c.l.bf16 %v215
        %v270 = vunpack.c.l.bf16 %v216
        %v271 = vunpack.c.l.bf16 %v217
        %v272 = vunpack.c.l.bf16 %v218
        %v273 = vunpack.c.l.bf16 %v219
        %v274 = vunpack.c.l.bf16 %v220
        %v275 = vunpack.c.l.bf16 %v221
        %v276 = vunpack.c.l.bf16 %v222
        %v277 = vunpack.c.l.bf16 %v223
        %v278 = vunpack.c.l.bf16 %v224
        %v279 = vld [vmem:[%s1] sm:$0x1]
        %v280 = vlaneseq
        %v281 = vshrl.u32 %v280, 7
        %v282 = vsub.s32 0, %v281
        %v283 = vrot.slane %v279, %v282
        %v284 = vmul.f32 %v225, %v283
        %v285 = vmul.f32 %v226, %v283
        %v286 = vmul.f32 %v228, %v283
        %v287 = vmul.f32 %v229, %v283
        %v288 = vmul.f32 %v231, %v283
        %v289 = vmul.f32 %v232, %v283
        %v290 = vmul.f32 %v234, %v283
        %v291 = vmul.f32 %v235, %v283
        %v292 = vmul.f32 %v237, %v283
        %v293 = vmul.f32 %v238, %v283
        %v294 = vmul.f32 %v240, %v283
        %v295 = vmul.f32 %v241, %v283
        %v296 = vmul.f32 %v243, %v283
        %v297 = vmul.f32 %v244, %v283
        %v298 = vmul.f32 %v246, %v283
        %v299 = vmul.f32 %v247, %v283
        %v300 = vmul.f32 %v249, %v283
        %v301 = vmul.f32 %v250, %v283
        %v302 = vmul.f32 %v252, %v283
        %v303 = vmul.f32 %v253, %v283
        %v304 = vmul.f32 %v255, %v283
        %v305 = vmul.f32 %v256, %v283
        %v306 = vmul.f32 %v258, %v283
        %v307 = vmul.f32 %v259, %v283
        %v308 = vmul.f32 %v261, %v283
        %v309 = vmul.f32 %v262, %v283
        %v310 = vmul.f32 %v264, %v283
        %v311 = vmul.f32 %v265, %v283
        %v312 = vmul.f32 %v267, %v283
        %v313 = vmul.f32 %v268, %v283
        %v314 = vmul.f32 %v270, %v283
        %v315 = vmul.f32 %v271, %v283
        %v316 = vld [vmem:[%s1 + $0x1] sm:$0x1]
        %v317 = vlaneseq
        %v318 = vshrl.u32 %v317, 7
        %v319 = vsub.s32 0, %v318
        %v320 = vrot.slane %v316, %v319
        %v321 = vmul.f32 %v225, %v320
        %v322 = vmul.f32 %v226, %v320
        %v323 = vmul.f32 %v227, %v320
        %v324 = vmul.f32 %v228, %v320
        %v325 = vmul.f32 %v229, %v320
        %v326 = vmul.f32 %v230, %v320
        %v327 = vmul.f32 %v231, %v320
        %v328 = vmul.f32 %v232, %v320
        %v329 = vmul.f32 %v233, %v320
        %v330 = vmul.f32 %v234, %v320
        %v331 = vmul.f32 %v235, %v320
        %v332 = vmul.f32 %v236, %v320
        %v333 = vmul.f32 %v237, %v320
        %v334 = vmul.f32 %v238, %v320
        %v335 = vmul.f32 %v239, %v320
        %v336 = vmul.f32 %v240, %v320
        %v337 = vmul.f32 %v241, %v320
        %v338 = vmul.f32 %v242, %v320
        %v339 = vmul.f32 %v243, %v320
        %v340 = vmul.f32 %v244, %v320
        %v341 = vmul.f32 %v245, %v320
        %v342 = vmul.f32 %v246, %v320
        %v343 = vmul.f32 %v247, %v320
        %v344 = vmul.f32 %v248, %v320
        %v345 = vmul.f32 %v249, %v320
        %v346 = vmul.f32 %v250, %v320
        %v347 = vmul.f32 %v251, %v320
        %v348 = vmul.f32 %v252, %v320
        %v349 = vmul.f32 %v253, %v320
        %v350 = vmul.f32 %v254, %v320
        %v351 = vmul.f32 %v255, %v320
        %v352 = vmul.f32 %v256, %v320
        %v353 = vmul.f32 %v257, %v320
        %v354 = vmul.f32 %v258, %v320
        %v355 = vmul.f32 %v259, %v320
        %v356 = vmul.f32 %v260, %v320
        %v357 = vmul.f32 %v261, %v320
        %v358 = vmul.f32 %v262, %v320
        %v359 = vmul.f32 %v263, %v320
        %v360 = vmul.f32 %v264, %v320
        %v361 = vmul.f32 %v265, %v320
        %v362 = vmul.f32 %v266, %v320
        %v363 = vmul.f32 %v267, %v320
        %v364 = vmul.f32 %v268, %v320
        %v365 = vmul.f32 %v269, %v320
        %v366 = vmul.f32 %v270, %v320
        %v367 = vmul.f32 %v271, %v320
        %v368 = vmul.f32 %v272, %v320
        %vm417 = vcmask 1046528
        %v418 = vrot.slane %v321, 1
        %v419 = vrot.slane %v322, 1
        %v420 = vsel %vm417, %v418, %v419
        %v421 = vrot.slane %v323, 1
        %v422 = vsel %vm417, %v419, %v421
        %v423 = vrot.slane %v324, 1
        %v424 = vrot.slane %v325, 1
        %v425 = vsel %vm417, %v423, %v424
        %v426 = vrot.slane %v326, 1
        %v427 = vsel %vm417, %v424, %v426
        %v428 = vrot.slane %v327, 1
        %v429 = vrot.slane %v328, 1
        %v430 = vsel %vm417, %v428, %v429
        %v431 = vrot.slane %v329, 1
        %v432 = vsel %vm417, %v429, %v431
        %v433 = vrot.slane %v330, 1
        %v434 = vrot.slane %v331, 1
        %v435 = vsel %vm417, %v433, %v434
        %v436 = vrot.slane %v332, 1
        %v437 = vsel %vm417, %v434, %v436
        %v438 = vrot.slane %v333, 1
        %v439 = vrot.slane %v334, 1
        %v440 = vsel %vm417, %v438, %v439
        %v441 = vrot.slane %v335, 1
        %v442 = vsel %vm417, %v439, %v441
        %v443 = vrot.slane %v336, 1
        %v444 = vrot.slane %v337, 1
        %v445 = vsel %vm417, %v443, %v444
        %v446 = vrot.slane %v338, 1
        %v447 = vsel %vm417, %v444, %v446
        %v448 = vrot.slane %v339, 1
        %v449 = vrot.slane %v340, 1
        %v450 = vsel %vm417, %v448, %v449
        %v451 = vrot.slane %v341, 1
        %v452 = vsel %vm417, %v449, %v451
        %v453 = vrot.slane %v342, 1
        %v454 = vrot.slane %v343, 1
        %v455 = vsel %vm417, %v453, %v454
        %v456 = vrot.slane %v344, 1
        %v457 = vsel %vm417, %v454, %v456
        %v458 = vrot.slane %v345, 1
        %v459 = vrot.slane %v346, 1
        %v460 = vsel %vm417, %v458, %v459
        %v461 = vrot.slane %v347, 1
        %v462 = vsel %vm417, %v459, %v461
        %v463 = vrot.slane %v348, 1
        %v464 = vrot.slane %v349, 1
        %v465 = vsel %vm417, %v463, %v464
        %v466 = vrot.slane %v350, 1
        %v467 = vsel %vm417, %v464, %v466
        %v468 = vrot.slane %v351, 1
        %v469 = vrot.slane %v352, 1
        %v470 = vsel %vm417, %v468, %v469
        %v471 = vrot.slane %v353, 1
        %v472 = vsel %vm417, %v469, %v471
        %v473 = vrot.slane %v354, 1
        %v474 = vrot.slane %v355, 1
        %v475 = vsel %vm417, %v473, %v474
        %v476 = vrot.slane %v356, 1
        %v477 = vsel %vm417, %v474, %v476
        %v478 = vrot.slane %v357, 1
        %v479 = vrot.slane %v358, 1
        %v480 = vsel %vm417, %v478, %v479
        %v481 = vrot.slane %v359, 1
        %v482 = vsel %vm417, %v479, %v481
        %v483 = vrot.slane %v360, 1
        %v484 = vrot.slane %v361, 1
        %v485 = vsel %vm417, %v483, %v484
        %v486 = vrot.slane %v362, 1
        %v487 = vsel %vm417, %v484, %v486
        %v488 = vrot.slane %v363, 1
        %v489 = vrot.slane %v364, 1
        %v490 = vsel %vm417, %v488, %v489
        %v491 = vrot.slane %v365, 1
        %v492 = vsel %vm417, %v489, %v491
        %v493 = vrot.slane %v366, 1
        %v494 = vrot.slane %v367, 1
        %v495 = vsel %vm417, %v493, %v494
        %v496 = vrot.slane %v368, 1
        %v497 = vsel %vm417, %v494, %v496
        %v530 = vadd.f32 %v284, %v420
        %v531 = vadd.f32 %v285, %v422
        %v532 = vadd.f32 %v286, %v425
        %v533 = vadd.f32 %v287, %v427
        %v534 = vadd.f32 %v288, %v430
        %v535 = vadd.f32 %v289, %v432
        %v536 = vadd.f32 %v290, %v435
        %v537 = vadd.f32 %v291, %v437
        %v538 = vadd.f32 %v292, %v440
        %v539 = vadd.f32 %v293, %v442
        %v540 = vadd.f32 %v294, %v445
        %v541 = vadd.f32 %v295, %v447
        %v542 = vadd.f32 %v296, %v450
        %v543 = vadd.f32 %v297, %v452
        %v544 = vadd.f32 %v298, %v455
        %v545 = vadd.f32 %v299, %v457
        %v546 = vadd.f32 %v300, %v460
        %v547 = vadd.f32 %v301, %v462
        %v548 = vadd.f32 %v302, %v465
        %v549 = vadd.f32 %v303, %v467
        %v550 = vadd.f32 %v304, %v470
        %v551 = vadd.f32 %v305, %v472
        %v552 = vadd.f32 %v306, %v475
        %v553 = vadd.f32 %v307, %v477
        %v554 = vadd.f32 %v308, %v480
        %v555 = vadd.f32 %v309, %v482
        %v556 = vadd.f32 %v310, %v485
        %v557 = vadd.f32 %v311, %v487
        %v558 = vadd.f32 %v312, %v490
        %v559 = vadd.f32 %v313, %v492
        %v560 = vadd.f32 %v314, %v495
        %v561 = vadd.f32 %v315, %v497
        %v562 = vld [vmem:[%s1 + $0x2] sm:$0x1]
        %v563 = vlaneseq
        %v564 = vshrl.u32 %v563, 7
        %v565 = vsub.s32 0, %v564
        %v566 = vrot.slane %v562, %v565
        %v567 = vmul.f32 %v225, %v566
        %v568 = vmul.f32 %v226, %v566
        %v569 = vmul.f32 %v227, %v566
        %v570 = vmul.f32 %v228, %v566
        %v571 = vmul.f32 %v229, %v566
        %v572 = vmul.f32 %v230, %v566
        %v573 = vmul.f32 %v231, %v566
        %v574 = vmul.f32 %v232, %v566
        %v575 = vmul.f32 %v233, %v566
        %v576 = vmul.f32 %v234, %v566
        %v577 = vmul.f32 %v235, %v566
        %v578 = vmul.f32 %v236, %v566
        %v579 = vmul.f32 %v237, %v566
        %v580 = vmul.f32 %v238, %v566
        %v581 = vmul.f32 %v239, %v566
        %v582 = vmul.f32 %v240, %v566
        %v583 = vmul.f32 %v241, %v566
        %v584 = vmul.f32 %v242, %v566
        %v585 = vmul.f32 %v243, %v566
        %v586 = vmul.f32 %v244, %v566
        %v587 = vmul.f32 %v245, %v566
        %v588 = vmul.f32 %v246, %v566
        %v589 = vmul.f32 %v247, %v566
        %v590 = vmul.f32 %v248, %v566
        %v591 = vmul.f32 %v249, %v566
        %v592 = vmul.f32 %v250, %v566
        %v593 = vmul.f32 %v251, %v566
        %v594 = vmul.f32 %v252, %v566
        %v595 = vmul.f32 %v253, %v566
        %v596 = vmul.f32 %v254, %v566
        %v597 = vmul.f32 %v255, %v566
        %v598 = vmul.f32 %v256, %v566
        %v599 = vmul.f32 %v257, %v566
        %v600 = vmul.f32 %v258, %v566
        %v601 = vmul.f32 %v259, %v566
        %v602 = vmul.f32 %v260, %v566
        %v603 = vmul.f32 %v261, %v566
        %v604 = vmul.f32 %v262, %v566
        %v605 = vmul.f32 %v263, %v566
        %v606 = vmul.f32 %v264, %v566
        %v607 = vmul.f32 %v265, %v566
        %v608 = vmul.f32 %v266, %v566
        %v609 = vmul.f32 %v267, %v566
        %v610 = vmul.f32 %v268, %v566
        %v611 = vmul.f32 %v269, %v566
        %v612 = vmul.f32 %v270, %v566
        %v613 = vmul.f32 %v271, %v566
        %v614 = vmul.f32 %v272, %v566
        %vm663 = vcmask 1045504
        %v664 = vrot.slane %v567, 2
        %v665 = vrot.slane %v568, 2
        %v666 = vsel %vm663, %v664, %v665
        %v667 = vrot.slane %v569, 2
        %v668 = vsel %vm663, %v665, %v667
        %v669 = vrot.slane %v570, 2
        %v670 = vrot.slane %v571, 2
        %v671 = vsel %vm663, %v669, %v670
        %v672 = vrot.slane %v572, 2
        %v673 = vsel %vm663, %v670, %v672
        %v674 = vrot.slane %v573, 2
        %v675 = vrot.slane %v574, 2
        %v676 = vsel %vm663, %v674, %v675
        %v677 = vrot.slane %v575, 2
        %v678 = vsel %vm663, %v675, %v677
        %v679 = vrot.slane %v576, 2
        %v680 = vrot.slane %v577, 2
        %v681 = vsel %vm663, %v679, %v680
        %v682 = vrot.slane %v578, 2
        %v683 = vsel %vm663, %v680, %v682
        %v684 = vrot.slane %v579, 2
        %v685 = vrot.slane %v580, 2
        %v686 = vsel %vm663, %v684, %v685
        %v687 = vrot.slane %v581, 2
        %v688 = vsel %vm663, %v685, %v687
        %v689 = vrot.slane %v582, 2
        %v690 = vrot.slane %v583, 2
        %v691 = vsel %vm663, %v689, %v690
        %v692 = vrot.slane %v584, 2
        %v693 = vsel %vm663, %v690, %v692
        %v694 = vrot.slane %v585, 2
        %v695 = vrot.slane %v586, 2
        %v696 = vsel %vm663, %v694, %v695
        %v697 = vrot.slane %v587, 2
        %v698 = vsel %vm663, %v695, %v697
        %v699 = vrot.slane %v588, 2
        %v700 = vrot.slane %v589, 2
        %v701 = vsel %vm663, %v699, %v700
        %v702 = vrot.slane %v590, 2
        %v703 = vsel %vm663, %v700, %v702
        %v704 = vrot.slane %v591, 2
        %v705 = vrot.slane %v592, 2
        %v706 = vsel %vm663, %v704, %v705
        %v707 = vrot.slane %v593, 2
        %v708 = vsel %vm663, %v705, %v707
        %v709 = vrot.slane %v594, 2
        %v710 = vrot.slane %v595, 2
        %v711 = vsel %vm663, %v709, %v710
        %v712 = vrot.slane %v596, 2
        %v713 = vsel %vm663, %v710, %v712
        %v714 = vrot.slane %v597, 2
        %v715 = vrot.slane %v598, 2
        %v716 = vsel %vm663, %v714, %v715
        %v717 = vrot.slane %v599, 2
        %v718 = vsel %vm663, %v715, %v717
        %v719 = vrot.slane %v600, 2
        %v720 = vrot.slane %v601, 2
        %v721 = vsel %vm663, %v719, %v720
        %v722 = vrot.slane %v602, 2
        %v723 = vsel %vm663, %v720, %v722
        %v724 = vrot.slane %v603, 2
        %v725 = vrot.slane %v604, 2
        %v726 = vsel %vm663, %v724, %v725
        %v727 = vrot.slane %v605, 2
        %v728 = vsel %vm663, %v725, %v727
        %v729 = vrot.slane %v606, 2
        %v730 = vrot.slane %v607, 2
        %v731 = vsel %vm663, %v729, %v730
        %v732 = vrot.slane %v608, 2
        %v733 = vsel %vm663, %v730, %v732
        %v734 = vrot.slane %v609, 2
        %v735 = vrot.slane %v610, 2
        %v736 = vsel %vm663, %v734, %v735
        %v737 = vrot.slane %v611, 2
        %v738 = vsel %vm663, %v735, %v737
        %v739 = vrot.slane %v612, 2
        %v740 = vrot.slane %v613, 2
        %v741 = vsel %vm663, %v739, %v740
        %v742 = vrot.slane %v614, 2
        %v743 = vsel %vm663, %v740, %v742
        %v776 = vadd.f32 %v530, %v666
        %v777 = vadd.f32 %v531, %v668
        %v778 = vadd.f32 %v532, %v671
        %v779 = vadd.f32 %v533, %v673
        %v780 = vadd.f32 %v534, %v676
        %v781 = vadd.f32 %v535, %v678
        %v782 = vadd.f32 %v536, %v681
        %v783 = vadd.f32 %v537, %v683
        %v784 = vadd.f32 %v538, %v686
        %v785 = vadd.f32 %v539, %v688
        %v786 = vadd.f32 %v540, %v691
        %v787 = vadd.f32 %v541, %v693
        %v788 = vadd.f32 %v542, %v696
        %v789 = vadd.f32 %v543, %v698
        %v790 = vadd.f32 %v544, %v701
        %v791 = vadd.f32 %v545, %v703
        %v792 = vadd.f32 %v546, %v706
        %v793 = vadd.f32 %v547, %v708
        %v794 = vadd.f32 %v548, %v711
        %v795 = vadd.f32 %v549, %v713
        %v796 = vadd.f32 %v550, %v716
        %v797 = vadd.f32 %v551, %v718
        %v798 = vadd.f32 %v552, %v721
        %v799 = vadd.f32 %v553, %v723
        %v800 = vadd.f32 %v554, %v726
        %v801 = vadd.f32 %v555, %v728
        %v802 = vadd.f32 %v556, %v731
        %v803 = vadd.f32 %v557, %v733
        %v804 = vadd.f32 %v558, %v736
        %v805 = vadd.f32 %v559, %v738
        %v806 = vadd.f32 %v560, %v741
        %v807 = vadd.f32 %v561, %v743
        %v808 = vld [vmem:[%s1 + $0x3] sm:$0x1]
        %v809 = vlaneseq
        %v810 = vshrl.u32 %v809, 7
        %v811 = vsub.s32 0, %v810
        %v812 = vrot.slane %v808, %v811
        %v813 = vmul.f32 %v228, %v812
        %v814 = vmul.f32 %v229, %v812
        %v815 = vmul.f32 %v231, %v812
        %v816 = vmul.f32 %v232, %v812
        %v817 = vmul.f32 %v234, %v812
        %v818 = vmul.f32 %v235, %v812
        %v819 = vmul.f32 %v237, %v812
        %v820 = vmul.f32 %v238, %v812
        %v821 = vmul.f32 %v240, %v812
        %v822 = vmul.f32 %v241, %v812
        %v823 = vmul.f32 %v243, %v812
        %v824 = vmul.f32 %v244, %v812
        %v825 = vmul.f32 %v246, %v812
        %v826 = vmul.f32 %v247, %v812
        %v827 = vmul.f32 %v249, %v812
        %v828 = vmul.f32 %v250, %v812
        %v829 = vmul.f32 %v252, %v812
        %v830 = vmul.f32 %v253, %v812
        %v831 = vmul.f32 %v255, %v812
        %v832 = vmul.f32 %v256, %v812
        %v833 = vmul.f32 %v258, %v812
        %v834 = vmul.f32 %v259, %v812
        %v835 = vmul.f32 %v261, %v812
        %v836 = vmul.f32 %v262, %v812
        %v837 = vmul.f32 %v264, %v812
        %v838 = vmul.f32 %v265, %v812
        %v839 = vmul.f32 %v267, %v812
        %v840 = vmul.f32 %v268, %v812
        %v841 = vmul.f32 %v270, %v812
        %v842 = vmul.f32 %v271, %v812
        %v843 = vmul.f32 %v273, %v812
        %v844 = vmul.f32 %v274, %v812
        %v845 = vadd.f32 %v776, %v813
        %v846 = vadd.f32 %v777, %v814
        %v847 = vadd.f32 %v778, %v815
        %v848 = vadd.f32 %v779, %v816
        %v849 = vadd.f32 %v780, %v817
        %v850 = vadd.f32 %v781, %v818
        %v851 = vadd.f32 %v782, %v819
        %v852 = vadd.f32 %v783, %v820
        %v853 = vadd.f32 %v784, %v821
        %v854 = vadd.f32 %v785, %v822
        %v855 = vadd.f32 %v786, %v823
        %v856 = vadd.f32 %v787, %v824
        %v857 = vadd.f32 %v788, %v825
        %v858 = vadd.f32 %v789, %v826
        %v859 = vadd.f32 %v790, %v827
        %v860 = vadd.f32 %v791, %v828
        %v861 = vadd.f32 %v792, %v829
        %v862 = vadd.f32 %v793, %v830
        %v863 = vadd.f32 %v794, %v831
        %v864 = vadd.f32 %v795, %v832
        %v865 = vadd.f32 %v796, %v833
        %v866 = vadd.f32 %v797, %v834
        %v867 = vadd.f32 %v798, %v835
        %v868 = vadd.f32 %v799, %v836
        %v869 = vadd.f32 %v800, %v837
        %v870 = vadd.f32 %v801, %v838
        %v871 = vadd.f32 %v802, %v839
        %v872 = vadd.f32 %v803, %v840
        %v873 = vadd.f32 %v804, %v841
        %v874 = vadd.f32 %v805, %v842
        %v875 = vadd.f32 %v806, %v843
        %v876 = vadd.f32 %v807, %v844
        %v877 = vld [vmem:[%s1 + $0x4] sm:$0x1]
        %v878 = vlaneseq
        %v879 = vshrl.u32 %v878, 7
        %v880 = vsub.s32 0, %v879
        %v881 = vrot.slane %v877, %v880
        %v882 = vmul.f32 %v228, %v881
        %v883 = vmul.f32 %v229, %v881
        %v884 = vmul.f32 %v230, %v881
        %v885 = vmul.f32 %v231, %v881
        %v886 = vmul.f32 %v232, %v881
        %v887 = vmul.f32 %v233, %v881
        %v888 = vmul.f32 %v234, %v881
        %v889 = vmul.f32 %v235, %v881
        %v890 = vmul.f32 %v236, %v881
        %v891 = vmul.f32 %v237, %v881
        %v892 = vmul.f32 %v238, %v881
        %v893 = vmul.f32 %v239, %v881
        %v894 = vmul.f32 %v240, %v881
        %v895 = vmul.f32 %v241, %v881
        %v896 = vmul.f32 %v242, %v881
        %v897 = vmul.f32 %v243, %v881
        %v898 = vmul.f32 %v244, %v881
        %v899 = vmul.f32 %v245, %v881
        %v900 = vmul.f32 %v246, %v881
        %v901 = vmul.f32 %v247, %v881
        %v902 = vmul.f32 %v248, %v881
        %v903 = vmul.f32 %v249, %v881
        %v904 = vmul.f32 %v250, %v881
        %v905 = vmul.f32 %v251, %v881
        %v906 = vmul.f32 %v252, %v881
        %v907 = vmul.f32 %v253, %v881
        %v908 = vmul.f32 %v254, %v881
        %v909 = vmul.f32 %v255, %v881
        %v910 = vmul.f32 %v256, %v881
        %v911 = vmul.f32 %v257, %v881
        %v912 = vmul.f32 %v258, %v881
        %v913 = vmul.f32 %v259, %v881
        %v914 = vmul.f32 %v260, %v881
        %v915 = vmul.f32 %v261, %v881
        %v916 = vmul.f32 %v262, %v881
        %v917 = vmul.f32 %v263, %v881
        %v918 = vmul.f32 %v264, %v881
        %v919 = vmul.f32 %v265, %v881
        %v920 = vmul.f32 %v266, %v881
        %v921 = vmul.f32 %v267, %v881
        %v922 = vmul.f32 %v268, %v881
        %v923 = vmul.f32 %v269, %v881
        %v924 = vmul.f32 %v270, %v881
        %v925 = vmul.f32 %v271, %v881
        %v926 = vmul.f32 %v272, %v881
        %v927 = vmul.f32 %v273, %v881
        %v928 = vmul.f32 %v274, %v881
        %v929 = vmul.f32 %v275, %v881
        %v978 = vrot.slane %v882, 1
        %v979 = vrot.slane %v883, 1
        %v980 = vsel %vm417, %v978, %v979
        %v981 = vrot.slane %v884, 1
        %v982 = vsel %vm417, %v979, %v981
        %v983 = vrot.slane %v885, 1
        %v984 = vrot.slane %v886, 1
        %v985 = vsel %vm417, %v983, %v984
        %v986 = vrot.slane %v887, 1
        %v987 = vsel %vm417, %v984, %v986
        %v988 = vrot.slane %v888, 1
        %v989 = vrot.slane %v889, 1
        %v990 = vsel %vm417, %v988, %v989
        %v991 = vrot.slane %v890, 1
        %v992 = vsel %vm417, %v989, %v991
        %v993 = vrot.slane %v891, 1
        %v994 = vrot.slane %v892, 1
        %v995 = vsel %vm417, %v993, %v994
        %v996 = vrot.slane %v893, 1
        %v997 = vsel %vm417, %v994, %v996
        %v998 = vrot.slane %v894, 1
        %v999 = vrot.slane %v895, 1
        %v1000 = vsel %vm417, %v998, %v999
        %v1001 = vrot.slane %v896, 1
        %v1002 = vsel %vm417, %v999, %v1001
        %v1003 = vrot.slane %v897, 1
        %v1004 = vrot.slane %v898, 1
        %v1005 = vsel %vm417, %v1003, %v1004
        %v1006 = vrot.slane %v899, 1
        %v1007 = vsel %vm417, %v1004, %v1006
        %v1008 = vrot.slane %v900, 1
        %v1009 = vrot.slane %v901, 1
        %v1010 = vsel %vm417, %v1008, %v1009
        %v1011 = vrot.slane %v902, 1
        %v1012 = vsel %vm417, %v1009, %v1011
        %v1013 = vrot.slane %v903, 1
        %v1014 = vrot.slane %v904, 1
        %v1015 = vsel %vm417, %v1013, %v1014
        %v1016 = vrot.slane %v905, 1
        %v1017 = vsel %vm417, %v1014, %v1016
        %v1018 = vrot.slane %v906, 1
        %v1019 = vrot.slane %v907, 1
        %v1020 = vsel %vm417, %v1018, %v1019
        %v1021 = vrot.slane %v908, 1
        %v1022 = vsel %vm417, %v1019, %v1021
        %v1023 = vrot.slane %v909, 1
        %v1024 = vrot.slane %v910, 1
        %v1025 = vsel %vm417, %v1023, %v1024
        %v1026 = vrot.slane %v911, 1
        %v1027 = vsel %vm417, %v1024, %v1026
        %v1028 = vrot.slane %v912, 1
        %v1029 = vrot.slane %v913, 1
        %v1030 = vsel %vm417, %v1028, %v1029
        %v1031 = vrot.slane %v914, 1
        %v1032 = vsel %vm417, %v1029, %v1031
        %v1033 = vrot.slane %v915, 1
        %v1034 = vrot.slane %v916, 1
        %v1035 = vsel %vm417, %v1033, %v1034
        %v1036 = vrot.slane %v917, 1
        %v1037 = vsel %vm417, %v1034, %v1036
        %v1038 = vrot.slane %v918, 1
        %v1039 = vrot.slane %v919, 1
        %v1040 = vsel %vm417, %v1038, %v1039
        %v1041 = vrot.slane %v920, 1
        %v1042 = vsel %vm417, %v1039, %v1041
        %v1043 = vrot.slane %v921, 1
        %v1044 = vrot.slane %v922, 1
        %v1045 = vsel %vm417, %v1043, %v1044
        %v1046 = vrot.slane %v923, 1
        %v1047 = vsel %vm417, %v1044, %v1046
        %v1048 = vrot.slane %v924, 1
        %v1049 = vrot.slane %v925, 1
        %v1050 = vsel %vm417, %v1048, %v1049
        %v1051 = vrot.slane %v926, 1
        %v1052 = vsel %vm417, %v1049, %v1051
        %v1053 = vrot.slane %v927, 1
        %v1054 = vrot.slane %v928, 1
        %v1055 = vsel %vm417, %v1053, %v1054
        %v1056 = vrot.slane %v929, 1
        %v1057 = vsel %vm417, %v1054, %v1056
        %v1090 = vadd.f32 %v845, %v980
        %v1091 = vadd.f32 %v846, %v982
        %v1092 = vadd.f32 %v847, %v985
        %v1093 = vadd.f32 %v848, %v987
        %v1094 = vadd.f32 %v849, %v990
        %v1095 = vadd.f32 %v850, %v992
        %v1096 = vadd.f32 %v851, %v995
        %v1097 = vadd.f32 %v852, %v997
        %v1098 = vadd.f32 %v853, %v1000
        %v1099 = vadd.f32 %v854, %v1002
        %v1100 = vadd.f32 %v855, %v1005
        %v1101 = vadd.f32 %v856, %v1007
        %v1102 = vadd.f32 %v857, %v1010
        %v1103 = vadd.f32 %v858, %v1012
        %v1104 = vadd.f32 %v859, %v1015
        %v1105 = vadd.f32 %v860, %v1017
        %v1106 = vadd.f32 %v861, %v1020
        %v1107 = vadd.f32 %v862, %v1022
        %v1108 = vadd.f32 %v863, %v1025
        %v1109 = vadd.f32 %v864, %v1027
        %v1110 = vadd.f32 %v865, %v1030
        %v1111 = vadd.f32 %v866, %v1032
        %v1112 = vadd.f32 %v867, %v1035
        %v1113 = vadd.f32 %v868, %v1037
        %v1114 = vadd.f32 %v869, %v1040
        %v1115 = vadd.f32 %v870, %v1042
        %v1116 = vadd.f32 %v871, %v1045
        %v1117 = vadd.f32 %v872, %v1047
        %v1118 = vadd.f32 %v873, %v1050
        %v1119 = vadd.f32 %v874, %v1052
        %v1120 = vadd.f32 %v875, %v1055
        %v1121 = vadd.f32 %v876, %v1057
        %v1122 = vld [vmem:[%s1 + $0x5] sm:$0x1]
        %v1123 = vlaneseq
        %v1124 = vshrl.u32 %v1123, 7
        %v1125 = vsub.s32 0, %v1124
        %v1126 = vrot.slane %v1122, %v1125
        %v1127 = vmul.f32 %v228, %v1126
        %v1128 = vmul.f32 %v229, %v1126
        %v1129 = vmul.f32 %v230, %v1126
        %v1130 = vmul.f32 %v231, %v1126
        %v1131 = vmul.f32 %v232, %v1126
        %v1132 = vmul.f32 %v233, %v1126
        %v1133 = vmul.f32 %v234, %v1126
        %v1134 = vmul.f32 %v235, %v1126
        %v1135 = vmul.f32 %v236, %v1126
        %v1136 = vmul.f32 %v237, %v1126
        %v1137 = vmul.f32 %v238, %v1126
        %v1138 = vmul.f32 %v239, %v1126
        %v1139 = vmul.f32 %v240, %v1126
        %v1140 = vmul.f32 %v241, %v1126
        %v1141 = vmul.f32 %v242, %v1126
        %v1142 = vmul.f32 %v243, %v1126
        %v1143 = vmul.f32 %v244, %v1126
        %v1144 = vmul.f32 %v245, %v1126
        %v1145 = vmul.f32 %v246, %v1126
        %v1146 = vmul.f32 %v247, %v1126
        %v1147 = vmul.f32 %v248, %v1126
        %v1148 = vmul.f32 %v249, %v1126
        %v1149 = vmul.f32 %v250, %v1126
        %v1150 = vmul.f32 %v251, %v1126
        %v1151 = vmul.f32 %v252, %v1126
        %v1152 = vmul.f32 %v253, %v1126
        %v1153 = vmul.f32 %v254, %v1126
        %v1154 = vmul.f32 %v255, %v1126
        %v1155 = vmul.f32 %v256, %v1126
        %v1156 = vmul.f32 %v257, %v1126
        %v1157 = vmul.f32 %v258, %v1126
        %v1158 = vmul.f32 %v259, %v1126
        %v1159 = vmul.f32 %v260, %v1126
        %v1160 = vmul.f32 %v261, %v1126
        %v1161 = vmul.f32 %v262, %v1126
        %v1162 = vmul.f32 %v263, %v1126
        %v1163 = vmul.f32 %v264, %v1126
        %v1164 = vmul.f32 %v265, %v1126
        %v1165 = vmul.f32 %v266, %v1126
        %v1166 = vmul.f32 %v267, %v1126
        %v1167 = vmul.f32 %v268, %v1126
        %v1168 = vmul.f32 %v269, %v1126
        %v1169 = vmul.f32 %v270, %v1126
        %v1170 = vmul.f32 %v271, %v1126
        %v1171 = vmul.f32 %v272, %v1126
        %v1172 = vmul.f32 %v273, %v1126
        %v1173 = vmul.f32 %v274, %v1126
        %v1174 = vmul.f32 %v275, %v1126
        %v1223 = vrot.slane %v1127, 2
        %v1224 = vrot.slane %v1128, 2
        %v1225 = vsel %vm663, %v1223, %v1224
        %v1226 = vrot.slane %v1129, 2
        %v1227 = vsel %vm663, %v1224, %v1226
        %v1228 = vrot.slane %v1130, 2
        %v1229 = vrot.slane %v1131, 2
        %v1230 = vsel %vm663, %v1228, %v1229
        %v1231 = vrot.slane %v1132, 2
        %v1232 = vsel %vm663, %v1229, %v1231
        %v1233 = vrot.slane %v1133, 2
        %v1234 = vrot.slane %v1134, 2
        %v1235 = vsel %vm663, %v1233, %v1234
        %v1236 = vrot.slane %v1135, 2
        %v1237 = vsel %vm663, %v1234, %v1236
        %v1238 = vrot.slane %v1136, 2
        %v1239 = vrot.slane %v1137, 2
        %v1240 = vsel %vm663, %v1238, %v1239
        %v1241 = vrot.slane %v1138, 2
        %v1242 = vsel %vm663, %v1239, %v1241
        %v1243 = vrot.slane %v1139, 2
        %v1244 = vrot.slane %v1140, 2
        %v1245 = vsel %vm663, %v1243, %v1244
        %v1246 = vrot.slane %v1141, 2
        %v1247 = vsel %vm663, %v1244, %v1246
        %v1248 = vrot.slane %v1142, 2
        %v1249 = vrot.slane %v1143, 2
        %v1250 = vsel %vm663, %v1248, %v1249
        %v1251 = vrot.slane %v1144, 2
        %v1252 = vsel %vm663, %v1249, %v1251
        %v1253 = vrot.slane %v1145, 2
        %v1254 = vrot.slane %v1146, 2
        %v1255 = vsel %vm663, %v1253, %v1254
        %v1256 = vrot.slane %v1147, 2
        %v1257 = vsel %vm663, %v1254, %v1256
        %v1258 = vrot.slane %v1148, 2
        %v1259 = vrot.slane %v1149, 2
        %v1260 = vsel %vm663, %v1258, %v1259
        %v1261 = vrot.slane %v1150, 2
        %v1262 = vsel %vm663, %v1259, %v1261
        %v1263 = vrot.slane %v1151, 2
        %v1264 = vrot.slane %v1152, 2
        %v1265 = vsel %vm663, %v1263, %v1264
        %v1266 = vrot.slane %v1153, 2
        %v1267 = vsel %vm663, %v1264, %v1266
        %v1268 = vrot.slane %v1154, 2
        %v1269 = vrot.slane %v1155, 2
        %v1270 = vsel %vm663, %v1268, %v1269
        %v1271 = vrot.slane %v1156, 2
        %v1272 = vsel %vm663, %v1269, %v1271
        %v1273 = vrot.slane %v1157, 2
        %v1274 = vrot.slane %v1158, 2
        %v1275 = vsel %vm663, %v1273, %v1274
        %v1276 = vrot.slane %v1159, 2
        %v1277 = vsel %vm663, %v1274, %v1276
        %v1278 = vrot.slane %v1160, 2
        %v1279 = vrot.slane %v1161, 2
        %v1280 = vsel %vm663, %v1278, %v1279
        %v1281 = vrot.slane %v1162, 2
        %v1282 = vsel %vm663, %v1279, %v1281
        %v1283 = vrot.slane %v1163, 2
        %v1284 = vrot.slane %v1164, 2
        %v1285 = vsel %vm663, %v1283, %v1284
        %v1286 = vrot.slane %v1165, 2
        %v1287 = vsel %vm663, %v1284, %v1286
        %v1288 = vrot.slane %v1166, 2
        %v1289 = vrot.slane %v1167, 2
        %v1290 = vsel %vm663, %v1288, %v1289
        %v1291 = vrot.slane %v1168, 2
        %v1292 = vsel %vm663, %v1289, %v1291
        %v1293 = vrot.slane %v1169, 2
        %v1294 = vrot.slane %v1170, 2
        %v1295 = vsel %vm663, %v1293, %v1294
        %v1296 = vrot.slane %v1171, 2
        %v1297 = vsel %vm663, %v1294, %v1296
        %v1298 = vrot.slane %v1172, 2
        %v1299 = vrot.slane %v1173, 2
        %v1300 = vsel %vm663, %v1298, %v1299
        %v1301 = vrot.slane %v1174, 2
        %v1302 = vsel %vm663, %v1299, %v1301
        %v1335 = vadd.f32 %v1090, %v1225
        %v1336 = vadd.f32 %v1091, %v1227
        %v1337 = vadd.f32 %v1092, %v1230
        %v1338 = vadd.f32 %v1093, %v1232
        %v1339 = vadd.f32 %v1094, %v1235
        %v1340 = vadd.f32 %v1095, %v1237
        %v1341 = vadd.f32 %v1096, %v1240
        %v1342 = vadd.f32 %v1097, %v1242
        %v1343 = vadd.f32 %v1098, %v1245
        %v1344 = vadd.f32 %v1099, %v1247
        %v1345 = vadd.f32 %v1100, %v1250
        %v1346 = vadd.f32 %v1101, %v1252
        %v1347 = vadd.f32 %v1102, %v1255
        %v1348 = vadd.f32 %v1103, %v1257
        %v1349 = vadd.f32 %v1104, %v1260
        %v1350 = vadd.f32 %v1105, %v1262
        %v1351 = vadd.f32 %v1106, %v1265
        %v1352 = vadd.f32 %v1107, %v1267
        %v1353 = vadd.f32 %v1108, %v1270
        %v1354 = vadd.f32 %v1109, %v1272
        %v1355 = vadd.f32 %v1110, %v1275
        %v1356 = vadd.f32 %v1111, %v1277
        %v1357 = vadd.f32 %v1112, %v1280
        %v1358 = vadd.f32 %v1113, %v1282
        %v1359 = vadd.f32 %v1114, %v1285
        %v1360 = vadd.f32 %v1115, %v1287
        %v1361 = vadd.f32 %v1116, %v1290
        %v1362 = vadd.f32 %v1117, %v1292
        %v1363 = vadd.f32 %v1118, %v1295
        %v1364 = vadd.f32 %v1119, %v1297
        %v1365 = vadd.f32 %v1120, %v1300
        %v1366 = vadd.f32 %v1121, %v1302
        %v1367 = vld [vmem:[%s1 + $0x6] sm:$0x1]
        %v1368 = vlaneseq
        %v1369 = vshrl.u32 %v1368, 7
        %v1370 = vsub.s32 0, %v1369
        %v1371 = vrot.slane %v1367, %v1370
        %v1372 = vmul.f32 %v231, %v1371
        %v1373 = vmul.f32 %v232, %v1371
        %v1374 = vmul.f32 %v234, %v1371
        %v1375 = vmul.f32 %v235, %v1371
        %v1376 = vmul.f32 %v237, %v1371
        %v1377 = vmul.f32 %v238, %v1371
        %v1378 = vmul.f32 %v240, %v1371
        %v1379 = vmul.f32 %v241, %v1371
        %v1380 = vmul.f32 %v243, %v1371
        %v1381 = vmul.f32 %v244, %v1371
        %v1382 = vmul.f32 %v246, %v1371
        %v1383 = vmul.f32 %v247, %v1371
        %v1384 = vmul.f32 %v249, %v1371
        %v1385 = vmul.f32 %v250, %v1371
        %v1386 = vmul.f32 %v252, %v1371
        %v1387 = vmul.f32 %v253, %v1371
        %v1388 = vmul.f32 %v255, %v1371
        %v1389 = vmul.f32 %v256, %v1371
        %v1390 = vmul.f32 %v258, %v1371
        %v1391 = vmul.f32 %v259, %v1371
        %v1392 = vmul.f32 %v261, %v1371
        %v1393 = vmul.f32 %v262, %v1371
        %v1394 = vmul.f32 %v264, %v1371
        %v1395 = vmul.f32 %v265, %v1371
        %v1396 = vmul.f32 %v267, %v1371
        %v1397 = vmul.f32 %v268, %v1371
        %v1398 = vmul.f32 %v270, %v1371
        %v1399 = vmul.f32 %v271, %v1371
        %v1400 = vmul.f32 %v273, %v1371
        %v1401 = vmul.f32 %v274, %v1371
        %v1402 = vmul.f32 %v276, %v1371
        %v1403 = vmul.f32 %v277, %v1371
        %v1404 = vadd.f32 %v1335, %v1372
        %v1405 = vadd.f32 %v1336, %v1373
        %v1406 = vadd.f32 %v1337, %v1374
        %v1407 = vadd.f32 %v1338, %v1375
        %v1408 = vadd.f32 %v1339, %v1376
        %v1409 = vadd.f32 %v1340, %v1377
        %v1410 = vadd.f32 %v1341, %v1378
        %v1411 = vadd.f32 %v1342, %v1379
        %v1412 = vadd.f32 %v1343, %v1380
        %v1413 = vadd.f32 %v1344, %v1381
        %v1414 = vadd.f32 %v1345, %v1382
        %v1415 = vadd.f32 %v1346, %v1383
        %v1416 = vadd.f32 %v1347, %v1384
        %v1417 = vadd.f32 %v1348, %v1385
        %v1418 = vadd.f32 %v1349, %v1386
        %v1419 = vadd.f32 %v1350, %v1387
        %v1420 = vadd.f32 %v1351, %v1388
        %v1421 = vadd.f32 %v1352, %v1389
        %v1422 = vadd.f32 %v1353, %v1390
        %v1423 = vadd.f32 %v1354, %v1391
        %v1424 = vadd.f32 %v1355, %v1392
        %v1425 = vadd.f32 %v1356, %v1393
        %v1426 = vadd.f32 %v1357, %v1394
        %v1427 = vadd.f32 %v1358, %v1395
        %v1428 = vadd.f32 %v1359, %v1396
        %v1429 = vadd.f32 %v1360, %v1397
        %v1430 = vadd.f32 %v1361, %v1398
        %v1431 = vadd.f32 %v1362, %v1399
        %v1432 = vadd.f32 %v1363, %v1400
        %v1433 = vadd.f32 %v1364, %v1401
        %v1434 = vadd.f32 %v1365, %v1402
        %v1435 = vadd.f32 %v1366, %v1403
        %v1436 = vld [vmem:[%s1 + $0x7] sm:$0x1]
        %v1437 = vlaneseq
        %v1438 = vshrl.u32 %v1437, 7
        %v1439 = vsub.s32 0, %v1438
        %v1440 = vrot.slane %v1436, %v1439
        %v1441 = vmul.f32 %v231, %v1440
        %v1442 = vmul.f32 %v232, %v1440
        %v1443 = vmul.f32 %v233, %v1440
        %v1444 = vmul.f32 %v234, %v1440
        %v1445 = vmul.f32 %v235, %v1440
        %v1446 = vmul.f32 %v236, %v1440
        %v1447 = vmul.f32 %v237, %v1440
        %v1448 = vmul.f32 %v238, %v1440
        %v1449 = vmul.f32 %v239, %v1440
        %v1450 = vmul.f32 %v240, %v1440
        %v1451 = vmul.f32 %v241, %v1440
        %v1452 = vmul.f32 %v242, %v1440
        %v1453 = vmul.f32 %v243, %v1440
        %v1454 = vmul.f32 %v244, %v1440
        %v1455 = vmul.f32 %v245, %v1440
        %v1456 = vmul.f32 %v246, %v1440
        %v1457 = vmul.f32 %v247, %v1440
        %v1458 = vmul.f32 %v248, %v1440
        %v1459 = vmul.f32 %v249, %v1440
        %v1460 = vmul.f32 %v250, %v1440
        %v1461 = vmul.f32 %v251, %v1440
        %v1462 = vmul.f32 %v252, %v1440
        %v1463 = vmul.f32 %v253, %v1440
        %v1464 = vmul.f32 %v254, %v1440
        %v1465 = vmul.f32 %v255, %v1440
        %v1466 = vmul.f32 %v256, %v1440
        %v1467 = vmul.f32 %v257, %v1440
        %v1468 = vmul.f32 %v258, %v1440
        %v1469 = vmul.f32 %v259, %v1440
        %v1470 = vmul.f32 %v260, %v1440
        %v1471 = vmul.f32 %v261, %v1440
        %v1472 = vmul.f32 %v262, %v1440
        %v1473 = vmul.f32 %v263, %v1440
        %v1474 = vmul.f32 %v264, %v1440
        %v1475 = vmul.f32 %v265, %v1440
        %v1476 = vmul.f32 %v266, %v1440
        %v1477 = vmul.f32 %v267, %v1440
        %v1478 = vmul.f32 %v268, %v1440
        %v1479 = vmul.f32 %v269, %v1440
        %v1480 = vmul.f32 %v270, %v1440
        %v1481 = vmul.f32 %v271, %v1440
        %v1482 = vmul.f32 %v272, %v1440
        %v1483 = vmul.f32 %v273, %v1440
        %v1484 = vmul.f32 %v274, %v1440
        %v1485 = vmul.f32 %v275, %v1440
        %v1486 = vmul.f32 %v276, %v1440
        %v1487 = vmul.f32 %v277, %v1440
        %v1488 = vmul.f32 %v278, %v1440
        %v1537 = vrot.slane %v1441, 1
        %v1538 = vrot.slane %v1442, 1
        %v1539 = vsel %vm417, %v1537, %v1538
        %v1540 = vrot.slane %v1443, 1
        %v1541 = vsel %vm417, %v1538, %v1540
        %v1542 = vrot.slane %v1444, 1
        %v1543 = vrot.slane %v1445, 1
        %v1544 = vsel %vm417, %v1542, %v1543
        %v1545 = vrot.slane %v1446, 1
        %v1546 = vsel %vm417, %v1543, %v1545
        %v1547 = vrot.slane %v1447, 1
        %v1548 = vrot.slane %v1448, 1
        %v1549 = vsel %vm417, %v1547, %v1548
        %v1550 = vrot.slane %v1449, 1
        %v1551 = vsel %vm417, %v1548, %v1550
        %v1552 = vrot.slane %v1450, 1
        %v1553 = vrot.slane %v1451, 1
        %v1554 = vsel %vm417, %v1552, %v1553
        %v1555 = vrot.slane %v1452, 1
        %v1556 = vsel %vm417, %v1553, %v1555
        %v1557 = vrot.slane %v1453, 1
        %v1558 = vrot.slane %v1454, 1
        %v1559 = vsel %vm417, %v1557, %v1558
        %v1560 = vrot.slane %v1455, 1
        %v1561 = vsel %vm417, %v1558, %v1560
        %v1562 = vrot.slane %v1456, 1
        %v1563 = vrot.slane %v1457, 1
        %v1564 = vsel %vm417, %v1562, %v1563
        %v1565 = vrot.slane %v1458, 1
        %v1566 = vsel %vm417, %v1563, %v1565
        %v1567 = vrot.slane %v1459, 1
        %v1568 = vrot.slane %v1460, 1
        %v1569 = vsel %vm417, %v1567, %v1568
        %v1570 = vrot.slane %v1461, 1
        %v1571 = vsel %vm417, %v1568, %v1570
        %v1572 = vrot.slane %v1462, 1
        %v1573 = vrot.slane %v1463, 1
        %v1574 = vsel %vm417, %v1572, %v1573
        %v1575 = vrot.slane %v1464, 1
        %v1576 = vsel %vm417, %v1573, %v1575
        %v1577 = vrot.slane %v1465, 1
        %v1578 = vrot.slane %v1466, 1
        %v1579 = vsel %vm417, %v1577, %v1578
        %v1580 = vrot.slane %v1467, 1
        %v1581 = vsel %vm417, %v1578, %v1580
        %v1582 = vrot.slane %v1468, 1
        %v1583 = vrot.slane %v1469, 1
        %v1584 = vsel %vm417, %v1582, %v1583
        %v1585 = vrot.slane %v1470, 1
        %v1586 = vsel %vm417, %v1583, %v1585
        %v1587 = vrot.slane %v1471, 1
        %v1588 = vrot.slane %v1472, 1
        %v1589 = vsel %vm417, %v1587, %v1588
        %v1590 = vrot.slane %v1473, 1
        %v1591 = vsel %vm417, %v1588, %v1590
        %v1592 = vrot.slane %v1474, 1
        %v1593 = vrot.slane %v1475, 1
        %v1594 = vsel %vm417, %v1592, %v1593
        %v1595 = vrot.slane %v1476, 1
        %v1596 = vsel %vm417, %v1593, %v1595
        %v1597 = vrot.slane %v1477, 1
        %v1598 = vrot.slane %v1478, 1
        %v1599 = vsel %vm417, %v1597, %v1598
        %v1600 = vrot.slane %v1479, 1
        %v1601 = vsel %vm417, %v1598, %v1600
        %v1602 = vrot.slane %v1480, 1
        %v1603 = vrot.slane %v1481, 1
        %v1604 = vsel %vm417, %v1602, %v1603
        %v1605 = vrot.slane %v1482, 1
        %v1606 = vsel %vm417, %v1603, %v1605
        %v1607 = vrot.slane %v1483, 1
        %v1608 = vrot.slane %v1484, 1
        %v1609 = vsel %vm417, %v1607, %v1608
        %v1610 = vrot.slane %v1485, 1
        %v1611 = vsel %vm417, %v1608, %v1610
        %v1612 = vrot.slane %v1486, 1
        %v1613 = vrot.slane %v1487, 1
        %v1614 = vsel %vm417, %v1612, %v1613
        %v1615 = vrot.slane %v1488, 1
        %v1616 = vsel %vm417, %v1613, %v1615
        %v1649 = vadd.f32 %v1404, %v1539
        %v1650 = vadd.f32 %v1405, %v1541
        %v1651 = vadd.f32 %v1406, %v1544
        %v1652 = vadd.f32 %v1407, %v1546
        %v1653 = vadd.f32 %v1408, %v1549
        %v1654 = vadd.f32 %v1409, %v1551
        %v1655 = vadd.f32 %v1410, %v1554
        %v1656 = vadd.f32 %v1411, %v1556
        %v1657 = vadd.f32 %v1412, %v1559
        %v1658 = vadd.f32 %v1413, %v1561
        %v1659 = vadd.f32 %v1414, %v1564
        %v1660 = vadd.f32 %v1415, %v1566
        %v1661 = vadd.f32 %v1416, %v1569
        %v1662 = vadd.f32 %v1417, %v1571
        %v1663 = vadd.f32 %v1418, %v1574
        %v1664 = vadd.f32 %v1419, %v1576
        %v1665 = vadd.f32 %v1420, %v1579
        %v1666 = vadd.f32 %v1421, %v1581
        %v1667 = vadd.f32 %v1422, %v1584
        %v1668 = vadd.f32 %v1423, %v1586
        %v1669 = vadd.f32 %v1424, %v1589
        %v1670 = vadd.f32 %v1425, %v1591
        %v1671 = vadd.f32 %v1426, %v1594
        %v1672 = vadd.f32 %v1427, %v1596
        %v1673 = vadd.f32 %v1428, %v1599
        %v1674 = vadd.f32 %v1429, %v1601
        %v1675 = vadd.f32 %v1430, %v1604
        %v1676 = vadd.f32 %v1431, %v1606
        %v1677 = vadd.f32 %v1432, %v1609
        %v1678 = vadd.f32 %v1433, %v1611
        %v1679 = vadd.f32 %v1434, %v1614
        %v1680 = vadd.f32 %v1435, %v1616
        %v1681 = vld [vmem:[%s1 + $0x8] sm:$0x1]
        %v1682 = vlaneseq
        %v1683 = vshrl.u32 %v1682, 7
        %v1684 = vsub.s32 0, %v1683
        %v1685 = vrot.slane %v1681, %v1684
        %v1686 = vmul.f32 %v231, %v1685
        %v1687 = vmul.f32 %v232, %v1685
        %v1688 = vmul.f32 %v233, %v1685
        %v1689 = vmul.f32 %v234, %v1685
        %v1690 = vmul.f32 %v235, %v1685
        %v1691 = vmul.f32 %v236, %v1685
        %v1692 = vmul.f32 %v237, %v1685
        %v1693 = vmul.f32 %v238, %v1685
        %v1694 = vmul.f32 %v239, %v1685
        %v1695 = vmul.f32 %v240, %v1685
        %v1696 = vmul.f32 %v241, %v1685
        %v1697 = vmul.f32 %v242, %v1685
        %v1698 = vmul.f32 %v243, %v1685
        %v1699 = vmul.f32 %v244, %v1685
        %v1700 = vmul.f32 %v245, %v1685
        %v1701 = vmul.f32 %v246, %v1685
        %v1702 = vmul.f32 %v247, %v1685
        %v1703 = vmul.f32 %v248, %v1685
        %v1704 = vmul.f32 %v249, %v1685
        %v1705 = vmul.f32 %v250, %v1685
        %v1706 = vmul.f32 %v251, %v1685
        %v1707 = vmul.f32 %v252, %v1685
        %v1708 = vmul.f32 %v253, %v1685
        %v1709 = vmul.f32 %v254, %v1685
        %v1710 = vmul.f32 %v255, %v1685
        %v1711 = vmul.f32 %v256, %v1685
        %v1712 = vmul.f32 %v257, %v1685
        %v1713 = vmul.f32 %v258, %v1685
        %v1714 = vmul.f32 %v259, %v1685
        %v1715 = vmul.f32 %v260, %v1685
        %v1716 = vmul.f32 %v261, %v1685
        %v1717 = vmul.f32 %v262, %v1685
        %v1718 = vmul.f32 %v263, %v1685
        %v1719 = vmul.f32 %v264, %v1685
        %v1720 = vmul.f32 %v265, %v1685
        %v1721 = vmul.f32 %v266, %v1685
        %v1722 = vmul.f32 %v267, %v1685
        %v1723 = vmul.f32 %v268, %v1685
        %v1724 = vmul.f32 %v269, %v1685
        %v1725 = vmul.f32 %v270, %v1685
        %v1726 = vmul.f32 %v271, %v1685
        %v1727 = vmul.f32 %v272, %v1685
        %v1728 = vmul.f32 %v273, %v1685
        %v1729 = vmul.f32 %v274, %v1685
        %v1730 = vmul.f32 %v275, %v1685
        %v1731 = vmul.f32 %v276, %v1685
        %v1732 = vmul.f32 %v277, %v1685
        %v1733 = vmul.f32 %v278, %v1685
        %v1782 = vrot.slane %v1686, 2
        %v1783 = vrot.slane %v1687, 2
        %v1784 = vsel %vm663, %v1782, %v1783
        %v1785 = vrot.slane %v1688, 2
        %v1786 = vsel %vm663, %v1783, %v1785
        %v1787 = vrot.slane %v1689, 2
        %v1788 = vrot.slane %v1690, 2
        %v1789 = vsel %vm663, %v1787, %v1788
        %v1790 = vrot.slane %v1691, 2
        %v1791 = vsel %vm663, %v1788, %v1790
        %v1792 = vrot.slane %v1692, 2
        %v1793 = vrot.slane %v1693, 2
        %v1794 = vsel %vm663, %v1792, %v1793
        %v1795 = vrot.slane %v1694, 2
        %v1796 = vsel %vm663, %v1793, %v1795
        %v1797 = vrot.slane %v1695, 2
        %v1798 = vrot.slane %v1696, 2
        %v1799 = vsel %vm663, %v1797, %v1798
        %v1800 = vrot.slane %v1697, 2
        %v1801 = vsel %vm663, %v1798, %v1800
        %v1802 = vrot.slane %v1698, 2
        %v1803 = vrot.slane %v1699, 2
        %v1804 = vsel %vm663, %v1802, %v1803
        %v1805 = vrot.slane %v1700, 2
        %v1806 = vsel %vm663, %v1803, %v1805
        %v1807 = vrot.slane %v1701, 2
        %v1808 = vrot.slane %v1702, 2
        %v1809 = vsel %vm663, %v1807, %v1808
        %v1810 = vrot.slane %v1703, 2
        %v1811 = vsel %vm663, %v1808, %v1810
        %v1812 = vrot.slane %v1704, 2
        %v1813 = vrot.slane %v1705, 2
        %v1814 = vsel %vm663, %v1812, %v1813
        %v1815 = vrot.slane %v1706, 2
        %v1816 = vsel %vm663, %v1813, %v1815
        %v1817 = vrot.slane %v1707, 2
        %v1818 = vrot.slane %v1708, 2
        %v1819 = vsel %vm663, %v1817, %v1818
        %v1820 = vrot.slane %v1709, 2
        %v1821 = vsel %vm663, %v1818, %v1820
        %v1822 = vrot.slane %v1710, 2
        %v1823 = vrot.slane %v1711, 2
        %v1824 = vsel %vm663, %v1822, %v1823
        %v1825 = vrot.slane %v1712, 2
        %v1826 = vsel %vm663, %v1823, %v1825
        %v1827 = vrot.slane %v1713, 2
        %v1828 = vrot.slane %v1714, 2
        %v1829 = vsel %vm663, %v1827, %v1828
        %v1830 = vrot.slane %v1715, 2
        %v1831 = vsel %vm663, %v1828, %v1830
        %v1832 = vrot.slane %v1716, 2
        %v1833 = vrot.slane %v1717, 2
        %v1834 = vsel %vm663, %v1832, %v1833
        %v1835 = vrot.slane %v1718, 2
        %v1836 = vsel %vm663, %v1833, %v1835
        %v1837 = vrot.slane %v1719, 2
        %v1838 = vrot.slane %v1720, 2
        %v1839 = vsel %vm663, %v1837, %v1838
        %v1840 = vrot.slane %v1721, 2
        %v1841 = vsel %vm663, %v1838, %v1840
        %v1842 = vrot.slane %v1722, 2
        %v1843 = vrot.slane %v1723, 2
        %v1844 = vsel %vm663, %v1842, %v1843
        %v1845 = vrot.slane %v1724, 2
        %v1846 = vsel %vm663, %v1843, %v1845
        %v1847 = vrot.slane %v1725, 2
        %v1848 = vrot.slane %v1726, 2
        %v1849 = vsel %vm663, %v1847, %v1848
        %v1850 = vrot.slane %v1727, 2
        %v1851 = vsel %vm663, %v1848, %v1850
        %v1852 = vrot.slane %v1728, 2
        %v1853 = vrot.slane %v1729, 2
        %v1854 = vsel %vm663, %v1852, %v1853
        %v1855 = vrot.slane %v1730, 2
        %v1856 = vsel %vm663, %v1853, %v1855
        %v1857 = vrot.slane %v1731, 2
        %v1858 = vrot.slane %v1732, 2
        %v1859 = vsel %vm663, %v1857, %v1858
        %v1860 = vrot.slane %v1733, 2
        %v1861 = vsel %vm663, %v1858, %v1860
        %v1894 = vadd.f32 %v1649, %v1784
        %v1895 = vadd.f32 %v1650, %v1786
        %v1896 = vadd.f32 %v1651, %v1789
        %v1897 = vadd.f32 %v1652, %v1791
        %v1898 = vadd.f32 %v1653, %v1794
        %v1899 = vadd.f32 %v1654, %v1796
        %v1900 = vadd.f32 %v1655, %v1799
        %v1901 = vadd.f32 %v1656, %v1801
        %v1902 = vadd.f32 %v1657, %v1804
        %v1903 = vadd.f32 %v1658, %v1806
        %v1904 = vadd.f32 %v1659, %v1809
        %v1905 = vadd.f32 %v1660, %v1811
        %v1906 = vadd.f32 %v1661, %v1814
        %v1907 = vadd.f32 %v1662, %v1816
        %v1908 = vadd.f32 %v1663, %v1819
        %v1909 = vadd.f32 %v1664, %v1821
        %v1910 = vadd.f32 %v1665, %v1824
        %v1911 = vadd.f32 %v1666, %v1826
        %v1912 = vadd.f32 %v1667, %v1829
        %v1913 = vadd.f32 %v1668, %v1831
        %v1914 = vadd.f32 %v1669, %v1834
        %v1915 = vadd.f32 %v1670, %v1836
        %v1916 = vadd.f32 %v1671, %v1839
        %v1917 = vadd.f32 %v1672, %v1841
        %v1918 = vadd.f32 %v1673, %v1844
        %v1919 = vadd.f32 %v1674, %v1846
        %v1920 = vadd.f32 %v1675, %v1849
        %v1921 = vadd.f32 %v1676, %v1851
        %v1922 = vadd.f32 %v1677, %v1854
        %v1923 = vadd.f32 %v1678, %v1856
        %v1924 = vadd.f32 %v1679, %v1859
        %v1925 = vadd.f32 %v1680, %v1861
        %vm1926 = vcmask 64512
        %v1927 = vsel %vm1926, %v1894, 0.0
        %1928 = vadd.xlane.f32.xlu0 %v1927
        %v1929 = vpop.xlane.xlu0 %1928
        %v1930 = vsel %vm1926, %v1895, 0.0
        %1931 = vadd.xlane.f32.xlu0 %v1930
        %v1932 = vpop.xlane.xlu0 %1931
        %v1933 = vsel %vm1926, %v1896, 0.0
        %1934 = vadd.xlane.f32.xlu0 %v1933
        %v1935 = vpop.xlane.xlu0 %1934
        %v1936 = vsel %vm1926, %v1897, 0.0
        %1937 = vadd.xlane.f32.xlu0 %v1936
        %v1938 = vpop.xlane.xlu0 %1937
        %v1939 = vsel %vm1926, %v1898, 0.0
        %1940 = vadd.xlane.f32.xlu0 %v1939
        %v1941 = vpop.xlane.xlu0 %1940
        %v1942 = vsel %vm1926, %v1899, 0.0
        %1943 = vadd.xlane.f32.xlu0 %v1942
        %v1944 = vpop.xlane.xlu0 %1943
        %v1945 = vsel %vm1926, %v1900, 0.0
        %1946 = vadd.xlane.f32.xlu0 %v1945
        %v1947 = vpop.xlane.xlu0 %1946
        %v1948 = vsel %vm1926, %v1901, 0.0
        %1949 = vadd.xlane.f32.xlu0 %v1948
        %v1950 = vpop.xlane.xlu0 %1949
        %v1951 = vsel %vm1926, %v1902, 0.0
        %1952 = vadd.xlane.f32.xlu0 %v1951
        %v1953 = vpop.xlane.xlu0 %1952
        %v1954 = vsel %vm1926, %v1903, 0.0
        %1955 = vadd.xlane.f32.xlu0 %v1954
        %v1956 = vpop.xlane.xlu0 %1955
        %v1957 = vsel %vm1926, %v1904, 0.0
        %1958 = vadd.xlane.f32.xlu0 %v1957
        %v1959 = vpop.xlane.xlu0 %1958
        %v1960 = vsel %vm1926, %v1905, 0.0
        %1961 = vadd.xlane.f32.xlu0 %v1960
        %v1962 = vpop.xlane.xlu0 %1961
        %v1963 = vsel %vm1926, %v1906, 0.0
        %1964 = vadd.xlane.f32.xlu0 %v1963
        %v1965 = vpop.xlane.xlu0 %1964
        %v1966 = vsel %vm1926, %v1907, 0.0
        %1967 = vadd.xlane.f32.xlu0 %v1966
        %v1968 = vpop.xlane.xlu0 %1967
        %v1969 = vsel %vm1926, %v1908, 0.0
        %1970 = vadd.xlane.f32.xlu0 %v1969
        %v1971 = vpop.xlane.xlu0 %1970
        %v1972 = vsel %vm1926, %v1909, 0.0
        %1973 = vadd.xlane.f32.xlu0 %v1972
        %v1974 = vpop.xlane.xlu0 %1973
        %v1975 = vsel %vm1926, %v1910, 0.0
        %1976 = vadd.xlane.f32.xlu0 %v1975
        %v1977 = vpop.xlane.xlu0 %1976
        %v1978 = vsel %vm1926, %v1911, 0.0
        %1979 = vadd.xlane.f32.xlu0 %v1978
        %v1980 = vpop.xlane.xlu0 %1979
        %v1981 = vsel %vm1926, %v1912, 0.0
        %1982 = vadd.xlane.f32.xlu0 %v1981
        %v1983 = vpop.xlane.xlu0 %1982
        %v1984 = vsel %vm1926, %v1913, 0.0
        %1985 = vadd.xlane.f32.xlu0 %v1984
        %v1986 = vpop.xlane.xlu0 %1985
        %v1987 = vsel %vm1926, %v1914, 0.0
        %1988 = vadd.xlane.f32.xlu0 %v1987
        %v1989 = vpop.xlane.xlu0 %1988
        %v1990 = vsel %vm1926, %v1915, 0.0
        %1991 = vadd.xlane.f32.xlu0 %v1990
        %v1992 = vpop.xlane.xlu0 %1991
        %v1993 = vsel %vm1926, %v1916, 0.0
        %1994 = vadd.xlane.f32.xlu0 %v1993
        %v1995 = vpop.xlane.xlu0 %1994
        %v1996 = vsel %vm1926, %v1917, 0.0
        %1997 = vadd.xlane.f32.xlu0 %v1996
        %v1998 = vpop.xlane.xlu0 %1997
        %v1999 = vsel %vm1926, %v1918, 0.0
        %2000 = vadd.xlane.f32.xlu0 %v1999
        %v2001 = vpop.xlane.xlu0 %2000
        %v2002 = vsel %vm1926, %v1919, 0.0
        %2003 = vadd.xlane.f32.xlu0 %v2002
        %v2004 = vpop.xlane.xlu0 %2003
        %v2005 = vsel %vm1926, %v1920, 0.0
        %2006 = vadd.xlane.f32.xlu0 %v2005
        %v2007 = vpop.xlane.xlu0 %2006
        %v2008 = vsel %vm1926, %v1921, 0.0
        %2009 = vadd.xlane.f32.xlu0 %v2008
        %v2010 = vpop.xlane.xlu0 %2009
        %v2011 = vsel %vm1926, %v1922, 0.0
        %2012 = vadd.xlane.f32.xlu0 %v2011
        %v2013 = vpop.xlane.xlu0 %2012
        %v2014 = vsel %vm1926, %v1923, 0.0
        %2015 = vadd.xlane.f32.xlu0 %v2014
        %v2016 = vpop.xlane.xlu0 %2015
        %v2017 = vsel %vm1926, %v1924, 0.0
        %2018 = vadd.xlane.f32.xlu0 %v2017
        %v2019 = vpop.xlane.xlu0 %2018
        %v2020 = vsel %vm1926, %v1925, 0.0
        %2021 = vadd.xlane.f32.xlu0 %v2020
        %v2022 = vpop.xlane.xlu0 %2021
        %v2023 = vld [vmem:[#allocation2] sm:$0x1]
        %v2025 = vlaneseq
        %v2026 = vshrl.u32 %v2025, 7
        %v2027 = vsub.s32 0, %v2026
        %v2028 = vrot.slane %v2023, %v2027
        %2029 = vset.pattern.permute.xlu0 0
        %2030 = vperm.xlu0 %2029, %v2028
        %v2031 = vpop.permute.xlu0 %2030
        %v2033 = vadd.f32 %v1929, %v2031
        %v2034 = vadd.f32 %v1932, %v2031
        %v2035 = vadd.f32 %v1935, %v2031
        %v2036 = vadd.f32 %v1938, %v2031
        %v2037 = vadd.f32 %v1941, %v2031
        %v2038 = vadd.f32 %v1944, %v2031
        %v2039 = vadd.f32 %v1947, %v2031
        %v2040 = vadd.f32 %v1950, %v2031
        %v2041 = vadd.f32 %v1953, %v2031
        %v2042 = vadd.f32 %v1956, %v2031
        %v2043 = vadd.f32 %v1959, %v2031
        %v2044 = vadd.f32 %v1962, %v2031
        %v2045 = vadd.f32 %v1965, %v2031
        %v2046 = vadd.f32 %v1968, %v2031
        %v2047 = vadd.f32 %v1971, %v2031
        %v2048 = vadd.f32 %v1974, %v2031
        %v2049 = vadd.f32 %v1977, %v2031
        %v2050 = vadd.f32 %v1980, %v2031
        %v2051 = vadd.f32 %v1983, %v2031
        %v2052 = vadd.f32 %v1986, %v2031
        %v2053 = vadd.f32 %v1989, %v2031
        %v2054 = vadd.f32 %v1992, %v2031
        %v2055 = vadd.f32 %v1995, %v2031
        %v2056 = vadd.f32 %v1998, %v2031
        %v2057 = vadd.f32 %v2001, %v2031
        %v2058 = vadd.f32 %v2004, %v2031
        %v2059 = vadd.f32 %v2007, %v2031
        %v2060 = vadd.f32 %v2010, %v2031
        %v2061 = vadd.f32 %v2013, %v2031
        %v2062 = vadd.f32 %v2016, %v2031
        %v2063 = vadd.f32 %v2019, %v2031
        %v2064 = vadd.f32 %v2022, %v2031
        %v2097 = vlaneseq
        %v2098 = vand.u32 %v2097, 127
        %v2099 = vlaneseq
        %v2100 = vshrl.u32 %v2099, 7
        %v2101 = vsub.s32 %v2098, %v2100
        %v2102 = vrot.slane %v2033, %v2101
        %v2103 = vadd.s32 %v2098, 4294967288
        %v2104 = vlaneseq
        %v2105 = vshrl.u32 %v2104, 7
        %v2106 = vsub.s32 %v2103, %v2105
        %v2107 = vrot.slane %v2034, %v2106
        %vm2108 = vcmask 130112
        %v2109 = vsel %vm2108, %v2107, %v2102
        %v2110 = vlaneseq
        %v2111 = vshrl.u32 %v2110, 7
        %v2112 = vsub.s32 %v2098, %v2111
        %v2113 = vrot.slane %v2035, %v2112
        %v2114 = vlaneseq
        %v2115 = vshrl.u32 %v2114, 7
        %v2116 = vsub.s32 %v2103, %v2115
        %v2117 = vrot.slane %v2036, %v2116
        %v2118 = vsel %vm2108, %v2117, %v2113
        %v2119 = vlaneseq
        %v2120 = vshrl.u32 %v2119, 7
        %v2121 = vsub.s32 %v2098, %v2120
        %v2122 = vrot.slane %v2037, %v2121
        %v2123 = vlaneseq
        %v2124 = vshrl.u32 %v2123, 7
        %v2125 = vsub.s32 %v2103, %v2124
        %v2126 = vrot.slane %v2038, %v2125
        %v2127 = vsel %vm2108, %v2126, %v2122
        %v2128 = vlaneseq
        %v2129 = vshrl.u32 %v2128, 7
        %v2130 = vsub.s32 %v2098, %v2129
        %v2131 = vrot.slane %v2039, %v2130
        %v2132 = vlaneseq
        %v2133 = vshrl.u32 %v2132, 7
        %v2134 = vsub.s32 %v2103, %v2133
        %v2135 = vrot.slane %v2040, %v2134
        %v2136 = vsel %vm2108, %v2135, %v2131
        %v2137 = vlaneseq
        %v2138 = vshrl.u32 %v2137, 7
        %v2139 = vsub.s32 %v2098, %v2138
        %v2140 = vrot.slane %v2041, %v2139
        %v2141 = vlaneseq
        %v2142 = vshrl.u32 %v2141, 7
        %v2143 = vsub.s32 %v2103, %v2142
        %v2144 = vrot.slane %v2042, %v2143
        %v2145 = vsel %vm2108, %v2144, %v2140
        %v2146 = vlaneseq
        %v2147 = vshrl.u32 %v2146, 7
        %v2148 = vsub.s32 %v2098, %v2147
        %v2149 = vrot.slane %v2043, %v2148
        %v2150 = vlaneseq
        %v2151 = vshrl.u32 %v2150, 7
        %v2152 = vsub.s32 %v2103, %v2151
        %v2153 = vrot.slane %v2044, %v2152
        %v2154 = vsel %vm2108, %v2153, %v2149
        %v2155 = vlaneseq
        %v2156 = vshrl.u32 %v2155, 7
        %v2157 = vsub.s32 %v2098, %v2156
        %v2158 = vrot.slane %v2045, %v2157
        %v2159 = vlaneseq
        %v2160 = vshrl.u32 %v2159, 7
        %v2161 = vsub.s32 %v2103, %v2160
        %v2162 = vrot.slane %v2046, %v2161
        %v2163 = vsel %vm2108, %v2162, %v2158
        %v2164 = vlaneseq
        %v2165 = vshrl.u32 %v2164, 7
        %v2166 = vsub.s32 %v2098, %v2165
        %v2167 = vrot.slane %v2047, %v2166
        %v2168 = vlaneseq
        %v2169 = vshrl.u32 %v2168, 7
        %v2170 = vsub.s32 %v2103, %v2169
        %v2171 = vrot.slane %v2048, %v2170
        %v2172 = vsel %vm2108, %v2171, %v2167
        %v2173 = vlaneseq
        %v2174 = vshrl.u32 %v2173, 7
        %v2175 = vsub.s32 %v2098, %v2174
        %v2176 = vrot.slane %v2049, %v2175
        %v2177 = vlaneseq
        %v2178 = vshrl.u32 %v2177, 7
        %v2179 = vsub.s32 %v2103, %v2178
        %v2180 = vrot.slane %v2050, %v2179
        %v2181 = vsel %vm2108, %v2180, %v2176
        %v2182 = vlaneseq
        %v2183 = vshrl.u32 %v2182, 7
        %v2184 = vsub.s32 %v2098, %v2183
        %v2185 = vrot.slane %v2051, %v2184
        %v2186 = vlaneseq
        %v2187 = vshrl.u32 %v2186, 7
        %v2188 = vsub.s32 %v2103, %v2187
        %v2189 = vrot.slane %v2052, %v2188
        %v2190 = vsel %vm2108, %v2189, %v2185
        %v2191 = vlaneseq
        %v2192 = vshrl.u32 %v2191, 7
        %v2193 = vsub.s32 %v2098, %v2192
        %v2194 = vrot.slane %v2053, %v2193
        %v2195 = vlaneseq
        %v2196 = vshrl.u32 %v2195, 7
        %v2197 = vsub.s32 %v2103, %v2196
        %v2198 = vrot.slane %v2054, %v2197
        %v2199 = vsel %vm2108, %v2198, %v2194
        %v2200 = vlaneseq
        %v2201 = vshrl.u32 %v2200, 7
        %v2202 = vsub.s32 %v2098, %v2201
        %v2203 = vrot.slane %v2055, %v2202
        %v2204 = vlaneseq
        %v2205 = vshrl.u32 %v2204, 7
        %v2206 = vsub.s32 %v2103, %v2205
        %v2207 = vrot.slane %v2056, %v2206
        %v2208 = vsel %vm2108, %v2207, %v2203
        %v2209 = vlaneseq
        %v2210 = vshrl.u32 %v2209, 7
        %v2211 = vsub.s32 %v2098, %v2210
        %v2212 = vrot.slane %v2057, %v2211
        %v2213 = vlaneseq
        %v2214 = vshrl.u32 %v2213, 7
        %v2215 = vsub.s32 %v2103, %v2214
        %v2216 = vrot.slane %v2058, %v2215
        %v2217 = vsel %vm2108, %v2216, %v2212
        %v2218 = vlaneseq
        %v2219 = vshrl.u32 %v2218, 7
        %v2220 = vsub.s32 %v2098, %v2219
        %v2221 = vrot.slane %v2059, %v2220
        %v2222 = vlaneseq
        %v2223 = vshrl.u32 %v2222, 7
        %v2224 = vsub.s32 %v2103, %v2223
        %v2225 = vrot.slane %v2060, %v2224
        %v2226 = vsel %vm2108, %v2225, %v2221
        %v2227 = vlaneseq
        %v2228 = vshrl.u32 %v2227, 7
        %v2229 = vsub.s32 %v2098, %v2228
        %v2230 = vrot.slane %v2061, %v2229
        %v2231 = vlaneseq
        %v2232 = vshrl.u32 %v2231, 7
        %v2233 = vsub.s32 %v2103, %v2232
        %v2234 = vrot.slane %v2062, %v2233
        %v2235 = vsel %vm2108, %v2234, %v2230
        %v2236 = vlaneseq
        %v2237 = vshrl.u32 %v2236, 7
        %v2238 = vsub.s32 %v2098, %v2237
        %v2239 = vrot.slane %v2063, %v2238
        %v2240 = vlaneseq
        %v2241 = vshrl.u32 %v2240, 7
        %v2242 = vsub.s32 %v2103, %v2241
        %v2243 = vrot.slane %v2064, %v2242
        %v2244 = vsel %vm2108, %v2243, %v2239
        %vm2245 = vcmask 1041409
        %v2246 = vsel %vm2245, %v2118, %v2109
        %vm2247 = vcmask 1042434
        %v2248 = vsel %vm2247, %v2127, %v2246
        %vm2249 = vcmask 1043459
        %v2250 = vsel %vm2249, %v2136, %v2248
        %vm2251 = vcmask 1044484
        %v2252 = vsel %vm2251, %v2145, %v2250
        %vm2253 = vcmask 1045509
        %v2254 = vsel %vm2253, %v2154, %v2252
        %vm2255 = vcmask 1046534
        %v2256 = vsel %vm2255, %v2163, %v2254
        %vm2257 = vcmask 1047559
        %v2258 = vsel %vm2257, %v2172, %v2256
        %v2259 = vsel %vm2245, %v2190, %v2181
        %v2260 = vsel %vm2247, %v2199, %v2259
        %v2261 = vsel %vm2249, %v2208, %v2260
        %v2262 = vsel %vm2251, %v2217, %v2261
        %v2263 = vsel %vm2253, %v2226, %v2262
        %v2264 = vsel %vm2255, %v2235, %v2263
        %v2265 = vsel %vm2257, %v2244, %v2264
        %vm2268 = vcmask 130048
        %2269 = vst.msk [vmem:[%s165] sm:$0xff] %vm2268, %v2258
        %2270 = vst.msk [vmem:[%s165 + $0x8] sm:$0xff] %vm2268, %v2265
        %s2271 = sand.u32 %s95, 1
        %s2272 = scalar_lea.sflag [#allocation4], %s2271
        %s2273 = sand.u32 %s95, 1
        %s2274 = smul.addr %s2273, 16
        %s2275 = scalar_lea.vmem [#allocation3], %s2274
        // Predicated region
        $region33: #{deep_unet_forward.11} parent=31 // pred_check
          %p2276 = pneg %p105
        $region34: #{deep_unet_forward.11} parent=31 // pred_check_branch
          %2278 = sbr.rel (%p2276) target = $region36
        $region35: #{deep_unet_forward.11} parent=31 // pred_region
          %s2280 = ssub.s32 256, 256
          %2281 = vsyncadd %s2272, %s2280
          %s2282 = smul.addr %s19, 2
          %s2283 = smul.addr %s2282, 128
          %s2284 = scalar_lea.hbm %s3, %s2283
          %s2285 = sshll.u32 %s2275, 4
          %s2286 = int_to_ptr.vmem [resolvable:$true] %s2285
          %2291 = dma.vmem_to_hbm [thread:$0]  %s2286, 256, %s2284, %s2272, 128, 128, 8
        $region36: #{deep_unet_forward.11} parent=31 // pred_fallthru
          _
      $region32: #{deep_unet_forward.11} parent=5 // pred_fallthru
        _
      %p2292 = scmp.le.s32.totalorder 2, %s14
      // Predicated region
      $region37: #{deep_unet_forward.11} parent=5 // pred_check
        %p2293 = pneg %p2292
      $region38: #{deep_unet_forward.11} parent=5 // pred_check_branch
        %2295 = sbr.rel (%p2293) target = $region40
      $region39: #{deep_unet_forward.11} parent=5 // pred_region
        %s2296 = ssub.s32 %s14, 2
        // Predicated region
        $region41: #{deep_unet_forward.11} parent=39 // pred_check
          %p2297 = pneg %p111
        $region42: #{deep_unet_forward.11} parent=39 // pred_check_branch
          %2299 = sbr.rel (%p2297) target = $region44
        $region43: #{deep_unet_forward.11} parent=39 // pred_region
          %s2300 = sand.u32 %s96, 1
          %s2301 = scalar_lea.sflag [#allocation4], %s2300
          %s2302 = sand.u32 %s96, 1
          %s2303 = smul.addr %s2302, 16
          %s2304 = scalar_lea.vmem [#allocation3], %s2303
          %2305 = dma.done %s2301, 256
        $region44: #{deep_unet_forward.11} parent=39 // pred_fallthru
          _
      $region40: #{deep_unet_forward.11} parent=5 // pred_fallthru
        _
    $region6: #{deep_unet_forward.11} parent=1 // loop_footer
      %s18 = sadd.s32 1, %s14
    $region7: #{deep_unet_forward.11} parent=1 // loop_footer_branch
      %13 = sbr.rel target = $region3
    $region8: #{deep_unet_forward.11} parent=1 // loop_exit
      _
    %2306 = vsyncpa [#allocation4], 1
    %s2307 = scalar_lea.sflag [#allocation4], 1
    %2308 = vsyncpa %s2307, 1

// kernel: deep_unet_forward.10
$region0: #{deep_unet_forward.10}
  #allocation0 [shape = 'u32[]', space=smem, size = 0x4, offset = 0x4, fixed_abs, tag = 'smem constant byte address 0x4 - core index']
  #allocation1 [shape = 'u32[144,128]{1,0:T(1,128)}', space=vmem, size = 0x12000, scoped, tag = 'internal scratch']
  %s0 = inlined_call_operand.vmem [shape: bf16[2,18,18,16], index: 0, kind: input, shape index: {}]
  %s1 = inlined_call_operand.vmem [shape: bf16[2,18,18,8], index: 1, kind: input, shape index: {}]
  %s2 = inlined_call_operand.vmem [shape: bf16[144,8], index: 2, kind: input, shape index: {}]
  %s3 = inlined_call_operand.vmem [shape: bf16[72,8], index: 3, kind: input, shape index: {}]
  %s4 = inlined_call_operand.vmem [shape: f32[1,8], index: 4, kind: input, shape index: {}]
  %s5 = inlined_call_operand.vmem [shape: bf16[2,16,16,8], index: 5, kind: output, shape index: {}]
  %s6 = sld [smem:[#allocation0]]
  $region53: #{deep_unet_forward.10} parent=0
    _
  %s8 = ssub.s32 1, %s6
  %s9 = scalar_select 0, %s8, %s6
  loop: start=0, step=1, limit=4
  $region2: #{deep_unet_forward.10} parent=0 // loop_pre_header
    _
  $region3: #{deep_unet_forward.10} parent=0 // loop_header
    %s11 = sphi 0, %s15
    %p12 = scmp.ge.s32.totalorder %s11, 4
    %s18 = sphi 0, %s30
    %s19 = sphi 0, %s26
    %s20 = sphi 0, %s18
    %s21 = sphi 0, %s19
    %s22 = sphi 0, %s20
    %s23 = sphi 0, %s21
    %s33 = sphi 0, %s35
    %s36 = sphi 0, %s33
    %s37 = sphi 0, %s36
    %s53 = sphi 0, %s37
    %s59 = sphi 0, %s61
    %s62 = sphi 0, %s59
    %s63 = sphi 0, %s62
    %s79 = sphi 0, %s63
    %s83 = sphi 0, %s83
    %s85 = sphi 0, %s83
    %s86 = sphi 0, %s85
    %s100 = sphi 0, %s86
    %s104 = sphi 0, %s104
    %s106 = sphi 0, %s104
    %s107 = sphi 0, %s106
    %s121 = sphi 0, %s107
    %s125 = sphi 0, %s125
    %s127 = sphi 0, %s125
    %s128 = sphi 0, %s127
    %s142 = sphi 0, %s128
    %s150 = sphi 0, %s152
    %s153 = sphi 0, %s150
    %s154 = sphi 0, %s153
    %s170 = sphi 0, %s154
  $region4: #{deep_unet_forward.10} parent=0 // loop_header_branch
    %14 = sbr.rel (%p12) target = $region8
  $region5: #{deep_unet_forward.10} parent=0 // loop_body
    %s16 = ssub.s32 %s11, 1
    %s17 = ssub.s32 %s11, 2
    %s24 = sadd.s32 1, %s19
    %p25 = scmp.ge.s32.totalorder %s24, 1
    %s26 = scalar_select %p25, 0, %s24
    %s27 = sadd.s32 1, %s18
    %s28 = scalar_select %p25, %s27, %s18
    %p29 = scmp.ge.s32.totalorder %s28, 2
    %s30 = scalar_select %p29, 0, %s28
    %s31 = ssub.s32 %s18, %s30
    %p32 = scmp.eq.s32.totalorder %s31, 0
    %s34 = sadd.s32 %s33, 1
    %s35 = scalar_select %p32, %s33, %s34
    %p38 = pneg %p32
    %p39 = scmp.eq.s32.totalorder %s11, 1
    %p40 = por %p38, %p39
    %p41 = scmp.ne.s32.totalorder %s33, %s36
    %p42 = scmp.eq.s32.totalorder %s11, 0
    %p43 = por %p41, %p42
    %p44 = scmp.ne.s32.totalorder %s33, %s36
    %p45 = scmp.eq.s32.totalorder %s16, 1
    %p46 = por %p44, %p45
    %p47 = scmp.ne.s32.totalorder %s36, %s37
    %p48 = scmp.eq.s32.totalorder %s16, 0
    %p49 = por %p47, %p48
    %p50 = scmp.ne.s32.totalorder %s36, %s37
    %p51 = scmp.eq.s32.totalorder %s17, 1
    %p52 = por %p50, %p51
    %p54 = scmp.ne.s32.totalorder %s37, %s53
    %p55 = scmp.eq.s32.totalorder %s17, 0
    %p56 = por %p54, %p55
    %s57 = ssub.s32 %s18, %s30
    %p58 = scmp.eq.s32.totalorder %s57, 0
    %s60 = sadd.s32 %s59, 1
    %s61 = scalar_select %p58, %s59, %s60
    %p64 = pneg %p58
    %p65 = scmp.eq.s32.totalorder %s11, 1
    %p66 = por %p64, %p65
    %p67 = scmp.ne.s32.totalorder %s59, %s62
    %p68 = scmp.eq.s32.totalorder %s11, 0
    %p69 = por %p67, %p68
    %p70 = scmp.ne.s32.totalorder %s59, %s62
    %p71 = scmp.eq.s32.totalorder %s16, 1
    %p72 = por %p70, %p71
    %p73 = scmp.ne.s32.totalorder %s62, %s63
    %p74 = scmp.eq.s32.totalorder %s16, 0
    %p75 = por %p73, %p74
    %p76 = scmp.ne.s32.totalorder %s62, %s63
    %p77 = scmp.eq.s32.totalorder %s17, 1
    %p78 = por %p76, %p77
    %p80 = scmp.ne.s32.totalorder %s63, %s79
    %p81 = scmp.eq.s32.totalorder %s17, 0
    %p82 = por %p80, %p81
    %s84 = sadd.s32 %s83, 1
    %p87 = scmp.eq.s32.totalorder %s11, 1
    %p88 = scmp.ne.s32.totalorder %s83, %s85
    %p89 = scmp.eq.s32.totalorder %s11, 0
    %p90 = por %p88, %p89
    %p91 = scmp.ne.s32.totalorder %s83, %s85
    %p92 = scmp.eq.s32.totalorder %s16, 1
    %p93 = por %p91, %p92
    %p94 = scmp.ne.s32.totalorder %s85, %s86
    %p95 = scmp.eq.s32.totalorder %s16, 0
    %p96 = por %p94, %p95
    %p97 = scmp.ne.s32.totalorder %s85, %s86
    %p98 = scmp.eq.s32.totalorder %s17, 1
    %p99 = por %p97, %p98
    %p101 = scmp.ne.s32.totalorder %s86, %s100
    %p102 = scmp.eq.s32.totalorder %s17, 0
    %p103 = por %p101, %p102
    %s105 = sadd.s32 %s104, 1
    %p108 = scmp.eq.s32.totalorder %s11, 1
    %p109 = scmp.ne.s32.totalorder %s104, %s106
    %p110 = scmp.eq.s32.totalorder %s11, 0
    %p111 = por %p109, %p110
    %p112 = scmp.ne.s32.totalorder %s104, %s106
    %p113 = scmp.eq.s32.totalorder %s16, 1
    %p114 = por %p112, %p113
    %p115 = scmp.ne.s32.totalorder %s106, %s107
    %p116 = scmp.eq.s32.totalorder %s16, 0
    %p117 = por %p115, %p116
    %p118 = scmp.ne.s32.totalorder %s106, %s107
    %p119 = scmp.eq.s32.totalorder %s17, 1
    %p120 = por %p118, %p119
    %p122 = scmp.ne.s32.totalorder %s107, %s121
    %p123 = scmp.eq.s32.totalorder %s17, 0
    %p124 = por %p122, %p123
    %s126 = sadd.s32 %s125, 1
    %p129 = scmp.eq.s32.totalorder %s11, 1
    %p130 = scmp.ne.s32.totalorder %s125, %s127
    %p131 = scmp.eq.s32.totalorder %s11, 0
    %p132 = por %p130, %p131
    %p133 = scmp.ne.s32.totalorder %s125, %s127
    %p134 = scmp.eq.s32.totalorder %s16, 1
    %p135 = por %p133, %p134
    %p136 = scmp.ne.s32.totalorder %s127, %s128
    %p137 = scmp.eq.s32.totalorder %s16, 0
    %p138 = por %p136, %p137
    %p139 = scmp.ne.s32.totalorder %s127, %s128
    %p140 = scmp.eq.s32.totalorder %s17, 1
    %p141 = por %p139, %p140
    %p143 = scmp.ne.s32.totalorder %s128, %s142
    %p144 = scmp.eq.s32.totalorder %s17, 0
    %p145 = por %p143, %p144
    %s146 = ssub.s32 %s18, %s30
    %s147 = ssub.s32 %s19, %s26
    %s148 = sor.u32 %s146, %s147
    %p149 = scmp.eq.s32.totalorder %s148, 0
    %s151 = sadd.s32 %s150, 1
    %s152 = scalar_select %p149, %s150, %s151
    %p155 = pneg %p149
    %p156 = scmp.eq.s32.totalorder %s11, 1
    %p157 = por %p155, %p156
    %p158 = scmp.ne.s32.totalorder %s150, %s153
    %p159 = scmp.eq.s32.totalorder %s11, 0
    %p160 = por %p158, %p159
    %p161 = scmp.ne.s32.totalorder %s150, %s153
    %p162 = scmp.eq.s32.totalorder %s16, 1
    %p163 = por %p161, %p162
    %p164 = scmp.ne.s32.totalorder %s153, %s154
    %p165 = scmp.eq.s32.totalorder %s16, 0
    %p166 = por %p164, %p165
    %p167 = scmp.ne.s32.totalorder %s153, %s154
    %p168 = scmp.eq.s32.totalorder %s17, 1
    %p169 = por %p167, %p168
    %p171 = scmp.ne.s32.totalorder %s154, %s170
    %p172 = scmp.eq.s32.totalorder %s17, 0
    %p173 = por %p171, %p172
    %p174 = scmp.le.s32.totalorder 1, %s11
    %p175 = scmp.lt.s32.totalorder %s11, 3
    %p176 = pnand %p174, %p175
    %p177 = pneg %p176
    // Predicated region
    $region9: #{deep_unet_forward.10} parent=5 // pred_check
      _
    $region10: #{deep_unet_forward.10} parent=5 // pred_check_branch
      %179 = sbr.rel (%p176) target = $region12
    $region11: #{deep_unet_forward.10} parent=5 // pred_region
      %s180 = ssub.s32 %s11, 1
      // Predicated region
      $region13: #{deep_unet_forward.10} parent=11 // pred_check
        %p181 = pneg %p96
      $region14: #{deep_unet_forward.10} parent=11 // pred_check_branch
        %183 = sbr.rel (%p181) target = $region16
      $region15: #{deep_unet_forward.10} parent=11 // pred_region
        _
      $region16: #{deep_unet_forward.10} parent=11 // pred_fallthru
        _
      // Predicated region
      $region17: #{deep_unet_forward.10} parent=11 // pred_check
        %p184 = pneg %p117
      $region18: #{deep_unet_forward.10} parent=11 // pred_check_branch
        %186 = sbr.rel (%p184) target = $region20
      $region19: #{deep_unet_forward.10} parent=11 // pred_region
        _
      $region20: #{deep_unet_forward.10} parent=11 // pred_fallthru
        _
      // Predicated region
      $region21: #{deep_unet_forward.10} parent=11 // pred_check
        %p187 = pneg %p138
      $region22: #{deep_unet_forward.10} parent=11 // pred_check_branch
        %189 = sbr.rel (%p187) target = $region24
      $region23: #{deep_unet_forward.10} parent=11 // pred_region
        _
      $region24: #{deep_unet_forward.10} parent=11 // pred_fallthru
        _
    $region12: #{deep_unet_forward.10} parent=5 // pred_fallthru
      _
    %p190 = scmp.lt.s32.totalorder %s11, 2
    // Predicated region
    $region25: #{deep_unet_forward.10} parent=5 // pred_check
      %p191 = pneg %p190
    $region26: #{deep_unet_forward.10} parent=5 // pred_check_branch
      %193 = sbr.rel (%p191) target = $region28
    $region27: #{deep_unet_forward.10} parent=5 // pred_region
      // Predicated region
      $region29: #{deep_unet_forward.10} parent=27 // pred_check
        %p194 = pneg %p43
      $region30: #{deep_unet_forward.10} parent=27 // pred_check_branch
        %196 = sbr.rel (%p194) target = $region32
      $region31: #{deep_unet_forward.10} parent=27 // pred_region
        %p197 = scmp.lt.s32.totalorder %s18, 1
        %s198 = scalar_select %p197, %s18, 1
        %s199 = smul.addr %s198, 54
        %s200 = smul.addr %s199, 4
        %s201 = scalar_lea.vmem %s0, %s200
      $region32: #{deep_unet_forward.10} parent=27 // pred_fallthru
        _
      // Predicated region
      $region33: #{deep_unet_forward.10} parent=27 // pred_check
        %p202 = pneg %p69
      $region34: #{deep_unet_forward.10} parent=27 // pred_check_branch
        %204 = sbr.rel (%p202) target = $region36
      $region35: #{deep_unet_forward.10} parent=27 // pred_region
        %p205 = scmp.lt.s32.totalorder %s18, 1
        %s206 = scalar_select %p205, %s18, 1
        %s207 = smul.addr %s206, 54
        %s208 = smul.addr %s207, 4
        %s209 = scalar_lea.vmem %s1, %s208
      $region36: #{deep_unet_forward.10} parent=27 // pred_fallthru
        _
    $region28: #{deep_unet_forward.10} parent=5 // pred_fallthru
      _
    %p210 = scmp.le.s32.totalorder 1, %s11
    %p211 = scmp.lt.s32.totalorder %s11, 3
    %p212 = pnand %p210, %p211
    %p213 = pneg %p212
    // Predicated region
    $region37: #{deep_unet_forward.10} parent=5 // pred_check
      _
    $region38: #{deep_unet_forward.10} parent=5 // pred_check_branch
      %215 = sbr.rel (%p212) target = $region40
    $region39: #{deep_unet_forward.10} parent=5 // pred_region
      %s216 = ssub.s32 %s11, 1
      %p217 = scmp.lt.s32.totalorder %s20, 1
      %s218 = scalar_select %p217, %s20, 1
      %s219 = smul.addr %s218, 54
      %s220 = smul.addr %s219, 4
      %s221 = scalar_lea.vmem %s0, %s220
      %p222 = pneg %p49
      %p223 = pneg %p46
      %p224 = scmp.lt.s32.totalorder %s20, 1
      %s225 = scalar_select %p224, %s20, 1
      %s226 = smul.addr %s225, 54
      %s227 = smul.addr %s226, 4
      %s228 = scalar_lea.vmem %s1, %s227
      %p229 = pneg %p75
      %p230 = pneg %p72
      %p231 = pneg %p96
      %p232 = pneg %p93
      %p233 = pneg %p117
      %p234 = pneg %p114
      %p235 = pneg %p138
      %p236 = pneg %p135
      %p237 = pneg %p166
      %p238 = pneg %p163
      %s239 = smul.u32 16, %s21
      %p240 = scmp.lt.s32.totalorder %s20, 1
      %s241 = scalar_select %p240, %s20, 1
      %p242 = scmp.lt.s32.totalorder %s239, 15
      %s243 = scalar_select %p242, %s239, 15
      %s244 = smul.addr %s243, 2
      %s245 = smul.addr %s241, 32
      %s246 = sadd.s32 %s244, %s245
      %s247 = smul.addr %s246, 4
      %s248 = scalar_lea.vmem %s5, %s247
      %p249 = scmp.lt.s32.totalorder %s20, 1
      %s250 = scalar_select %p249, %s20, 1
      %s251 = smul.addr %s250, 54
      %s252 = smul.addr %s251, 4
      %s253 = scalar_lea.vmem %s0, %s252
      %p254 = scmp.lt.s32.totalorder %s20, 1
      %s255 = scalar_select %p254, %s20, 1
      %s256 = smul.addr %s255, 54
      %s257 = smul.addr %s256, 4
      %s258 = scalar_lea.vmem %s1, %s257
      %s259 = smul.u32 16, %s21
      %p260 = scmp.lt.s32.totalorder %s20, 1
      %s261 = scalar_select %p260, %s20, 1
      %p262 = scmp.lt.s32.totalorder %s259, 15
      %s263 = scalar_select %p262, %s259, 15
      %s264 = smul.addr %s263, 2
      %s265 = smul.addr %s261, 32
      %s266 = sadd.s32 %s264, %s265
      %s267 = smul.addr %s266, 4
      %s268 = scalar_lea.vmem %s5, %s267
      %s269 = smul.u32 16, %s21
      %s271 = smul.u32 %s21, 16
      %s272 = smul.u32 %s271, 3
      %s273 = smul.addr %s272, 4
      %s274 = scalar_lea.vmem %s253, %s273
      %v275 = vld [vmem:[%s274] sm:$0xf]
      %v276 = vld [vmem:[%s274 + $0x4] sm:$0xf]
      %v277 = vld [vmem:[%s274 + $0x8] sm:$0x1]
      %v278 = vld [vmem:[%s274 + $0xc] sm:$0xf]
      %v279 = vld [vmem:[%s274 + $0x10] sm:$0xf]
      %v280 = vld [vmem:[%s274 + $0x14] sm:$0x1]
      %v281 = vld [vmem:[%s274 + $0x18] sm:$0xf]
      %v282 = vld [vmem:[%s274 + $0x1c] sm:$0xf]
      %v283 = vld [vmem:[%s274 + $0x20] sm:$0x1]
      %v284 = vld [vmem:[%s274 + $0x24] sm:$0xf]
      %v285 = vld [vmem:[%s274 + $0x28] sm:$0xf]
      %v286 = vld [vmem:[%s274 + $0x2c] sm:$0x1]
      %v287 = vld [vmem:[%s274 + $0x30] sm:$0xf]
      %v288 = vld [vmem:[%s274 + $0x34] sm:$0xf]
      %v289 = vld [vmem:[%s274 + $0x38] sm:$0x1]
      %v290 = vld [vmem:[%s274 + $0x3c] sm:$0xf]
      %v291 = vld [vmem:[%s274 + $0x40] sm:$0xf]
      %v292 = vld [vmem:[%s274 + $0x44] sm:$0x1]
      %v293 = vld [vmem:[%s274 + $0x48] sm:$0xf]
      %v294 = vld [vmem:[%s274 + $0x4c] sm:$0xf]
      %v295 = vld [vmem:[%s274 + $0x50] sm:$0x1]
      %v296 = vld [vmem:[%s274 + $0x54] sm:$0xf]
      %v297 = vld [vmem:[%s274 + $0x58] sm:$0xf]
      %v298 = vld [vmem:[%s274 + $0x5c] sm:$0x1]
      %v299 = vld [vmem:[%s274 + $0x60] sm:$0xf]
      %v300 = vld [vmem:[%s274 + $0x64] sm:$0xf]
      %v301 = vld [vmem:[%s274 + $0x68] sm:$0x1]
      %v302 = vld [vmem:[%s274 + $0x6c] sm:$0xf]
      %v303 = vld [vmem:[%s274 + $0x70] sm:$0xf]
      %v304 = vld [vmem:[%s274 + $0x74] sm:$0x1]
      %v305 = vld [vmem:[%s274 + $0x78] sm:$0xf]
      %v306 = vld [vmem:[%s274 + $0x7c] sm:$0xf]
      %v307 = vld [vmem:[%s274 + $0x80] sm:$0x1]
      %v308 = vld [vmem:[%s274 + $0x84] sm:$0xf]
      %v309 = vld [vmem:[%s274 + $0x88] sm:$0xf]
      %v310 = vld [vmem:[%s274 + $0x8c] sm:$0x1]
      %v311 = vld [vmem:[%s274 + $0x90] sm:$0xf]
      %v312 = vld [vmem:[%s274 + $0x94] sm:$0xf]
      %v313 = vld [vmem:[%s274 + $0x98] sm:$0x1]
      %v314 = vld [vmem:[%s274 + $0x9c] sm:$0xf]
      %v315 = vld [vmem:[%s274 + $0xa0] sm:$0xf]
      %v316 = vld [vmem:[%s274 + $0xa4] sm:$0x1]
      %v317 = vld [vmem:[%s274 + $0xa8] sm:$0xf]
      %v318 = vld [vmem:[%s274 + $0xac] sm:$0xf]
      %v319 = vld [vmem:[%s274 + $0xb0] sm:$0x1]
      %v320 = vld [vmem:[%s274 + $0xb4] sm:$0xf]
      %v321 = vld [vmem:[%s274 + $0xb8] sm:$0xf]
      %v322 = vld [vmem:[%s274 + $0xbc] sm:$0x1]
      %v323 = vld [vmem:[%s274 + $0xc0] sm:$0xf]
      %v324 = vld [vmem:[%s274 + $0xc4] sm:$0xf]
      %v325 = vld [vmem:[%s274 + $0xc8] sm:$0x1]
      %v326 = vld [vmem:[%s274 + $0xcc] sm:$0xf]
      %v327 = vld [vmem:[%s274 + $0xd0] sm:$0xf]
      %v328 = vld [vmem:[%s274 + $0xd4] sm:$0x1]
      %v329 = vunpack.c.l.bf16 %v275
      %v330 = vunpack.c.l.bf16 %v276
      %v331 = vunpack.c.l.bf16 %v277
      %v332 = vunpack.c.l.bf16 %v278
      %v333 = vunpack.c.l.bf16 %v279
      %v334 = vunpack.c.l.bf16 %v280
      %v335 = vunpack.c.l.bf16 %v281
      %v336 = vunpack.c.l.bf16 %v282
      %v337 = vunpack.c.l.bf16 %v283
      %v338 = vunpack.c.l.bf16 %v284
      %v339 = vunpack.c.l.bf16 %v285
      %v340 = vunpack.c.l.bf16 %v286
      %v341 = vunpack.c.l.bf16 %v287
      %v342 = vunpack.c.l.bf16 %v288
      %v343 = vunpack.c.l.bf16 %v289
      %v344 = vunpack.c.l.bf16 %v290
      %v345 = vunpack.c.l.bf16 %v291
      %v346 = vunpack.c.l.bf16 %v292
      %v347 = vunpack.c.l.bf16 %v293
      %v348 = vunpack.c.l.bf16 %v294
      %v349 = vunpack.c.l.bf16 %v295
      %v350 = vunpack.c.l.bf16 %v296
      %v351 = vunpack.c.l.bf16 %v297
      %v352 = vunpack.c.l.bf16 %v298
      %v353 = vunpack.c.l.bf16 %v299
      %v354 = vunpack.c.l.bf16 %v300
      %v355 = vunpack.c.l.bf16 %v301
      %v356 = vunpack.c.l.bf16 %v302
      %v357 = vunpack.c.l.bf16 %v303
      %v358 = vunpack.c.l.bf16 %v304
      %v359 = vunpack.c.l.bf16 %v305
      %v360 = vunpack.c.l.bf16 %v306
      %v361 = vunpack.c.l.bf16 %v307
      %v362 = vunpack.c.l.bf16 %v308
      %v363 = vunpack.c.l.bf16 %v309
      %v364 = vunpack.c.l.bf16 %v310
      %v365 = vunpack.c.l.bf16 %v311
      %v366 = vunpack.c.l.bf16 %v312
      %v367 = vunpack.c.l.bf16 %v313
      %v368 = vunpack.c.l.bf16 %v314
      %v369 = vunpack.c.l.bf16 %v315
      %v370 = vunpack.c.l.bf16 %v316
      %v371 = vunpack.c.l.bf16 %v317
      %v372 = vunpack.c.l.bf16 %v318
      %v373 = vunpack.c.l.bf16 %v319
      %v374 = vunpack.c.l.bf16 %v320
      %v375 = vunpack.c.l.bf16 %v321
      %v376 = vunpack.c.l.bf16 %v322
      %v377 = vunpack.c.l.bf16 %v323
      %v378 = vunpack.c.l.bf16 %v324
      %v379 = vunpack.c.l.bf16 %v325
      %v380 = vunpack.c.l.bf16 %v326
      %v381 = vunpack.c.l.bf16 %v327
      %v382 = vunpack.c.l.bf16 %v328
      %vm431 = vcmask 1046528
      %v432 = vrot.slane %v329, 1
      %v433 = vrot.slane %v330, 1
      %v434 = vsel %vm431, %v432, %v433
      %v435 = vrot.slane %v331, 1
      %v436 = vsel %vm431, %v433, %v435
      %v437 = vrot.slane %v332, 1
      %v438 = vrot.slane %v333, 1
      %v439 = vsel %vm431, %v437, %v438
      %v440 = vrot.slane %v334, 1
      %v441 = vsel %vm431, %v438, %v440
      %v442 = vrot.slane %v335, 1
      %v443 = vrot.slane %v336, 1
      %v444 = vsel %vm431, %v442, %v443
      %v445 = vrot.slane %v337, 1
      %v446 = vsel %vm431, %v443, %v445
      %v447 = vrot.slane %v338, 1
      %v448 = vrot.slane %v339, 1
      %v449 = vsel %vm431, %v447, %v448
      %v450 = vrot.slane %v340, 1
      %v451 = vsel %vm431, %v448, %v450
      %v452 = vrot.slane %v341, 1
      %v453 = vrot.slane %v342, 1
      %v454 = vsel %vm431, %v452, %v453
      %v455 = vrot.slane %v343, 1
      %v456 = vsel %vm431, %v453, %v455
      %v457 = vrot.slane %v344, 1
      %v458 = vrot.slane %v345, 1
      %v459 = vsel %vm431, %v457, %v458
      %v460 = vrot.slane %v346, 1
      %v461 = vsel %vm431, %v458, %v460
      %v462 = vrot.slane %v347, 1
      %v463 = vrot.slane %v348, 1
      %v464 = vsel %vm431, %v462, %v463
      %v465 = vrot.slane %v349, 1
      %v466 = vsel %vm431, %v463, %v465
      %v467 = vrot.slane %v350, 1
      %v468 = vrot.slane %v351, 1
      %v469 = vsel %vm431, %v467, %v468
      %v470 = vrot.slane %v352, 1
      %v471 = vsel %vm431, %v468, %v470
      %v472 = vrot.slane %v353, 1
      %v473 = vrot.slane %v354, 1
      %v474 = vsel %vm431, %v472, %v473
      %v475 = vrot.slane %v355, 1
      %v476 = vsel %vm431, %v473, %v475
      %v477 = vrot.slane %v356, 1
      %v478 = vrot.slane %v357, 1
      %v479 = vsel %vm431, %v477, %v478
      %v480 = vrot.slane %v358, 1
      %v481 = vsel %vm431, %v478, %v480
      %v482 = vrot.slane %v359, 1
      %v483 = vrot.slane %v360, 1
      %v484 = vsel %vm431, %v482, %v483
      %v485 = vrot.slane %v361, 1
      %v486 = vsel %vm431, %v483, %v485
      %v487 = vrot.slane %v362, 1
      %v488 = vrot.slane %v363, 1
      %v489 = vsel %vm431, %v487, %v488
      %v490 = vrot.slane %v364, 1
      %v491 = vsel %vm431, %v488, %v490
      %v492 = vrot.slane %v365, 1
      %v493 = vrot.slane %v366, 1
      %v494 = vsel %vm431, %v492, %v493
      %v495 = vrot.slane %v367, 1
      %v496 = vsel %vm431, %v493, %v495
      %v497 = vrot.slane %v368, 1
      %v498 = vrot.slane %v369, 1
      %v499 = vsel %vm431, %v497, %v498
      %v500 = vrot.slane %v370, 1
      %v501 = vsel %vm431, %v498, %v500
      %v502 = vrot.slane %v371, 1
      %v503 = vrot.slane %v372, 1
      %v504 = vsel %vm431, %v502, %v503
      %v505 = vrot.slane %v373, 1
      %v506 = vsel %vm431, %v503, %v505
      %v507 = vrot.slane %v374, 1
      %v508 = vrot.slane %v375, 1
      %v509 = vsel %vm431, %v507, %v508
      %v510 = vrot.slane %v376, 1
      %v511 = vsel %vm431, %v508, %v510
      %512 = vrot.lane.b32.xlu0 %v434, 16
      %v513 = vpop.permute.xlu0 %512
      %514 = vrot.lane.b32.xlu0 %v436, 16
      %v515 = vpop.permute.xlu0 %514
      %516 = vrot.lane.b32.xlu0 %v439, 16
      %v517 = vpop.permute.xlu0 %516
      %518 = vrot.lane.b32.xlu0 %v441, 16
      %v519 = vpop.permute.xlu0 %518
      %520 = vrot.lane.b32.xlu0 %v444, 16
      %v521 = vpop.permute.xlu0 %520
      %522 = vrot.lane.b32.xlu0 %v446, 16
      %v523 = vpop.permute.xlu0 %522
      %524 = vrot.lane.b32.xlu0 %v449, 16
      %v525 = vpop.permute.xlu0 %524
      %526 = vrot.lane.b32.xlu0 %v451, 16
      %v527 = vpop.permute.xlu0 %526
      %528 = vrot.lane.b32.xlu0 %v454, 16
      %v529 = vpop.permute.xlu0 %528
      %530 = vrot.lane.b32.xlu0 %v456, 16
      %v531 = vpop.permute.xlu0 %530
      %532 = vrot.lane.b32.xlu0 %v459, 16
      %v533 = vpop.permute.xlu0 %532
      %534 = vrot.lane.b32.xlu0 %v461, 16
      %v535 = vpop.permute.xlu0 %534
      %536 = vrot.lane.b32.xlu0 %v464, 16
      %v537 = vpop.permute.xlu0 %536
      %538 = vrot.lane.b32.xlu0 %v466, 16
      %v539 = vpop.permute.xlu0 %538
      %540 = vrot.lane.b32.xlu0 %v469, 16
      %v541 = vpop.permute.xlu0 %540
      %542 = vrot.lane.b32.xlu0 %v471, 16
      %v543 = vpop.permute.xlu0 %542
      %544 = vrot.lane.b32.xlu0 %v474, 16
      %v545 = vpop.permute.xlu0 %544
      %546 = vrot.lane.b32.xlu0 %v476, 16
      %v547 = vpop.permute.xlu0 %546
      %548 = vrot.lane.b32.xlu0 %v479, 16
      %v549 = vpop.permute.xlu0 %548
      %550 = vrot.lane.b32.xlu0 %v481, 16
      %v551 = vpop.permute.xlu0 %550
      %552 = vrot.lane.b32.xlu0 %v484, 16
      %v553 = vpop.permute.xlu0 %552
      %554 = vrot.lane.b32.xlu0 %v486, 16
      %v555 = vpop.permute.xlu0 %554
      %556 = vrot.lane.b32.xlu0 %v489, 16
      %v557 = vpop.permute.xlu0 %556
      %558 = vrot.lane.b32.xlu0 %v491, 16
      %v559 = vpop.permute.xlu0 %558
      %560 = vrot.lane.b32.xlu0 %v494, 16
      %v561 = vpop.permute.xlu0 %560
      %562 = vrot.lane.b32.xlu0 %v496, 16
      %v563 = vpop.permute.xlu0 %562
      %564 = vrot.lane.b32.xlu0 %v499, 16
      %v565 = vpop.permute.xlu0 %564
      %566 = vrot.lane.b32.xlu0 %v501, 16
      %v567 = vpop.permute.xlu0 %566
      %568 = vrot.lane.b32.xlu0 %v504, 16
      %v569 = vpop.permute.xlu0 %568
      %570 = vrot.lane.b32.xlu0 %v506, 16
      %v571 = vpop.permute.xlu0 %570
      %572 = vrot.lane.b32.xlu0 %v509, 16
      %v573 = vpop.permute.xlu0 %572
      %574 = vrot.lane.b32.xlu0 %v511, 16
      %v575 = vpop.permute.xlu0 %574
      %vm608 = vcmask 1045504
      %v609 = vrot.slane %v329, 2
      %v610 = vrot.slane %v330, 2
      %v611 = vsel %vm608, %v609, %v610
      %v612 = vrot.slane %v331, 2
      %v613 = vsel %vm608, %v610, %v612
      %v614 = vrot.slane %v332, 2
      %v615 = vrot.slane %v333, 2
      %v616 = vsel %vm608, %v614, %v615
      %v617 = vrot.slane %v334, 2
      %v618 = vsel %vm608, %v615, %v617
      %v619 = vrot.slane %v335, 2
      %v620 = vrot.slane %v336, 2
      %v621 = vsel %vm608, %v619, %v620
      %v622 = vrot.slane %v337, 2
      %v623 = vsel %vm608, %v620, %v622
      %v624 = vrot.slane %v338, 2
      %v625 = vrot.slane %v339, 2
      %v626 = vsel %vm608, %v624, %v625
      %v627 = vrot.slane %v340, 2
      %v628 = vsel %vm608, %v625, %v627
      %v629 = vrot.slane %v341, 2
      %v630 = vrot.slane %v342, 2
      %v631 = vsel %vm608, %v629, %v630
      %v632 = vrot.slane %v343, 2
      %v633 = vsel %vm608, %v630, %v632
      %v634 = vrot.slane %v344, 2
      %v635 = vrot.slane %v345, 2
      %v636 = vsel %vm608, %v634, %v635
      %v637 = vrot.slane %v346, 2
      %v638 = vsel %vm608, %v635, %v637
      %v639 = vrot.slane %v347, 2
      %v640 = vrot.slane %v348, 2
      %v641 = vsel %vm608, %v639, %v640
      %v642 = vrot.slane %v349, 2
      %v643 = vsel %vm608, %v640, %v642
      %v644 = vrot.slane %v350, 2
      %v645 = vrot.slane %v351, 2
      %v646 = vsel %vm608, %v644, %v645
      %v647 = vrot.slane %v352, 2
      %v648 = vsel %vm608, %v645, %v647
      %v649 = vrot.slane %v353, 2
      %v650 = vrot.slane %v354, 2
      %v651 = vsel %vm608, %v649, %v650
      %v652 = vrot.slane %v355, 2
      %v653 = vsel %vm608, %v650, %v652
      %v654 = vrot.slane %v356, 2
      %v655 = vrot.slane %v357, 2
      %v656 = vsel %vm608, %v654, %v655
      %v657 = vrot.slane %v358, 2
      %v658 = vsel %vm608, %v655, %v657
      %v659 = vrot.slane %v359, 2
      %v660 = vrot.slane %v360, 2
      %v661 = vsel %vm608, %v659, %v660
      %v662 = vrot.slane %v361, 2
      %v663 = vsel %vm608, %v660, %v662
      %v664 = vrot.slane %v362, 2
      %v665 = vrot.slane %v363, 2
      %v666 = vsel %vm608, %v664, %v665
      %v667 = vrot.slane %v364, 2
      %v668 = vsel %vm608, %v665, %v667
      %v669 = vrot.slane %v365, 2
      %v670 = vrot.slane %v366, 2
      %v671 = vsel %vm608, %v669, %v670
      %v672 = vrot.slane %v367, 2
      %v673 = vsel %vm608, %v670, %v672
      %v674 = vrot.slane %v368, 2
      %v675 = vrot.slane %v369, 2
      %v676 = vsel %vm608, %v674, %v675
      %v677 = vrot.slane %v370, 2
      %v678 = vsel %vm608, %v675, %v677
      %v679 = vrot.slane %v371, 2
      %v680 = vrot.slane %v372, 2
      %v681 = vsel %vm608, %v679, %v680
      %v682 = vrot.slane %v373, 2
      %v683 = vsel %vm608, %v680, %v682
      %v684 = vrot.slane %v374, 2
      %v685 = vrot.slane %v375, 2
      %v686 = vsel %vm608, %v684, %v685
      %v687 = vrot.slane %v376, 2
      %v688 = vsel %vm608, %v685, %v687
      %689 = vrot.lane.b32.xlu0 %v611, 32
      %v690 = vpop.permute.xlu0 %689
      %691 = vrot.lane.b32.xlu0 %v613, 32
      %v692 = vpop.permute.xlu0 %691
      %693 = vrot.lane.b32.xlu0 %v616, 32
      %v694 = vpop.permute.xlu0 %693
      %695 = vrot.lane.b32.xlu0 %v618, 32
      %v696 = vpop.permute.xlu0 %695
      %697 = vrot.lane.b32.xlu0 %v621, 32
      %v698 = vpop.permute.xlu0 %697
      %699 = vrot.lane.b32.xlu0 %v623, 32
      %v700 = vpop.permute.xlu0 %699
      %701 = vrot.lane.b32.xlu0 %v626, 32
      %v702 = vpop.permute.xlu0 %701
      %703 = vrot.lane.b32.xlu0 %v628, 32
      %v704 = vpop.permute.xlu0 %703
      %705 = vrot.lane.b32.xlu0 %v631, 32
      %v706 = vpop.permute.xlu0 %705
      %707 = vrot.lane.b32.xlu0 %v633, 32
      %v708 = vpop.permute.xlu0 %707
      %709 = vrot.lane.b32.xlu0 %v636, 32
      %v710 = vpop.permute.xlu0 %709
      %711 = vrot.lane.b32.xlu0 %v638, 32
      %v712 = vpop.permute.xlu0 %711
      %713 = vrot.lane.b32.xlu0 %v641, 32
      %v714 = vpop.permute.xlu0 %713
      %715 = vrot.lane.b32.xlu0 %v643, 32
      %v716 = vpop.permute.xlu0 %715
      %717 = vrot.lane.b32.xlu0 %v646, 32
      %v718 = vpop.permute.xlu0 %717
      %719 = vrot.lane.b32.xlu0 %v648, 32
      %v720 = vpop.permute.xlu0 %719
      %721 = vrot.lane.b32.xlu0 %v651, 32
      %v722 = vpop.permute.xlu0 %721
      %723 = vrot.lane.b32.xlu0 %v653, 32
      %v724 = vpop.permute.xlu0 %723
      %725 = vrot.lane.b32.xlu0 %v656, 32
      %v726 = vpop.permute.xlu0 %725
      %727 = vrot.lane.b32.xlu0 %v658, 32
      %v728 = vpop.permute.xlu0 %727
      %729 = vrot.lane.b32.xlu0 %v661, 32
      %v730 = vpop.permute.xlu0 %729
      %731 = vrot.lane.b32.xlu0 %v663, 32
      %v732 = vpop.permute.xlu0 %731
      %733 = vrot.lane.b32.xlu0 %v666, 32
      %v734 = vpop.permute.xlu0 %733
      %735 = vrot.lane.b32.xlu0 %v668, 32
      %v736 = vpop.permute.xlu0 %735
      %737 = vrot.lane.b32.xlu0 %v671, 32
      %v738 = vpop.permute.xlu0 %737
      %739 = vrot.lane.b32.xlu0 %v673, 32
      %v740 = vpop.permute.xlu0 %739
      %741 = vrot.lane.b32.xlu0 %v676, 32
      %v742 = vpop.permute.xlu0 %741
      %743 = vrot.lane.b32.xlu0 %v678, 32
      %v744 = vpop.permute.xlu0 %743
      %745 = vrot.lane.b32.xlu0 %v681, 32
      %v746 = vpop.permute.xlu0 %745
      %747 = vrot.lane.b32.xlu0 %v683, 32
      %v748 = vpop.permute.xlu0 %747
      %749 = vrot.lane.b32.xlu0 %v686, 32
      %v750 = vpop.permute.xlu0 %749
      %751 = vrot.lane.b32.xlu0 %v688, 32
      %v752 = vpop.permute.xlu0 %751
      %787 = vrot.lane.b32.xlu0 %v332, 48
      %v788 = vpop.permute.xlu0 %787
      %789 = vrot.lane.b32.xlu0 %v333, 48
      %v790 = vpop.permute.xlu0 %789
      %791 = vrot.lane.b32.xlu0 %v335, 48
      %v792 = vpop.permute.xlu0 %791
      %793 = vrot.lane.b32.xlu0 %v336, 48
      %v794 = vpop.permute.xlu0 %793
      %795 = vrot.lane.b32.xlu0 %v338, 48
      %v796 = vpop.permute.xlu0 %795
      %797 = vrot.lane.b32.xlu0 %v339, 48
      %v798 = vpop.permute.xlu0 %797
      %799 = vrot.lane.b32.xlu0 %v341, 48
      %v800 = vpop.permute.xlu0 %799
      %801 = vrot.lane.b32.xlu0 %v342, 48
      %v802 = vpop.permute.xlu0 %801
      %803 = vrot.lane.b32.xlu0 %v344, 48
      %v804 = vpop.permute.xlu0 %803
      %805 = vrot.lane.b32.xlu0 %v345, 48
      %v806 = vpop.permute.xlu0 %805
      %807 = vrot.lane.b32.xlu0 %v347, 48
      %v808 = vpop.permute.xlu0 %807
      %809 = vrot.lane.b32.xlu0 %v348, 48
      %v810 = vpop.permute.xlu0 %809
      %811 = vrot.lane.b32.xlu0 %v350, 48
      %v812 = vpop.permute.xlu0 %811
      %813 = vrot.lane.b32.xlu0 %v351, 48
      %v814 = vpop.permute.xlu0 %813
      %815 = vrot.lane.b32.xlu0 %v353, 48
      %v816 = vpop.permute.xlu0 %815
      %817 = vrot.lane.b32.xlu0 %v354, 48
      %v818 = vpop.permute.xlu0 %817
      %819 = vrot.lane.b32.xlu0 %v356, 48
      %v820 = vpop.permute.xlu0 %819
      %821 = vrot.lane.b32.xlu0 %v357, 48
      %v822 = vpop.permute.xlu0 %821
      %823 = vrot.lane.b32.xlu0 %v359, 48
      %v824 = vpop.permute.xlu0 %823
      %825 = vrot.lane.b32.xlu0 %v360, 48
      %v826 = vpop.permute.xlu0 %825
      %827 = vrot.lane.b32.xlu0 %v362, 48
      %v828 = vpop.permute.xlu0 %827
      %829 = vrot.lane.b32.xlu0 %v363, 48
      %v830 = vpop.permute.xlu0 %829
      %831 = vrot.lane.b32.xlu0 %v365, 48
      %v832 = vpop.permute.xlu0 %831
      %833 = vrot.lane.b32.xlu0 %v366, 48
      %v834 = vpop.permute.xlu0 %833
      %835 = vrot.lane.b32.xlu0 %v368, 48
      %v836 = vpop.permute.xlu0 %835
      %837 = vrot.lane.b32.xlu0 %v369, 48
      %v838 = vpop.permute.xlu0 %837
      %839 = vrot.lane.b32.xlu0 %v371, 48
      %v840 = vpop.permute.xlu0 %839
      %841 = vrot.lane.b32.xlu0 %v372, 48
      %v842 = vpop.permute.xlu0 %841
      %843 = vrot.lane.b32.xlu0 %v374, 48
      %v844 = vpop.permute.xlu0 %843
      %845 = vrot.lane.b32.xlu0 %v375, 48
      %v846 = vpop.permute.xlu0 %845
      %847 = vrot.lane.b32.xlu0 %v377, 48
      %v848 = vpop.permute.xlu0 %847
      %849 = vrot.lane.b32.xlu0 %v378, 48
      %v850 = vpop.permute.xlu0 %849
      %v884 = vrot.slane %v377, 1
      %v885 = vrot.slane %v378, 1
      %v886 = vsel %vm431, %v884, %v885
      %v887 = vrot.slane %v379, 1
      %v888 = vsel %vm431, %v885, %v887
      %889 = vrot.lane.b32.xlu0 %v439, 64
      %v890 = vpop.permute.xlu0 %889
      %891 = vrot.lane.b32.xlu0 %v441, 64
      %v892 = vpop.permute.xlu0 %891
      %893 = vrot.lane.b32.xlu0 %v444, 64
      %v894 = vpop.permute.xlu0 %893
      %895 = vrot.lane.b32.xlu0 %v446, 64
      %v896 = vpop.permute.xlu0 %895
      %897 = vrot.lane.b32.xlu0 %v449, 64
      %v898 = vpop.permute.xlu0 %897
      %899 = vrot.lane.b32.xlu0 %v451, 64
      %v900 = vpop.permute.xlu0 %899
      %901 = vrot.lane.b32.xlu0 %v454, 64
      %v902 = vpop.permute.xlu0 %901
      %903 = vrot.lane.b32.xlu0 %v456, 64
      %v904 = vpop.permute.xlu0 %903
      %905 = vrot.lane.b32.xlu0 %v459, 64
      %v906 = vpop.permute.xlu0 %905
      %907 = vrot.lane.b32.xlu0 %v461, 64
      %v908 = vpop.permute.xlu0 %907
      %909 = vrot.lane.b32.xlu0 %v464, 64
      %v910 = vpop.permute.xlu0 %909
      %911 = vrot.lane.b32.xlu0 %v466, 64
      %v912 = vpop.permute.xlu0 %911
      %913 = vrot.lane.b32.xlu0 %v469, 64
      %v914 = vpop.permute.xlu0 %913
      %915 = vrot.lane.b32.xlu0 %v471, 64
      %v916 = vpop.permute.xlu0 %915
      %917 = vrot.lane.b32.xlu0 %v474, 64
      %v918 = vpop.permute.xlu0 %917
      %919 = vrot.lane.b32.xlu0 %v476, 64
      %v920 = vpop.permute.xlu0 %919
      %921 = vrot.lane.b32.xlu0 %v479, 64
      %v922 = vpop.permute.xlu0 %921
      %923 = vrot.lane.b32.xlu0 %v481, 64
      %v924 = vpop.permute.xlu0 %923
      %925 = vrot.lane.b32.xlu0 %v484, 64
      %v926 = vpop.permute.xlu0 %925
      %927 = vrot.lane.b32.xlu0 %v486, 64
      %v928 = vpop.permute.xlu0 %927
      %929 = vrot.lane.b32.xlu0 %v489, 64
      %v930 = vpop.permute.xlu0 %929
      %931 = vrot.lane.b32.xlu0 %v491, 64
      %v932 = vpop.permute.xlu0 %931
      %933 = vrot.lane.b32.xlu0 %v494, 64
      %v934 = vpop.permute.xlu0 %933
      %935 = vrot.lane.b32.xlu0 %v496, 64
      %v936 = vpop.permute.xlu0 %935
      %937 = vrot.lane.b32.xlu0 %v499, 64
      %v938 = vpop.permute.xlu0 %937
      %939 = vrot.lane.b32.xlu0 %v501, 64
      %v940 = vpop.permute.xlu0 %939
      %941 = vrot.lane.b32.xlu0 %v504, 64
      %v942 = vpop.permute.xlu0 %941
      %943 = vrot.lane.b32.xlu0 %v506, 64
      %v944 = vpop.permute.xlu0 %943
      %945 = vrot.lane.b32.xlu0 %v509, 64
      %v946 = vpop.permute.xlu0 %945
      %947 = vrot.lane.b32.xlu0 %v511, 64
      %v948 = vpop.permute.xlu0 %947
      %949 = vrot.lane.b32.xlu0 %v886, 64
      %v950 = vpop.permute.xlu0 %949
      %951 = vrot.lane.b32.xlu0 %v888, 64
      %v952 = vpop.permute.xlu0 %951
      %v985 = vrot.slane %v377, 2
      %v986 = vrot.slane %v378, 2
      %v987 = vsel %vm608, %v985, %v986
      %v988 = vrot.slane %v379, 2
      %v989 = vsel %vm608, %v986, %v988
      %990 = vrot.lane.b32.xlu0 %v616, 80
      %v991 = vpop.permute.xlu0 %990
      %992 = vrot.lane.b32.xlu0 %v618, 80
      %v993 = vpop.permute.xlu0 %992
      %994 = vrot.lane.b32.xlu0 %v621, 80
      %v995 = vpop.permute.xlu0 %994
      %996 = vrot.lane.b32.xlu0 %v623, 80
      %v997 = vpop.permute.xlu0 %996
      %998 = vrot.lane.b32.xlu0 %v626, 80
      %v999 = vpop.permute.xlu0 %998
      %1000 = vrot.lane.b32.xlu0 %v628, 80
      %v1001 = vpop.permute.xlu0 %1000
      %1002 = vrot.lane.b32.xlu0 %v631, 80
      %v1003 = vpop.permute.xlu0 %1002
      %1004 = vrot.lane.b32.xlu0 %v633, 80
      %v1005 = vpop.permute.xlu0 %1004
      %1006 = vrot.lane.b32.xlu0 %v636, 80
      %v1007 = vpop.permute.xlu0 %1006
      %1008 = vrot.lane.b32.xlu0 %v638, 80
      %v1009 = vpop.permute.xlu0 %1008
      %1010 = vrot.lane.b32.xlu0 %v641, 80
      %v1011 = vpop.permute.xlu0 %1010
      %1012 = vrot.lane.b32.xlu0 %v643, 80
      %v1013 = vpop.permute.xlu0 %1012
      %1014 = vrot.lane.b32.xlu0 %v646, 80
      %v1015 = vpop.permute.xlu0 %1014
      %1016 = vrot.lane.b32.xlu0 %v648, 80
      %v1017 = vpop.permute.xlu0 %1016
      %1018 = vrot.lane.b32.xlu0 %v651, 80
      %v1019 = vpop.permute.xlu0 %1018
      %1020 = vrot.lane.b32.xlu0 %v653, 80
      %v1021 = vpop.permute.xlu0 %1020
      %1022 = vrot.lane.b32.xlu0 %v656, 80
      %v1023 = vpop.permute.xlu0 %1022
      %1024 = vrot.lane.b32.xlu0 %v658, 80
      %v1025 = vpop.permute.xlu0 %1024
      %1026 = vrot.lane.b32.xlu0 %v661, 80
      %v1027 = vpop.permute.xlu0 %1026
      %1028 = vrot.lane.b32.xlu0 %v663, 80
      %v1029 = vpop.permute.xlu0 %1028
      %1030 = vrot.lane.b32.xlu0 %v666, 80
      %v1031 = vpop.permute.xlu0 %1030
      %1032 = vrot.lane.b32.xlu0 %v668, 80
      %v1033 = vpop.permute.xlu0 %1032
      %1034 = vrot.lane.b32.xlu0 %v671, 80
      %v1035 = vpop.permute.xlu0 %1034
      %1036 = vrot.lane.b32.xlu0 %v673, 80
      %v1037 = vpop.permute.xlu0 %1036
      %1038 = vrot.lane.b32.xlu0 %v676, 80
      %v1039 = vpop.permute.xlu0 %1038
      %1040 = vrot.lane.b32.xlu0 %v678, 80
      %v1041 = vpop.permute.xlu0 %1040
      %1042 = vrot.lane.b32.xlu0 %v681, 80
      %v1043 = vpop.permute.xlu0 %1042
      %1044 = vrot.lane.b32.xlu0 %v683, 80
      %v1045 = vpop.permute.xlu0 %1044
      %1046 = vrot.lane.b32.xlu0 %v686, 80
      %v1047 = vpop.permute.xlu0 %1046
      %1048 = vrot.lane.b32.xlu0 %v688, 80
      %v1049 = vpop.permute.xlu0 %1048
      %1050 = vrot.lane.b32.xlu0 %v987, 80
      %v1051 = vpop.permute.xlu0 %1050
      %1052 = vrot.lane.b32.xlu0 %v989, 80
      %v1053 = vpop.permute.xlu0 %1052
      %1088 = vrot.lane.b32.xlu0 %v335, 96
      %v1089 = vpop.permute.xlu0 %1088
      %1090 = vrot.lane.b32.xlu0 %v336, 96
      %v1091 = vpop.permute.xlu0 %1090
      %1092 = vrot.lane.b32.xlu0 %v338, 96
      %v1093 = vpop.permute.xlu0 %1092
      %1094 = vrot.lane.b32.xlu0 %v339, 96
      %v1095 = vpop.permute.xlu0 %1094
      %1096 = vrot.lane.b32.xlu0 %v341, 96
      %v1097 = vpop.permute.xlu0 %1096
      %1098 = vrot.lane.b32.xlu0 %v342, 96
      %v1099 = vpop.permute.xlu0 %1098
      %1100 = vrot.lane.b32.xlu0 %v344, 96
      %v1101 = vpop.permute.xlu0 %1100
      %1102 = vrot.lane.b32.xlu0 %v345, 96
      %v1103 = vpop.permute.xlu0 %1102
      %1104 = vrot.lane.b32.xlu0 %v347, 96
      %v1105 = vpop.permute.xlu0 %1104
      %1106 = vrot.lane.b32.xlu0 %v348, 96
      %v1107 = vpop.permute.xlu0 %1106
      %1108 = vrot.lane.b32.xlu0 %v350, 96
      %v1109 = vpop.permute.xlu0 %1108
      %1110 = vrot.lane.b32.xlu0 %v351, 96
      %v1111 = vpop.permute.xlu0 %1110
      %1112 = vrot.lane.b32.xlu0 %v353, 96
      %v1113 = vpop.permute.xlu0 %1112
      %1114 = vrot.lane.b32.xlu0 %v354, 96
      %v1115 = vpop.permute.xlu0 %1114
      %1116 = vrot.lane.b32.xlu0 %v356, 96
      %v1117 = vpop.permute.xlu0 %1116
      %1118 = vrot.lane.b32.xlu0 %v357, 96
      %v1119 = vpop.permute.xlu0 %1118
      %1120 = vrot.lane.b32.xlu0 %v359, 96
      %v1121 = vpop.permute.xlu0 %1120
      %1122 = vrot.lane.b32.xlu0 %v360, 96
      %v1123 = vpop.permute.xlu0 %1122
      %1124 = vrot.lane.b32.xlu0 %v362, 96
      %v1125 = vpop.permute.xlu0 %1124
      %1126 = vrot.lane.b32.xlu0 %v363, 96
      %v1127 = vpop.permute.xlu0 %1126
      %1128 = vrot.lane.b32.xlu0 %v365, 96
      %v1129 = vpop.permute.xlu0 %1128
      %1130 = vrot.lane.b32.xlu0 %v366, 96
      %v1131 = vpop.permute.xlu0 %1130
      %1132 = vrot.lane.b32.xlu0 %v368, 96
      %v1133 = vpop.permute.xlu0 %1132
      %1134 = vrot.lane.b32.xlu0 %v369, 96
      %v1135 = vpop.permute.xlu0 %1134
      %1136 = vrot.lane.b32.xlu0 %v371, 96
      %v1137 = vpop.permute.xlu0 %1136
      %1138 = vrot.lane.b32.xlu0 %v372, 96
      %v1139 = vpop.permute.xlu0 %1138
      %1140 = vrot.lane.b32.xlu0 %v374, 96
      %v1141 = vpop.permute.xlu0 %1140
      %1142 = vrot.lane.b32.xlu0 %v375, 96
      %v1143 = vpop.permute.xlu0 %1142
      %1144 = vrot.lane.b32.xlu0 %v377, 96
      %v1145 = vpop.permute.xlu0 %1144
      %1146 = vrot.lane.b32.xlu0 %v378, 96
      %v1147 = vpop.permute.xlu0 %1146
      %1148 = vrot.lane.b32.xlu0 %v380, 96
      %v1149 = vpop.permute.xlu0 %1148
      %1150 = vrot.lane.b32.xlu0 %v381, 96
      %v1151 = vpop.permute.xlu0 %1150
      %v1185 = vrot.slane %v380, 1
      %v1186 = vrot.slane %v381, 1
      %v1187 = vsel %vm431, %v1185, %v1186
      %v1188 = vrot.slane %v382, 1
      %v1189 = vsel %vm431, %v1186, %v1188
      %1190 = vrot.lane.b32.xlu0 %v444, 112
      %v1191 = vpop.permute.xlu0 %1190
      %1192 = vrot.lane.b32.xlu0 %v446, 112
      %v1193 = vpop.permute.xlu0 %1192
      %1194 = vrot.lane.b32.xlu0 %v449, 112
      %v1195 = vpop.permute.xlu0 %1194
      %1196 = vrot.lane.b32.xlu0 %v451, 112
      %v1197 = vpop.permute.xlu0 %1196
      %1198 = vrot.lane.b32.xlu0 %v454, 112
      %v1199 = vpop.permute.xlu0 %1198
      %1200 = vrot.lane.b32.xlu0 %v456, 112
      %v1201 = vpop.permute.xlu0 %1200
      %1202 = vrot.lane.b32.xlu0 %v459, 112
      %v1203 = vpop.permute.xlu0 %1202
      %1204 = vrot.lane.b32.xlu0 %v461, 112
      %v1205 = vpop.permute.xlu0 %1204
      %1206 = vrot.lane.b32.xlu0 %v464, 112
      %v1207 = vpop.permute.xlu0 %1206
      %1208 = vrot.lane.b32.xlu0 %v466, 112
      %v1209 = vpop.permute.xlu0 %1208
      %1210 = vrot.lane.b32.xlu0 %v469, 112
      %v1211 = vpop.permute.xlu0 %1210
      %1212 = vrot.lane.b32.xlu0 %v471, 112
      %v1213 = vpop.permute.xlu0 %1212
      %1214 = vrot.lane.b32.xlu0 %v474, 112
      %v1215 = vpop.permute.xlu0 %1214
      %1216 = vrot.lane.b32.xlu0 %v476, 112
      %v1217 = vpop.permute.xlu0 %1216
      %1218 = vrot.lane.b32.xlu0 %v479, 112
      %v1219 = vpop.permute.xlu0 %1218
      %1220 = vrot.lane.b32.xlu0 %v481, 112
      %v1221 = vpop.permute.xlu0 %1220
      %1222 = vrot.lane.b32.xlu0 %v484, 112
      %v1223 = vpop.permute.xlu0 %1222
      %1224 = vrot.lane.b32.xlu0 %v486, 112
      %v1225 = vpop.permute.xlu0 %1224
      %1226 = vrot.lane.b32.xlu0 %v489, 112
      %v1227 = vpop.permute.xlu0 %1226
      %1228 = vrot.lane.b32.xlu0 %v491, 112
      %v1229 = vpop.permute.xlu0 %1228
      %1230 = vrot.lane.b32.xlu0 %v494, 112
      %v1231 = vpop.permute.xlu0 %1230
      %1232 = vrot.lane.b32.xlu0 %v496, 112
      %v1233 = vpop.permute.xlu0 %1232
      %1234 = vrot.lane.b32.xlu0 %v499, 112
      %v1235 = vpop.permute.xlu0 %1234
      %1236 = vrot.lane.b32.xlu0 %v501, 112
      %v1237 = vpop.permute.xlu0 %1236
      %1238 = vrot.lane.b32.xlu0 %v504, 112
      %v1239 = vpop.permute.xlu0 %1238
      %1240 = vrot.lane.b32.xlu0 %v506, 112
      %v1241 = vpop.permute.xlu0 %1240
      %1242 = vrot.lane.b32.xlu0 %v509, 112
      %v1243 = vpop.permute.xlu0 %1242
      %1244 = vrot.lane.b32.xlu0 %v511, 112
      %v1245 = vpop.permute.xlu0 %1244
      %1246 = vrot.lane.b32.xlu0 %v886, 112
      %v1247 = vpop.permute.xlu0 %1246
      %1248 = vrot.lane.b32.xlu0 %v888, 112
      %v1249 = vpop.permute.xlu0 %1248
      %1250 = vrot.lane.b32.xlu0 %v1187, 112
      %v1251 = vpop.permute.xlu0 %1250
      %1252 = vrot.lane.b32.xlu0 %v1189, 112
      %v1253 = vpop.permute.xlu0 %1252
      %v1286 = vrot.slane %v380, 2
      %v1287 = vrot.slane %v381, 2
      %v1288 = vsel %vm608, %v1286, %v1287
      %v1289 = vrot.slane %v382, 2
      %v1290 = vsel %vm608, %v1287, %v1289
      %vm1323 = vcmask 130048
      %v1324 = vsel %vm1323, %v329, %v513
      %v1325 = vsel %vm1323, %v330, %v515
      %v1326 = vsel %vm1323, %v332, %v517
      %v1327 = vsel %vm1323, %v333, %v519
      %v1328 = vsel %vm1323, %v335, %v521
      %v1329 = vsel %vm1323, %v336, %v523
      %v1330 = vsel %vm1323, %v338, %v525
      %v1331 = vsel %vm1323, %v339, %v527
      %v1332 = vsel %vm1323, %v341, %v529
      %v1333 = vsel %vm1323, %v342, %v531
      %v1334 = vsel %vm1323, %v344, %v533
      %v1335 = vsel %vm1323, %v345, %v535
      %v1336 = vsel %vm1323, %v347, %v537
      %v1337 = vsel %vm1323, %v348, %v539
      %v1338 = vsel %vm1323, %v350, %v541
      %v1339 = vsel %vm1323, %v351, %v543
      %v1340 = vsel %vm1323, %v353, %v545
      %v1341 = vsel %vm1323, %v354, %v547
      %v1342 = vsel %vm1323, %v356, %v549
      %v1343 = vsel %vm1323, %v357, %v551
      %v1344 = vsel %vm1323, %v359, %v553
      %v1345 = vsel %vm1323, %v360, %v555
      %v1346 = vsel %vm1323, %v362, %v557
      %v1347 = vsel %vm1323, %v363, %v559
      %v1348 = vsel %vm1323, %v365, %v561
      %v1349 = vsel %vm1323, %v366, %v563
      %v1350 = vsel %vm1323, %v368, %v565
      %v1351 = vsel %vm1323, %v369, %v567
      %v1352 = vsel %vm1323, %v371, %v569
      %v1353 = vsel %vm1323, %v372, %v571
      %v1354 = vsel %vm1323, %v374, %v573
      %v1355 = vsel %vm1323, %v375, %v575
      %vm1356 = vcmask 261120
      %v1357 = vsel %vm1356, %v1324, %v690
      %v1358 = vsel %vm1356, %v1325, %v692
      %v1359 = vsel %vm1356, %v1326, %v694
      %v1360 = vsel %vm1356, %v1327, %v696
      %v1361 = vsel %vm1356, %v1328, %v698
      %v1362 = vsel %vm1356, %v1329, %v700
      %v1363 = vsel %vm1356, %v1330, %v702
      %v1364 = vsel %vm1356, %v1331, %v704
      %v1365 = vsel %vm1356, %v1332, %v706
      %v1366 = vsel %vm1356, %v1333, %v708
      %v1367 = vsel %vm1356, %v1334, %v710
      %v1368 = vsel %vm1356, %v1335, %v712
      %v1369 = vsel %vm1356, %v1336, %v714
      %v1370 = vsel %vm1356, %v1337, %v716
      %v1371 = vsel %vm1356, %v1338, %v718
      %v1372 = vsel %vm1356, %v1339, %v720
      %v1373 = vsel %vm1356, %v1340, %v722
      %v1374 = vsel %vm1356, %v1341, %v724
      %v1375 = vsel %vm1356, %v1342, %v726
      %v1376 = vsel %vm1356, %v1343, %v728
      %v1377 = vsel %vm1356, %v1344, %v730
      %v1378 = vsel %vm1356, %v1345, %v732
      %v1379 = vsel %vm1356, %v1346, %v734
      %v1380 = vsel %vm1356, %v1347, %v736
      %v1381 = vsel %vm1356, %v1348, %v738
      %v1382 = vsel %vm1356, %v1349, %v740
      %v1383 = vsel %vm1356, %v1350, %v742
      %v1384 = vsel %vm1356, %v1351, %v744
      %v1385 = vsel %vm1356, %v1352, %v746
      %v1386 = vsel %vm1356, %v1353, %v748
      %v1387 = vsel %vm1356, %v1354, %v750
      %v1388 = vsel %vm1356, %v1355, %v752
      %vm1389 = vcmask 392192
      %v1390 = vsel %vm1389, %v1357, %v788
      %v1391 = vsel %vm1389, %v1358, %v790
      %v1392 = vsel %vm1389, %v1359, %v792
      %v1393 = vsel %vm1389, %v1360, %v794
      %v1394 = vsel %vm1389, %v1361, %v796
      %v1395 = vsel %vm1389, %v1362, %v798
      %v1396 = vsel %vm1389, %v1363, %v800
      %v1397 = vsel %vm1389, %v1364, %v802
      %v1398 = vsel %vm1389, %v1365, %v804
      %v1399 = vsel %vm1389, %v1366, %v806
      %v1400 = vsel %vm1389, %v1367, %v808
      %v1401 = vsel %vm1389, %v1368, %v810
      %v1402 = vsel %vm1389, %v1369, %v812
      %v1403 = vsel %vm1389, %v1370, %v814
      %v1404 = vsel %vm1389, %v1371, %v816
      %v1405 = vsel %vm1389, %v1372, %v818
      %v1406 = vsel %vm1389, %v1373, %v820
      %v1407 = vsel %vm1389, %v1374, %v822
      %v1408 = vsel %vm1389, %v1375, %v824
      %v1409 = vsel %vm1389, %v1376, %v826
      %v1410 = vsel %vm1389, %v1377, %v828
      %v1411 = vsel %vm1389, %v1378, %v830
      %v1412 = vsel %vm1389, %v1379, %v832
      %v1413 = vsel %vm1389, %v1380, %v834
      %v1414 = vsel %vm1389, %v1381, %v836
      %v1415 = vsel %vm1389, %v1382, %v838
      %v1416 = vsel %vm1389, %v1383, %v840
      %v1417 = vsel %vm1389, %v1384, %v842
      %v1418 = vsel %vm1389, %v1385, %v844
      %v1419 = vsel %vm1389, %v1386, %v846
      %v1420 = vsel %vm1389, %v1387, %v848
      %v1421 = vsel %vm1389, %v1388, %v850
      %vm1422 = vcmask 523264
      %v1423 = vsel %vm1422, %v1390, %v890
      %v1424 = vsel %vm1422, %v1391, %v892
      %v1425 = vsel %vm1422, %v1392, %v894
      %v1426 = vsel %vm1422, %v1393, %v896
      %v1427 = vsel %vm1422, %v1394, %v898
      %v1428 = vsel %vm1422, %v1395, %v900
      %v1429 = vsel %vm1422, %v1396, %v902
      %v1430 = vsel %vm1422, %v1397, %v904
      %v1431 = vsel %vm1422, %v1398, %v906
      %v1432 = vsel %vm1422, %v1399, %v908
      %v1433 = vsel %vm1422, %v1400, %v910
      %v1434 = vsel %vm1422, %v1401, %v912
      %v1435 = vsel %vm1422, %v1402, %v914
      %v1436 = vsel %vm1422, %v1403, %v916
      %v1437 = vsel %vm1422, %v1404, %v918
      %v1438 = vsel %vm1422, %v1405, %v920
      %v1439 = vsel %vm1422, %v1406, %v922
      %v1440 = vsel %vm1422, %v1407, %v924
      %v1441 = vsel %vm1422, %v1408, %v926
      %v1442 = vsel %vm1422, %v1409, %v928
      %v1443 = vsel %vm1422, %v1410, %v930
      %v1444 = vsel %vm1422, %v1411, %v932
      %v1445 = vsel %vm1422, %v1412, %v934
      %v1446 = vsel %vm1422, %v1413, %v936
      %v1447 = vsel %vm1422, %v1414, %v938
      %v1448 = vsel %vm1422, %v1415, %v940
      %v1449 = vsel %vm1422, %v1416, %v942
      %v1450 = vsel %vm1422, %v1417, %v944
      %v1451 = vsel %vm1422, %v1418, %v946
      %v1452 = vsel %vm1422, %v1419, %v948
      %v1453 = vsel %vm1422, %v1420, %v950
      %v1454 = vsel %vm1422, %v1421, %v952
      %vm1455 = vcmask 654336
      %v1456 = vsel %vm1455, %v1423, %v991
      %v1457 = vsel %vm1455, %v1424, %v993
      %v1458 = vsel %vm1455, %v1425, %v995
      %v1459 = vsel %vm1455, %v1426, %v997
      %v1460 = vsel %vm1455, %v1427, %v999
      %v1461 = vsel %vm1455, %v1428, %v1001
      %v1462 = vsel %vm1455, %v1429, %v1003
      %v1463 = vsel %vm1455, %v1430, %v1005
      %v1464 = vsel %vm1455, %v1431, %v1007
      %v1465 = vsel %vm1455, %v1432, %v1009
      %v1466 = vsel %vm1455, %v1433, %v1011
      %v1467 = vsel %vm1455, %v1434, %v1013
      %v1468 = vsel %vm1455, %v1435, %v1015
      %v1469 = vsel %vm1455, %v1436, %v1017
      %v1470 = vsel %vm1455, %v1437, %v1019
      %v1471 = vsel %vm1455, %v1438, %v1021
      %v1472 = vsel %vm1455, %v1439, %v1023
      %v1473 = vsel %vm1455, %v1440, %v1025
      %v1474 = vsel %vm1455, %v1441, %v1027
      %v1475 = vsel %vm1455, %v1442, %v1029
      %v1476 = vsel %vm1455, %v1443, %v1031
      %v1477 = vsel %vm1455, %v1444, %v1033
      %v1478 = vsel %vm1455, %v1445, %v1035
      %v1479 = vsel %vm1455, %v1446, %v1037
      %v1480 = vsel %vm1455, %v1447, %v1039
      %v1481 = vsel %vm1455, %v1448, %v1041
      %v1482 = vsel %vm1455, %v1449, %v1043
      %v1483 = vsel %vm1455, %v1450, %v1045
      %v1484 = vsel %vm1455, %v1451, %v1047
      %v1485 = vsel %vm1455, %v1452, %v1049
      %v1486 = vsel %vm1455, %v1453, %v1051
      %v1487 = vsel %vm1455, %v1454, %v1053
      %vm1488 = vcmask 785408
      %v1489 = vsel %vm1488, %v1456, %v1089
      %v1490 = vsel %vm1488, %v1457, %v1091
      %v1491 = vsel %vm1488, %v1458, %v1093
      %v1492 = vsel %vm1488, %v1459, %v1095
      %v1493 = vsel %vm1488, %v1460, %v1097
      %v1494 = vsel %vm1488, %v1461, %v1099
      %v1495 = vsel %vm1488, %v1462, %v1101
      %v1496 = vsel %vm1488, %v1463, %v1103
      %v1497 = vsel %vm1488, %v1464, %v1105
      %v1498 = vsel %vm1488, %v1465, %v1107
      %v1499 = vsel %vm1488, %v1466, %v1109
      %v1500 = vsel %vm1488, %v1467, %v1111
      %v1501 = vsel %vm1488, %v1468, %v1113
      %v1502 = vsel %vm1488, %v1469, %v1115
      %v1503 = vsel %vm1488, %v1470, %v1117
      %v1504 = vsel %vm1488, %v1471, %v1119
      %v1505 = vsel %vm1488, %v1472, %v1121
      %v1506 = vsel %vm1488, %v1473, %v1123
      %v1507 = vsel %vm1488, %v1474, %v1125
      %v1508 = vsel %vm1488, %v1475, %v1127
      %v1509 = vsel %vm1488, %v1476, %v1129
      %v1510 = vsel %vm1488, %v1477, %v1131
      %v1511 = vsel %vm1488, %v1478, %v1133
      %v1512 = vsel %vm1488, %v1479, %v1135
      %v1513 = vsel %vm1488, %v1480, %v1137
      %v1514 = vsel %vm1488, %v1481, %v1139
      %v1515 = vsel %vm1488, %v1482, %v1141
      %v1516 = vsel %vm1488, %v1483, %v1143
      %v1517 = vsel %vm1488, %v1484, %v1145
      %v1518 = vsel %vm1488, %v1485, %v1147
      %v1519 = vsel %vm1488, %v1486, %v1149
      %v1520 = vsel %vm1488, %v1487, %v1151
      %vm1521 = vcmask 916480
      %v1522 = vsel %vm1521, %v1489, %v1191
      %v1523 = vsel %vm1521, %v1490, %v1193
      %v1524 = vsel %vm1521, %v1491, %v1195
      %v1525 = vsel %vm1521, %v1492, %v1197
      %v1526 = vsel %vm1521, %v1493, %v1199
      %v1527 = vsel %vm1521, %v1494, %v1201
      %v1528 = vsel %vm1521, %v1495, %v1203
      %v1529 = vsel %vm1521, %v1496, %v1205
      %v1530 = vsel %vm1521, %v1497, %v1207
      %v1531 = vsel %vm1521, %v1498, %v1209
      %v1532 = vsel %vm1521, %v1499, %v1211
      %v1533 = vsel %vm1521, %v1500, %v1213
      %v1534 = vsel %vm1521, %v1501, %v1215
      %v1535 = vsel %vm1521, %v1502, %v1217
      %v1536 = vsel %vm1521, %v1503, %v1219
      %v1537 = vsel %vm1521, %v1504, %v1221
      %v1538 = vsel %vm1521, %v1505, %v1223
      %v1539 = vsel %vm1521, %v1506, %v1225
      %v1540 = vsel %vm1521, %v1507, %v1227
      %v1541 = vsel %vm1521, %v1508, %v1229
      %v1542 = vsel %vm1521, %v1509, %v1231
      %v1543 = vsel %vm1521, %v1510, %v1233
      %v1544 = vsel %vm1521, %v1511, %v1235
      %v1545 = vsel %vm1521, %v1512, %v1237
      %v1546 = vsel %vm1521, %v1513, %v1239
      %v1547 = vsel %vm1521, %v1514, %v1241
      %v1548 = vsel %vm1521, %v1515, %v1243
      %v1549 = vsel %vm1521, %v1516, %v1245
      %v1550 = vsel %vm1521, %v1517, %v1247
      %v1551 = vsel %vm1521, %v1518, %v1249
      %v1552 = vsel %vm1521, %v1519, %v1251
      %v1553 = vsel %vm1521, %v1520, %v1253
      %v1554 = vpack.c.bf16 %v1523, %v1522
      %v1555 = vpack.c.bf16 %v623, %v621
      %v1556 = vpack.c.bf16 %v1525, %v1524
      %v1557 = vpack.c.bf16 %v628, %v626
      %v1558 = vpack.c.bf16 %v1527, %v1526
      %v1559 = vpack.c.bf16 %v633, %v631
      %v1560 = vpack.c.bf16 %v1529, %v1528
      %v1561 = vpack.c.bf16 %v638, %v636
      %v1562 = vpack.c.bf16 %v1531, %v1530
      %v1563 = vpack.c.bf16 %v643, %v641
      %v1564 = vpack.c.bf16 %v1533, %v1532
      %v1565 = vpack.c.bf16 %v648, %v646
      %v1566 = vpack.c.bf16 %v1535, %v1534
      %v1567 = vpack.c.bf16 %v653, %v651
      %v1568 = vpack.c.bf16 %v1537, %v1536
      %v1569 = vpack.c.bf16 %v658, %v656
      %v1570 = vpack.c.bf16 %v1539, %v1538
      %v1571 = vpack.c.bf16 %v663, %v661
      %v1572 = vpack.c.bf16 %v1541, %v1540
      %v1573 = vpack.c.bf16 %v668, %v666
      %v1574 = vpack.c.bf16 %v1543, %v1542
      %v1575 = vpack.c.bf16 %v673, %v671
      %v1576 = vpack.c.bf16 %v1545, %v1544
      %v1577 = vpack.c.bf16 %v678, %v676
      %v1578 = vpack.c.bf16 %v1547, %v1546
      %v1579 = vpack.c.bf16 %v683, %v681
      %v1580 = vpack.c.bf16 %v1549, %v1548
      %v1581 = vpack.c.bf16 %v688, %v686
      %v1582 = vpack.c.bf16 %v1551, %v1550
      %v1583 = vpack.c.bf16 %v989, %v987
      %v1584 = vpack.c.bf16 %v1553, %v1552
      %v1585 = vpack.c.bf16 %v1290, %v1288
      %v1586 = vld [vmem:[%s2] sm:$0xf]
      %v1587 = vld [vmem:[%s2 + $0x4] sm:$0xf]
      %v1588 = vld [vmem:[%s2 + $0x8] sm:$0xf]
      %v1589 = vld [vmem:[%s2 + $0xc] sm:$0xf]
      %v1590 = vld [vmem:[%s2 + $0x10] sm:$0xf]
      %v1591 = vld [vmem:[%s2 + $0x14] sm:$0xf]
      %v1592 = vld [vmem:[%s2 + $0x18] sm:$0xf]
      %v1593 = vld [vmem:[%s2 + $0x1c] sm:$0xf]
      %v1594 = vld [vmem:[%s2 + $0x20] sm:$0xf]
      %v1595 = vld [vmem:[%s2 + $0x24] sm:$0xf]
      %v1596 = vld [vmem:[%s2 + $0x28] sm:$0xf]
      %v1597 = vld [vmem:[%s2 + $0x2c] sm:$0xf]
      %v1598 = vld [vmem:[%s2 + $0x30] sm:$0xf]
      %v1599 = vld [vmem:[%s2 + $0x34] sm:$0xf]
      %v1600 = vld [vmem:[%s2 + $0x38] sm:$0xf]
      %v1601 = vld [vmem:[%s2 + $0x3c] sm:$0xf]
      %v1602 = vld [vmem:[%s2 + $0x40] sm:$0xf]
      %v1603 = vld [vmem:[%s2 + $0x44] sm:$0xf]
      %s1604 = smul.addr %s272, 4
      %s1605 = scalar_lea.vmem %s258, %s1604
      %v1606 = vld [vmem:[%s1605] sm:$0xf]
      %v1607 = vld [vmem:[%s1605 + $0x4] sm:$0xf]
      %v1608 = vld [vmem:[%s1605 + $0x8] sm:$0x1]
      %v1609 = vld [vmem:[%s1605 + $0xc] sm:$0xf]
      %v1610 = vld [vmem:[%s1605 + $0x10] sm:$0xf]
      %v1611 = vld [vmem:[%s1605 + $0x14] sm:$0x1]
      %v1612 = vld [vmem:[%s1605 + $0x18] sm:$0xf]
      %v1613 = vld [vmem:[%s1605 + $0x1c] sm:$0xf]
      %v1614 = vld [vmem:[%s1605 + $0x20] sm:$0x1]
      %v1615 = vld [vmem:[%s1605 + $0x24] sm:$0xf]
      %v1616 = vld [vmem:[%s1605 + $0x28] sm:$0xf]
      %v1617 = vld [vmem:[%s1605 + $0x2c] sm:$0x1]
      %v1618 = vld [vmem:[%s1605 + $0x30] sm:$0xf]
      %v1619 = vld [vmem:[%s1605 + $0x34] sm:$0xf]
      %v1620 = vld [vmem:[%s1605 + $0x38] sm:$0x1]
      %v1621 = vld [vmem:[%s1605 + $0x3c] sm:$0xf]
      %v1622 = vld [vmem:[%s1605 + $0x40] sm:$0xf]
      %v1623 = vld [vmem:[%s1605 + $0x44] sm:$0x1]
      %v1624 = vld [vmem:[%s1605 + $0x48] sm:$0xf]
      %v1625 = vld [vmem:[%s1605 + $0x4c] sm:$0xf]
      %v1626 = vld [vmem:[%s1605 + $0x50] sm:$0x1]
      %v1627 = vld [vmem:[%s1605 + $0x54] sm:$0xf]
      %v1628 = vld [vmem:[%s1605 + $0x58] sm:$0xf]
      %v1629 = vld [vmem:[%s1605 + $0x5c] sm:$0x1]
      %v1630 = vld [vmem:[%s1605 + $0x60] sm:$0xf]
      %v1631 = vld [vmem:[%s1605 + $0x64] sm:$0xf]
      %v1632 = vld [vmem:[%s1605 + $0x68] sm:$0x1]
      %v1633 = vld [vmem:[%s1605 + $0x6c] sm:$0xf]
      %v1634 = vld [vmem:[%s1605 + $0x70] sm:$0xf]
      %v1635 = vld [vmem:[%s1605 + $0x74] sm:$0x1]
      %v1636 = vld [vmem:[%s1605 + $0x78] sm:$0xf]
      %v1637 = vld [vmem:[%s1605 + $0x7c] sm:$0xf]
      %v1638 = vld [vmem:[%s1605 + $0x80] sm:$0x1]
      %v1639 = vld [vmem:[%s1605 + $0x84] sm:$0xf]
      %v1640 = vld [vmem:[%s1605 + $0x88] sm:$0xf]
      %v1641 = vld [vmem:[%s1605 + $0x8c] sm:$0x1]
      %v1642 = vld [vmem:[%s1605 + $0x90] sm:$0xf]
      %v1643 = vld [vmem:[%s1605 + $0x94] sm:$0xf]
      %v1644 = vld [vmem:[%s1605 + $0x98] sm:$0x1]
      %v1645 = vld [vmem:[%s1605 + $0x9c] sm:$0xf]
      %v1646 = vld [vmem:[%s1605 + $0xa0] sm:$0xf]
      %v1647 = vld [vmem:[%s1605 + $0xa4] sm:$0x1]
      %v1648 = vld [vmem:[%s1605 + $0xa8] sm:$0xf]
      %v1649 = vld [vmem:[%s1605 + $0xac] sm:$0xf]
      %v1650 = vld [vmem:[%s1605 + $0xb0] sm:$0x1]
      %v1651 = vld [vmem:[%s1605 + $0xb4] sm:$0xf]
      %v1652 = vld [vmem:[%s1605 + $0xb8] sm:$0xf]
      %v1653 = vld [vmem:[%s1605 + $0xbc] sm:$0x1]
      %v1654 = vld [vmem:[%s1605 + $0xc0] sm:$0xf]
      %v1655 = vld [vmem:[%s1605 + $0xc4] sm:$0xf]
      %v1656 = vld [vmem:[%s1605 + $0xc8] sm:$0x1]
      %v1657 = vld [vmem:[%s1605 + $0xcc] sm:$0xf]
      %v1658 = vld [vmem:[%s1605 + $0xd0] sm:$0xf]
      %v1659 = vld [vmem:[%s1605 + $0xd4] sm:$0x1]
      %v1660 = vunpack.c.l.bf16 %v1606
      %v1661 = vunpack.c.l.bf16 %v1607
      %v1662 = vunpack.c.l.bf16 %v1608
      %v1663 = vunpack.c.l.bf16 %v1609
      %v1664 = vunpack.c.l.bf16 %v1610
      %v1665 = vunpack.c.l.bf16 %v1611
      %v1666 = vunpack.c.l.bf16 %v1612
      %v1667 = vunpack.c.l.bf16 %v1613
      %v1668 = vunpack.c.l.bf16 %v1614
      %v1669 = vunpack.c.l.bf16 %v1615
      %v1670 = vunpack.c.l.bf16 %v1616
      %v1671 = vunpack.c.l.bf16 %v1617
      %v1672 = vunpack.c.l.bf16 %v1618
      %v1673 = vunpack.c.l.bf16 %v1619
      %v1674 = vunpack.c.l.bf16 %v1620
      %v1675 = vunpack.c.l.bf16 %v1621
      %v1676 = vunpack.c.l.bf16 %v1622
      %v1677 = vunpack.c.l.bf16 %v1623
      %v1678 = vunpack.c.l.bf16 %v1624
      %v1679 = vunpack.c.l.bf16 %v1625
      %v1680 = vunpack.c.l.bf16 %v1626
      %v1681 = vunpack.c.l.bf16 %v1627
      %v1682 = vunpack.c.l.bf16 %v1628
      %v1683 = vunpack.c.l.bf16 %v1629
      %v1684 = vunpack.c.l.bf16 %v1630
      %v1685 = vunpack.c.l.bf16 %v1631
      %v1686 = vunpack.c.l.bf16 %v1632
      %v1687 = vunpack.c.l.bf16 %v1633
      %v1688 = vunpack.c.l.bf16 %v1634
      %v1689 = vunpack.c.l.bf16 %v1635
      %v1690 = vunpack.c.l.bf16 %v1636
      %v1691 = vunpack.c.l.bf16 %v1637
      %v1692 = vunpack.c.l.bf16 %v1638
      %v1693 = vunpack.c.l.bf16 %v1639
      %v1694 = vunpack.c.l.bf16 %v1640
      %v1695 = vunpack.c.l.bf16 %v1641
      %v1696 = vunpack.c.l.bf16 %v1642
      %v1697 = vunpack.c.l.bf16 %v1643
      %v1698 = vunpack.c.l.bf16 %v1644
      %v1699 = vunpack.c.l.bf16 %v1645
      %v1700 = vunpack.c.l.bf16 %v1646
      %v1701 = vunpack.c.l.bf16 %v1647
      %v1702 = vunpack.c.l.bf16 %v1648
      %v1703 = vunpack.c.l.bf16 %v1649
      %v1704 = vunpack.c.l.bf16 %v1650
      %v1705 = vunpack.c.l.bf16 %v1651
      %v1706 = vunpack.c.l.bf16 %v1652
      %v1707 = vunpack.c.l.bf16 %v1653
      %v1708 = vunpack.c.l.bf16 %v1654
      %v1709 = vunpack.c.l.bf16 %v1655
      %v1710 = vunpack.c.l.bf16 %v1656
      %v1711 = vunpack.c.l.bf16 %v1657
      %v1712 = vunpack.c.l.bf16 %v1658
      %v1713 = vunpack.c.l.bf16 %v1659
      %v1762 = vrot.slane %v1660, 1
      %v1763 = vrot.slane %v1661, 1
      %v1764 = vsel %vm431, %v1762, %v1763
      %v1765 = vrot.slane %v1662, 1
      %v1766 = vsel %vm431, %v1763, %v1765
      %v1767 = vrot.slane %v1663, 1
      %v1768 = vrot.slane %v1664, 1
      %v1769 = vsel %vm431, %v1767, %v1768
      %v1770 = vrot.slane %v1665, 1
      %v1771 = vsel %vm431, %v1768, %v1770
      %v1772 = vrot.slane %v1666, 1
      %v1773 = vrot.slane %v1667, 1
      %v1774 = vsel %vm431, %v1772, %v1773
      %v1775 = vrot.slane %v1668, 1
      %v1776 = vsel %vm431, %v1773, %v1775
      %v1777 = vrot.slane %v1669, 1
      %v1778 = vrot.slane %v1670, 1
      %v1779 = vsel %vm431, %v1777, %v1778
      %v1780 = vrot.slane %v1671, 1
      %v1781 = vsel %vm431, %v1778, %v1780
      %v1782 = vrot.slane %v1672, 1
      %v1783 = vrot.slane %v1673, 1
      %v1784 = vsel %vm431, %v1782, %v1783
      %v1785 = vrot.slane %v1674, 1
      %v1786 = vsel %vm431, %v1783, %v1785
      %v1787 = vrot.slane %v1675, 1
      %v1788 = vrot.slane %v1676, 1
      %v1789 = vsel %vm431, %v1787, %v1788
      %v1790 = vrot.slane %v1677, 1
      %v1791 = vsel %vm431, %v1788, %v1790
      %v1792 = vrot.slane %v1678, 1
      %v1793 = vrot.slane %v1679, 1
      %v1794 = vsel %vm431, %v1792, %v1793
      %v1795 = vrot.slane %v1680, 1
      %v1796 = vsel %vm431, %v1793, %v1795
      %v1797 = vrot.slane %v1681, 1
      %v1798 = vrot.slane %v1682, 1
      %v1799 = vsel %vm431, %v1797, %v1798
      %v1800 = vrot.slane %v1683, 1
      %v1801 = vsel %vm431, %v1798, %v1800
      %v1802 = vrot.slane %v1684, 1
      %v1803 = vrot.slane %v1685, 1
      %v1804 = vsel %vm431, %v1802, %v1803
      %v1805 = vrot.slane %v1686, 1
      %v1806 = vsel %vm431, %v1803, %v1805
      %v1807 = vrot.slane %v1687, 1
      %v1808 = vrot.slane %v1688, 1
      %v1809 = vsel %vm431, %v1807, %v1808
      %v1810 = vrot.slane %v1689, 1
      %v1811 = vsel %vm431, %v1808, %v1810
      %v1812 = vrot.slane %v1690, 1
      %v1813 = vrot.slane %v1691, 1
      %v1814 = vsel %vm431, %v1812, %v1813
      %v1815 = vrot.slane %v1692, 1
      %v1816 = vsel %vm431, %v1813, %v1815
      %v1817 = vrot.slane %v1693, 1
      %v1818 = vrot.slane %v1694, 1
      %v1819 = vsel %vm431, %v1817, %v1818
      %v1820 = vrot.slane %v1695, 1
      %v1821 = vsel %vm431, %v1818, %v1820
      %v1822 = vrot.slane %v1696, 1
      %v1823 = vrot.slane %v1697, 1
      %v1824 = vsel %vm431, %v1822, %v1823
      %v1825 = vrot.slane %v1698, 1
      %v1826 = vsel %vm431, %v1823, %v1825
      %v1827 = vrot.slane %v1699, 1
      %v1828 = vrot.slane %v1700, 1
      %v1829 = vsel %vm431, %v1827, %v1828
      %v1830 = vrot.slane %v1701, 1
      %v1831 = vsel %vm431, %v1828, %v1830
      %v1832 = vrot.slane %v1702, 1
      %v1833 = vrot.slane %v1703, 1
      %v1834 = vsel %vm431, %v1832, %v1833
      %v1835 = vrot.slane %v1704, 1
      %v1836 = vsel %vm431, %v1833, %v1835
      %v1837 = vrot.slane %v1705, 1
      %v1838 = vrot.slane %v1706, 1
      %v1839 = vsel %vm431, %v1837, %v1838
      %v1840 = vrot.slane %v1707, 1
      %v1841 = vsel %vm431, %v1838, %v1840
      %1842 = vrot.lane.b32.xlu0 %v1764, 8
      %v1843 = vpop.permute.xlu0 %1842
      %1844 = vrot.lane.b32.xlu0 %v1766, 8
      %v1845 = vpop.permute.xlu0 %1844
      %1846 = vrot.lane.b32.xlu0 %v1769, 8
      %v1847 = vpop.permute.xlu0 %1846
      %1848 = vrot.lane.b32.xlu0 %v1771, 8
      %v1849 = vpop.permute.xlu0 %1848
      %1850 = vrot.lane.b32.xlu0 %v1774, 8
      %v1851 = vpop.permute.xlu0 %1850
      %1852 = vrot.lane.b32.xlu0 %v1776, 8
      %v1853 = vpop.permute.xlu0 %1852
      %1854 = vrot.lane.b32.xlu0 %v1779, 8
      %v1855 = vpop.permute.xlu0 %1854
      %1856 = vrot.lane.b32.xlu0 %v1781, 8
      %v1857 = vpop.permute.xlu0 %1856
      %1858 = vrot.lane.b32.xlu0 %v1784, 8
      %v1859 = vpop.permute.xlu0 %1858
      %1860 = vrot.lane.b32.xlu0 %v1786, 8
      %v1861 = vpop.permute.xlu0 %1860
      %1862 = vrot.lane.b32.xlu0 %v1789, 8
      %v1863 = vpop.permute.xlu0 %1862
      %1864 = vrot.lane.b32.xlu0 %v1791, 8
      %v1865 = vpop.permute.xlu0 %1864
      %1866 = vrot.lane.b32.xlu0 %v1794, 8
      %v1867 = vpop.permute.xlu0 %1866
      %1868 = vrot.lane.b32.xlu0 %v1796, 8
      %v1869 = vpop.permute.xlu0 %1868
      %1870 = vrot.lane.b32.xlu0 %v1799, 8
      %v1871 = vpop.permute.xlu0 %1870
      %1872 = vrot.lane.b32.xlu0 %v1801, 8
      %v1873 = vpop.permute.xlu0 %1872
      %1874 = vrot.lane.b32.xlu0 %v1804, 8
      %v1875 = vpop.permute.xlu0 %1874
      %1876 = vrot.lane.b32.xlu0 %v1806, 8
      %v1877 = vpop.permute.xlu0 %1876
      %1878 = vrot.lane.b32.xlu0 %v1809, 8
      %v1879 = vpop.permute.xlu0 %1878
      %1880 = vrot.lane.b32.xlu0 %v1811, 8
      %v1881 = vpop.permute.xlu0 %1880
      %1882 = vrot.lane.b32.xlu0 %v1814, 8
      %v1883 = vpop.permute.xlu0 %1882
      %1884 = vrot.lane.b32.xlu0 %v1816, 8
      %v1885 = vpop.permute.xlu0 %1884
      %1886 = vrot.lane.b32.xlu0 %v1819, 8
      %v1887 = vpop.permute.xlu0 %1886
      %1888 = vrot.lane.b32.xlu0 %v1821, 8
      %v1889 = vpop.permute.xlu0 %1888
      %1890 = vrot.lane.b32.xlu0 %v1824, 8
      %v1891 = vpop.permute.xlu0 %1890
      %1892 = vrot.lane.b32.xlu0 %v1826, 8
      %v1893 = vpop.permute.xlu0 %1892
      %1894 = vrot.lane.b32.xlu0 %v1829, 8
      %v1895 = vpop.permute.xlu0 %1894
      %1896 = vrot.lane.b32.xlu0 %v1831, 8
      %v1897 = vpop.permute.xlu0 %1896
      %1898 = vrot.lane.b32.xlu0 %v1834, 8
      %v1899 = vpop.permute.xlu0 %1898
      %1900 = vrot.lane.b32.xlu0 %v1836, 8
      %v1901 = vpop.permute.xlu0 %1900
      %1902 = vrot.lane.b32.xlu0 %v1839, 8
      %v1903 = vpop.permute.xlu0 %1902
      %1904 = vrot.lane.b32.xlu0 %v1841, 8
      %v1905 = vpop.permute.xlu0 %1904
      %v1938 = vrot.slane %v1660, 2
      %v1939 = vrot.slane %v1661, 2
      %v1940 = vsel %vm608, %v1938, %v1939
      %v1941 = vrot.slane %v1662, 2
      %v1942 = vsel %vm608, %v1939, %v1941
      %v1943 = vrot.slane %v1663, 2
      %v1944 = vrot.slane %v1664, 2
      %v1945 = vsel %vm608, %v1943, %v1944
      %v1946 = vrot.slane %v1665, 2
      %v1947 = vsel %vm608, %v1944, %v1946
      %v1948 = vrot.slane %v1666, 2
      %v1949 = vrot.slane %v1667, 2
      %v1950 = vsel %vm608, %v1948, %v1949
      %v1951 = vrot.slane %v1668, 2
      %v1952 = vsel %vm608, %v1949, %v1951
      %v1953 = vrot.slane %v1669, 2
      %v1954 = vrot.slane %v1670, 2
      %v1955 = vsel %vm608, %v1953, %v1954
      %v1956 = vrot.slane %v1671, 2
      %v1957 = vsel %vm608, %v1954, %v1956
      %v1958 = vrot.slane %v1672, 2
      %v1959 = vrot.slane %v1673, 2
      %v1960 = vsel %vm608, %v1958, %v1959
      %v1961 = vrot.slane %v1674, 2
      %v1962 = vsel %vm608, %v1959, %v1961
      %v1963 = vrot.slane %v1675, 2
      %v1964 = vrot.slane %v1676, 2
      %v1965 = vsel %vm608, %v1963, %v1964
      %v1966 = vrot.slane %v1677, 2
      %v1967 = vsel %vm608, %v1964, %v1966
      %v1968 = vrot.slane %v1678, 2
      %v1969 = vrot.slane %v1679, 2
      %v1970 = vsel %vm608, %v1968, %v1969
      %v1971 = vrot.slane %v1680, 2
      %v1972 = vsel %vm608, %v1969, %v1971
      %v1973 = vrot.slane %v1681, 2
      %v1974 = vrot.slane %v1682, 2
      %v1975 = vsel %vm608, %v1973, %v1974
      %v1976 = vrot.slane %v1683, 2
      %v1977 = vsel %vm608, %v1974, %v1976
      %v1978 = vrot.slane %v1684, 2
      %v1979 = vrot.slane %v1685, 2
      %v1980 = vsel %vm608, %v1978, %v1979
      %v1981 = vrot.slane %v1686, 2
      %v1982 = vsel %vm608, %v1979, %v1981
      %v1983 = vrot.slane %v1687, 2
      %v1984 = vrot.slane %v1688, 2
      %v1985 = vsel %vm608, %v1983, %v1984
      %v1986 = vrot.slane %v1689, 2
      %v1987 = vsel %vm608, %v1984, %v1986
      %v1988 = vrot.slane %v1690, 2
      %v1989 = vrot.slane %v1691, 2
      %v1990 = vsel %vm608, %v1988, %v1989
      %v1991 = vrot.slane %v1692, 2
      %v1992 = vsel %vm608, %v1989, %v1991
      %v1993 = vrot.slane %v1693, 2
      %v1994 = vrot.slane %v1694, 2
      %v1995 = vsel %vm608, %v1993, %v1994
      %v1996 = vrot.slane %v1695, 2
      %v1997 = vsel %vm608, %v1994, %v1996
      %v1998 = vrot.slane %v1696, 2
      %v1999 = vrot.slane %v1697, 2
      %v2000 = vsel %vm608, %v1998, %v1999
      %v2001 = vrot.slane %v1698, 2
      %v2002 = vsel %vm608, %v1999, %v2001
      %v2003 = vrot.slane %v1699, 2
      %v2004 = vrot.slane %v1700, 2
      %v2005 = vsel %vm608, %v2003, %v2004
      %v2006 = vrot.slane %v1701, 2
      %v2007 = vsel %vm608, %v2004, %v2006
      %v2008 = vrot.slane %v1702, 2
      %v2009 = vrot.slane %v1703, 2
      %v2010 = vsel %vm608, %v2008, %v2009
      %v2011 = vrot.slane %v1704, 2
      %v2012 = vsel %vm608, %v2009, %v2011
      %v2013 = vrot.slane %v1705, 2
      %v2014 = vrot.slane %v1706, 2
      %v2015 = vsel %vm608, %v2013, %v2014
      %v2016 = vrot.slane %v1707, 2
      %v2017 = vsel %vm608, %v2014, %v2016
      %2018 = vrot.lane.b32.xlu0 %v1940, 16
      %v2019 = vpop.permute.xlu0 %2018
      %2020 = vrot.lane.b32.xlu0 %v1942, 16
      %v2021 = vpop.permute.xlu0 %2020
      %2022 = vrot.lane.b32.xlu0 %v1945, 16
      %v2023 = vpop.permute.xlu0 %2022
      %2024 = vrot.lane.b32.xlu0 %v1947, 16
      %v2025 = vpop.permute.xlu0 %2024
      %2026 = vrot.lane.b32.xlu0 %v1950, 16
      %v2027 = vpop.permute.xlu0 %2026
      %2028 = vrot.lane.b32.xlu0 %v1952, 16
      %v2029 = vpop.permute.xlu0 %2028
      %2030 = vrot.lane.b32.xlu0 %v1955, 16
      %v2031 = vpop.permute.xlu0 %2030
      %2032 = vrot.lane.b32.xlu0 %v1957, 16
      %v2033 = vpop.permute.xlu0 %2032
      %2034 = vrot.lane.b32.xlu0 %v1960, 16
      %v2035 = vpop.permute.xlu0 %2034
      %2036 = vrot.lane.b32.xlu0 %v1962, 16
      %v2037 = vpop.permute.xlu0 %2036
      %2038 = vrot.lane.b32.xlu0 %v1965, 16
      %v2039 = vpop.permute.xlu0 %2038
      %2040 = vrot.lane.b32.xlu0 %v1967, 16
      %v2041 = vpop.permute.xlu0 %2040
      %2042 = vrot.lane.b32.xlu0 %v1970, 16
      %v2043 = vpop.permute.xlu0 %2042
      %2044 = vrot.lane.b32.xlu0 %v1972, 16
      %v2045 = vpop.permute.xlu0 %2044
      %2046 = vrot.lane.b32.xlu0 %v1975, 16
      %v2047 = vpop.permute.xlu0 %2046
      %2048 = vrot.lane.b32.xlu0 %v1977, 16
      %v2049 = vpop.permute.xlu0 %2048
      %2050 = vrot.lane.b32.xlu0 %v1980, 16
      %v2051 = vpop.permute.xlu0 %2050
      %2052 = vrot.lane.b32.xlu0 %v1982, 16
      %v2053 = vpop.permute.xlu0 %2052
      %2054 = vrot.lane.b32.xlu0 %v1985, 16
      %v2055 = vpop.permute.xlu0 %2054
      %2056 = vrot.lane.b32.xlu0 %v1987, 16
      %v2057 = vpop.permute.xlu0 %2056
      %2058 = vrot.lane.b32.xlu0 %v1990, 16
      %v2059 = vpop.permute.xlu0 %2058
      %2060 = vrot.lane.b32.xlu0 %v1992, 16
      %v2061 = vpop.permute.xlu0 %2060
      %2062 = vrot.lane.b32.xlu0 %v1995, 16
      %v2063 = vpop.permute.xlu0 %2062
      %2064 = vrot.lane.b32.xlu0 %v1997, 16
      %v2065 = vpop.permute.xlu0 %2064
      %2066 = vrot.lane.b32.xlu0 %v2000, 16
      %v2067 = vpop.permute.xlu0 %2066
      %2068 = vrot.lane.b32.xlu0 %v2002, 16
      %v2069 = vpop.permute.xlu0 %2068
      %2070 = vrot.lane.b32.xlu0 %v2005, 16
      %v2071 = vpop.permute.xlu0 %2070
      %2072 = vrot.lane.b32.xlu0 %v2007, 16
      %v2073 = vpop.permute.xlu0 %2072
      %2074 = vrot.lane.b32.xlu0 %v2010, 16
      %v2075 = vpop.permute.xlu0 %2074
      %2076 = vrot.lane.b32.xlu0 %v2012, 16
      %v2077 = vpop.permute.xlu0 %2076
      %2078 = vrot.lane.b32.xlu0 %v2015, 16
      %v2079 = vpop.permute.xlu0 %2078
      %2080 = vrot.lane.b32.xlu0 %v2017, 16
      %v2081 = vpop.permute.xlu0 %2080
      %2116 = vrot.lane.b32.xlu0 %v1663, 24
      %v2117 = vpop.permute.xlu0 %2116
      %2118 = vrot.lane.b32.xlu0 %v1664, 24
      %v2119 = vpop.permute.xlu0 %2118
      %2120 = vrot.lane.b32.xlu0 %v1666, 24
      %v2121 = vpop.permute.xlu0 %2120
      %2122 = vrot.lane.b32.xlu0 %v1667, 24
      %v2123 = vpop.permute.xlu0 %2122
      %2124 = vrot.lane.b32.xlu0 %v1669, 24
      %v2125 = vpop.permute.xlu0 %2124
      %2126 = vrot.lane.b32.xlu0 %v1670, 24
      %v2127 = vpop.permute.xlu0 %2126
      %2128 = vrot.lane.b32.xlu0 %v1672, 24
      %v2129 = vpop.permute.xlu0 %2128
      %2130 = vrot.lane.b32.xlu0 %v1673, 24
      %v2131 = vpop.permute.xlu0 %2130
      %2132 = vrot.lane.b32.xlu0 %v1675, 24
      %v2133 = vpop.permute.xlu0 %2132
      %2134 = vrot.lane.b32.xlu0 %v1676, 24
      %v2135 = vpop.permute.xlu0 %2134
      %2136 = vrot.lane.b32.xlu0 %v1678, 24
      %v2137 = vpop.permute.xlu0 %2136
      %2138 = vrot.lane.b32.xlu0 %v1679, 24
      %v2139 = vpop.permute.xlu0 %2138
      %2140 = vrot.lane.b32.xlu0 %v1681, 24
      %v2141 = vpop.permute.xlu0 %2140
      %2142 = vrot.lane.b32.xlu0 %v1682, 24
      %v2143 = vpop.permute.xlu0 %2142
      %2144 = vrot.lane.b32.xlu0 %v1684, 24
      %v2145 = vpop.permute.xlu0 %2144
      %2146 = vrot.lane.b32.xlu0 %v1685, 24
      %v2147 = vpop.permute.xlu0 %2146
      %2148 = vrot.lane.b32.xlu0 %v1687, 24
      %v2149 = vpop.permute.xlu0 %2148
      %2150 = vrot.lane.b32.xlu0 %v1688, 24
      %v2151 = vpop.permute.xlu0 %2150
      %2152 = vrot.lane.b32.xlu0 %v1690, 24
      %v2153 = vpop.permute.xlu0 %2152
      %2154 = vrot.lane.b32.xlu0 %v1691, 24
      %v2155 = vpop.permute.xlu0 %2154
      %2156 = vrot.lane.b32.xlu0 %v1693, 24
      %v2157 = vpop.permute.xlu0 %2156
      %2158 = vrot.lane.b32.xlu0 %v1694, 24
      %v2159 = vpop.permute.xlu0 %2158
      %2160 = vrot.lane.b32.xlu0 %v1696, 24
      %v2161 = vpop.permute.xlu0 %2160
      %2162 = vrot.lane.b32.xlu0 %v1697, 24
      %v2163 = vpop.permute.xlu0 %2162
      %2164 = vrot.lane.b32.xlu0 %v1699, 24
      %v2165 = vpop.permute.xlu0 %2164
      %2166 = vrot.lane.b32.xlu0 %v1700, 24
      %v2167 = vpop.permute.xlu0 %2166
      %2168 = vrot.lane.b32.xlu0 %v1702, 24
      %v2169 = vpop.permute.xlu0 %2168
      %2170 = vrot.lane.b32.xlu0 %v1703, 24
      %v2171 = vpop.permute.xlu0 %2170
      %2172 = vrot.lane.b32.xlu0 %v1705, 24
      %v2173 = vpop.permute.xlu0 %2172
      %2174 = vrot.lane.b32.xlu0 %v1706, 24
      %v2175 = vpop.permute.xlu0 %2174
      %2176 = vrot.lane.b32.xlu0 %v1708, 24
      %v2177 = vpop.permute.xlu0 %2176
      %2178 = vrot.lane.b32.xlu0 %v1709, 24
      %v2179 = vpop.permute.xlu0 %2178
      %v2213 = vrot.slane %v1708, 1
      %v2214 = vrot.slane %v1709, 1
      %v2215 = vsel %vm431, %v2213, %v2214
      %v2216 = vrot.slane %v1710, 1
      %v2217 = vsel %vm431, %v2214, %v2216
      %2218 = vrot.lane.b32.xlu0 %v1769, 32
      %v2219 = vpop.permute.xlu0 %2218
      %2220 = vrot.lane.b32.xlu0 %v1771, 32
      %v2221 = vpop.permute.xlu0 %2220
      %2222 = vrot.lane.b32.xlu0 %v1774, 32
      %v2223 = vpop.permute.xlu0 %2222
      %2224 = vrot.lane.b32.xlu0 %v1776, 32
      %v2225 = vpop.permute.xlu0 %2224
      %2226 = vrot.lane.b32.xlu0 %v1779, 32
      %v2227 = vpop.permute.xlu0 %2226
      %2228 = vrot.lane.b32.xlu0 %v1781, 32
      %v2229 = vpop.permute.xlu0 %2228
      %2230 = vrot.lane.b32.xlu0 %v1784, 32
      %v2231 = vpop.permute.xlu0 %2230
      %2232 = vrot.lane.b32.xlu0 %v1786, 32
      %v2233 = vpop.permute.xlu0 %2232
      %2234 = vrot.lane.b32.xlu0 %v1789, 32
      %v2235 = vpop.permute.xlu0 %2234
      %2236 = vrot.lane.b32.xlu0 %v1791, 32
      %v2237 = vpop.permute.xlu0 %2236
      %2238 = vrot.lane.b32.xlu0 %v1794, 32
      %v2239 = vpop.permute.xlu0 %2238
      %2240 = vrot.lane.b32.xlu0 %v1796, 32
      %v2241 = vpop.permute.xlu0 %2240
      %2242 = vrot.lane.b32.xlu0 %v1799, 32
      %v2243 = vpop.permute.xlu0 %2242
      %2244 = vrot.lane.b32.xlu0 %v1801, 32
      %v2245 = vpop.permute.xlu0 %2244
      %2246 = vrot.lane.b32.xlu0 %v1804, 32
      %v2247 = vpop.permute.xlu0 %2246
      %2248 = vrot.lane.b32.xlu0 %v1806, 32
      %v2249 = vpop.permute.xlu0 %2248
      %2250 = vrot.lane.b32.xlu0 %v1809, 32
      %v2251 = vpop.permute.xlu0 %2250
      %2252 = vrot.lane.b32.xlu0 %v1811, 32
      %v2253 = vpop.permute.xlu0 %2252
      %2254 = vrot.lane.b32.xlu0 %v1814, 32
      %v2255 = vpop.permute.xlu0 %2254
      %2256 = vrot.lane.b32.xlu0 %v1816, 32
      %v2257 = vpop.permute.xlu0 %2256
      %2258 = vrot.lane.b32.xlu0 %v1819, 32
      %v2259 = vpop.permute.xlu0 %2258
      %2260 = vrot.lane.b32.xlu0 %v1821, 32
      %v2261 = vpop.permute.xlu0 %2260
      %2262 = vrot.lane.b32.xlu0 %v1824, 32
      %v2263 = vpop.permute.xlu0 %2262
      %2264 = vrot.lane.b32.xlu0 %v1826, 32
      %v2265 = vpop.permute.xlu0 %2264
      %2266 = vrot.lane.b32.xlu0 %v1829, 32
      %v2267 = vpop.permute.xlu0 %2266
      %2268 = vrot.lane.b32.xlu0 %v1831, 32
      %v2269 = vpop.permute.xlu0 %2268
      %2270 = vrot.lane.b32.xlu0 %v1834, 32
      %v2271 = vpop.permute.xlu0 %2270
      %2272 = vrot.lane.b32.xlu0 %v1836, 32
      %v2273 = vpop.permute.xlu0 %2272
      %2274 = vrot.lane.b32.xlu0 %v1839, 32
      %v2275 = vpop.permute.xlu0 %2274
      %2276 = vrot.lane.b32.xlu0 %v1841, 32
      %v2277 = vpop.permute.xlu0 %2276
      %2278 = vrot.lane.b32.xlu0 %v2215, 32
      %v2279 = vpop.permute.xlu0 %2278
      %2280 = vrot.lane.b32.xlu0 %v2217, 32
      %v2281 = vpop.permute.xlu0 %2280
      %v2314 = vrot.slane %v1708, 2
      %v2315 = vrot.slane %v1709, 2
      %v2316 = vsel %vm608, %v2314, %v2315
      %v2317 = vrot.slane %v1710, 2
      %v2318 = vsel %vm608, %v2315, %v2317
      %2319 = vrot.lane.b32.xlu0 %v1945, 40
      %v2320 = vpop.permute.xlu0 %2319
      %2321 = vrot.lane.b32.xlu0 %v1947, 40
      %v2322 = vpop.permute.xlu0 %2321
      %2323 = vrot.lane.b32.xlu0 %v1950, 40
      %v2324 = vpop.permute.xlu0 %2323
      %2325 = vrot.lane.b32.xlu0 %v1952, 40
      %v2326 = vpop.permute.xlu0 %2325
      %2327 = vrot.lane.b32.xlu0 %v1955, 40
      %v2328 = vpop.permute.xlu0 %2327
      %2329 = vrot.lane.b32.xlu0 %v1957, 40
      %v2330 = vpop.permute.xlu0 %2329
      %2331 = vrot.lane.b32.xlu0 %v1960, 40
      %v2332 = vpop.permute.xlu0 %2331
      %2333 = vrot.lane.b32.xlu0 %v1962, 40
      %v2334 = vpop.permute.xlu0 %2333
      %2335 = vrot.lane.b32.xlu0 %v1965, 40
      %v2336 = vpop.permute.xlu0 %2335
      %2337 = vrot.lane.b32.xlu0 %v1967, 40
      %v2338 = vpop.permute.xlu0 %2337
      %2339 = vrot.lane.b32.xlu0 %v1970, 40
      %v2340 = vpop.permute.xlu0 %2339
      %2341 = vrot.lane.b32.xlu0 %v1972, 40
      %v2342 = vpop.permute.xlu0 %2341
      %2343 = vrot.lane.b32.xlu0 %v1975, 40
      %v2344 = vpop.permute.xlu0 %2343
      %2345 = vrot.lane.b32.xlu0 %v1977, 40
      %v2346 = vpop.permute.xlu0 %2345
      %2347 = vrot.lane.b32.xlu0 %v1980, 40
      %v2348 = vpop.permute.xlu0 %2347
      %2349 = vrot.lane.b32.xlu0 %v1982, 40
      %v2350 = vpop.permute.xlu0 %2349
      %2351 = vrot.lane.b32.xlu0 %v1985, 40
      %v2352 = vpop.permute.xlu0 %2351
      %2353 = vrot.lane.b32.xlu0 %v1987, 40
      %v2354 = vpop.permute.xlu0 %2353
      %2355 = vrot.lane.b32.xlu0 %v1990, 40
      %v2356 = vpop.permute.xlu0 %2355
      %2357 = vrot.lane.b32.xlu0 %v1992, 40
      %v2358 = vpop.permute.xlu0 %2357
      %2359 = vrot.lane.b32.xlu0 %v1995, 40
      %v2360 = vpop.permute.xlu0 %2359
      %2361 = vrot.lane.b32.xlu0 %v1997, 40
      %v2362 = vpop.permute.xlu0 %2361
      %2363 = vrot.lane.b32.xlu0 %v2000, 40
      %v2364 = vpop.permute.xlu0 %2363
      %2365 = vrot.lane.b32.xlu0 %v2002, 40
      %v2366 = vpop.permute.xlu0 %2365
      %2367 = vrot.lane.b32.xlu0 %v2005, 40
      %v2368 = vpop.permute.xlu0 %2367
      %2369 = vrot.lane.b32.xlu0 %v2007, 40
      %v2370 = vpop.permute.xlu0 %2369
      %2371 = vrot.lane.b32.xlu0 %v2010, 40
      %v2372 = vpop.permute.xlu0 %2371
      %2373 = vrot.lane.b32.xlu0 %v2012, 40
      %v2374 = vpop.permute.xlu0 %2373
      %2375 = vrot.lane.b32.xlu0 %v2015, 40
      %v2376 = vpop.permute.xlu0 %2375
      %2377 = vrot.lane.b32.xlu0 %v2017, 40
      %v2378 = vpop.permute.xlu0 %2377
      %2379 = vrot.lane.b32.xlu0 %v2316, 40
      %v2380 = vpop.permute.xlu0 %2379
      %2381 = vrot.lane.b32.xlu0 %v2318, 40
      %v2382 = vpop.permute.xlu0 %2381
      %2417 = vrot.lane.b32.xlu0 %v1666, 48
      %v2418 = vpop.permute.xlu0 %2417
      %2419 = vrot.lane.b32.xlu0 %v1667, 48
      %v2420 = vpop.permute.xlu0 %2419
      %2421 = vrot.lane.b32.xlu0 %v1669, 48
      %v2422 = vpop.permute.xlu0 %2421
      %2423 = vrot.lane.b32.xlu0 %v1670, 48
      %v2424 = vpop.permute.xlu0 %2423
      %2425 = vrot.lane.b32.xlu0 %v1672, 48
      %v2426 = vpop.permute.xlu0 %2425
      %2427 = vrot.lane.b32.xlu0 %v1673, 48
      %v2428 = vpop.permute.xlu0 %2427
      %2429 = vrot.lane.b32.xlu0 %v1675, 48
      %v2430 = vpop.permute.xlu0 %2429
      %2431 = vrot.lane.b32.xlu0 %v1676, 48
      %v2432 = vpop.permute.xlu0 %2431
      %2433 = vrot.lane.b32.xlu0 %v1678, 48
      %v2434 = vpop.permute.xlu0 %2433
      %2435 = vrot.lane.b32.xlu0 %v1679, 48
      %v2436 = vpop.permute.xlu0 %2435
      %2437 = vrot.lane.b32.xlu0 %v1681, 48
      %v2438 = vpop.permute.xlu0 %2437
      %2439 = vrot.lane.b32.xlu0 %v1682, 48
      %v2440 = vpop.permute.xlu0 %2439
      %2441 = vrot.lane.b32.xlu0 %v1684, 48
      %v2442 = vpop.permute.xlu0 %2441
      %2443 = vrot.lane.b32.xlu0 %v1685, 48
      %v2444 = vpop.permute.xlu0 %2443
      %2445 = vrot.lane.b32.xlu0 %v1687, 48
      %v2446 = vpop.permute.xlu0 %2445
      %2447 = vrot.lane.b32.xlu0 %v1688, 48
      %v2448 = vpop.permute.xlu0 %2447
      %2449 = vrot.lane.b32.xlu0 %v1690, 48
      %v2450 = vpop.permute.xlu0 %2449
      %2451 = vrot.lane.b32.xlu0 %v1691, 48
      %v2452 = vpop.permute.xlu0 %2451
      %2453 = vrot.lane.b32.xlu0 %v1693, 48
      %v2454 = vpop.permute.xlu0 %2453
      %2455 = vrot.lane.b32.xlu0 %v1694, 48
      %v2456 = vpop.permute.xlu0 %2455
      %2457 = vrot.lane.b32.xlu0 %v1696, 48
      %v2458 = vpop.permute.xlu0 %2457
      %2459 = vrot.lane.b32.xlu0 %v1697, 48
      %v2460 = vpop.permute.xlu0 %2459
      %2461 = vrot.lane.b32.xlu0 %v1699, 48
      %v2462 = vpop.permute.xlu0 %2461
      %2463 = vrot.lane.b32.xlu0 %v1700, 48
      %v2464 = vpop.permute.xlu0 %2463
      %2465 = vrot.lane.b32.xlu0 %v1702, 48
      %v2466 = vpop.permute.xlu0 %2465
      %2467 = vrot.lane.b32.xlu0 %v1703, 48
      %v2468 = vpop.permute.xlu0 %2467
      %2469 = vrot.lane.b32.xlu0 %v1705, 48
      %v2470 = vpop.permute.xlu0 %2469
      %2471 = vrot.lane.b32.xlu0 %v1706, 48
      %v2472 = vpop.permute.xlu0 %2471
      %2473 = vrot.lane.b32.xlu0 %v1708, 48
      %v2474 = vpop.permute.xlu0 %2473
      %2475 = vrot.lane.b32.xlu0 %v1709, 48
      %v2476 = vpop.permute.xlu0 %2475
      %2477 = vrot.lane.b32.xlu0 %v1711, 48
      %v2478 = vpop.permute.xlu0 %2477
      %2479 = vrot.lane.b32.xlu0 %v1712, 48
      %v2480 = vpop.permute.xlu0 %2479
      %v2514 = vrot.slane %v1711, 1
      %v2515 = vrot.slane %v1712, 1
      %v2516 = vsel %vm431, %v2514, %v2515
      %v2517 = vrot.slane %v1713, 1
      %v2518 = vsel %vm431, %v2515, %v2517
      %2519 = vrot.lane.b32.xlu0 %v1774, 56
      %v2520 = vpop.permute.xlu0 %2519
      %2521 = vrot.lane.b32.xlu0 %v1776, 56
      %v2522 = vpop.permute.xlu0 %2521
      %2523 = vrot.lane.b32.xlu0 %v1779, 56
      %v2524 = vpop.permute.xlu0 %2523
      %2525 = vrot.lane.b32.xlu0 %v1781, 56
      %v2526 = vpop.permute.xlu0 %2525
      %2527 = vrot.lane.b32.xlu0 %v1784, 56
      %v2528 = vpop.permute.xlu0 %2527
      %2529 = vrot.lane.b32.xlu0 %v1786, 56
      %v2530 = vpop.permute.xlu0 %2529
      %2531 = vrot.lane.b32.xlu0 %v1789, 56
      %v2532 = vpop.permute.xlu0 %2531
      %2533 = vrot.lane.b32.xlu0 %v1791, 56
      %v2534 = vpop.permute.xlu0 %2533
      %2535 = vrot.lane.b32.xlu0 %v1794, 56
      %v2536 = vpop.permute.xlu0 %2535
      %2537 = vrot.lane.b32.xlu0 %v1796, 56
      %v2538 = vpop.permute.xlu0 %2537
      %2539 = vrot.lane.b32.xlu0 %v1799, 56
      %v2540 = vpop.permute.xlu0 %2539
      %2541 = vrot.lane.b32.xlu0 %v1801, 56
      %v2542 = vpop.permute.xlu0 %2541
      %2543 = vrot.lane.b32.xlu0 %v1804, 56
      %v2544 = vpop.permute.xlu0 %2543
      %2545 = vrot.lane.b32.xlu0 %v1806, 56
      %v2546 = vpop.permute.xlu0 %2545
      %2547 = vrot.lane.b32.xlu0 %v1809, 56
      %v2548 = vpop.permute.xlu0 %2547
      %2549 = vrot.lane.b32.xlu0 %v1811, 56
      %v2550 = vpop.permute.xlu0 %2549
      %2551 = vrot.lane.b32.xlu0 %v1814, 56
      %v2552 = vpop.permute.xlu0 %2551
      %2553 = vrot.lane.b32.xlu0 %v1816, 56
      %v2554 = vpop.permute.xlu0 %2553
      %2555 = vrot.lane.b32.xlu0 %v1819, 56
      %v2556 = vpop.permute.xlu0 %2555
      %2557 = vrot.lane.b32.xlu0 %v1821, 56
      %v2558 = vpop.permute.xlu0 %2557
      %2559 = vrot.lane.b32.xlu0 %v1824, 56
      %v2560 = vpop.permute.xlu0 %2559
      %2561 = vrot.lane.b32.xlu0 %v1826, 56
      %v2562 = vpop.permute.xlu0 %2561
      %2563 = vrot.lane.b32.xlu0 %v1829, 56
      %v2564 = vpop.permute.xlu0 %2563
      %2565 = vrot.lane.b32.xlu0 %v1831, 56
      %v2566 = vpop.permute.xlu0 %2565
      %2567 = vrot.lane.b32.xlu0 %v1834, 56
      %v2568 = vpop.permute.xlu0 %2567
      %2569 = vrot.lane.b32.xlu0 %v1836, 56
      %v2570 = vpop.permute.xlu0 %2569
      %2571 = vrot.lane.b32.xlu0 %v1839, 56
      %v2572 = vpop.permute.xlu0 %2571
      %2573 = vrot.lane.b32.xlu0 %v1841, 56
      %v2574 = vpop.permute.xlu0 %2573
      %2575 = vrot.lane.b32.xlu0 %v2215, 56
      %v2576 = vpop.permute.xlu0 %2575
      %2577 = vrot.lane.b32.xlu0 %v2217, 56
      %v2578 = vpop.permute.xlu0 %2577
      %2579 = vrot.lane.b32.xlu0 %v2516, 56
      %v2580 = vpop.permute.xlu0 %2579
      %2581 = vrot.lane.b32.xlu0 %v2518, 56
      %v2582 = vpop.permute.xlu0 %2581
      %v2615 = vrot.slane %v1711, 2
      %v2616 = vrot.slane %v1712, 2
      %v2617 = vsel %vm608, %v2615, %v2616
      %v2618 = vrot.slane %v1713, 2
      %v2619 = vsel %vm608, %v2616, %v2618
      %2620 = vrot.lane.b32.xlu0 %v1950, 64
      %v2621 = vpop.permute.xlu0 %2620
      %2622 = vrot.lane.b32.xlu0 %v1952, 64
      %v2623 = vpop.permute.xlu0 %2622
      %2624 = vrot.lane.b32.xlu0 %v1955, 64
      %v2625 = vpop.permute.xlu0 %2624
      %2626 = vrot.lane.b32.xlu0 %v1957, 64
      %v2627 = vpop.permute.xlu0 %2626
      %2628 = vrot.lane.b32.xlu0 %v1960, 64
      %v2629 = vpop.permute.xlu0 %2628
      %2630 = vrot.lane.b32.xlu0 %v1962, 64
      %v2631 = vpop.permute.xlu0 %2630
      %2632 = vrot.lane.b32.xlu0 %v1965, 64
      %v2633 = vpop.permute.xlu0 %2632
      %2634 = vrot.lane.b32.xlu0 %v1967, 64
      %v2635 = vpop.permute.xlu0 %2634
      %2636 = vrot.lane.b32.xlu0 %v1970, 64
      %v2637 = vpop.permute.xlu0 %2636
      %2638 = vrot.lane.b32.xlu0 %v1972, 64
      %v2639 = vpop.permute.xlu0 %2638
      %2640 = vrot.lane.b32.xlu0 %v1975, 64
      %v2641 = vpop.permute.xlu0 %2640
      %2642 = vrot.lane.b32.xlu0 %v1977, 64
      %v2643 = vpop.permute.xlu0 %2642
      %2644 = vrot.lane.b32.xlu0 %v1980, 64
      %v2645 = vpop.permute.xlu0 %2644
      %2646 = vrot.lane.b32.xlu0 %v1982, 64
      %v2647 = vpop.permute.xlu0 %2646
      %2648 = vrot.lane.b32.xlu0 %v1985, 64
      %v2649 = vpop.permute.xlu0 %2648
      %2650 = vrot.lane.b32.xlu0 %v1987, 64
      %v2651 = vpop.permute.xlu0 %2650
      %2652 = vrot.lane.b32.xlu0 %v1990, 64
      %v2653 = vpop.permute.xlu0 %2652
      %2654 = vrot.lane.b32.xlu0 %v1992, 64
      %v2655 = vpop.permute.xlu0 %2654
      %2656 = vrot.lane.b32.xlu0 %v1995, 64
      %v2657 = vpop.permute.xlu0 %2656
      %2658 = vrot.lane.b32.xlu0 %v1997, 64
      %v2659 = vpop.permute.xlu0 %2658
      %2660 = vrot.lane.b32.xlu0 %v2000, 64
      %v2661 = vpop.permute.xlu0 %2660
      %2662 = vrot.lane.b32.xlu0 %v2002, 64
      %v2663 = vpop.permute.xlu0 %2662
      %2664 = vrot.lane.b32.xlu0 %v2005, 64
      %v2665 = vpop.permute.xlu0 %2664
      %2666 = vrot.lane.b32.xlu0 %v2007, 64
      %v2667 = vpop.permute.xlu0 %2666
      %2668 = vrot.lane.b32.xlu0 %v2010, 64
      %v2669 = vpop.permute.xlu0 %2668
      %2670 = vrot.lane.b32.xlu0 %v2012, 64
      %v2671 = vpop.permute.xlu0 %2670
      %2672 = vrot.lane.b32.xlu0 %v2015, 64
      %v2673 = vpop.permute.xlu0 %2672
      %2674 = vrot.lane.b32.xlu0 %v2017, 64
      %v2675 = vpop.permute.xlu0 %2674
      %2676 = vrot.lane.b32.xlu0 %v2316, 64
      %v2677 = vpop.permute.xlu0 %2676
      %2678 = vrot.lane.b32.xlu0 %v2318, 64
      %v2679 = vpop.permute.xlu0 %2678
      %2680 = vrot.lane.b32.xlu0 %v2617, 64
      %v2681 = vpop.permute.xlu0 %2680
      %2682 = vrot.lane.b32.xlu0 %v2619, 64
      %v2683 = vpop.permute.xlu0 %2682
      %vm2716 = vcmask 64512
      %v2717 = vsel %vm2716, %v1660, %v1843
      %v2718 = vsel %vm2716, %v1661, %v1845
      %v2719 = vsel %vm2716, %v1663, %v1847
      %v2720 = vsel %vm2716, %v1664, %v1849
      %v2721 = vsel %vm2716, %v1666, %v1851
      %v2722 = vsel %vm2716, %v1667, %v1853
      %v2723 = vsel %vm2716, %v1669, %v1855
      %v2724 = vsel %vm2716, %v1670, %v1857
      %v2725 = vsel %vm2716, %v1672, %v1859
      %v2726 = vsel %vm2716, %v1673, %v1861
      %v2727 = vsel %vm2716, %v1675, %v1863
      %v2728 = vsel %vm2716, %v1676, %v1865
      %v2729 = vsel %vm2716, %v1678, %v1867
      %v2730 = vsel %vm2716, %v1679, %v1869
      %v2731 = vsel %vm2716, %v1681, %v1871
      %v2732 = vsel %vm2716, %v1682, %v1873
      %v2733 = vsel %vm2716, %v1684, %v1875
      %v2734 = vsel %vm2716, %v1685, %v1877
      %v2735 = vsel %vm2716, %v1687, %v1879
      %v2736 = vsel %vm2716, %v1688, %v1881
      %v2737 = vsel %vm2716, %v1690, %v1883
      %v2738 = vsel %vm2716, %v1691, %v1885
      %v2739 = vsel %vm2716, %v1693, %v1887
      %v2740 = vsel %vm2716, %v1694, %v1889
      %v2741 = vsel %vm2716, %v1696, %v1891
      %v2742 = vsel %vm2716, %v1697, %v1893
      %v2743 = vsel %vm2716, %v1699, %v1895
      %v2744 = vsel %vm2716, %v1700, %v1897
      %v2745 = vsel %vm2716, %v1702, %v1899
      %v2746 = vsel %vm2716, %v1703, %v1901
      %v2747 = vsel %vm2716, %v1705, %v1903
      %v2748 = vsel %vm2716, %v1706, %v1905
      %v2749 = vsel %vm1323, %v2717, %v2019
      %v2750 = vsel %vm1323, %v2718, %v2021
      %v2751 = vsel %vm1323, %v2719, %v2023
      %v2752 = vsel %vm1323, %v2720, %v2025
      %v2753 = vsel %vm1323, %v2721, %v2027
      %v2754 = vsel %vm1323, %v2722, %v2029
      %v2755 = vsel %vm1323, %v2723, %v2031
      %v2756 = vsel %vm1323, %v2724, %v2033
      %v2757 = vsel %vm1323, %v2725, %v2035
      %v2758 = vsel %vm1323, %v2726, %v2037
      %v2759 = vsel %vm1323, %v2727, %v2039
      %v2760 = vsel %vm1323, %v2728, %v2041
      %v2761 = vsel %vm1323, %v2729, %v2043
      %v2762 = vsel %vm1323, %v2730, %v2045
      %v2763 = vsel %vm1323, %v2731, %v2047
      %v2764 = vsel %vm1323, %v2732, %v2049
      %v2765 = vsel %vm1323, %v2733, %v2051
      %v2766 = vsel %vm1323, %v2734, %v2053
      %v2767 = vsel %vm1323, %v2735, %v2055
      %v2768 = vsel %vm1323, %v2736, %v2057
      %v2769 = vsel %vm1323, %v2737, %v2059
      %v2770 = vsel %vm1323, %v2738, %v2061
      %v2771 = vsel %vm1323, %v2739, %v2063
      %v2772 = vsel %vm1323, %v2740, %v2065
      %v2773 = vsel %vm1323, %v2741, %v2067
      %v2774 = vsel %vm1323, %v2742, %v2069
      %v2775 = vsel %vm1323, %v2743, %v2071
      %v2776 = vsel %vm1323, %v2744, %v2073
      %v2777 = vsel %vm1323, %v2745, %v2075
      %v2778 = vsel %vm1323, %v2746, %v2077
      %v2779 = vsel %vm1323, %v2747, %v2079
      %v2780 = vsel %vm1323, %v2748, %v2081
      %vm2781 = vcmask 195584
      %v2782 = vsel %vm2781, %v2749, %v2117
      %v2783 = vsel %vm2781, %v2750, %v2119
      %v2784 = vsel %vm2781, %v2751, %v2121
      %v2785 = vsel %vm2781, %v2752, %v2123
      %v2786 = vsel %vm2781, %v2753, %v2125
      %v2787 = vsel %vm2781, %v2754, %v2127
      %v2788 = vsel %vm2781, %v2755, %v2129
      %v2789 = vsel %vm2781, %v2756, %v2131
      %v2790 = vsel %vm2781, %v2757, %v2133
      %v2791 = vsel %vm2781, %v2758, %v2135
      %v2792 = vsel %vm2781, %v2759, %v2137
      %v2793 = vsel %vm2781, %v2760, %v2139
      %v2794 = vsel %vm2781, %v2761, %v2141
      %v2795 = vsel %vm2781, %v2762, %v2143
      %v2796 = vsel %vm2781, %v2763, %v2145
      %v2797 = vsel %vm2781, %v2764, %v2147
      %v2798 = vsel %vm2781, %v2765, %v2149
      %v2799 = vsel %vm2781, %v2766, %v2151
      %v2800 = vsel %vm2781, %v2767, %v2153
      %v2801 = vsel %vm2781, %v2768, %v2155
      %v2802 = vsel %vm2781, %v2769, %v2157
      %v2803 = vsel %vm2781, %v2770, %v2159
      %v2804 = vsel %vm2781, %v2771, %v2161
      %v2805 = vsel %vm2781, %v2772, %v2163
      %v2806 = vsel %vm2781, %v2773, %v2165
      %v2807 = vsel %vm2781, %v2774, %v2167
      %v2808 = vsel %vm2781, %v2775, %v2169
      %v2809 = vsel %vm2781, %v2776, %v2171
      %v2810 = vsel %vm2781, %v2777, %v2173
      %v2811 = vsel %vm2781, %v2778, %v2175
      %v2812 = vsel %vm2781, %v2779, %v2177
      %v2813 = vsel %vm2781, %v2780, %v2179
      %v2814 = vsel %vm1356, %v2782, %v2219
      %v2815 = vsel %vm1356, %v2783, %v2221
      %v2816 = vsel %vm1356, %v2784, %v2223
      %v2817 = vsel %vm1356, %v2785, %v2225
      %v2818 = vsel %vm1356, %v2786, %v2227
      %v2819 = vsel %vm1356, %v2787, %v2229
      %v2820 = vsel %vm1356, %v2788, %v2231
      %v2821 = vsel %vm1356, %v2789, %v2233
      %v2822 = vsel %vm1356, %v2790, %v2235
      %v2823 = vsel %vm1356, %v2791, %v2237
      %v2824 = vsel %vm1356, %v2792, %v2239
      %v2825 = vsel %vm1356, %v2793, %v2241
      %v2826 = vsel %vm1356, %v2794, %v2243
      %v2827 = vsel %vm1356, %v2795, %v2245
      %v2828 = vsel %vm1356, %v2796, %v2247
      %v2829 = vsel %vm1356, %v2797, %v2249
      %v2830 = vsel %vm1356, %v2798, %v2251
      %v2831 = vsel %vm1356, %v2799, %v2253
      %v2832 = vsel %vm1356, %v2800, %v2255
      %v2833 = vsel %vm1356, %v2801, %v2257
      %v2834 = vsel %vm1356, %v2802, %v2259
      %v2835 = vsel %vm1356, %v2803, %v2261
      %v2836 = vsel %vm1356, %v2804, %v2263
      %v2837 = vsel %vm1356, %v2805, %v2265
      %v2838 = vsel %vm1356, %v2806, %v2267
      %v2839 = vsel %vm1356, %v2807, %v2269
      %v2840 = vsel %vm1356, %v2808, %v2271
      %v2841 = vsel %vm1356, %v2809, %v2273
      %v2842 = vsel %vm1356, %v2810, %v2275
      %v2843 = vsel %vm1356, %v2811, %v2277
      %v2844 = vsel %vm1356, %v2812, %v2279
      %v2845 = vsel %vm1356, %v2813, %v2281
      %vm2846 = vcmask 326656
      %v2847 = vsel %vm2846, %v2814, %v2320
      %v2848 = vsel %vm2846, %v2815, %v2322
      %v2849 = vsel %vm2846, %v2816, %v2324
      %v2850 = vsel %vm2846, %v2817, %v2326
      %v2851 = vsel %vm2846, %v2818, %v2328
      %v2852 = vsel %vm2846, %v2819, %v2330
      %v2853 = vsel %vm2846, %v2820, %v2332
      %v2854 = vsel %vm2846, %v2821, %v2334
      %v2855 = vsel %vm2846, %v2822, %v2336
      %v2856 = vsel %vm2846, %v2823, %v2338
      %v2857 = vsel %vm2846, %v2824, %v2340
      %v2858 = vsel %vm2846, %v2825, %v2342
      %v2859 = vsel %vm2846, %v2826, %v2344
      %v2860 = vsel %vm2846, %v2827, %v2346
      %v2861 = vsel %vm2846, %v2828, %v2348
      %v2862 = vsel %vm2846, %v2829, %v2350
      %v2863 = vsel %vm2846, %v2830, %v2352
      %v2864 = vsel %vm2846, %v2831, %v2354
      %v2865 = vsel %vm2846, %v2832, %v2356
      %v2866 = vsel %vm2846, %v2833, %v2358
      %v2867 = vsel %vm2846, %v2834, %v2360
      %v2868 = vsel %vm2846, %v2835, %v2362
      %v2869 = vsel %vm2846, %v2836, %v2364
      %v2870 = vsel %vm2846, %v2837, %v2366
      %v2871 = vsel %vm2846, %v2838, %v2368
      %v2872 = vsel %vm2846, %v2839, %v2370
      %v2873 = vsel %vm2846, %v2840, %v2372
      %v2874 = vsel %vm2846, %v2841, %v2374
      %v2875 = vsel %vm2846, %v2842, %v2376
      %v2876 = vsel %vm2846, %v2843, %v2378
      %v2877 = vsel %vm2846, %v2844, %v2380
      %v2878 = vsel %vm2846, %v2845, %v2382
      %v2879 = vsel %vm1389, %v2847, %v2418
      %v2880 = vsel %vm1389, %v2848, %v2420
      %v2881 = vsel %vm1389, %v2849, %v2422
      %v2882 = vsel %vm1389, %v2850, %v2424
      %v2883 = vsel %vm1389, %v2851, %v2426
      %v2884 = vsel %vm1389, %v2852, %v2428
      %v2885 = vsel %vm1389, %v2853, %v2430
      %v2886 = vsel %vm1389, %v2854, %v2432
      %v2887 = vsel %vm1389, %v2855, %v2434
      %v2888 = vsel %vm1389, %v2856, %v2436
      %v2889 = vsel %vm1389, %v2857, %v2438
      %v2890 = vsel %vm1389, %v2858, %v2440
      %v2891 = vsel %vm1389, %v2859, %v2442
      %v2892 = vsel %vm1389, %v2860, %v2444
      %v2893 = vsel %vm1389, %v2861, %v2446
      %v2894 = vsel %vm1389, %v2862, %v2448
      %v2895 = vsel %vm1389, %v2863, %v2450
      %v2896 = vsel %vm1389, %v2864, %v2452
      %v2897 = vsel %vm1389, %v2865, %v2454
      %v2898 = vsel %vm1389, %v2866, %v2456
      %v2899 = vsel %vm1389, %v2867, %v2458
      %v2900 = vsel %vm1389, %v2868, %v2460
      %v2901 = vsel %vm1389, %v2869, %v2462
      %v2902 = vsel %vm1389, %v2870, %v2464
      %v2903 = vsel %vm1389, %v2871, %v2466
      %v2904 = vsel %vm1389, %v2872, %v2468
      %v2905 = vsel %vm1389, %v2873, %v2470
      %v2906 = vsel %vm1389, %v2874, %v2472
      %v2907 = vsel %vm1389, %v2875, %v2474
      %v2908 = vsel %vm1389, %v2876, %v2476
      %v2909 = vsel %vm1389, %v2877, %v2478
      %v2910 = vsel %vm1389, %v2878, %v2480
      %vm2911 = vcmask 457728
      %v2912 = vsel %vm2911, %v2879, %v2520
      %v2913 = vsel %vm2911, %v2880, %v2522
      %v2914 = vsel %vm2911, %v2881, %v2524
      %v2915 = vsel %vm2911, %v2882, %v2526
      %v2916 = vsel %vm2911, %v2883, %v2528
      %v2917 = vsel %vm2911, %v2884, %v2530
      %v2918 = vsel %vm2911, %v2885, %v2532
      %v2919 = vsel %vm2911, %v2886, %v2534
      %v2920 = vsel %vm2911, %v2887, %v2536
      %v2921 = vsel %vm2911, %v2888, %v2538
      %v2922 = vsel %vm2911, %v2889, %v2540
      %v2923 = vsel %vm2911, %v2890, %v2542
      %v2924 = vsel %vm2911, %v2891, %v2544
      %v2925 = vsel %vm2911, %v2892, %v2546
      %v2926 = vsel %vm2911, %v2893, %v2548
      %v2927 = vsel %vm2911, %v2894, %v2550
      %v2928 = vsel %vm2911, %v2895, %v2552
      %v2929 = vsel %vm2911, %v2896, %v2554
      %v2930 = vsel %vm2911, %v2897, %v2556
      %v2931 = vsel %vm2911, %v2898, %v2558
      %v2932 = vsel %vm2911, %v2899, %v2560
      %v2933 = vsel %vm2911, %v2900, %v2562
      %v2934 = vsel %vm2911, %v2901, %v2564
      %v2935 = vsel %vm2911, %v2902, %v2566
      %v2936 = vsel %vm2911, %v2903, %v2568
      %v2937 = vsel %vm2911, %v2904, %v2570
      %v2938 = vsel %vm2911, %v2905, %v2572
      %v2939 = vsel %vm2911, %v2906, %v2574
      %v2940 = vsel %vm2911, %v2907, %v2576
      %v2941 = vsel %vm2911, %v2908, %v2578
      %v2942 = vsel %vm2911, %v2909, %v2580
      %v2943 = vsel %vm2911, %v2910, %v2582
      %v2944 = vsel %vm1422, %v2912, %v2621
      %v2945 = vsel %vm1422, %v2913, %v2623
      %v2946 = vsel %vm1422, %v2914, %v2625
      %v2947 = vsel %vm1422, %v2915, %v2627
      %v2948 = vsel %vm1422, %v2916, %v2629
      %v2949 = vsel %vm1422, %v2917, %v2631
      %v2950 = vsel %vm1422, %v2918, %v2633
      %v2951 = vsel %vm1422, %v2919, %v2635
      %v2952 = vsel %vm1422, %v2920, %v2637
      %v2953 = vsel %vm1422, %v2921, %v2639
      %v2954 = vsel %vm1422, %v2922, %v2641
      %v2955 = vsel %vm1422, %v2923, %v2643
      %v2956 = vsel %vm1422, %v2924, %v2645
      %v2957 = vsel %vm1422, %v2925, %v2647
      %v2958 = vsel %vm1422, %v2926, %v2649
      %v2959 = vsel %vm1422, %v2927, %v2651
      %v2960 = vsel %vm1422, %v2928, %v2653
      %v2961 = vsel %vm1422, %v2929, %v2655
      %v2962 = vsel %vm1422, %v2930, %v2657
      %v2963 = vsel %vm1422, %v2931, %v2659
      %v2964 = vsel %vm1422, %v2932, %v2661
      %v2965 = vsel %vm1422, %v2933, %v2663
      %v2966 = vsel %vm1422, %v2934, %v2665
      %v2967 = vsel %vm1422, %v2935, %v2667
      %v2968 = vsel %vm1422, %v2936, %v2669
      %v2969 = vsel %vm1422, %v2937, %v2671
      %v2970 = vsel %vm1422, %v2938, %v2673
      %v2971 = vsel %vm1422, %v2939, %v2675
      %v2972 = vsel %vm1422, %v2940, %v2677
      %v2973 = vsel %vm1422, %v2941, %v2679
      %v2974 = vsel %vm1422, %v2942, %v2681
      %v2975 = vsel %vm1422, %v2943, %v2683
      %v2976 = vpack.c.bf16 %v2945, %v2944
      %v2977 = vpack.c.bf16 %v2947, %v2946
      %v2978 = vpack.c.bf16 %v2949, %v2948
      %v2979 = vpack.c.bf16 %v2951, %v2950
      %v2980 = vpack.c.bf16 %v2953, %v2952
      %v2981 = vpack.c.bf16 %v2955, %v2954
      %v2982 = vpack.c.bf16 %v2957, %v2956
      %v2983 = vpack.c.bf16 %v2959, %v2958
      %v2984 = vpack.c.bf16 %v2961, %v2960
      %v2985 = vpack.c.bf16 %v2963, %v2962
      %v2986 = vpack.c.bf16 %v2965, %v2964
      %v2987 = vpack.c.bf16 %v2967, %v2966
      %v2988 = vpack.c.bf16 %v2969, %v2968
      %v2989 = vpack.c.bf16 %v2971, %v2970
      %v2990 = vpack.c.bf16 %v2973, %v2972
      %v2991 = vpack.c.bf16 %v2975, %v2974
      %v2992 = vld [vmem:[%s3] sm:$0xf]
      %v2993 = vld [vmem:[%s3 + $0x4] sm:$0xf]
      %v2994 = vld [vmem:[%s3 + $0x8] sm:$0xf]
      %v2995 = vld [vmem:[%s3 + $0xc] sm:$0xf]
      %v2996 = vld [vmem:[%s3 + $0x10] sm:$0xf]
      %v2997 = vld [vmem:[%s3 + $0x14] sm:$0xf]
      %v2998 = vld [vmem:[%s3 + $0x18] sm:$0xf]
      %v2999 = vld [vmem:[%s3 + $0x1c] sm:$0xf]
      %v3000 = vld [vmem:[%s3 + $0x20] sm:$0xf]
      %v3010 = vunpack.c.l.b16 %v2992
      %v3011 = vunpack.c.l.b16 %v2993
      %v3012 = vunpack.c.l.b16 %v2994
      %v3013 = vunpack.c.l.b16 %v2995
      %v3014 = vunpack.c.l.b16 %v2996
      %v3015 = vunpack.c.l.b16 %v2997
      %v3016 = vunpack.c.l.b16 %v2998
      %v3017 = vunpack.c.l.b16 %v2999
      %v3018 = vunpack.c.l.b16 %v3000
      %v3019 = vpack.c.b16 %v3011, %v3010
      %v3020 = vpack.c.b16 %v3013, %v3012
      %v3021 = vpack.c.b16 %v3015, %v3014
      %v3022 = vpack.c.b16 %v3017, %v3016
      %v3023 = vpack.c.b16 %v3018, %v3018
      %vm3028 = vcmask 588800
      %v3030 = vsel %vm3028, %v2976, 0
      %v3033 = vsel %vm3028, %v2977, 0
      %v3036 = vsel %vm3028, %v2978, 0
      %v3039 = vsel %vm3028, %v2979, 0
      %v3042 = vsel %vm3028, %v2980, 0
      %v3045 = vsel %vm3028, %v2981, 0
      %v3048 = vsel %vm3028, %v2982, 0
      %v3051 = vsel %vm3028, %v2983, 0
      %v3054 = vsel %vm3028, %v2984, 0
      %v3057 = vsel %vm3028, %v2985, 0
      %v3060 = vsel %vm3028, %v2986, 0
      %v3063 = vsel %vm3028, %v2987, 0
      %v3066 = vsel %vm3028, %v2988, 0
      %v3069 = vsel %vm3028, %v2989, 0
      %v3072 = vsel %vm3028, %v2990, 0
      %v3075 = vsel %vm3028, %v2991, 0
      %vm3077 = vcmask 1043456
      %v3079 = vsel %vm3077, %v3023, 0
      %3081 = vmatprep.subr.bf16.mxu0 0
      %3082 = vmatpush1.bf16.msra.mxu0 0
      %3083 = vmatprep.subr.bf16.mxu0 0
      %3084 = vmatpush1.bf16.msra.mxu0 0
      %3085 = vmatprep.subr.bf16.mxu0 0
      %3086 = vmatpush1.bf16.msra.mxu0 0
      %3087 = vmatprep.subr.bf16.mxu0 0
      %3088 = vmatpush1.bf16.msra.mxu0 %v3079
      %3089 = vmatprep.subr.bf16.mxu0 0
      %3090 = vmatpush1.bf16.msra.mxu0 %v3022
      %3091 = vmatprep.subr.bf16.mxu0 0
      %3092 = vmatpush1.bf16.msra.mxu0 %v3021
      %3093 = vmatprep.subr.bf16.mxu0 0
      %3094 = vmatpush1.bf16.msra.mxu0 %v3020
      %3095 = vmatprep.subr.bf16.mxu0 0
      %3096 = vmatpush1.bf16.msra.mxu0 %v3019
      %3097 = vmatprep.subr.bf16.mxu0 0
      %3098 = vmatpush2.bf16.msra.mxu0 0
      %3099 = vmatprep.subr.bf16.mxu0 0
      %3100 = vmatpush2.bf16.msra.mxu0 0
      %3101 = vmatprep.subr.bf16.mxu0 0
      %3102 = vmatpush2.bf16.msra.mxu0 0
      %3103 = vmatprep.subr.bf16.mxu0 0
      %3104 = vmatpush2.bf16.msra.mxu0 0
      %3105 = vmatprep.subr.bf16.mxu0 0
      %3106 = vmatpush2.bf16.msra.mxu0 0
      %3107 = vmatprep.subr.bf16.mxu0 0
      %3108 = vmatpush2.bf16.msra.mxu0 0
      %3109 = vmatprep.subr.bf16.mxu0 0
      %3110 = vmatpush2.bf16.msra.mxu0 0
      %3111 = vmatprep.subr.bf16.mxu0 0
      %3112 = vmatpush2.bf16.msra.mxu0 0
      %3113 = vmatprep.mubr.bf16.mxu0 0
      %3114 = vmatmul.mubr.bf16.gmra.mxu0 %v3030
      %v3115 = vpop.f32.mrf.mxu0
      %v3116 = vadd.f32 0.0, %v3115
      %v3117 = vpop.f32.mrf.mxu0
      %v3118 = vpop.f32.mrf.mxu0
      %v3119 = vadd.f32 0.0, %v3118
      %v3120 = vpop.f32.mrf.mxu0
      %3121 = vmatprep.mubr.bf16.mxu0 0
      %3122 = vmatmul.mubr.bf16.gmra.mxu0 %v3033
      %v3123 = vpop.f32.mrf.mxu0
      %v3124 = vadd.f32 0.0, %v3123
      %v3125 = vpop.f32.mrf.mxu0
      %v3126 = vpop.f32.mrf.mxu0
      %v3127 = vadd.f32 0.0, %v3126
      %v3128 = vpop.f32.mrf.mxu0
      %3129 = vmatprep.mubr.bf16.mxu0 0
      %3130 = vmatmul.mubr.bf16.gmra.mxu0 %v3036
      %v3131 = vpop.f32.mrf.mxu0
      %v3132 = vadd.f32 0.0, %v3131
      %v3133 = vpop.f32.mrf.mxu0
      %v3134 = vpop.f32.mrf.mxu0
      %v3135 = vadd.f32 0.0, %v3134
      %v3136 = vpop.f32.mrf.mxu0
      %3137 = vmatprep.mubr.bf16.mxu0 0
      %3138 = vmatmul.mubr.bf16.gmra.mxu0 %v3039
      %v3139 = vpop.f32.mrf.mxu0
      %v3140 = vadd.f32 0.0, %v3139
      %v3141 = vpop.f32.mrf.mxu0
      %v3142 = vpop.f32.mrf.mxu0
      %v3143 = vadd.f32 0.0, %v3142
      %v3144 = vpop.f32.mrf.mxu0
      %3145 = vmatprep.mubr.bf16.mxu0 0
      %3146 = vmatmul.mubr.bf16.gmra.mxu0 %v3042
      %v3147 = vpop.f32.mrf.mxu0
      %v3148 = vadd.f32 0.0, %v3147
      %v3149 = vpop.f32.mrf.mxu0
      %v3150 = vpop.f32.mrf.mxu0
      %v3151 = vadd.f32 0.0, %v3150
      %v3152 = vpop.f32.mrf.mxu0
      %3153 = vmatprep.mubr.bf16.mxu0 0
      %3154 = vmatmul.mubr.bf16.gmra.mxu0 %v3045
      %v3155 = vpop.f32.mrf.mxu0
      %v3156 = vadd.f32 0.0, %v3155
      %v3157 = vpop.f32.mrf.mxu0
      %v3158 = vpop.f32.mrf.mxu0
      %v3159 = vadd.f32 0.0, %v3158
      %v3160 = vpop.f32.mrf.mxu0
      %3161 = vmatprep.mubr.bf16.mxu0 0
      %3162 = vmatmul.mubr.bf16.gmra.mxu0 %v3048
      %v3163 = vpop.f32.mrf.mxu0
      %v3164 = vadd.f32 0.0, %v3163
      %v3165 = vpop.f32.mrf.mxu0
      %v3166 = vpop.f32.mrf.mxu0
      %v3167 = vadd.f32 0.0, %v3166
      %v3168 = vpop.f32.mrf.mxu0
      %3169 = vmatprep.mubr.bf16.mxu0 0
      %3170 = vmatmul.mubr.bf16.gmra.mxu0 %v3051
      %v3171 = vpop.f32.mrf.mxu0
      %v3172 = vadd.f32 0.0, %v3171
      %v3173 = vpop.f32.mrf.mxu0
      %v3174 = vpop.f32.mrf.mxu0
      %v3175 = vadd.f32 0.0, %v3174
      %v3176 = vpop.f32.mrf.mxu0
      %3177 = vmatprep.mubr.bf16.mxu0 0
      %3178 = vmatmul.mubr.bf16.gmra.mxu0 %v3054
      %v3179 = vpop.f32.mrf.mxu0
      %v3180 = vadd.f32 0.0, %v3179
      %v3181 = vpop.f32.mrf.mxu0
      %v3182 = vpop.f32.mrf.mxu0
      %v3183 = vadd.f32 0.0, %v3182
      %v3184 = vpop.f32.mrf.mxu0
      %3185 = vmatprep.mubr.bf16.mxu0 0
      %3186 = vmatmul.mubr.bf16.gmra.mxu0 %v3057
      %v3187 = vpop.f32.mrf.mxu0
      %v3188 = vadd.f32 0.0, %v3187
      %v3189 = vpop.f32.mrf.mxu0
      %v3190 = vpop.f32.mrf.mxu0
      %v3191 = vadd.f32 0.0, %v3190
      %v3192 = vpop.f32.mrf.mxu0
      %3193 = vmatprep.mubr.bf16.mxu0 0
      %3194 = vmatmul.mubr.bf16.gmra.mxu0 %v3060
      %v3195 = vpop.f32.mrf.mxu0
      %v3196 = vadd.f32 0.0, %v3195
      %v3197 = vpop.f32.mrf.mxu0
      %v3198 = vpop.f32.mrf.mxu0
      %v3199 = vadd.f32 0.0, %v3198
      %v3200 = vpop.f32.mrf.mxu0
      %3201 = vmatprep.mubr.bf16.mxu0 0
      %3202 = vmatmul.mubr.bf16.gmra.mxu0 %v3063
      %v3203 = vpop.f32.mrf.mxu0
      %v3204 = vadd.f32 0.0, %v3203
      %v3205 = vpop.f32.mrf.mxu0
      %v3206 = vpop.f32.mrf.mxu0
      %v3207 = vadd.f32 0.0, %v3206
      %v3208 = vpop.f32.mrf.mxu0
      %3209 = vmatprep.mubr.bf16.mxu0 0
      %3210 = vmatmul.mubr.bf16.gmra.mxu0 %v3066
      %v3211 = vpop.f32.mrf.mxu0
      %v3212 = vadd.f32 0.0, %v3211
      %v3213 = vpop.f32.mrf.mxu0
      %v3214 = vpop.f32.mrf.mxu0
      %v3215 = vadd.f32 0.0, %v3214
      %v3216 = vpop.f32.mrf.mxu0
      %3217 = vmatprep.mubr.bf16.mxu0 0
      %3218 = vmatmul.mubr.bf16.gmra.mxu0 %v3069
      %v3219 = vpop.f32.mrf.mxu0
      %v3220 = vadd.f32 0.0, %v3219
      %v3221 = vpop.f32.mrf.mxu0
      %v3222 = vpop.f32.mrf.mxu0
      %v3223 = vadd.f32 0.0, %v3222
      %v3224 = vpop.f32.mrf.mxu0
      %3225 = vmatprep.mubr.bf16.mxu0 0
      %3226 = vmatmul.mubr.bf16.gmra.mxu0 %v3072
      %v3227 = vpop.f32.mrf.mxu0
      %v3228 = vadd.f32 0.0, %v3227
      %v3229 = vpop.f32.mrf.mxu0
      %v3230 = vpop.f32.mrf.mxu0
      %v3231 = vadd.f32 0.0, %v3230
      %v3232 = vpop.f32.mrf.mxu0
      %3233 = vmatprep.mubr.bf16.mxu0 0
      %3234 = vmatmul.mubr.bf16.gmra.mxu0 %v3075
      %v3235 = vpop.f32.mrf.mxu0
      %v3236 = vadd.f32 0.0, %v3235
      %v3237 = vpop.f32.mrf.mxu0
      %v3238 = vpop.f32.mrf.mxu0
      %v3239 = vadd.f32 0.0, %v3238
      %v3240 = vpop.f32.mrf.mxu0
      %3241 = vdwg.mxu0
      %v3260 = vunpack.c.l.b16 %v1586
      %v3261 = vunpack.c.l.b16 %v1587
      %v3262 = vunpack.c.l.b16 %v1588
      %v3263 = vunpack.c.l.b16 %v1589
      %v3264 = vunpack.c.l.b16 %v1590
      %v3265 = vunpack.c.l.b16 %v1591
      %v3266 = vunpack.c.l.b16 %v1592
      %v3267 = vunpack.c.l.b16 %v1593
      %v3268 = vunpack.c.l.b16 %v1594
      %v3269 = vunpack.c.l.b16 %v1595
      %v3270 = vunpack.c.l.b16 %v1596
      %v3271 = vunpack.c.l.b16 %v1597
      %v3272 = vunpack.c.l.b16 %v1598
      %v3273 = vunpack.c.l.b16 %v1599
      %v3274 = vunpack.c.l.b16 %v1600
      %v3275 = vunpack.c.l.b16 %v1601
      %v3276 = vunpack.c.l.b16 %v1602
      %v3277 = vunpack.c.l.b16 %v1603
      %v3278 = vpack.c.b16 %v3261, %v3260
      %v3279 = vpack.c.b16 %v3263, %v3262
      %v3280 = vpack.c.b16 %v3265, %v3264
      %v3281 = vpack.c.b16 %v3267, %v3266
      %v3282 = vpack.c.b16 %v3269, %v3268
      %v3283 = vpack.c.b16 %v3271, %v3270
      %v3284 = vpack.c.b16 %v3273, %v3272
      %v3285 = vpack.c.b16 %v3275, %v3274
      %v3286 = vpack.c.b16 %v3277, %v3276
      %v3297 = vsel %vm1323, %v1555, 0
      %v3300 = vsel %vm1323, %v1557, 0
      %v3303 = vsel %vm1323, %v1559, 0
      %v3306 = vsel %vm1323, %v1561, 0
      %v3309 = vsel %vm1323, %v1563, 0
      %v3312 = vsel %vm1323, %v1565, 0
      %v3315 = vsel %vm1323, %v1567, 0
      %v3318 = vsel %vm1323, %v1569, 0
      %v3321 = vsel %vm1323, %v1571, 0
      %v3324 = vsel %vm1323, %v1573, 0
      %v3327 = vsel %vm1323, %v1575, 0
      %v3330 = vsel %vm1323, %v1577, 0
      %v3333 = vsel %vm1323, %v1579, 0
      %v3336 = vsel %vm1323, %v1581, 0
      %v3339 = vsel %vm1323, %v1583, 0
      %v3342 = vsel %vm1323, %v1585, 0
      %3344 = vmatprep.subr.bf16.mxu0 0
      %3345 = vmatpush1.bf16.msra.mxu0 %v3285
      %3346 = vmatprep.subr.bf16.mxu0 0
      %3347 = vmatpush1.bf16.msra.mxu0 %v3284
      %3348 = vmatprep.subr.bf16.mxu0 0
      %3349 = vmatpush1.bf16.msra.mxu0 %v3283
      %3350 = vmatprep.subr.bf16.mxu0 0
      %3351 = vmatpush1.bf16.msra.mxu0 %v3282
      %3352 = vmatprep.subr.bf16.mxu0 0
      %3353 = vmatpush1.bf16.msra.mxu0 %v3281
      %3354 = vmatprep.subr.bf16.mxu0 0
      %3355 = vmatpush1.bf16.msra.mxu0 %v3280
      %3356 = vmatprep.subr.bf16.mxu0 0
      %3357 = vmatpush1.bf16.msra.mxu0 %v3279
      %3358 = vmatprep.subr.bf16.mxu0 0
      %3359 = vmatpush1.bf16.msra.mxu0 %v3278
      %3360 = vmatprep.subr.bf16.mxu0 0
      %3361 = vmatpush2.bf16.msra.mxu0 0
      %3362 = vmatprep.subr.bf16.mxu0 0
      %3363 = vmatpush2.bf16.msra.mxu0 0
      %3364 = vmatprep.subr.bf16.mxu0 0
      %3365 = vmatpush2.bf16.msra.mxu0 0
      %3366 = vmatprep.subr.bf16.mxu0 0
      %3367 = vmatpush2.bf16.msra.mxu0 0
      %3368 = vmatprep.subr.bf16.mxu0 0
      %3369 = vmatpush2.bf16.msra.mxu0 0
      %3370 = vmatprep.subr.bf16.mxu0 0
      %3371 = vmatpush2.bf16.msra.mxu0 0
      %3372 = vmatprep.subr.bf16.mxu0 0
      %3373 = vmatpush2.bf16.msra.mxu0 0
      %3374 = vmatprep.subr.bf16.mxu0 0
      %3375 = vmatpush2.bf16.msra.mxu0 %v3286
      %3376 = vmatprep.mubr.bf16.mxu0 %v3297
      %3377 = vmatmul.mubr.bf16.gmra.mxu0 %v1554
      %v3378 = vpop.f32.mrf.mxu0
      %v3379 = vadd.f32 %v3116, %v3378
      %v3380 = vpop.f32.mrf.mxu0
      %v3381 = vpop.f32.mrf.mxu0
      %v3382 = vadd.f32 %v3119, %v3381
      %v3383 = vpop.f32.mrf.mxu0
      %3384 = vmatprep.mubr.bf16.mxu0 %v3300
      %3385 = vmatmul.mubr.bf16.gmra.mxu0 %v1556
      %v3386 = vpop.f32.mrf.mxu0
      %v3387 = vadd.f32 %v3124, %v3386
      %v3388 = vpop.f32.mrf.mxu0
      %v3389 = vpop.f32.mrf.mxu0
      %v3390 = vadd.f32 %v3127, %v3389
      %v3391 = vpop.f32.mrf.mxu0
      %3392 = vmatprep.mubr.bf16.mxu0 %v3303
      %3393 = vmatmul.mubr.bf16.gmra.mxu0 %v1558
      %v3394 = vpop.f32.mrf.mxu0
      %v3395 = vadd.f32 %v3132, %v3394
      %v3396 = vpop.f32.mrf.mxu0
      %v3397 = vpop.f32.mrf.mxu0
      %v3398 = vadd.f32 %v3135, %v3397
      %v3399 = vpop.f32.mrf.mxu0
      %3400 = vmatprep.mubr.bf16.mxu0 %v3306
      %3401 = vmatmul.mubr.bf16.gmra.mxu0 %v1560
      %v3402 = vpop.f32.mrf.mxu0
      %v3403 = vadd.f32 %v3140, %v3402
      %v3404 = vpop.f32.mrf.mxu0
      %v3405 = vpop.f32.mrf.mxu0
      %v3406 = vadd.f32 %v3143, %v3405
      %v3407 = vpop.f32.mrf.mxu0
      %3408 = vmatprep.mubr.bf16.mxu0 %v3309
      %3409 = vmatmul.mubr.bf16.gmra.mxu0 %v1562
      %v3410 = vpop.f32.mrf.mxu0
      %v3411 = vadd.f32 %v3148, %v3410
      %v3412 = vpop.f32.mrf.mxu0
      %v3413 = vpop.f32.mrf.mxu0
      %v3414 = vadd.f32 %v3151, %v3413
      %v3415 = vpop.f32.mrf.mxu0
      %3416 = vmatprep.mubr.bf16.mxu0 %v3312
      %3417 = vmatmul.mubr.bf16.gmra.mxu0 %v1564
      %v3418 = vpop.f32.mrf.mxu0
      %v3419 = vadd.f32 %v3156, %v3418
      %v3420 = vpop.f32.mrf.mxu0
      %v3421 = vpop.f32.mrf.mxu0
      %v3422 = vadd.f32 %v3159, %v3421
      %v3423 = vpop.f32.mrf.mxu0
      %3424 = vmatprep.mubr.bf16.mxu0 %v3315
      %3425 = vmatmul.mubr.bf16.gmra.mxu0 %v1566
      %v3426 = vpop.f32.mrf.mxu0
      %v3427 = vadd.f32 %v3164, %v3426
      %v3428 = vpop.f32.mrf.mxu0
      %v3429 = vpop.f32.mrf.mxu0
      %v3430 = vadd.f32 %v3167, %v3429
      %v3431 = vpop.f32.mrf.mxu0
      %3432 = vmatprep.mubr.bf16.mxu0 %v3318
      %3433 = vmatmul.mubr.bf16.gmra.mxu0 %v1568
      %v3434 = vpop.f32.mrf.mxu0
      %v3435 = vadd.f32 %v3172, %v3434
      %v3436 = vpop.f32.mrf.mxu0
      %v3437 = vpop.f32.mrf.mxu0
      %v3438 = vadd.f32 %v3175, %v3437
      %v3439 = vpop.f32.mrf.mxu0
      %3440 = vmatprep.mubr.bf16.mxu0 %v3321
      %3441 = vmatmul.mubr.bf16.gmra.mxu0 %v1570
      %v3442 = vpop.f32.mrf.mxu0
      %v3443 = vadd.f32 %v3180, %v3442
      %v3444 = vpop.f32.mrf.mxu0
      %v3445 = vpop.f32.mrf.mxu0
      %v3446 = vadd.f32 %v3183, %v3445
      %v3447 = vpop.f32.mrf.mxu0
      %3448 = vmatprep.mubr.bf16.mxu0 %v3324
      %3449 = vmatmul.mubr.bf16.gmra.mxu0 %v1572
      %v3450 = vpop.f32.mrf.mxu0
      %v3451 = vadd.f32 %v3188, %v3450
      %v3452 = vpop.f32.mrf.mxu0
      %v3453 = vpop.f32.mrf.mxu0
      %v3454 = vadd.f32 %v3191, %v3453
      %v3455 = vpop.f32.mrf.mxu0
      %3456 = vmatprep.mubr.bf16.mxu0 %v3327
      %3457 = vmatmul.mubr.bf16.gmra.mxu0 %v1574
      %v3458 = vpop.f32.mrf.mxu0
      %v3459 = vadd.f32 %v3196, %v3458
      %v3460 = vpop.f32.mrf.mxu0
      %v3461 = vpop.f32.mrf.mxu0
      %v3462 = vadd.f32 %v3199, %v3461
      %v3463 = vpop.f32.mrf.mxu0
      %3464 = vmatprep.mubr.bf16.mxu0 %v3330
      %3465 = vmatmul.mubr.bf16.gmra.mxu0 %v1576
      %v3466 = vpop.f32.mrf.mxu0
      %v3467 = vadd.f32 %v3204, %v3466
      %v3468 = vpop.f32.mrf.mxu0
      %v3469 = vpop.f32.mrf.mxu0
      %v3470 = vadd.f32 %v3207, %v3469
      %v3471 = vpop.f32.mrf.mxu0
      %3472 = vmatprep.mubr.bf16.mxu0 %v3333
      %3473 = vmatmul.mubr.bf16.gmra.mxu0 %v1578
      %v3474 = vpop.f32.mrf.mxu0
      %v3475 = vadd.f32 %v3212, %v3474
      %v3476 = vpop.f32.mrf.mxu0
      %v3477 = vpop.f32.mrf.mxu0
      %v3478 = vadd.f32 %v3215, %v3477
      %v3479 = vpop.f32.mrf.mxu0
      %3480 = vmatprep.mubr.bf16.mxu0 %v3336
      %3481 = vmatmul.mubr.bf16.gmra.mxu0 %v1580
      %v3482 = vpop.f32.mrf.mxu0
      %v3483 = vadd.f32 %v3220, %v3482
      %v3484 = vpop.f32.mrf.mxu0
      %v3485 = vpop.f32.mrf.mxu0
      %v3486 = vadd.f32 %v3223, %v3485
      %v3487 = vpop.f32.mrf.mxu0
      %3488 = vmatprep.mubr.bf16.mxu0 %v3339
      %3489 = vmatmul.mubr.bf16.gmra.mxu0 %v1582
      %v3490 = vpop.f32.mrf.mxu0
      %v3491 = vadd.f32 %v3228, %v3490
      %v3492 = vpop.f32.mrf.mxu0
      %v3493 = vpop.f32.mrf.mxu0
      %v3494 = vadd.f32 %v3231, %v3493
      %v3495 = vpop.f32.mrf.mxu0
      %3496 = vmatprep.mubr.bf16.mxu0 %v3342
      %3497 = vmatmul.mubr.bf16.gmra.mxu0 %v1584
      %v3498 = vpop.f32.mrf.mxu0
      %v3499 = vadd.f32 %v3236, %v3498
      %v3500 = vpop.f32.mrf.mxu0
      %v3501 = vpop.f32.mrf.mxu0
      %v3502 = vadd.f32 %v3239, %v3501
      %v3503 = vpop.f32.mrf.mxu0
      %3504 = vdwg.mxu0
      %v3505 = vld [vmem:[%s4] sm:$0x1]
      %v3507 = vlaneseq
      %v3508 = vshrl.u32 %v3507, 7
      %v3509 = vsub.s32 0, %v3508
      %v3510 = vrot.slane %v3505, %v3509
      %v3512 = vadd.f32 %v3379, %v3510
      %v3513 = vadd.f32 %v3382, %v3510
      %v3514 = vadd.f32 %v3387, %v3510
      %v3515 = vadd.f32 %v3390, %v3510
      %v3516 = vadd.f32 %v3395, %v3510
      %v3517 = vadd.f32 %v3398, %v3510
      %v3518 = vadd.f32 %v3403, %v3510
      %v3519 = vadd.f32 %v3406, %v3510
      %v3520 = vadd.f32 %v3411, %v3510
      %v3521 = vadd.f32 %v3414, %v3510
      %v3522 = vadd.f32 %v3419, %v3510
      %v3523 = vadd.f32 %v3422, %v3510
      %v3524 = vadd.f32 %v3427, %v3510
      %v3525 = vadd.f32 %v3430, %v3510
      %v3526 = vadd.f32 %v3435, %v3510
      %v3527 = vadd.f32 %v3438, %v3510
      %v3528 = vadd.f32 %v3443, %v3510
      %v3529 = vadd.f32 %v3446, %v3510
      %v3530 = vadd.f32 %v3451, %v3510
      %v3531 = vadd.f32 %v3454, %v3510
      %v3532 = vadd.f32 %v3459, %v3510
      %v3533 = vadd.f32 %v3462, %v3510
      %v3534 = vadd.f32 %v3467, %v3510
      %v3535 = vadd.f32 %v3470, %v3510
      %v3536 = vadd.f32 %v3475, %v3510
      %v3537 = vadd.f32 %v3478, %v3510
      %v3538 = vadd.f32 %v3483, %v3510
      %v3539 = vadd.f32 %v3486, %v3510
      %v3540 = vadd.f32 %v3491, %v3510
      %v3541 = vadd.f32 %v3494, %v3510
      %v3542 = vadd.f32 %v3499, %v3510
      %v3543 = vadd.f32 %v3502, %v3510
      %v3544 = vmax.f32 %v3512, 0.0
      %v3545 = vmax.f32 %v3513, 0.0
      %v3546 = vmax.f32 %v3514, 0.0
      %v3547 = vmax.f32 %v3515, 0.0
      %v3548 = vmax.f32 %v3516, 0.0
      %v3549 = vmax.f32 %v3517, 0.0
      %v3550 = vmax.f32 %v3518, 0.0
      %v3551 = vmax.f32 %v3519, 0.0
      %v3552 = vmax.f32 %v3520, 0.0
      %v3553 = vmax.f32 %v3521, 0.0
      %v3554 = vmax.f32 %v3522, 0.0
      %v3555 = vmax.f32 %v3523, 0.0
      %v3556 = vmax.f32 %v3524, 0.0
      %v3557 = vmax.f32 %v3525, 0.0
      %v3558 = vmax.f32 %v3526, 0.0
      %v3559 = vmax.f32 %v3527, 0.0
      %v3560 = vmax.f32 %v3528, 0.0
      %v3561 = vmax.f32 %v3529, 0.0
      %v3562 = vmax.f32 %v3530, 0.0
      %v3563 = vmax.f32 %v3531, 0.0
      %v3564 = vmax.f32 %v3532, 0.0
      %v3565 = vmax.f32 %v3533, 0.0
      %v3566 = vmax.f32 %v3534, 0.0
      %v3567 = vmax.f32 %v3535, 0.0
      %v3568 = vmax.f32 %v3536, 0.0
      %v3569 = vmax.f32 %v3537, 0.0
      %v3570 = vmax.f32 %v3538, 0.0
      %v3571 = vmax.f32 %v3539, 0.0
      %v3572 = vmax.f32 %v3540, 0.0
      %v3573 = vmax.f32 %v3541, 0.0
      %v3574 = vmax.f32 %v3542, 0.0
      %v3575 = vmax.f32 %v3543, 0.0
      %v3576 = vpack.c.bf16 %v3545, %v3544
      %v3577 = vpack.c.bf16 %v3547, %v3546
      %v3578 = vpack.c.bf16 %v3549, %v3548
      %v3579 = vpack.c.bf16 %v3551, %v3550
      %v3580 = vpack.c.bf16 %v3553, %v3552
      %v3581 = vpack.c.bf16 %v3555, %v3554
      %v3582 = vpack.c.bf16 %v3557, %v3556
      %v3583 = vpack.c.bf16 %v3559, %v3558
      %v3584 = vpack.c.bf16 %v3561, %v3560
      %v3585 = vpack.c.bf16 %v3563, %v3562
      %v3586 = vpack.c.bf16 %v3565, %v3564
      %v3587 = vpack.c.bf16 %v3567, %v3566
      %v3588 = vpack.c.bf16 %v3569, %v3568
      %v3589 = vpack.c.bf16 %v3571, %v3570
      %v3590 = vpack.c.bf16 %v3573, %v3572
      %v3591 = vpack.c.bf16 %v3575, %v3574
      %v3608 = vunpack.c.l.b16 %v3576
      %v3609 = vunpack.c.h.b16 %v3576
      %v3610 = vunpack.c.l.b16 %v3577
      %v3611 = vunpack.c.h.b16 %v3577
      %v3612 = vunpack.c.l.b16 %v3578
      %v3613 = vunpack.c.h.b16 %v3578
      %v3614 = vunpack.c.l.b16 %v3579
      %v3615 = vunpack.c.h.b16 %v3579
      %v3616 = vunpack.c.l.b16 %v3580
      %v3617 = vunpack.c.h.b16 %v3580
      %v3618 = vunpack.c.l.b16 %v3581
      %v3619 = vunpack.c.h.b16 %v3581
      %v3620 = vunpack.c.l.b16 %v3582
      %v3621 = vunpack.c.h.b16 %v3582
      %v3622 = vunpack.c.l.b16 %v3583
      %v3623 = vunpack.c.h.b16 %v3583
      %v3624 = vunpack.c.l.b16 %v3584
      %v3625 = vunpack.c.h.b16 %v3584
      %v3626 = vunpack.c.l.b16 %v3585
      %v3627 = vunpack.c.h.b16 %v3585
      %v3628 = vunpack.c.l.b16 %v3586
      %v3629 = vunpack.c.h.b16 %v3586
      %v3630 = vunpack.c.l.b16 %v3587
      %v3631 = vunpack.c.h.b16 %v3587
      %v3632 = vunpack.c.l.b16 %v3588
      %v3633 = vunpack.c.h.b16 %v3588
      %v3634 = vunpack.c.l.b16 %v3589
      %v3635 = vunpack.c.h.b16 %v3589
      %v3636 = vunpack.c.l.b16 %v3590
      %v3637 = vunpack.c.h.b16 %v3590
      %v3638 = vunpack.c.l.b16 %v3591
      %v3639 = vunpack.c.h.b16 %v3591
      %v3640 = vpack.c.b16 %v3608, %v3608
      %v3641 = vpack.c.b16 %v3609, %v3609
      %v3642 = vpack.c.b16 %v3610, %v3610
      %v3643 = vpack.c.b16 %v3611, %v3611
      %v3644 = vpack.c.b16 %v3612, %v3612
      %v3645 = vpack.c.b16 %v3613, %v3613
      %v3646 = vpack.c.b16 %v3614, %v3614
      %v3647 = vpack.c.b16 %v3615, %v3615
      %v3648 = vpack.c.b16 %v3616, %v3616
      %v3649 = vpack.c.b16 %v3617, %v3617
      %v3650 = vpack.c.b16 %v3618, %v3618
      %v3651 = vpack.c.b16 %v3619, %v3619
      %v3652 = vpack.c.b16 %v3620, %v3620
      %v3653 = vpack.c.b16 %v3621, %v3621
      %v3654 = vpack.c.b16 %v3622, %v3622
      %v3655 = vpack.c.b16 %v3623, %v3623
      %v3656 = vpack.c.b16 %v3624, %v3624
      %v3657 = vpack.c.b16 %v3625, %v3625
      %v3658 = vpack.c.b16 %v3626, %v3626
      %v3659 = vpack.c.b16 %v3627, %v3627
      %v3660 = vpack.c.b16 %v3628, %v3628
      %v3661 = vpack.c.b16 %v3629, %v3629
      %v3662 = vpack.c.b16 %v3630, %v3630
      %v3663 = vpack.c.b16 %v3631, %v3631
      %v3664 = vpack.c.b16 %v3632, %v3632
      %v3665 = vpack.c.b16 %v3633, %v3633
      %v3666 = vpack.c.b16 %v3634, %v3634
      %v3667 = vpack.c.b16 %v3635, %v3635
      %v3668 = vpack.c.b16 %v3636, %v3636
      %v3669 = vpack.c.b16 %v3637, %v3637
      %v3670 = vpack.c.b16 %v3638, %v3638
      %v3671 = vpack.c.b16 %v3639, %v3639
      %vm3704 = vcmask 60416
      %3705 = vst.msk [vmem:[%s268] sm:$0xf] %vm3704, %v3640
      %3706 = vst.msk [vmem:[%s268 + $0x4] sm:$0xf] %vm3704, %v3641
      %3707 = vst.msk [vmem:[%s268 + $0x8] sm:$0xf] %vm3704, %v3642
      %3708 = vst.msk [vmem:[%s268 + $0xc] sm:$0xf] %vm3704, %v3643
      %3709 = vst.msk [vmem:[%s268 + $0x10] sm:$0xf] %vm3704, %v3644
      %3710 = vst.msk [vmem:[%s268 + $0x14] sm:$0xf] %vm3704, %v3645
      %3711 = vst.msk [vmem:[%s268 + $0x18] sm:$0xf] %vm3704, %v3646
      %3712 = vst.msk [vmem:[%s268 + $0x1c] sm:$0xf] %vm3704, %v3647
      %3713 = vst.msk [vmem:[%s268 + $0x20] sm:$0xf] %vm3704, %v3648
      %3714 = vst.msk [vmem:[%s268 + $0x24] sm:$0xf] %vm3704, %v3649
      %3715 = vst.msk [vmem:[%s268 + $0x28] sm:$0xf] %vm3704, %v3650
      %3716 = vst.msk [vmem:[%s268 + $0x2c] sm:$0xf] %vm3704, %v3651
      %3717 = vst.msk [vmem:[%s268 + $0x30] sm:$0xf] %vm3704, %v3652
      %3718 = vst.msk [vmem:[%s268 + $0x34] sm:$0xf] %vm3704, %v3653
      %3719 = vst.msk [vmem:[%s268 + $0x38] sm:$0xf] %vm3704, %v3654
      %3720 = vst.msk [vmem:[%s268 + $0x3c] sm:$0xf] %vm3704, %v3655
      %3721 = vst.msk [vmem:[%s268 + $0x40] sm:$0xf] %vm3704, %v3656
      %3722 = vst.msk [vmem:[%s268 + $0x44] sm:$0xf] %vm3704, %v3657
      %3723 = vst.msk [vmem:[%s268 + $0x48] sm:$0xf] %vm3704, %v3658
      %3724 = vst.msk [vmem:[%s268 + $0x4c] sm:$0xf] %vm3704, %v3659
      %3725 = vst.msk [vmem:[%s268 + $0x50] sm:$0xf] %vm3704, %v3660
      %3726 = vst.msk [vmem:[%s268 + $0x54] sm:$0xf] %vm3704, %v3661
      %3727 = vst.msk [vmem:[%s268 + $0x58] sm:$0xf] %vm3704, %v3662
      %3728 = vst.msk [vmem:[%s268 + $0x5c] sm:$0xf] %vm3704, %v3663
      %3729 = vst.msk [vmem:[%s268 + $0x60] sm:$0xf] %vm3704, %v3664
      %3730 = vst.msk [vmem:[%s268 + $0x64] sm:$0xf] %vm3704, %v3665
      %3731 = vst.msk [vmem:[%s268 + $0x68] sm:$0xf] %vm3704, %v3666
      %3732 = vst.msk [vmem:[%s268 + $0x6c] sm:$0xf] %vm3704, %v3667
      %3733 = vst.msk [vmem:[%s268 + $0x70] sm:$0xf] %vm3704, %v3668
      %3734 = vst.msk [vmem:[%s268 + $0x74] sm:$0xf] %vm3704, %v3669
      %3735 = vst.msk [vmem:[%s268 + $0x78] sm:$0xf] %vm3704, %v3670
      %3736 = vst.msk [vmem:[%s268 + $0x7c] sm:$0xf] %vm3704, %v3671
      %s3737 = smul.u32 16, %s21
      %p3738 = scmp.lt.s32.totalorder %s20, 1
      %s3739 = scalar_select %p3738, %s20, 1
      %p3740 = scmp.lt.s32.totalorder %s3737, 15
      %s3741 = scalar_select %p3740, %s3737, 15
      %s3742 = smul.addr %s3741, 2
      %s3743 = smul.addr %s3739, 32
      %s3744 = sadd.s32 %s3742, %s3743
      %s3745 = smul.addr %s3744, 4
      %s3746 = scalar_lea.vmem %s5, %s3745
      // Predicated region
      $region41: #{deep_unet_forward.10} parent=39 // pred_check
        %p3747 = pneg %p163
      $region42: #{deep_unet_forward.10} parent=39 // pred_check_branch
        %3749 = sbr.rel (%p3747) target = $region44
      $region43: #{deep_unet_forward.10} parent=39 // pred_region
        %s3750 = smul.u32 16, %s21
      $region44: #{deep_unet_forward.10} parent=39 // pred_fallthru
        _
    $region40: #{deep_unet_forward.10} parent=5 // pred_fallthru
      _
    %p3751 = scmp.le.s32.totalorder 2, %s11
    // Predicated region
    $region45: #{deep_unet_forward.10} parent=5 // pred_check
      %p3752 = pneg %p3751
    $region46: #{deep_unet_forward.10} parent=5 // pred_check_branch
      %3754 = sbr.rel (%p3752) target = $region48
    $region47: #{deep_unet_forward.10} parent=5 // pred_region
      %s3755 = ssub.s32 %s11, 2
      // Predicated region
      $region49: #{deep_unet_forward.10} parent=47 // pred_check
        %p3756 = pneg %p169
      $region50: #{deep_unet_forward.10} parent=47 // pred_check_branch
        %3758 = sbr.rel (%p3756) target = $region52
      $region51: #{deep_unet_forward.10} parent=47 // pred_region
        %s3759 = smul.u32 16, %s23
        %p3760 = scmp.lt.s32.totalorder %s22, 1
        %s3761 = scalar_select %p3760, %s22, 1
        %p3762 = scmp.lt.s32.totalorder %s3759, 15
        %s3763 = scalar_select %p3762, %s3759, 15
        %s3764 = smul.addr %s3763, 2
        %s3765 = smul.addr %s3761, 32
        %s3766 = sadd.s32 %s3764, %s3765
        %s3767 = smul.addr %s3766, 4
        %s3768 = scalar_lea.vmem %s5, %s3767
      $region52: #{deep_unet_forward.10} parent=47 // pred_fallthru
        _
    $region48: #{deep_unet_forward.10} parent=5 // pred_fallthru
      _
  $region6: #{deep_unet_forward.10} parent=0 // loop_footer
    %s15 = sadd.s32 1, %s11
  $region7: #{deep_unet_forward.10} parent=0 // loop_footer_branch
    %10 = sbr.rel target = $region3
  $region8: #{deep_unet_forward.10} parent=0 // loop_exit
    _

</llo_original>
